<compile_context>
chip_gen: v7x
topology: tpu7x:2x2x1
jax: 0.10.0
libtpu: 0.0.40
codegen_flags: <defaults>
</compile_context>

<pallas_src>
import functools

import jax
import jax.numpy as jnp
from jax import lax
from jax.experimental import pallas as pl
from jax.experimental.pallas import tpu as pltpu


PAD = 128          # lane width; every feature dim (<=128 here) maps onto lanes
N_LAYERS = 9       # sc1..sc9 (tanh layers); sc10 is the linear head
N_CLIN = 5         # x_2..x_6 clinical covariates


def _round_up(x, m):
    return (x + m - 1) // m * m


def _layer_layout(dims):
    """Row offsets / padded fan-ins of each weight block inside the slab."""
    w_offs, w_kpads = [], []
    off = 0
    for i in range(N_LAYERS):
        kpad = _round_up(dims[i], 8)          # sublane-aligned fan-in
        w_offs.append(off)
        w_kpads.append(kpad)
        off += kpad
    misc_off = _round_up(off, 8)              # already a multiple of 8
    misc_rows = _round_up(N_LAYERS + 1, 8)    # 9 bias rows + 1 head row -> 16
    return tuple(w_offs), tuple(w_kpads), misc_off, misc_rows


def _cox_pasnet_kernel(x_ref, slab_ref, out_ref, *,
                       w_offs, w_kpads, misc_off, misc_rows):
    # x_ref:    (TB, 2*PAD)  cols [0:PAD] = padded x1,
    #                        cols [PAD+Out : PAD+Out+5] = clinical, rest zeros.
    # slab_ref: (misc_off + misc_rows, PAD) packed parameters:
    #           rows [w_offs[i] : w_offs[i]+w_kpads[i]] = W_{i+1} (zero-padded)
    #           row  misc_off + i                       = b_{i+1} (zero-padded)
    #           row  misc_off + 9                       = sc10 weights (w10a|w10b)
    h = x_ref[:, 0:PAD]                 # (TB, 128) padded x1
    clin = x_ref[:, PAD:2 * PAD]        # (TB, 128) clinical in lanes Out:Out+5

    misc = slab_ref[misc_off:misc_off + misc_rows, :]   # biases + head row

    # 9 fused matmul + bias + tanh layers, statically unrolled.
    # Contract only the (padded) fan-in lanes: fewer MXU rows per layer.
    for i in range(N_LAYERS):
        kpad = w_kpads[i]
        w = slab_ref[w_offs[i]:w_offs[i] + kpad, :]     # (Kpad_i, 128)
        b = misc[i:i + 1, :]                            # (1, 128) padded bias
        h = jnp.tanh(
            jnp.dot(h[:, :kpad], w,
                    preferred_element_type=jnp.float32,
                    precision=lax.Precision.HIGHEST) + b
        )

    # Head: lin_pred = concat(h, x2..x6) @ W10.  h is zero beyond Out_Nodes and
    # clin is zero outside [Out:Out+5], so (h + clin) * head_row summed over
    # lanes equals the concat-matmul exactly.  VPU mul + XLU reduce, no MXU.
    head_w = misc[N_LAYERS:N_LAYERS + 1, :]             # (1, 128)
    combo = h + clin
    out_ref[...] = jnp.sum(combo * head_w, axis=-1, keepdims=True)


def pack_inputs(x1, clinical, out_nodes):
    """Fuse x1 and clinical into one lane-padded (B, 2*PAD) array."""
    B, m = x1.shape
    c = clinical.shape[1]
    assert m <= PAD and out_nodes + c <= PAD
    x_in = jnp.zeros((B, 2 * PAD), jnp.float32)
    x_in = x_in.at[:, :m].set(x1)
    x_in = x_in.at[:, PAD + out_nodes:PAD + out_nodes + c].set(clinical)
    return x_in


def pack_params(params, dims, out_nodes):
    """Pack all weights/biases + the sc10 head into one compact f32 slab.

    Zero padding (columns >= fan_out, bias lanes >= fan_out, weight rows
    >= fan_in) is what keeps padded hidden lanes exactly zero in the kernel.
    """
    w_offs, w_kpads, misc_off, misc_rows = _layer_layout(dims)
    slab = jnp.zeros((misc_off + misc_rows, PAD), jnp.float32)
    for i in range(N_LAYERS):
        K, N = dims[i], dims[i + 1]
        slab = slab.at[w_offs[i]:w_offs[i] + K, :N].set(params[f"w{i + 1}"])
        slab = slab.at[misc_off + i, :N].set(params[f"b{i + 1}"][0])
    n_clin = params["w10b"].shape[0]
    assert out_nodes + n_clin <= PAD, "VPU head trick needs Out+n_clin <= 128"
    slab = slab.at[misc_off + N_LAYERS, :out_nodes].set(params["w10a"][:, 0])
    slab = slab.at[misc_off + N_LAYERS,
                   out_nodes:out_nodes + n_clin].set(params["w10b"][:, 0])
    return slab


def cox_pasnet_forward(x_in, slab, dims, out_nodes, *, tb=64):
    """x_in: (B, 2*PAD) packed input; slab: compact packed parameters."""
    B = x_in.shape[0]
    assert B % tb == 0 and tb % 8 == 0
    w_offs, w_kpads, misc_off, misc_rows = _layer_layout(dims)

    kernel = functools.partial(
        _cox_pasnet_kernel,
        w_offs=w_offs, w_kpads=w_kpads,
        misc_off=misc_off, misc_rows=misc_rows,
    )

    flops = (2 * B * sum(dims[i] * dims[i + 1] for i in range(N_LAYERS))
             + 2 * B * (out_nodes + N_CLIN))
    transcendentals = B * sum(dims[1:])          # one tanh per hidden output
    bytes_accessed = 4 * (x_in.size + slab.size + B)

    # Batch-parallel grid: each step handles TB samples; the slab block index
    # is constant across the grid so it is fetched once and re-used.  The
    # "parallel" semantic lets v7x shard batch tiles across its two TCs.
    return pl.pallas_call(
        kernel,
        out_shape=jax.ShapeDtypeStruct((B, 1), jnp.float32),
        grid_spec=pltpu.PrefetchScalarGridSpec(
            num_scalar_prefetch=0,
            grid=(B // tb,),
            in_specs=[
                pl.BlockSpec((tb, 2 * PAD), lambda i: (i, 0)),
                pl.BlockSpec(slab.shape, lambda i: (0, 0)),
            ],
            out_specs=pl.BlockSpec((tb, 1), lambda i: (i, 0)),
        ),
        compiler_params=pltpu.CompilerParams(
            dimension_semantics=("parallel",),
        ),
        cost_estimate=pl.CostEstimate(
            flops=flops,
            transcendentals=transcendentals,
            bytes_accessed=bytes_accessed,
        ),
    )(x_in, slab)


def init_params(key, dims, out_nodes):
    """Deterministic init mimicking nn.Linear default (uniform +/- 1/sqrt(fan_in))
    and sc10.weight.uniform_(-0.001, 0.001)."""
    params = {}
    keys = jax.random.split(key, 2 * N_LAYERS + 1)
    k_idx = 0
    for i in range(1, N_LAYERS + 1):
        fan_in, fan_out = dims[i - 1], dims[i]
        bound = 1.0 / (fan_in ** 0.5)
        params[f"w{i}"] = jax.random.uniform(
            keys[k_idx], (fan_in, fan_out), jnp.float32, -bound, bound)
        k_idx += 1
        params[f"b{i}"] = jax.random.uniform(
            keys[k_idx], (1, fan_out), jnp.float32, -bound, bound)
        k_idx += 1
    w10 = jax.random.uniform(
        keys[k_idx], (out_nodes + N_CLIN, 1), jnp.float32, -0.001, 0.001)
    params["w10a"] = w10[:out_nodes, :]   # applies to the MLP output
    params["w10b"] = w10[out_nodes:, :]   # applies to clinical covariates x2..x6
    return params


def reference_forward(x1, clinical, params):
    h = x1
    for i in range(1, N_LAYERS + 1):
        h = jnp.tanh(
            jnp.dot(h, params[f"w{i}"], precision=lax.Precision.HIGHEST)
            + params[f"b{i}"])
    return (jnp.dot(h, params["w10a"], precision=lax.Precision.HIGHEST)
            + jnp.dot(clinical, params["w10b"], precision=lax.Precision.HIGHEST))


if __name__ == "__main__":
    # Inference mode: do_m* dropout masks are all-ones no-ops in the PyTorch
    # module's eval path and are therefore omitted.
    B = 128            # batch raised so the MXU M dimension is actually used
    TB = 64            # two parallel batch tiles -> engages both v7x TCs
    MiRNA_Nodes = 32
    hidden = [32, 32, 32, 32, 16, 16, 16, 16]   # Hidden_Nodes_1..8
    Out_Nodes = 8
    dims = [MiRNA_Nodes] + hidden + [Out_Nodes]

    key = jax.random.PRNGKey(0)
    k_p, k_x1, k_c = jax.random.split(key, 3)

    params = init_params(k_p, dims, Out_Nodes)
    x1 = jax.random.normal(k_x1, (B, MiRNA_Nodes), jnp.float32)
    # x_2..x_6 are each (B, 1) clinical covariates; concatenated here as glue.
    clinical = jax.random.normal(k_c, (B, N_CLIN), jnp.float32)

    # Host-side packing (done once per parameter set / batch).
    x_in = pack_inputs(x1, clinical, Out_Nodes)
    slab = pack_params(params, dims, Out_Nodes)

    out = cox_pasnet_forward(x_in, slab, dims, Out_Nodes, tb=TB)
    out = jax.block_until_ready(out)

    ref = reference_forward(x1, clinical, params)
    assert out.shape == (B, 1)
    assert jnp.allclose(out, ref, atol=1e-5, rtol=1e-5)

    print("KERNEL_OK")
</pallas_src>

<mosaic_0001>
module attributes {stable_mosaic.version = 11 : i64} {
  func.func @_cox_pasnet_kernel(%arg0: i32, %arg1: memref<64x256xf32, #tpu.memory_space<vmem>>, %arg2: memref<240x128xf32, #tpu.memory_space<vmem>>, %arg3: memref<64x1xf32, #tpu.memory_space<vmem>>) attributes {dimension_semantics = [#tpu.dimension_semantics<parallel>], iteration_bounds = array<i64: 2>, scalar_prefetch = 0 : i64, scratch_operands = 0 : i64, tpu.core_type = #tpu.core_type<tc>, window_params = [{transform_indices = @transform_0, window_bounds = array<i64: 64, 256>}, {pipeline_mode = #tpu.pipeline_mode<synchronous>, transform_indices = @transform_1, window_bounds = array<i64: 240, 128>}, {transform_indices = @transform_2, window_bounds = array<i64: 64, 1>}]} {
    %c0 = arith.constant 0 : index
    %c0_0 = arith.constant 0 : index
    %0 = vector.load %arg1[%c0, %c0_0] : memref<64x256xf32, #tpu.memory_space<vmem>>, vector<64x128xf32>
    %c0_1 = arith.constant 0 : index
    %c128 = arith.constant 128 : index
    %1 = vector.load %arg1[%c0_1, %c128] : memref<64x256xf32, #tpu.memory_space<vmem>>, vector<64x128xf32>
    %c224 = arith.constant 224 : index
    %c0_2 = arith.constant 0 : index
    %2 = vector.load %arg2[%c224, %c0_2] : memref<240x128xf32, #tpu.memory_space<vmem>>, vector<16x128xf32>
    %c0_3 = arith.constant 0 : index
    %c0_4 = arith.constant 0 : index
    %3 = vector.load %arg2[%c0_3, %c0_4] : memref<240x128xf32, #tpu.memory_space<vmem>>, vector<32x128xf32>
    %4 = vector.extract_strided_slice %2 {offsets = [0, 0], sizes = [1, 128], strides = [1, 1]} : vector<16x128xf32> to vector<1x128xf32>
    %5 = vector.extract_strided_slice %0 {offsets = [0, 0], sizes = [64, 32], strides = [1, 1]} : vector<64x128xf32> to vector<64x32xf32>
    %cst = arith.constant dense<0.000000e+00> : vector<64x128xf32>
    %6 = tpu.matmul %5, %3, %cst {dimension_numbers = #tpu.dot_dimension_numbers<[1], [0], [0], [1], [0, 0, 1, 1], [], []>, precision = #tpu.contract_precision<fp32>} : vector<64x32xf32>, vector<32x128xf32>, vector<64x128xf32> -> vector<64x128xf32>
    %7 = vector.broadcast %4 : vector<1x128xf32> to vector<64x128xf32>
    %8 = arith.addf %6, %7 : vector<64x128xf32>
    %9 = math.tanh %8 : vector<64x128xf32>
    %c32 = arith.constant 32 : index
    %c0_5 = arith.constant 0 : index
    %10 = vector.load %arg2[%c32, %c0_5] : memref<240x128xf32, #tpu.memory_space<vmem>>, vector<32x128xf32>
    %11 = vector.extract_strided_slice %2 {offsets = [1, 0], sizes = [1, 128], strides = [1, 1]} : vector<16x128xf32> to vector<1x128xf32>
    %12 = vector.extract_strided_slice %9 {offsets = [0, 0], sizes = [64, 32], strides = [1, 1]} : vector<64x128xf32> to vector<64x32xf32>
    %cst_6 = arith.constant dense<0.000000e+00> : vector<64x128xf32>
    %13 = tpu.matmul %12, %10, %cst_6 {dimension_numbers = #tpu.dot_dimension_numbers<[1], [0], [0], [1], [0, 0, 1, 1], [], []>, precision = #tpu.contract_precision<fp32>} : vector<64x32xf32>, vector<32x128xf32>, vector<64x128xf32> -> vector<64x128xf32>
    %14 = vector.broadcast %11 : vector<1x128xf32> to vector<64x128xf32>
    %15 = arith.addf %13, %14 : vector<64x128xf32>
    %16 = math.tanh %15 : vector<64x128xf32>
    %c64 = arith.constant 64 : index
    %c0_7 = arith.constant 0 : index
    %17 = vector.load %arg2[%c64, %c0_7] : memref<240x128xf32, #tpu.memory_space<vmem>>, vector<32x128xf32>
    %18 = vector.extract_strided_slice %2 {offsets = [2, 0], sizes = [1, 128], strides = [1, 1]} : vector<16x128xf32> to vector<1x128xf32>
    %19 = vector.extract_strided_slice %16 {offsets = [0, 0], sizes = [64, 32], strides = [1, 1]} : vector<64x128xf32> to vector<64x32xf32>
    %cst_8 = arith.constant dense<0.000000e+00> : vector<64x128xf32>
    %20 = tpu.matmul %19, %17, %cst_8 {dimension_numbers = #tpu.dot_dimension_numbers<[1], [0], [0], [1], [0, 0, 1, 1], [], []>, precision = #tpu.contract_precision<fp32>} : vector<64x32xf32>, vector<32x128xf32>, vector<64x128xf32> -> vector<64x128xf32>
    %21 = vector.broadcast %18 : vector<1x128xf32> to vector<64x128xf32>
    %22 = arith.addf %20, %21 : vector<64x128xf32>
    %23 = math.tanh %22 : vector<64x128xf32>
    %c96 = arith.constant 96 : index
    %c0_9 = arith.constant 0 : index
    %24 = vector.load %arg2[%c96, %c0_9] : memref<240x128xf32, #tpu.memory_space<vmem>>, vector<32x128xf32>
    %25 = vector.extract_strided_slice %2 {offsets = [3, 0], sizes = [1, 128], strides = [1, 1]} : vector<16x128xf32> to vector<1x128xf32>
    %26 = vector.extract_strided_slice %23 {offsets = [0, 0], sizes = [64, 32], strides = [1, 1]} : vector<64x128xf32> to vector<64x32xf32>
    %cst_10 = arith.constant dense<0.000000e+00> : vector<64x128xf32>
    %27 = tpu.matmul %26, %24, %cst_10 {dimension_numbers = #tpu.dot_dimension_numbers<[1], [0], [0], [1], [0, 0, 1, 1], [], []>, precision = #tpu.contract_precision<fp32>} : vector<64x32xf32>, vector<32x128xf32>, vector<64x128xf32> -> vector<64x128xf32>
    %28 = vector.broadcast %25 : vector<1x128xf32> to vector<64x128xf32>
    %29 = arith.addf %27, %28 : vector<64x128xf32>
    %30 = math.tanh %29 : vector<64x128xf32>
    %c128_11 = arith.constant 128 : index
    %c0_12 = arith.constant 0 : index
    %31 = vector.load %arg2[%c128_11, %c0_12] : memref<240x128xf32, #tpu.memory_space<vmem>>, vector<32x128xf32>
    %32 = vector.extract_strided_slice %2 {offsets = [4, 0], sizes = [1, 128], strides = [1, 1]} : vector<16x128xf32> to vector<1x128xf32>
    %33 = vector.extract_strided_slice %30 {offsets = [0, 0], sizes = [64, 32], strides = [1, 1]} : vector<64x128xf32> to vector<64x32xf32>
    %cst_13 = arith.constant dense<0.000000e+00> : vector<64x128xf32>
    %34 = tpu.matmul %33, %31, %cst_13 {dimension_numbers = #tpu.dot_dimension_numbers<[1], [0], [0], [1], [0, 0, 1, 1], [], []>, precision = #tpu.contract_precision<fp32>} : vector<64x32xf32>, vector<32x128xf32>, vector<64x128xf32> -> vector<64x128xf32>
    %35 = vector.broadcast %32 : vector<1x128xf32> to vector<64x128xf32>
    %36 = arith.addf %34, %35 : vector<64x128xf32>
    %37 = math.tanh %36 : vector<64x128xf32>
    %c160 = arith.constant 160 : index
    %c0_14 = arith.constant 0 : index
    %38 = vector.load %arg2[%c160, %c0_14] : memref<240x128xf32, #tpu.memory_space<vmem>>, vector<16x128xf32>
    %39 = vector.extract_strided_slice %2 {offsets = [5, 0], sizes = [1, 128], strides = [1, 1]} : vector<16x128xf32> to vector<1x128xf32>
    %40 = vector.extract_strided_slice %37 {offsets = [0, 0], sizes = [64, 16], strides = [1, 1]} : vector<64x128xf32> to vector<64x16xf32>
    %cst_15 = arith.constant dense<0.000000e+00> : vector<64x128xf32>
    %41 = tpu.matmul %40, %38, %cst_15 {dimension_numbers = #tpu.dot_dimension_numbers<[1], [0], [0], [1], [0, 0, 1, 1], [], []>, precision = #tpu.contract_precision<fp32>} : vector<64x16xf32>, vector<16x128xf32>, vector<64x128xf32> -> vector<64x128xf32>
    %42 = vector.broadcast %39 : vector<1x128xf32> to vector<64x128xf32>
    %43 = arith.addf %41, %42 : vector<64x128xf32>
    %44 = math.tanh %43 : vector<64x128xf32>
    %c176 = arith.constant 176 : index
    %c0_16 = arith.constant 0 : index
    %45 = vector.load %arg2[%c176, %c0_16] : memref<240x128xf32, #tpu.memory_space<vmem>>, vector<16x128xf32>
    %46 = vector.extract_strided_slice %2 {offsets = [6, 0], sizes = [1, 128], strides = [1, 1]} : vector<16x128xf32> to vector<1x128xf32>
    %47 = vector.extract_strided_slice %44 {offsets = [0, 0], sizes = [64, 16], strides = [1, 1]} : vector<64x128xf32> to vector<64x16xf32>
    %cst_17 = arith.constant dense<0.000000e+00> : vector<64x128xf32>
    %48 = tpu.matmul %47, %45, %cst_17 {dimension_numbers = #tpu.dot_dimension_numbers<[1], [0], [0], [1], [0, 0, 1, 1], [], []>, precision = #tpu.contract_precision<fp32>} : vector<64x16xf32>, vector<16x128xf32>, vector<64x128xf32> -> vector<64x128xf32>
    %49 = vector.broadcast %46 : vector<1x128xf32> to vector<64x128xf32>
    %50 = arith.addf %48, %49 : vector<64x128xf32>
    %51 = math.tanh %50 : vector<64x128xf32>
    %c192 = arith.constant 192 : index
    %c0_18 = arith.constant 0 : index
    %52 = vector.load %arg2[%c192, %c0_18] : memref<240x128xf32, #tpu.memory_space<vmem>>, vector<16x128xf32>
    %53 = vector.extract_strided_slice %2 {offsets = [7, 0], sizes = [1, 128], strides = [1, 1]} : vector<16x128xf32> to vector<1x128xf32>
    %54 = vector.extract_strided_slice %51 {offsets = [0, 0], sizes = [64, 16], strides = [1, 1]} : vector<64x128xf32> to vector<64x16xf32>
    %cst_19 = arith.constant dense<0.000000e+00> : vector<64x128xf32>
    %55 = tpu.matmul %54, %52, %cst_19 {dimension_numbers = #tpu.dot_dimension_numbers<[1], [0], [0], [1], [0, 0, 1, 1], [], []>, precision = #tpu.contract_precision<fp32>} : vector<64x16xf32>, vector<16x128xf32>, vector<64x128xf32> -> vector<64x128xf32>
    %56 = vector.broadcast %53 : vector<1x128xf32> to vector<64x128xf32>
    %57 = arith.addf %55, %56 : vector<64x128xf32>
    %58 = math.tanh %57 : vector<64x128xf32>
    %c208 = arith.constant 208 : index
    %c0_20 = arith.constant 0 : index
    %59 = vector.load %arg2[%c208, %c0_20] : memref<240x128xf32, #tpu.memory_space<vmem>>, vector<16x128xf32>
    %60 = vector.extract_strided_slice %2 {offsets = [8, 0], sizes = [1, 128], strides = [1, 1]} : vector<16x128xf32> to vector<1x128xf32>
    %61 = vector.extract_strided_slice %58 {offsets = [0, 0], sizes = [64, 16], strides = [1, 1]} : vector<64x128xf32> to vector<64x16xf32>
    %cst_21 = arith.constant dense<0.000000e+00> : vector<64x128xf32>
    %62 = tpu.matmul %61, %59, %cst_21 {dimension_numbers = #tpu.dot_dimension_numbers<[1], [0], [0], [1], [0, 0, 1, 1], [], []>, precision = #tpu.contract_precision<fp32>} : vector<64x16xf32>, vector<16x128xf32>, vector<64x128xf32> -> vector<64x128xf32>
    %63 = vector.broadcast %60 : vector<1x128xf32> to vector<64x128xf32>
    %64 = arith.addf %62, %63 : vector<64x128xf32>
    %65 = math.tanh %64 : vector<64x128xf32>
    %66 = vector.extract_strided_slice %2 {offsets = [9, 0], sizes = [1, 128], strides = [1, 1]} : vector<16x128xf32> to vector<1x128xf32>
    %67 = arith.addf %65, %1 : vector<64x128xf32>
    %68 = vector.broadcast %66 : vector<1x128xf32> to vector<64x128xf32>
    %69 = arith.mulf %67, %68 : vector<64x128xf32>
    %cst_22 = arith.constant dense<0.000000e+00> : vector<64xf32>
    %70 = vector.multi_reduction <add>, %69, %cst_22 [1] : vector<64x128xf32> to vector<64xf32>
    %71 = vector.shape_cast %70 : vector<64xf32> to vector<64x1xf32>
    %c0_23 = arith.constant 0 : index
    %c0_24 = arith.constant 0 : index
    %72 = vector.load %arg3[%c0_23, %c0_24] : memref<64x1xf32, #tpu.memory_space<vmem>>, vector<64x1xf32>
    tpu.vector_store %arg3[%c0_23, %c0_24], %71 {strides = array<i32>} : memref<64x1xf32, #tpu.memory_space<vmem>>, vector<64x1xf32>,
    return
  }
  func.func @transform_0(%arg0: i32) -> (i32, i32) {
    %c0_i32 = arith.constant 0 : i32
    %c0_i32_0 = arith.constant 0 : i32
    return %arg0, %c0_i32 : i32, i32
  }
  func.func @transform_1(%arg0: i32) -> (i32, i32) {
    %c0_i32 = arith.constant 0 : i32
    %c0_i32_0 = arith.constant 0 : i32
    %c0_i32_1 = arith.constant 0 : i32
    return %c0_i32, %c0_i32_0 : i32, i32
  }
  func.func @transform_2(%arg0: i32) -> (i32, i32) {
    %c0_i32 = arith.constant 0 : i32
    %c0_i32_0 = arith.constant 0 : i32
    return %arg0, %c0_i32 : i32, i32
  }
}

</mosaic_0001>

<llo_original>
// kernel: tpu_custom_call.1
$region0: #{tpu_custom_call.1}
  #allocation0 [shape = 'u32[]', space=smem, size = 0x4, offset = 0x4, fixed_abs, tag = 'smem constant byte address 0x4 - core index']
  #allocation1 [shape = 'u32[144,128]{1,0:T(1,128)}', space=vmem, size = 0x12000, scoped, tag = 'internal scratch']
  %s0 = inlined_call_operand.hbm [shape: f32[128,256], index: 0, kind: input, shape index: {}]
  %s1 = inlined_call_operand.hbm [shape: f32[240,128], index: 1, kind: input, shape index: {}]
  %s2 = inlined_call_operand.vmem [shape: f32[128,1], index: 2, kind: output, shape index: {}]
  %s3 = sld [smem:[#allocation0]]
  $region49: #{tpu_custom_call.1} parent=0
    _
  %s5 = ssub.s32 1, %s3
  %s6 = scalar_select 0, %s5, %s3
  $region1: #{tpu_custom_call.1} parent=0
    #allocation2 [shape = 'u8[131072]{0}', space=vmem, size = 0x20000, scoped, tag = 'input window, operand 0']
    #allocation3 [shape = 's32[2]{0}', space=sflag, size = 0x8, scoped, tag = 'scoped memory for tpu_custom_call.1']
    #allocation4 [shape = 'u8[122880]{0}', space=vmem, size = 0x1e000, scoped, tag = 'input window, operand 1, single buffered']
    #allocation5 [shape = 's32[1]{0}', space=sflag, size = 0x4, scoped, tag = 'scoped memory for tpu_custom_call.1']
    %7 = vsyncpa [#allocation3], 0
    %s8 = scalar_lea.sflag [#allocation3], 1
    %9 = vsyncpa %s8, 0
    %10 = vsyncpa [#allocation5], 0
    loop: start=0, step=1, limit=4
    $region2: #{tpu_custom_call.1} parent=1 // loop_pre_header
      _
    $region3: #{tpu_custom_call.1} parent=1 // loop_header
      %s12 = sphi 0, %s16
      %p13 = scmp.ge.s32.totalorder %s12, 4
      %s22 = sphi 0, %s24
      %s25 = sphi 0, %s22
      %s26 = sphi 0, %s25
      %s42 = sphi 0, %s26
      %s46 = sphi 0, %s46
      %s48 = sphi 0, %s46
      %s49 = sphi 0, %s48
      %s63 = sphi 0, %s49
      %s69 = sphi 0, %s71
      %s72 = sphi 0, %s69
      %s73 = sphi 0, %s72
      %s89 = sphi 0, %s73
    $region4: #{tpu_custom_call.1} parent=1 // loop_header_branch
      %15 = sbr.rel (%p13) target = $region8
    $region5: #{tpu_custom_call.1} parent=1 // loop_body
      %s17 = ssub.s32 %s12, 1
      %s18 = ssub.s32 %s12, 2
      %s19 = sadd.s32 %s12, 1
      %s20 = ssub.s32 %s12, %s19
      %p21 = scmp.eq.s32.totalorder %s20, 0
      %s23 = sadd.s32 %s22, 1
      %s24 = scalar_select %p21, %s22, %s23
      %p27 = pneg %p21
      %p28 = scmp.eq.s32.totalorder %s12, 1
      %p29 = por %p27, %p28
      %p30 = scmp.ne.s32.totalorder %s22, %s25
      %p31 = scmp.eq.s32.totalorder %s12, 0
      %p32 = por %p30, %p31
      %p33 = scmp.ne.s32.totalorder %s22, %s25
      %p34 = scmp.eq.s32.totalorder %s17, 1
      %p35 = por %p33, %p34
      %p36 = scmp.ne.s32.totalorder %s25, %s26
      %p37 = scmp.eq.s32.totalorder %s17, 0
      %p38 = por %p36, %p37
      %p39 = scmp.ne.s32.totalorder %s25, %s26
      %p40 = scmp.eq.s32.totalorder %s18, 1
      %p41 = por %p39, %p40
      %p43 = scmp.ne.s32.totalorder %s26, %s42
      %p44 = scmp.eq.s32.totalorder %s18, 0
      %p45 = por %p43, %p44
      %s47 = sadd.s32 %s46, 1
      %p50 = scmp.eq.s32.totalorder %s12, 1
      %p51 = scmp.ne.s32.totalorder %s46, %s48
      %p52 = scmp.eq.s32.totalorder %s12, 0
      %p53 = por %p51, %p52
      %p54 = scmp.ne.s32.totalorder %s46, %s48
      %p55 = scmp.eq.s32.totalorder %s17, 1
      %p56 = por %p54, %p55
      %p57 = scmp.ne.s32.totalorder %s48, %s49
      %p58 = scmp.eq.s32.totalorder %s17, 0
      %p59 = por %p57, %p58
      %p60 = scmp.ne.s32.totalorder %s48, %s49
      %p61 = scmp.eq.s32.totalorder %s18, 1
      %p62 = por %p60, %p61
      %p64 = scmp.ne.s32.totalorder %s49, %s63
      %p65 = scmp.eq.s32.totalorder %s18, 0
      %p66 = por %p64, %p65
      %s67 = ssub.s32 %s12, %s19
      %p68 = scmp.eq.s32.totalorder %s67, 0
      %s70 = sadd.s32 %s69, 1
      %s71 = scalar_select %p68, %s69, %s70
      %p74 = pneg %p68
      %p75 = scmp.eq.s32.totalorder %s12, 1
      %p76 = por %p74, %p75
      %p77 = scmp.ne.s32.totalorder %s69, %s72
      %p78 = scmp.eq.s32.totalorder %s12, 0
      %p79 = por %p77, %p78
      %p80 = scmp.ne.s32.totalorder %s69, %s72
      %p81 = scmp.eq.s32.totalorder %s17, 1
      %p82 = por %p80, %p81
      %p83 = scmp.ne.s32.totalorder %s72, %s73
      %p84 = scmp.eq.s32.totalorder %s17, 0
      %p85 = por %p83, %p84
      %p86 = scmp.ne.s32.totalorder %s72, %s73
      %p87 = scmp.eq.s32.totalorder %s18, 1
      %p88 = por %p86, %p87
      %p90 = scmp.ne.s32.totalorder %s73, %s89
      %p91 = scmp.eq.s32.totalorder %s18, 0
      %p92 = por %p90, %p91
      %p93 = scmp.le.s32.totalorder 1, %s12
      %p94 = scmp.lt.s32.totalorder %s12, 3
      %p95 = pnand %p93, %p94
      %p96 = pneg %p95
      // Predicated region
      $region9: #{tpu_custom_call.1} parent=5 // pred_check
        _
      $region10: #{tpu_custom_call.1} parent=5 // pred_check_branch
        %98 = sbr.rel (%p95) target = $region12
      $region11: #{tpu_custom_call.1} parent=5 // pred_region
        %s99 = ssub.s32 %s12, 1
        // Predicated region
        $region13: #{tpu_custom_call.1} parent=11 // pred_check
          %p100 = pneg %p59
        $region14: #{tpu_custom_call.1} parent=11 // pred_check_branch
          %102 = sbr.rel (%p100) target = $region16
        $region15: #{tpu_custom_call.1} parent=11 // pred_region
          %s104 = ssub.s32 3840, 3840
          %105 = vsyncadd [#allocation5], %s104
          %s106 = sshll.u32 [#allocation4], 4
          %s107 = int_to_ptr.vmem [resolvable:$true] %s106
          %112 = dma.hbm_to_vmem [thread:$0]  %s1, 3840, %s107, [#allocation5], 128, 128, 8
        $region16: #{tpu_custom_call.1} parent=11 // pred_fallthru
          _
      $region12: #{tpu_custom_call.1} parent=5 // pred_fallthru
        _
      %p113 = scmp.lt.s32.totalorder %s12, 2
      // Predicated region
      $region17: #{tpu_custom_call.1} parent=5 // pred_check
        %p114 = pneg %p113
      $region18: #{tpu_custom_call.1} parent=5 // pred_check_branch
        %116 = sbr.rel (%p114) target = $region20
      $region19: #{tpu_custom_call.1} parent=5 // pred_region
        // Predicated region
        $region21: #{tpu_custom_call.1} parent=19 // pred_check
          %p117 = pneg %p32
        $region22: #{tpu_custom_call.1} parent=19 // pred_check_branch
          %119 = sbr.rel (%p117) target = $region24
        $region23: #{tpu_custom_call.1} parent=19 // pred_region
          %s120 = sand.u32 %s22, 1
          %s121 = scalar_lea.sflag [#allocation3], %s120
          %s122 = sand.u32 %s22, 1
          %s123 = smul.addr %s122, 128
          %s124 = scalar_lea.vmem [#allocation2], %s123
          %s125 = smul.u32 8, %s12
          %s127 = ssub.s32 2048, 2048
          %128 = vsyncadd %s121, %s127
          %s129 = smul.addr %s125, 2
          %s130 = smul.addr %s129, 128
          %s131 = scalar_lea.hbm %s0, %s130
          %s132 = sshll.u32 %s124, 4
          %s133 = int_to_ptr.vmem [resolvable:$true] %s132
          %138 = dma.hbm_to_vmem [thread:$0]  %s131, 2048, %s133, %s121, 256, 256, 16
        $region24: #{tpu_custom_call.1} parent=19 // pred_fallthru
          _
      $region20: #{tpu_custom_call.1} parent=5 // pred_fallthru
        _
      %p139 = scmp.le.s32.totalorder 1, %s12
      %p140 = scmp.lt.s32.totalorder %s12, 3
      %p141 = pnand %p139, %p140
      %p142 = pneg %p141
      // Predicated region
      $region25: #{tpu_custom_call.1} parent=5 // pred_check
        _
      $region26: #{tpu_custom_call.1} parent=5 // pred_check_branch
        %144 = sbr.rel (%p141) target = $region28
      $region27: #{tpu_custom_call.1} parent=5 // pred_region
        %s145 = ssub.s32 %s12, 1
        %s146 = sand.u32 %s25, 1
        %s147 = scalar_lea.sflag [#allocation3], %s146
        %s148 = sand.u32 %s25, 1
        %s149 = smul.addr %s148, 128
        %s150 = scalar_lea.vmem [#allocation2], %s149
        // Predicated region
        $region29: #{tpu_custom_call.1} parent=27 // pred_check
          %p151 = pneg %p38
        $region30: #{tpu_custom_call.1} parent=27 // pred_check_branch
          %153 = sbr.rel (%p151) target = $region32
        $region31: #{tpu_custom_call.1} parent=27 // pred_region
          %154 = dma.done %s147, 2048
        $region32: #{tpu_custom_call.1} parent=27 // pred_fallthru
          _
        // Predicated region
        $region33: #{tpu_custom_call.1} parent=27 // pred_check
          %p155 = pneg %p59
        $region34: #{tpu_custom_call.1} parent=27 // pred_check_branch
          %157 = sbr.rel (%p155) target = $region36
        $region35: #{tpu_custom_call.1} parent=27 // pred_region
          %158 = dma.done [#allocation5], 3840
        $region36: #{tpu_custom_call.1} parent=27 // pred_fallthru
          _
        %s159 = sand.u32 %s25, 1
        %s160 = scalar_lea.sflag [#allocation3], %s159
        %s161 = sand.u32 %s25, 1
        %s162 = smul.addr %s161, 128
        %s163 = scalar_lea.vmem [#allocation2], %s162
        %p164 = pneg %p38
        %p165 = pneg %p35
        %p166 = pneg %p59
        %p167 = pneg %p56
        %p168 = pneg %p85
        %p169 = pneg %p82
        %s170 = smul.u32 8, %s17
        %p171 = scmp.lt.s32.totalorder %s170, 15
        %s172 = scalar_select %p171, %s170, 15
        %s173 = smul.addr %s172, 8
        %s174 = scalar_lea.vmem %s2, %s173
        %s175 = smul.u32 8, %s17
        %s176 = smul.u32 8, %s17
        %p177 = scmp.lt.s32.totalorder %s176, 15
        %s178 = scalar_select %p177, %s176, 15
        %s179 = smul.addr %s178, 8
        %s180 = scalar_lea.vmem %s2, %s179
        %s181 = smul.u32 8, %s17
        %v182 = vld [vmem:[%s150] sm:$0xff]
        %v183 = vld [vmem:[%s150 + $0x10] sm:$0xff]
        %v184 = vld [vmem:[%s150 + $0x20] sm:$0xff]
        %v185 = vld [vmem:[%s150 + $0x30] sm:$0xff]
        %v186 = vld [vmem:[%s150 + $0x40] sm:$0xff]
        %v187 = vld [vmem:[%s150 + $0x50] sm:$0xff]
        %v188 = vld [vmem:[%s150 + $0x60] sm:$0xff]
        %v189 = vld [vmem:[%s150 + $0x70] sm:$0xff]
        %v190 = vld [vmem:[%s150 + $0x8] sm:$0xff]
        %v191 = vld [vmem:[%s150 + $0x18] sm:$0xff]
        %v192 = vld [vmem:[%s150 + $0x28] sm:$0xff]
        %v193 = vld [vmem:[%s150 + $0x38] sm:$0xff]
        %v194 = vld [vmem:[%s150 + $0x48] sm:$0xff]
        %v195 = vld [vmem:[%s150 + $0x58] sm:$0xff]
        %v196 = vld [vmem:[%s150 + $0x68] sm:$0xff]
        %v197 = vld [vmem:[%s150 + $0x78] sm:$0xff]
        %v198 = vld [vmem:[#allocation4 + $0xe0] sm:$0xff]
        %v199 = vld [vmem:[#allocation4 + $0xe8] sm:$0xff]
        %v200 = vld [vmem:[#allocation4] sm:$0xff]
        %v201 = vld [vmem:[#allocation4 + $0x8] sm:$0xff]
        %v202 = vld [vmem:[#allocation4 + $0x10] sm:$0xff]
        %v203 = vld [vmem:[#allocation4 + $0x18] sm:$0xff]
        %v204 = vlaneseq
        %v205 = vshrl.u32 %v204, 7
        %v206 = vsub.s32 0, %v205
        %v207 = vrot.slane %v198, %v206
        %vm208 = vcmask 261120
        %v210 = vsel %vm208, %v182, 0
        %v213 = vsel %vm208, %v183, 0
        %v216 = vsel %vm208, %v184, 0
        %v219 = vsel %vm208, %v185, 0
        %v222 = vsel %vm208, %v186, 0
        %v225 = vsel %vm208, %v187, 0
        %v228 = vsel %vm208, %v188, 0
        %v231 = vsel %vm208, %v189, 0
        %233 = vmatprep.subr.mxu0 0.0
        %v234 = vand.u32 %v200, 4294901760
        %235 = vmatpush1.msra.mxu0 %v234
        %236 = vmatprep.subr.mxu0 0.0
        %v237 = vand.u32 %v201, 4294901760
        %238 = vmatpush1.msra.mxu0 %v237
        %239 = vmatprep.subr.mxu0 0.0
        %v240 = vand.u32 %v202, 4294901760
        %241 = vmatpush1.msra.mxu0 %v240
        %242 = vmatprep.subr.mxu0 0.0
        %v243 = vand.u32 %v203, 4294901760
        %244 = vmatpush1.msra.mxu0 %v243
        %245 = vmatprep.subr.mxu0 0.0
        %246 = vmatpush1.msra.mxu0 0.0
        %247 = vmatprep.subr.mxu0 0.0
        %248 = vmatpush1.msra.mxu0 0.0
        %249 = vmatprep.subr.mxu0 0.0
        %250 = vmatpush1.msra.mxu0 0.0
        %251 = vmatprep.subr.mxu0 0.0
        %252 = vmatpush1.msra.mxu0 0.0
        %253 = vmatprep.subr.mxu0 0.0
        %254 = vmatpush1.msra.mxu0 0.0
        %255 = vmatprep.subr.mxu0 0.0
        %256 = vmatpush1.msra.mxu0 0.0
        %257 = vmatprep.subr.mxu0 0.0
        %258 = vmatpush1.msra.mxu0 0.0
        %259 = vmatprep.subr.mxu0 0.0
        %260 = vmatpush1.msra.mxu0 0.0
        %261 = vmatprep.subr.mxu0 0.0
        %262 = vmatpush1.msra.mxu0 0.0
        %263 = vmatprep.subr.mxu0 0.0
        %264 = vmatpush1.msra.mxu0 0.0
        %265 = vmatprep.subr.mxu0 0.0
        %266 = vmatpush1.msra.mxu0 0.0
        %267 = vmatprep.subr.mxu0 0.0
        %268 = vmatpush1.msra.mxu0 0.0
        %269 = vmatprep.subr.mxu0 0.0
        %270 = vmatpush1.msra.mxu0 0.0
        %271 = vmatprep.subr.mxu0 0.0
        %272 = vmatpush1.msra.mxu0 0.0
        %273 = vmatprep.subr.mxu0 0.0
        %274 = vmatpush1.msra.mxu0 0.0
        %275 = vmatprep.subr.mxu0 0.0
        %276 = vmatpush1.msra.mxu0 0.0
        %277 = vmatprep.subr.mxu0 0.0
        %278 = vmatpush1.msra.mxu0 0.0
        %279 = vmatprep.subr.mxu0 0.0
        %280 = vmatpush1.msra.mxu0 0.0
        %281 = vmatprep.subr.mxu0 0.0
        %282 = vmatpush1.msra.mxu0 0.0
        %283 = vmatprep.subr.mxu0 0.0
        %284 = vmatpush1.msra.mxu0 0.0
        %285 = vmatprep.subr.mxu0 0.0
        %286 = vmatpush1.msra.mxu0 0.0
        %287 = vmatprep.subr.mxu0 0.0
        %288 = vmatpush1.msra.mxu0 0.0
        %289 = vmatprep.subr.mxu0 0.0
        %290 = vmatpush1.msra.mxu0 0.0
        %291 = vmatprep.subr.mxu0 0.0
        %292 = vmatpush1.msra.mxu0 0.0
        %293 = vmatprep.subr.mxu0 0.0
        %294 = vmatpush1.msra.mxu0 0.0
        %295 = vmatprep.subr.mxu0 0.0
        %296 = vmatpush1.msra.mxu0 0.0
        %297 = vmatprep.subr.mxu0 0.0
        %298 = vmatpush1.msra.mxu0 0.0
        %299 = vmatprep.subr.mxu0 0.0
        %300 = vmatpush1.msra.mxu0 0.0
        %301 = vmatprep.mubr.f32.mxu0 0.0
        %v302 = vand.u32 %v210, 4294901760
        %v303 = vsub.f32 %v210, %v302
        %v304 = vand.u32 %v303, 4294901760
        %v305 = vsub.f32 %v303, %v304
        %v306 = vand.u32 %v305, 4294901760
        %307 = vmatmul.mubr.f32.gmra.mrb[0].mxu0 %v306
        %v308 = vpop.f32.mrb[0].mxu0
        %v309 = vadd.f32 %v207, %v308
        %v310 = vpop.f32.mrb[0].mxu0
        %311 = vmatprep.mubr.f32.mxu0 0.0
        %v312 = vand.u32 %v213, 4294901760
        %v313 = vsub.f32 %v213, %v312
        %v314 = vand.u32 %v313, 4294901760
        %v315 = vsub.f32 %v313, %v314
        %v316 = vand.u32 %v315, 4294901760
        %317 = vmatmul.mubr.f32.gmra.mrb[0].mxu0 %v316
        %v318 = vpop.f32.mrb[0].mxu0
        %v319 = vadd.f32 %v207, %v318
        %v320 = vpop.f32.mrb[0].mxu0
        %321 = vmatprep.mubr.f32.mxu0 0.0
        %v322 = vand.u32 %v216, 4294901760
        %v323 = vsub.f32 %v216, %v322
        %v324 = vand.u32 %v323, 4294901760
        %v325 = vsub.f32 %v323, %v324
        %v326 = vand.u32 %v325, 4294901760
        %327 = vmatmul.mubr.f32.gmra.mrb[0].mxu0 %v326
        %v328 = vpop.f32.mrb[0].mxu0
        %v329 = vadd.f32 %v207, %v328
        %v330 = vpop.f32.mrb[0].mxu0
        %331 = vmatprep.mubr.f32.mxu0 0.0
        %v332 = vand.u32 %v219, 4294901760
        %v333 = vsub.f32 %v219, %v332
        %v334 = vand.u32 %v333, 4294901760
        %v335 = vsub.f32 %v333, %v334
        %v336 = vand.u32 %v335, 4294901760
        %337 = vmatmul.mubr.f32.gmra.mrb[0].mxu0 %v336
        %v338 = vpop.f32.mrb[0].mxu0
        %v339 = vadd.f32 %v207, %v338
        %v340 = vpop.f32.mrb[0].mxu0
        %341 = vmatprep.mubr.f32.mxu0 0.0
        %v342 = vand.u32 %v222, 4294901760
        %v343 = vsub.f32 %v222, %v342
        %v344 = vand.u32 %v343, 4294901760
        %v345 = vsub.f32 %v343, %v344
        %v346 = vand.u32 %v345, 4294901760
        %347 = vmatmul.mubr.f32.gmra.mrb[0].mxu0 %v346
        %v348 = vpop.f32.mrb[0].mxu0
        %v349 = vadd.f32 %v207, %v348
        %v350 = vpop.f32.mrb[0].mxu0
        %351 = vmatprep.mubr.f32.mxu0 0.0
        %v352 = vand.u32 %v225, 4294901760
        %v353 = vsub.f32 %v225, %v352
        %v354 = vand.u32 %v353, 4294901760
        %v355 = vsub.f32 %v353, %v354
        %v356 = vand.u32 %v355, 4294901760
        %357 = vmatmul.mubr.f32.gmra.mrb[0].mxu0 %v356
        %v358 = vpop.f32.mrb[0].mxu0
        %v359 = vadd.f32 %v207, %v358
        %v360 = vpop.f32.mrb[0].mxu0
        %361 = vmatprep.mubr.f32.mxu0 0.0
        %v362 = vand.u32 %v228, 4294901760
        %v363 = vsub.f32 %v228, %v362
        %v364 = vand.u32 %v363, 4294901760
        %v365 = vsub.f32 %v363, %v364
        %v366 = vand.u32 %v365, 4294901760
        %367 = vmatmul.mubr.f32.gmra.mrb[0].mxu0 %v366
        %v368 = vpop.f32.mrb[0].mxu0
        %v369 = vadd.f32 %v207, %v368
        %v370 = vpop.f32.mrb[0].mxu0
        %371 = vmatprep.mubr.f32.mxu0 0.0
        %v372 = vand.u32 %v231, 4294901760
        %v373 = vsub.f32 %v231, %v372
        %v374 = vand.u32 %v373, 4294901760
        %v375 = vsub.f32 %v373, %v374
        %v376 = vand.u32 %v375, 4294901760
        %377 = vmatmul.mubr.f32.gmra.mrb[0].mxu0 %v376
        %v378 = vpop.f32.mrb[0].mxu0
        %v379 = vadd.f32 %v207, %v378
        %v380 = vpop.f32.mrb[0].mxu0
        %381 = vdwg.mxu0
        %382 = vmatprep.subr.mxu0 0.0
        %v383 = vand.u32 %v200, 4294901760
        %v384 = vsub.f32 %v200, %v383
        %v385 = vand.u32 %v384, 4294901760
        %v386 = vsub.f32 %v384, %v385
        %v387 = vand.u32 %v386, 4294901760
        %388 = vmatpush1.msra.mxu0 %v387
        %389 = vmatprep.subr.mxu0 0.0
        %v390 = vand.u32 %v201, 4294901760
        %v391 = vsub.f32 %v201, %v390
        %v392 = vand.u32 %v391, 4294901760
        %v393 = vsub.f32 %v391, %v392
        %v394 = vand.u32 %v393, 4294901760
        %395 = vmatpush1.msra.mxu0 %v394
        %396 = vmatprep.subr.mxu0 0.0
        %v397 = vand.u32 %v202, 4294901760
        %v398 = vsub.f32 %v202, %v397
        %v399 = vand.u32 %v398, 4294901760
        %v400 = vsub.f32 %v398, %v399
        %v401 = vand.u32 %v400, 4294901760
        %402 = vmatpush1.msra.mxu0 %v401
        %403 = vmatprep.subr.mxu0 0.0
        %v404 = vand.u32 %v203, 4294901760
        %v405 = vsub.f32 %v203, %v404
        %v406 = vand.u32 %v405, 4294901760
        %v407 = vsub.f32 %v405, %v406
        %v408 = vand.u32 %v407, 4294901760
        %409 = vmatpush1.msra.mxu0 %v408
        %410 = vmatprep.subr.mxu0 0.0
        %411 = vmatpush1.msra.mxu0 0.0
        %412 = vmatprep.subr.mxu0 0.0
        %413 = vmatpush1.msra.mxu0 0.0
        %414 = vmatprep.subr.mxu0 0.0
        %415 = vmatpush1.msra.mxu0 0.0
        %416 = vmatprep.subr.mxu0 0.0
        %417 = vmatpush1.msra.mxu0 0.0
        %418 = vmatprep.subr.mxu0 0.0
        %419 = vmatpush1.msra.mxu0 0.0
        %420 = vmatprep.subr.mxu0 0.0
        %421 = vmatpush1.msra.mxu0 0.0
        %422 = vmatprep.subr.mxu0 0.0
        %423 = vmatpush1.msra.mxu0 0.0
        %424 = vmatprep.subr.mxu0 0.0
        %425 = vmatpush1.msra.mxu0 0.0
        %426 = vmatprep.subr.mxu0 0.0
        %427 = vmatpush1.msra.mxu0 0.0
        %428 = vmatprep.subr.mxu0 0.0
        %429 = vmatpush1.msra.mxu0 0.0
        %430 = vmatprep.subr.mxu0 0.0
        %431 = vmatpush1.msra.mxu0 0.0
        %432 = vmatprep.subr.mxu0 0.0
        %433 = vmatpush1.msra.mxu0 0.0
        %434 = vmatprep.subr.mxu0 0.0
        %435 = vmatpush1.msra.mxu0 0.0
        %436 = vmatprep.subr.mxu0 0.0
        %437 = vmatpush1.msra.mxu0 0.0
        %438 = vmatprep.subr.mxu0 0.0
        %439 = vmatpush1.msra.mxu0 0.0
        %440 = vmatprep.subr.mxu0 0.0
        %441 = vmatpush1.msra.mxu0 0.0
        %442 = vmatprep.subr.mxu0 0.0
        %443 = vmatpush1.msra.mxu0 0.0
        %444 = vmatprep.subr.mxu0 0.0
        %445 = vmatpush1.msra.mxu0 0.0
        %446 = vmatprep.subr.mxu0 0.0
        %447 = vmatpush1.msra.mxu0 0.0
        %448 = vmatprep.subr.mxu0 0.0
        %449 = vmatpush1.msra.mxu0 0.0
        %450 = vmatprep.subr.mxu0 0.0
        %451 = vmatpush1.msra.mxu0 0.0
        %452 = vmatprep.subr.mxu0 0.0
        %453 = vmatpush1.msra.mxu0 0.0
        %454 = vmatprep.subr.mxu0 0.0
        %455 = vmatpush1.msra.mxu0 0.0
        %456 = vmatprep.subr.mxu0 0.0
        %457 = vmatpush1.msra.mxu0 0.0
        %458 = vmatprep.subr.mxu0 0.0
        %459 = vmatpush1.msra.mxu0 0.0
        %460 = vmatprep.subr.mxu0 0.0
        %461 = vmatpush1.msra.mxu0 0.0
        %462 = vmatprep.subr.mxu0 0.0
        %463 = vmatpush1.msra.mxu0 0.0
        %464 = vmatprep.subr.mxu0 0.0
        %465 = vmatpush1.msra.mxu0 0.0
        %466 = vmatprep.mubr.f32.mxu0 0.0
        %v467 = vand.u32 %v210, 4294901760
        %468 = vmatmul.mubr.f32.gmra.mrb[0].mxu0 %v467
        %v469 = vpop.f32.mrb[0].mxu0
        %v470 = vadd.f32 %v309, %v469
        %v471 = vpop.f32.mrb[0].mxu0
        %472 = vmatprep.mubr.f32.mxu0 0.0
        %v473 = vand.u32 %v213, 4294901760
        %474 = vmatmul.mubr.f32.gmra.mrb[0].mxu0 %v473
        %v475 = vpop.f32.mrb[0].mxu0
        %v476 = vadd.f32 %v319, %v475
        %v477 = vpop.f32.mrb[0].mxu0
        %478 = vmatprep.mubr.f32.mxu0 0.0
        %v479 = vand.u32 %v216, 4294901760
        %480 = vmatmul.mubr.f32.gmra.mrb[0].mxu0 %v479
        %v481 = vpop.f32.mrb[0].mxu0
        %v482 = vadd.f32 %v329, %v481
        %v483 = vpop.f32.mrb[0].mxu0
        %484 = vmatprep.mubr.f32.mxu0 0.0
        %v485 = vand.u32 %v219, 4294901760
        %486 = vmatmul.mubr.f32.gmra.mrb[0].mxu0 %v485
        %v487 = vpop.f32.mrb[0].mxu0
        %v488 = vadd.f32 %v339, %v487
        %v489 = vpop.f32.mrb[0].mxu0
        %490 = vmatprep.mubr.f32.mxu0 0.0
        %v491 = vand.u32 %v222, 4294901760
        %492 = vmatmul.mubr.f32.gmra.mrb[0].mxu0 %v491
        %v493 = vpop.f32.mrb[0].mxu0
        %v494 = vadd.f32 %v349, %v493
        %v495 = vpop.f32.mrb[0].mxu0
        %496 = vmatprep.mubr.f32.mxu0 0.0
        %v497 = vand.u32 %v225, 4294901760
        %498 = vmatmul.mubr.f32.gmra.mrb[0].mxu0 %v497
        %v499 = vpop.f32.mrb[0].mxu0
        %v500 = vadd.f32 %v359, %v499
        %v501 = vpop.f32.mrb[0].mxu0
        %502 = vmatprep.mubr.f32.mxu0 0.0
        %v503 = vand.u32 %v228, 4294901760
        %504 = vmatmul.mubr.f32.gmra.mrb[0].mxu0 %v503
        %v505 = vpop.f32.mrb[0].mxu0
        %v506 = vadd.f32 %v369, %v505
        %v507 = vpop.f32.mrb[0].mxu0
        %508 = vmatprep.mubr.f32.mxu0 0.0
        %v509 = vand.u32 %v231, 4294901760
        %510 = vmatmul.mubr.f32.gmra.mrb[0].mxu0 %v509
        %v511 = vpop.f32.mrb[0].mxu0
        %v512 = vadd.f32 %v379, %v511
        %v513 = vpop.f32.mrb[0].mxu0
        %514 = vdwg.mxu0
        %515 = vmatprep.subr.mxu0 0.0
        %v516 = vand.u32 %v200, 4294901760
        %v517 = vsub.f32 %v200, %v516
        %518 = vmatpush1.msra.mxu0 %v517
        %519 = vmatprep.subr.mxu0 0.0
        %v520 = vand.u32 %v201, 4294901760
        %v521 = vsub.f32 %v201, %v520
        %522 = vmatpush1.msra.mxu0 %v521
        %523 = vmatprep.subr.mxu0 0.0
        %v524 = vand.u32 %v202, 4294901760
        %v525 = vsub.f32 %v202, %v524
        %526 = vmatpush1.msra.mxu0 %v525
        %527 = vmatprep.subr.mxu0 0.0
        %v528 = vand.u32 %v203, 4294901760
        %v529 = vsub.f32 %v203, %v528
        %530 = vmatpush1.msra.mxu0 %v529
        %531 = vmatprep.subr.mxu0 0.0
        %532 = vmatpush1.msra.mxu0 0.0
        %533 = vmatprep.subr.mxu0 0.0
        %534 = vmatpush1.msra.mxu0 0.0
        %535 = vmatprep.subr.mxu0 0.0
        %536 = vmatpush1.msra.mxu0 0.0
        %537 = vmatprep.subr.mxu0 0.0
        %538 = vmatpush1.msra.mxu0 0.0
        %539 = vmatprep.subr.mxu0 0.0
        %540 = vmatpush1.msra.mxu0 0.0
        %541 = vmatprep.subr.mxu0 0.0
        %542 = vmatpush1.msra.mxu0 0.0
        %543 = vmatprep.subr.mxu0 0.0
        %544 = vmatpush1.msra.mxu0 0.0
        %545 = vmatprep.subr.mxu0 0.0
        %546 = vmatpush1.msra.mxu0 0.0
        %547 = vmatprep.subr.mxu0 0.0
        %548 = vmatpush1.msra.mxu0 0.0
        %549 = vmatprep.subr.mxu0 0.0
        %550 = vmatpush1.msra.mxu0 0.0
        %551 = vmatprep.subr.mxu0 0.0
        %552 = vmatpush1.msra.mxu0 0.0
        %553 = vmatprep.subr.mxu0 0.0
        %554 = vmatpush1.msra.mxu0 0.0
        %555 = vmatprep.subr.mxu0 0.0
        %556 = vmatpush1.msra.mxu0 0.0
        %557 = vmatprep.subr.mxu0 0.0
        %558 = vmatpush1.msra.mxu0 0.0
        %559 = vmatprep.subr.mxu0 0.0
        %560 = vmatpush1.msra.mxu0 0.0
        %561 = vmatprep.subr.mxu0 0.0
        %562 = vmatpush1.msra.mxu0 0.0
        %563 = vmatprep.subr.mxu0 0.0
        %564 = vmatpush1.msra.mxu0 0.0
        %565 = vmatprep.subr.mxu0 0.0
        %566 = vmatpush1.msra.mxu0 0.0
        %567 = vmatprep.subr.mxu0 0.0
        %568 = vmatpush1.msra.mxu0 0.0
        %569 = vmatprep.subr.mxu0 0.0
        %570 = vmatpush1.msra.mxu0 0.0
        %571 = vmatprep.subr.mxu0 0.0
        %572 = vmatpush1.msra.mxu0 0.0
        %573 = vmatprep.subr.mxu0 0.0
        %574 = vmatpush1.msra.mxu0 0.0
        %575 = vmatprep.subr.mxu0 0.0
        %576 = vmatpush1.msra.mxu0 0.0
        %577 = vmatprep.subr.mxu0 0.0
        %578 = vmatpush1.msra.mxu0 0.0
        %579 = vmatprep.subr.mxu0 0.0
        %580 = vmatpush1.msra.mxu0 0.0
        %581 = vmatprep.subr.mxu0 0.0
        %582 = vmatpush1.msra.mxu0 0.0
        %583 = vmatprep.subr.mxu0 0.0
        %584 = vmatpush1.msra.mxu0 0.0
        %585 = vmatprep.subr.mxu0 0.0
        %586 = vmatpush1.msra.mxu0 0.0
        %587 = vmatprep.mubr.f32.mxu0 0.0
        %v588 = vand.u32 %v210, 4294901760
        %v589 = vsub.f32 %v210, %v588
        %590 = vmatmul.mubr.f32.gmra.mrb[0].mxu0 %v589
        %v591 = vpop.f32.mrb[0].mxu0
        %v592 = vadd.f32 %v470, %v591
        %v593 = vpop.f32.mrb[0].mxu0
        %594 = vmatprep.mubr.f32.mxu0 0.0
        %v595 = vand.u32 %v213, 4294901760
        %v596 = vsub.f32 %v213, %v595
        %597 = vmatmul.mubr.f32.gmra.mrb[0].mxu0 %v596
        %v598 = vpop.f32.mrb[0].mxu0
        %v599 = vadd.f32 %v476, %v598
        %v600 = vpop.f32.mrb[0].mxu0
        %601 = vmatprep.mubr.f32.mxu0 0.0
        %v602 = vand.u32 %v216, 4294901760
        %v603 = vsub.f32 %v216, %v602
        %604 = vmatmul.mubr.f32.gmra.mrb[0].mxu0 %v603
        %v605 = vpop.f32.mrb[0].mxu0
        %v606 = vadd.f32 %v482, %v605
        %v607 = vpop.f32.mrb[0].mxu0
        %608 = vmatprep.mubr.f32.mxu0 0.0
        %v609 = vand.u32 %v219, 4294901760
        %v610 = vsub.f32 %v219, %v609
        %611 = vmatmul.mubr.f32.gmra.mrb[0].mxu0 %v610
        %v612 = vpop.f32.mrb[0].mxu0
        %v613 = vadd.f32 %v488, %v612
        %v614 = vpop.f32.mrb[0].mxu0
        %615 = vmatprep.mubr.f32.mxu0 0.0
        %v616 = vand.u32 %v222, 4294901760
        %v617 = vsub.f32 %v222, %v616
        %618 = vmatmul.mubr.f32.gmra.mrb[0].mxu0 %v617
        %v619 = vpop.f32.mrb[0].mxu0
        %v620 = vadd.f32 %v494, %v619
        %v621 = vpop.f32.mrb[0].mxu0
        %622 = vmatprep.mubr.f32.mxu0 0.0
        %v623 = vand.u32 %v225, 4294901760
        %v624 = vsub.f32 %v225, %v623
        %625 = vmatmul.mubr.f32.gmra.mrb[0].mxu0 %v624
        %v626 = vpop.f32.mrb[0].mxu0
        %v627 = vadd.f32 %v500, %v626
        %v628 = vpop.f32.mrb[0].mxu0
        %629 = vmatprep.mubr.f32.mxu0 0.0
        %v630 = vand.u32 %v228, 4294901760
        %v631 = vsub.f32 %v228, %v630
        %632 = vmatmul.mubr.f32.gmra.mrb[0].mxu0 %v631
        %v633 = vpop.f32.mrb[0].mxu0
        %v634 = vadd.f32 %v506, %v633
        %v635 = vpop.f32.mrb[0].mxu0
        %636 = vmatprep.mubr.f32.mxu0 0.0
        %v637 = vand.u32 %v231, 4294901760
        %v638 = vsub.f32 %v231, %v637
        %639 = vmatmul.mubr.f32.gmra.mrb[0].mxu0 %v638
        %v640 = vpop.f32.mrb[0].mxu0
        %v641 = vadd.f32 %v512, %v640
        %v642 = vpop.f32.mrb[0].mxu0
        %643 = vdwg.mxu0
        %644 = vmatprep.subr.mxu0 0.0
        %v645 = vand.u32 %v200, 4294901760
        %646 = vmatpush1.msra.mxu0 %v645
        %647 = vmatprep.subr.mxu0 0.0
        %v648 = vand.u32 %v201, 4294901760
        %649 = vmatpush1.msra.mxu0 %v648
        %650 = vmatprep.subr.mxu0 0.0
        %v651 = vand.u32 %v202, 4294901760
        %652 = vmatpush1.msra.mxu0 %v651
        %653 = vmatprep.subr.mxu0 0.0
        %v654 = vand.u32 %v203, 4294901760
        %655 = vmatpush1.msra.mxu0 %v654
        %656 = vmatprep.subr.mxu0 0.0
        %657 = vmatpush1.msra.mxu0 0.0
        %658 = vmatprep.subr.mxu0 0.0
        %659 = vmatpush1.msra.mxu0 0.0
        %660 = vmatprep.subr.mxu0 0.0
        %661 = vmatpush1.msra.mxu0 0.0
        %662 = vmatprep.subr.mxu0 0.0
        %663 = vmatpush1.msra.mxu0 0.0
        %664 = vmatprep.subr.mxu0 0.0
        %665 = vmatpush1.msra.mxu0 0.0
        %666 = vmatprep.subr.mxu0 0.0
        %667 = vmatpush1.msra.mxu0 0.0
        %668 = vmatprep.subr.mxu0 0.0
        %669 = vmatpush1.msra.mxu0 0.0
        %670 = vmatprep.subr.mxu0 0.0
        %671 = vmatpush1.msra.mxu0 0.0
        %672 = vmatprep.subr.mxu0 0.0
        %673 = vmatpush1.msra.mxu0 0.0
        %674 = vmatprep.subr.mxu0 0.0
        %675 = vmatpush1.msra.mxu0 0.0
        %676 = vmatprep.subr.mxu0 0.0
        %677 = vmatpush1.msra.mxu0 0.0
        %678 = vmatprep.subr.mxu0 0.0
        %679 = vmatpush1.msra.mxu0 0.0
        %680 = vmatprep.subr.mxu0 0.0
        %681 = vmatpush1.msra.mxu0 0.0
        %682 = vmatprep.subr.mxu0 0.0
        %683 = vmatpush1.msra.mxu0 0.0
        %684 = vmatprep.subr.mxu0 0.0
        %685 = vmatpush1.msra.mxu0 0.0
        %686 = vmatprep.subr.mxu0 0.0
        %687 = vmatpush1.msra.mxu0 0.0
        %688 = vmatprep.subr.mxu0 0.0
        %689 = vmatpush1.msra.mxu0 0.0
        %690 = vmatprep.subr.mxu0 0.0
        %691 = vmatpush1.msra.mxu0 0.0
        %692 = vmatprep.subr.mxu0 0.0
        %693 = vmatpush1.msra.mxu0 0.0
        %694 = vmatprep.subr.mxu0 0.0
        %695 = vmatpush1.msra.mxu0 0.0
        %696 = vmatprep.subr.mxu0 0.0
        %697 = vmatpush1.msra.mxu0 0.0
        %698 = vmatprep.subr.mxu0 0.0
        %699 = vmatpush1.msra.mxu0 0.0
        %700 = vmatprep.subr.mxu0 0.0
        %701 = vmatpush1.msra.mxu0 0.0
        %702 = vmatprep.subr.mxu0 0.0
        %703 = vmatpush1.msra.mxu0 0.0
        %704 = vmatprep.subr.mxu0 0.0
        %705 = vmatpush1.msra.mxu0 0.0
        %706 = vmatprep.subr.mxu0 0.0
        %707 = vmatpush1.msra.mxu0 0.0
        %708 = vmatprep.subr.mxu0 0.0
        %709 = vmatpush1.msra.mxu0 0.0
        %710 = vmatprep.subr.mxu0 0.0
        %711 = vmatpush1.msra.mxu0 0.0
        %712 = vmatprep.mubr.f32.mxu0 0.0
        %v713 = vand.u32 %v210, 4294901760
        %v714 = vsub.f32 %v210, %v713
        %v715 = vand.u32 %v714, 4294901760
        %716 = vmatmul.mubr.f32.gmra.mrb[0].mxu0 %v715
        %v717 = vpop.f32.mrb[0].mxu0
        %v718 = vadd.f32 %v592, %v717
        %v719 = vpop.f32.mrb[0].mxu0
        %720 = vmatprep.mubr.f32.mxu0 0.0
        %v721 = vand.u32 %v213, 4294901760
        %v722 = vsub.f32 %v213, %v721
        %v723 = vand.u32 %v722, 4294901760
        %724 = vmatmul.mubr.f32.gmra.mrb[0].mxu0 %v723
        %v725 = vpop.f32.mrb[0].mxu0
        %v726 = vadd.f32 %v599, %v725
        %v727 = vpop.f32.mrb[0].mxu0
        %728 = vmatprep.mubr.f32.mxu0 0.0
        %v729 = vand.u32 %v216, 4294901760
        %v730 = vsub.f32 %v216, %v729
        %v731 = vand.u32 %v730, 4294901760
        %732 = vmatmul.mubr.f32.gmra.mrb[0].mxu0 %v731
        %v733 = vpop.f32.mrb[0].mxu0
        %v734 = vadd.f32 %v606, %v733
        %v735 = vpop.f32.mrb[0].mxu0
        %736 = vmatprep.mubr.f32.mxu0 0.0
        %v737 = vand.u32 %v219, 4294901760
        %v738 = vsub.f32 %v219, %v737
        %v739 = vand.u32 %v738, 4294901760
        %740 = vmatmul.mubr.f32.gmra.mrb[0].mxu0 %v739
        %v741 = vpop.f32.mrb[0].mxu0
        %v742 = vadd.f32 %v613, %v741
        %v743 = vpop.f32.mrb[0].mxu0
        %744 = vmatprep.mubr.f32.mxu0 0.0
        %v745 = vand.u32 %v222, 4294901760
        %v746 = vsub.f32 %v222, %v745
        %v747 = vand.u32 %v746, 4294901760
        %748 = vmatmul.mubr.f32.gmra.mrb[0].mxu0 %v747
        %v749 = vpop.f32.mrb[0].mxu0
        %v750 = vadd.f32 %v620, %v749
        %v751 = vpop.f32.mrb[0].mxu0
        %752 = vmatprep.mubr.f32.mxu0 0.0
        %v753 = vand.u32 %v225, 4294901760
        %v754 = vsub.f32 %v225, %v753
        %v755 = vand.u32 %v754, 4294901760
        %756 = vmatmul.mubr.f32.gmra.mrb[0].mxu0 %v755
        %v757 = vpop.f32.mrb[0].mxu0
        %v758 = vadd.f32 %v627, %v757
        %v759 = vpop.f32.mrb[0].mxu0
        %760 = vmatprep.mubr.f32.mxu0 0.0
        %v761 = vand.u32 %v228, 4294901760
        %v762 = vsub.f32 %v228, %v761
        %v763 = vand.u32 %v762, 4294901760
        %764 = vmatmul.mubr.f32.gmra.mrb[0].mxu0 %v763
        %v765 = vpop.f32.mrb[0].mxu0
        %v766 = vadd.f32 %v634, %v765
        %v767 = vpop.f32.mrb[0].mxu0
        %768 = vmatprep.mubr.f32.mxu0 0.0
        %v769 = vand.u32 %v231, 4294901760
        %v770 = vsub.f32 %v231, %v769
        %v771 = vand.u32 %v770, 4294901760
        %772 = vmatmul.mubr.f32.gmra.mrb[0].mxu0 %v771
        %v773 = vpop.f32.mrb[0].mxu0
        %v774 = vadd.f32 %v641, %v773
        %v775 = vpop.f32.mrb[0].mxu0
        %776 = vdwg.mxu0
        %777 = vmatprep.subr.mxu0 0.0
        %v778 = vand.u32 %v200, 4294901760
        %v779 = vsub.f32 %v200, %v778
        %v780 = vand.u32 %v779, 4294901760
        %781 = vmatpush1.msra.mxu0 %v780
        %782 = vmatprep.subr.mxu0 0.0
        %v783 = vand.u32 %v201, 4294901760
        %v784 = vsub.f32 %v201, %v783
        %v785 = vand.u32 %v784, 4294901760
        %786 = vmatpush1.msra.mxu0 %v785
        %787 = vmatprep.subr.mxu0 0.0
        %v788 = vand.u32 %v202, 4294901760
        %v789 = vsub.f32 %v202, %v788
        %v790 = vand.u32 %v789, 4294901760
        %791 = vmatpush1.msra.mxu0 %v790
        %792 = vmatprep.subr.mxu0 0.0
        %v793 = vand.u32 %v203, 4294901760
        %v794 = vsub.f32 %v203, %v793
        %v795 = vand.u32 %v794, 4294901760
        %796 = vmatpush1.msra.mxu0 %v795
        %797 = vmatprep.subr.mxu0 0.0
        %798 = vmatpush1.msra.mxu0 0.0
        %799 = vmatprep.subr.mxu0 0.0
        %800 = vmatpush1.msra.mxu0 0.0
        %801 = vmatprep.subr.mxu0 0.0
        %802 = vmatpush1.msra.mxu0 0.0
        %803 = vmatprep.subr.mxu0 0.0
        %804 = vmatpush1.msra.mxu0 0.0
        %805 = vmatprep.subr.mxu0 0.0
        %806 = vmatpush1.msra.mxu0 0.0
        %807 = vmatprep.subr.mxu0 0.0
        %808 = vmatpush1.msra.mxu0 0.0
        %809 = vmatprep.subr.mxu0 0.0
        %810 = vmatpush1.msra.mxu0 0.0
        %811 = vmatprep.subr.mxu0 0.0
        %812 = vmatpush1.msra.mxu0 0.0
        %813 = vmatprep.subr.mxu0 0.0
        %814 = vmatpush1.msra.mxu0 0.0
        %815 = vmatprep.subr.mxu0 0.0
        %816 = vmatpush1.msra.mxu0 0.0
        %817 = vmatprep.subr.mxu0 0.0
        %818 = vmatpush1.msra.mxu0 0.0
        %819 = vmatprep.subr.mxu0 0.0
        %820 = vmatpush1.msra.mxu0 0.0
        %821 = vmatprep.subr.mxu0 0.0
        %822 = vmatpush1.msra.mxu0 0.0
        %823 = vmatprep.subr.mxu0 0.0
        %824 = vmatpush1.msra.mxu0 0.0
        %825 = vmatprep.subr.mxu0 0.0
        %826 = vmatpush1.msra.mxu0 0.0
        %827 = vmatprep.subr.mxu0 0.0
        %828 = vmatpush1.msra.mxu0 0.0
        %829 = vmatprep.subr.mxu0 0.0
        %830 = vmatpush1.msra.mxu0 0.0
        %831 = vmatprep.subr.mxu0 0.0
        %832 = vmatpush1.msra.mxu0 0.0
        %833 = vmatprep.subr.mxu0 0.0
        %834 = vmatpush1.msra.mxu0 0.0
        %835 = vmatprep.subr.mxu0 0.0
        %836 = vmatpush1.msra.mxu0 0.0
        %837 = vmatprep.subr.mxu0 0.0
        %838 = vmatpush1.msra.mxu0 0.0
        %839 = vmatprep.subr.mxu0 0.0
        %840 = vmatpush1.msra.mxu0 0.0
        %841 = vmatprep.subr.mxu0 0.0
        %842 = vmatpush1.msra.mxu0 0.0
        %843 = vmatprep.subr.mxu0 0.0
        %844 = vmatpush1.msra.mxu0 0.0
        %845 = vmatprep.subr.mxu0 0.0
        %846 = vmatpush1.msra.mxu0 0.0
        %847 = vmatprep.subr.mxu0 0.0
        %848 = vmatpush1.msra.mxu0 0.0
        %849 = vmatprep.subr.mxu0 0.0
        %850 = vmatpush1.msra.mxu0 0.0
        %851 = vmatprep.subr.mxu0 0.0
        %852 = vmatpush1.msra.mxu0 0.0
        %853 = vmatprep.mubr.f32.mxu0 0.0
        %v854 = vand.u32 %v210, 4294901760
        %855 = vmatmul.mubr.f32.gmra.mrb[0].mxu0 %v854
        %v856 = vpop.f32.mrb[0].mxu0
        %v857 = vadd.f32 %v718, %v856
        %v858 = vpop.f32.mrb[0].mxu0
        %859 = vmatprep.mubr.f32.mxu0 0.0
        %v860 = vand.u32 %v213, 4294901760
        %861 = vmatmul.mubr.f32.gmra.mrb[0].mxu0 %v860
        %v862 = vpop.f32.mrb[0].mxu0
        %v863 = vadd.f32 %v726, %v862
        %v864 = vpop.f32.mrb[0].mxu0
        %865 = vmatprep.mubr.f32.mxu0 0.0
        %v866 = vand.u32 %v216, 4294901760
        %867 = vmatmul.mubr.f32.gmra.mrb[0].mxu0 %v866
        %v868 = vpop.f32.mrb[0].mxu0
        %v869 = vadd.f32 %v734, %v868
        %v870 = vpop.f32.mrb[0].mxu0
        %871 = vmatprep.mubr.f32.mxu0 0.0
        %v872 = vand.u32 %v219, 4294901760
        %873 = vmatmul.mubr.f32.gmra.mrb[0].mxu0 %v872
        %v874 = vpop.f32.mrb[0].mxu0
        %v875 = vadd.f32 %v742, %v874
        %v876 = vpop.f32.mrb[0].mxu0
        %877 = vmatprep.mubr.f32.mxu0 0.0
        %v878 = vand.u32 %v222, 4294901760
        %879 = vmatmul.mubr.f32.gmra.mrb[0].mxu0 %v878
        %v880 = vpop.f32.mrb[0].mxu0
        %v881 = vadd.f32 %v750, %v880
        %v882 = vpop.f32.mrb[0].mxu0
        %883 = vmatprep.mubr.f32.mxu0 0.0
        %v884 = vand.u32 %v225, 4294901760
        %885 = vmatmul.mubr.f32.gmra.mrb[0].mxu0 %v884
        %v886 = vpop.f32.mrb[0].mxu0
        %v887 = vadd.f32 %v758, %v886
        %v888 = vpop.f32.mrb[0].mxu0
        %889 = vmatprep.mubr.f32.mxu0 0.0
        %v890 = vand.u32 %v228, 4294901760
        %891 = vmatmul.mubr.f32.gmra.mrb[0].mxu0 %v890
        %v892 = vpop.f32.mrb[0].mxu0
        %v893 = vadd.f32 %v766, %v892
        %v894 = vpop.f32.mrb[0].mxu0
        %895 = vmatprep.mubr.f32.mxu0 0.0
        %v896 = vand.u32 %v231, 4294901760
        %897 = vmatmul.mubr.f32.gmra.mrb[0].mxu0 %v896
        %v898 = vpop.f32.mrb[0].mxu0
        %v899 = vadd.f32 %v774, %v898
        %v900 = vpop.f32.mrb[0].mxu0
        %901 = vdwg.mxu0
        %902 = vmatprep.subr.mxu0 0.0
        %v903 = vand.u32 %v200, 4294901760
        %904 = vmatpush1.msra.mxu0 %v903
        %905 = vmatprep.subr.mxu0 0.0
        %v906 = vand.u32 %v201, 4294901760
        %907 = vmatpush1.msra.mxu0 %v906
        %908 = vmatprep.subr.mxu0 0.0
        %v909 = vand.u32 %v202, 4294901760
        %910 = vmatpush1.msra.mxu0 %v909
        %911 = vmatprep.subr.mxu0 0.0
        %v912 = vand.u32 %v203, 4294901760
        %913 = vmatpush1.msra.mxu0 %v912
        %914 = vmatprep.subr.mxu0 0.0
        %915 = vmatpush1.msra.mxu0 0.0
        %916 = vmatprep.subr.mxu0 0.0
        %917 = vmatpush1.msra.mxu0 0.0
        %918 = vmatprep.subr.mxu0 0.0
        %919 = vmatpush1.msra.mxu0 0.0
        %920 = vmatprep.subr.mxu0 0.0
        %921 = vmatpush1.msra.mxu0 0.0
        %922 = vmatprep.subr.mxu0 0.0
        %923 = vmatpush1.msra.mxu0 0.0
        %924 = vmatprep.subr.mxu0 0.0
        %925 = vmatpush1.msra.mxu0 0.0
        %926 = vmatprep.subr.mxu0 0.0
        %927 = vmatpush1.msra.mxu0 0.0
        %928 = vmatprep.subr.mxu0 0.0
        %929 = vmatpush1.msra.mxu0 0.0
        %930 = vmatprep.subr.mxu0 0.0
        %931 = vmatpush1.msra.mxu0 0.0
        %932 = vmatprep.subr.mxu0 0.0
        %933 = vmatpush1.msra.mxu0 0.0
        %934 = vmatprep.subr.mxu0 0.0
        %935 = vmatpush1.msra.mxu0 0.0
        %936 = vmatprep.subr.mxu0 0.0
        %937 = vmatpush1.msra.mxu0 0.0
        %938 = vmatprep.subr.mxu0 0.0
        %939 = vmatpush1.msra.mxu0 0.0
        %940 = vmatprep.subr.mxu0 0.0
        %941 = vmatpush1.msra.mxu0 0.0
        %942 = vmatprep.subr.mxu0 0.0
        %943 = vmatpush1.msra.mxu0 0.0
        %944 = vmatprep.subr.mxu0 0.0
        %945 = vmatpush1.msra.mxu0 0.0
        %946 = vmatprep.subr.mxu0 0.0
        %947 = vmatpush1.msra.mxu0 0.0
        %948 = vmatprep.subr.mxu0 0.0
        %949 = vmatpush1.msra.mxu0 0.0
        %950 = vmatprep.subr.mxu0 0.0
        %951 = vmatpush1.msra.mxu0 0.0
        %952 = vmatprep.subr.mxu0 0.0
        %953 = vmatpush1.msra.mxu0 0.0
        %954 = vmatprep.subr.mxu0 0.0
        %955 = vmatpush1.msra.mxu0 0.0
        %956 = vmatprep.subr.mxu0 0.0
        %957 = vmatpush1.msra.mxu0 0.0
        %958 = vmatprep.subr.mxu0 0.0
        %959 = vmatpush1.msra.mxu0 0.0
        %960 = vmatprep.subr.mxu0 0.0
        %961 = vmatpush1.msra.mxu0 0.0
        %962 = vmatprep.subr.mxu0 0.0
        %963 = vmatpush1.msra.mxu0 0.0
        %964 = vmatprep.subr.mxu0 0.0
        %965 = vmatpush1.msra.mxu0 0.0
        %966 = vmatprep.subr.mxu0 0.0
        %967 = vmatpush1.msra.mxu0 0.0
        %968 = vmatprep.subr.mxu0 0.0
        %969 = vmatpush1.msra.mxu0 0.0
        %970 = vmatprep.mubr.f32.mxu0 0.0
        %v971 = vand.u32 %v210, 4294901760
        %972 = vmatmul.mubr.f32.gmra.mrb[0].mxu0 %v971
        %v973 = vpop.f32.mrb[0].mxu0
        %v974 = vadd.f32 %v857, %v973
        %v975 = vpop.f32.mrb[0].mxu0
        %976 = vmatprep.mubr.f32.mxu0 0.0
        %v977 = vand.u32 %v213, 4294901760
        %978 = vmatmul.mubr.f32.gmra.mrb[0].mxu0 %v977
        %v979 = vpop.f32.mrb[0].mxu0
        %v980 = vadd.f32 %v863, %v979
        %v981 = vpop.f32.mrb[0].mxu0
        %982 = vmatprep.mubr.f32.mxu0 0.0
        %v983 = vand.u32 %v216, 4294901760
        %984 = vmatmul.mubr.f32.gmra.mrb[0].mxu0 %v983
        %v985 = vpop.f32.mrb[0].mxu0
        %v986 = vadd.f32 %v869, %v985
        %v987 = vpop.f32.mrb[0].mxu0
        %988 = vmatprep.mubr.f32.mxu0 0.0
        %v989 = vand.u32 %v219, 4294901760
        %990 = vmatmul.mubr.f32.gmra.mrb[0].mxu0 %v989
        %v991 = vpop.f32.mrb[0].mxu0
        %v992 = vadd.f32 %v875, %v991
        %v993 = vpop.f32.mrb[0].mxu0
        %994 = vmatprep.mubr.f32.mxu0 0.0
        %v995 = vand.u32 %v222, 4294901760
        %996 = vmatmul.mubr.f32.gmra.mrb[0].mxu0 %v995
        %v997 = vpop.f32.mrb[0].mxu0
        %v998 = vadd.f32 %v881, %v997
        %v999 = vpop.f32.mrb[0].mxu0
        %1000 = vmatprep.mubr.f32.mxu0 0.0
        %v1001 = vand.u32 %v225, 4294901760
        %1002 = vmatmul.mubr.f32.gmra.mrb[0].mxu0 %v1001
        %v1003 = vpop.f32.mrb[0].mxu0
        %v1004 = vadd.f32 %v887, %v1003
        %v1005 = vpop.f32.mrb[0].mxu0
        %1006 = vmatprep.mubr.f32.mxu0 0.0
        %v1007 = vand.u32 %v228, 4294901760
        %1008 = vmatmul.mubr.f32.gmra.mrb[0].mxu0 %v1007
        %v1009 = vpop.f32.mrb[0].mxu0
        %v1010 = vadd.f32 %v893, %v1009
        %v1011 = vpop.f32.mrb[0].mxu0
        %1012 = vmatprep.mubr.f32.mxu0 0.0
        %v1013 = vand.u32 %v231, 4294901760
        %1014 = vmatmul.mubr.f32.gmra.mrb[0].mxu0 %v1013
        %v1015 = vpop.f32.mrb[0].mxu0
        %v1016 = vadd.f32 %v899, %v1015
        %v1017 = vpop.f32.mrb[0].mxu0
        %1018 = vdwg.mxu0
        %v1019 = vtanh.pop %v974
        %v1020 = vtanh.pop %v980
        %v1021 = vtanh.pop %v986
        %v1022 = vtanh.pop %v992
        %v1023 = vtanh.pop %v998
        %v1024 = vtanh.pop %v1004
        %v1025 = vtanh.pop %v1010
        %v1026 = vtanh.pop %v1016
        %v1027 = vld [vmem:[#allocation4 + $0x20] sm:$0xff]
        %v1028 = vld [vmem:[#allocation4 + $0x28] sm:$0xff]
        %v1029 = vld [vmem:[#allocation4 + $0x30] sm:$0xff]
        %v1030 = vld [vmem:[#allocation4 + $0x38] sm:$0xff]
        %v1031 = vlaneseq
        %v1032 = vshrl.u32 %v1031, 7
        %v1033 = vsub.s32 1, %v1032
        %v1034 = vrot.slane %v198, %v1033
        %v1036 = vsel %vm208, %v1019, 0
        %v1039 = vsel %vm208, %v1020, 0
        %v1042 = vsel %vm208, %v1021, 0
        %v1045 = vsel %vm208, %v1022, 0
        %v1048 = vsel %vm208, %v1023, 0
        %v1051 = vsel %vm208, %v1024, 0
        %v1054 = vsel %vm208, %v1025, 0
        %v1057 = vsel %vm208, %v1026, 0
        %1059 = vmatprep.subr.mxu0 0.0
        %v1060 = vand.u32 %v1027, 4294901760
        %1061 = vmatpush1.msra.mxu0 %v1060
        %1062 = vmatprep.subr.mxu0 0.0
        %v1063 = vand.u32 %v1028, 4294901760
        %1064 = vmatpush1.msra.mxu0 %v1063
        %1065 = vmatprep.subr.mxu0 0.0
        %v1066 = vand.u32 %v1029, 4294901760
        %1067 = vmatpush1.msra.mxu0 %v1066
        %1068 = vmatprep.subr.mxu0 0.0
        %v1069 = vand.u32 %v1030, 4294901760
        %1070 = vmatpush1.msra.mxu0 %v1069
        %1071 = vmatprep.subr.mxu0 0.0
        %1072 = vmatpush1.msra.mxu0 0.0
        %1073 = vmatprep.subr.mxu0 0.0
        %1074 = vmatpush1.msra.mxu0 0.0
        %1075 = vmatprep.subr.mxu0 0.0
        %1076 = vmatpush1.msra.mxu0 0.0
        %1077 = vmatprep.subr.mxu0 0.0
        %1078 = vmatpush1.msra.mxu0 0.0
        %1079 = vmatprep.subr.mxu0 0.0
        %1080 = vmatpush1.msra.mxu0 0.0
        %1081 = vmatprep.subr.mxu0 0.0
        %1082 = vmatpush1.msra.mxu0 0.0
        %1083 = vmatprep.subr.mxu0 0.0
        %1084 = vmatpush1.msra.mxu0 0.0
        %1085 = vmatprep.subr.mxu0 0.0
        %1086 = vmatpush1.msra.mxu0 0.0
        %1087 = vmatprep.subr.mxu0 0.0
        %1088 = vmatpush1.msra.mxu0 0.0
        %1089 = vmatprep.subr.mxu0 0.0
        %1090 = vmatpush1.msra.mxu0 0.0
        %1091 = vmatprep.subr.mxu0 0.0
        %1092 = vmatpush1.msra.mxu0 0.0
        %1093 = vmatprep.subr.mxu0 0.0
        %1094 = vmatpush1.msra.mxu0 0.0
        %1095 = vmatprep.subr.mxu0 0.0
        %1096 = vmatpush1.msra.mxu0 0.0
        %1097 = vmatprep.subr.mxu0 0.0
        %1098 = vmatpush1.msra.mxu0 0.0
        %1099 = vmatprep.subr.mxu0 0.0
        %1100 = vmatpush1.msra.mxu0 0.0
        %1101 = vmatprep.subr.mxu0 0.0
        %1102 = vmatpush1.msra.mxu0 0.0
        %1103 = vmatprep.subr.mxu0 0.0
        %1104 = vmatpush1.msra.mxu0 0.0
        %1105 = vmatprep.subr.mxu0 0.0
        %1106 = vmatpush1.msra.mxu0 0.0
        %1107 = vmatprep.subr.mxu0 0.0
        %1108 = vmatpush1.msra.mxu0 0.0
        %1109 = vmatprep.subr.mxu0 0.0
        %1110 = vmatpush1.msra.mxu0 0.0
        %1111 = vmatprep.subr.mxu0 0.0
        %1112 = vmatpush1.msra.mxu0 0.0
        %1113 = vmatprep.subr.mxu0 0.0
        %1114 = vmatpush1.msra.mxu0 0.0
        %1115 = vmatprep.subr.mxu0 0.0
        %1116 = vmatpush1.msra.mxu0 0.0
        %1117 = vmatprep.subr.mxu0 0.0
        %1118 = vmatpush1.msra.mxu0 0.0
        %1119 = vmatprep.subr.mxu0 0.0
        %1120 = vmatpush1.msra.mxu0 0.0
        %1121 = vmatprep.subr.mxu0 0.0
        %1122 = vmatpush1.msra.mxu0 0.0
        %1123 = vmatprep.subr.mxu0 0.0
        %1124 = vmatpush1.msra.mxu0 0.0
        %1125 = vmatprep.subr.mxu0 0.0
        %1126 = vmatpush1.msra.mxu0 0.0
        %1127 = vmatprep.mubr.f32.mxu0 0.0
        %v1128 = vand.u32 %v1036, 4294901760
        %v1129 = vsub.f32 %v1036, %v1128
        %v1130 = vand.u32 %v1129, 4294901760
        %v1131 = vsub.f32 %v1129, %v1130
        %v1132 = vand.u32 %v1131, 4294901760
        %1133 = vmatmul.mubr.f32.gmra.mrb[0].mxu0 %v1132
        %v1134 = vpop.f32.mrb[0].mxu0
        %v1135 = vadd.f32 %v1034, %v1134
        %v1136 = vpop.f32.mrb[0].mxu0
        %1137 = vmatprep.mubr.f32.mxu0 0.0
        %v1138 = vand.u32 %v1039, 4294901760
        %v1139 = vsub.f32 %v1039, %v1138
        %v1140 = vand.u32 %v1139, 4294901760
        %v1141 = vsub.f32 %v1139, %v1140
        %v1142 = vand.u32 %v1141, 4294901760
        %1143 = vmatmul.mubr.f32.gmra.mrb[0].mxu0 %v1142
        %v1144 = vpop.f32.mrb[0].mxu0
        %v1145 = vadd.f32 %v1034, %v1144
        %v1146 = vpop.f32.mrb[0].mxu0
        %1147 = vmatprep.mubr.f32.mxu0 0.0
        %v1148 = vand.u32 %v1042, 4294901760
        %v1149 = vsub.f32 %v1042, %v1148
        %v1150 = vand.u32 %v1149, 4294901760
        %v1151 = vsub.f32 %v1149, %v1150
        %v1152 = vand.u32 %v1151, 4294901760
        %1153 = vmatmul.mubr.f32.gmra.mrb[0].mxu0 %v1152
        %v1154 = vpop.f32.mrb[0].mxu0
        %v1155 = vadd.f32 %v1034, %v1154
        %v1156 = vpop.f32.mrb[0].mxu0
        %1157 = vmatprep.mubr.f32.mxu0 0.0
        %v1158 = vand.u32 %v1045, 4294901760
        %v1159 = vsub.f32 %v1045, %v1158
        %v1160 = vand.u32 %v1159, 4294901760
        %v1161 = vsub.f32 %v1159, %v1160
        %v1162 = vand.u32 %v1161, 4294901760
        %1163 = vmatmul.mubr.f32.gmra.mrb[0].mxu0 %v1162
        %v1164 = vpop.f32.mrb[0].mxu0
        %v1165 = vadd.f32 %v1034, %v1164
        %v1166 = vpop.f32.mrb[0].mxu0
        %1167 = vmatprep.mubr.f32.mxu0 0.0
        %v1168 = vand.u32 %v1048, 4294901760
        %v1169 = vsub.f32 %v1048, %v1168
        %v1170 = vand.u32 %v1169, 4294901760
        %v1171 = vsub.f32 %v1169, %v1170
        %v1172 = vand.u32 %v1171, 4294901760
        %1173 = vmatmul.mubr.f32.gmra.mrb[0].mxu0 %v1172
        %v1174 = vpop.f32.mrb[0].mxu0
        %v1175 = vadd.f32 %v1034, %v1174
        %v1176 = vpop.f32.mrb[0].mxu0
        %1177 = vmatprep.mubr.f32.mxu0 0.0
        %v1178 = vand.u32 %v1051, 4294901760
        %v1179 = vsub.f32 %v1051, %v1178
        %v1180 = vand.u32 %v1179, 4294901760
        %v1181 = vsub.f32 %v1179, %v1180
        %v1182 = vand.u32 %v1181, 4294901760
        %1183 = vmatmul.mubr.f32.gmra.mrb[0].mxu0 %v1182
        %v1184 = vpop.f32.mrb[0].mxu0
        %v1185 = vadd.f32 %v1034, %v1184
        %v1186 = vpop.f32.mrb[0].mxu0
        %1187 = vmatprep.mubr.f32.mxu0 0.0
        %v1188 = vand.u32 %v1054, 4294901760
        %v1189 = vsub.f32 %v1054, %v1188
        %v1190 = vand.u32 %v1189, 4294901760
        %v1191 = vsub.f32 %v1189, %v1190
        %v1192 = vand.u32 %v1191, 4294901760
        %1193 = vmatmul.mubr.f32.gmra.mrb[0].mxu0 %v1192
        %v1194 = vpop.f32.mrb[0].mxu0
        %v1195 = vadd.f32 %v1034, %v1194
        %v1196 = vpop.f32.mrb[0].mxu0
        %1197 = vmatprep.mubr.f32.mxu0 0.0
        %v1198 = vand.u32 %v1057, 4294901760
        %v1199 = vsub.f32 %v1057, %v1198
        %v1200 = vand.u32 %v1199, 4294901760
        %v1201 = vsub.f32 %v1199, %v1200
        %v1202 = vand.u32 %v1201, 4294901760
        %1203 = vmatmul.mubr.f32.gmra.mrb[0].mxu0 %v1202
        %v1204 = vpop.f32.mrb[0].mxu0
        %v1205 = vadd.f32 %v1034, %v1204
        %v1206 = vpop.f32.mrb[0].mxu0
        %1207 = vdwg.mxu0
        %1208 = vmatprep.subr.mxu0 0.0
        %v1209 = vand.u32 %v1027, 4294901760
        %v1210 = vsub.f32 %v1027, %v1209
        %v1211 = vand.u32 %v1210, 4294901760
        %v1212 = vsub.f32 %v1210, %v1211
        %v1213 = vand.u32 %v1212, 4294901760
        %1214 = vmatpush1.msra.mxu0 %v1213
        %1215 = vmatprep.subr.mxu0 0.0
        %v1216 = vand.u32 %v1028, 4294901760
        %v1217 = vsub.f32 %v1028, %v1216
        %v1218 = vand.u32 %v1217, 4294901760
        %v1219 = vsub.f32 %v1217, %v1218
        %v1220 = vand.u32 %v1219, 4294901760
        %1221 = vmatpush1.msra.mxu0 %v1220
        %1222 = vmatprep.subr.mxu0 0.0
        %v1223 = vand.u32 %v1029, 4294901760
        %v1224 = vsub.f32 %v1029, %v1223
        %v1225 = vand.u32 %v1224, 4294901760
        %v1226 = vsub.f32 %v1224, %v1225
        %v1227 = vand.u32 %v1226, 4294901760
        %1228 = vmatpush1.msra.mxu0 %v1227
        %1229 = vmatprep.subr.mxu0 0.0
        %v1230 = vand.u32 %v1030, 4294901760
        %v1231 = vsub.f32 %v1030, %v1230
        %v1232 = vand.u32 %v1231, 4294901760
        %v1233 = vsub.f32 %v1231, %v1232
        %v1234 = vand.u32 %v1233, 4294901760
        %1235 = vmatpush1.msra.mxu0 %v1234
        %1236 = vmatprep.subr.mxu0 0.0
        %1237 = vmatpush1.msra.mxu0 0.0
        %1238 = vmatprep.subr.mxu0 0.0
        %1239 = vmatpush1.msra.mxu0 0.0
        %1240 = vmatprep.subr.mxu0 0.0
        %1241 = vmatpush1.msra.mxu0 0.0
        %1242 = vmatprep.subr.mxu0 0.0
        %1243 = vmatpush1.msra.mxu0 0.0
        %1244 = vmatprep.subr.mxu0 0.0
        %1245 = vmatpush1.msra.mxu0 0.0
        %1246 = vmatprep.subr.mxu0 0.0
        %1247 = vmatpush1.msra.mxu0 0.0
        %1248 = vmatprep.subr.mxu0 0.0
        %1249 = vmatpush1.msra.mxu0 0.0
        %1250 = vmatprep.subr.mxu0 0.0
        %1251 = vmatpush1.msra.mxu0 0.0
        %1252 = vmatprep.subr.mxu0 0.0
        %1253 = vmatpush1.msra.mxu0 0.0
        %1254 = vmatprep.subr.mxu0 0.0
        %1255 = vmatpush1.msra.mxu0 0.0
        %1256 = vmatprep.subr.mxu0 0.0
        %1257 = vmatpush1.msra.mxu0 0.0
        %1258 = vmatprep.subr.mxu0 0.0
        %1259 = vmatpush1.msra.mxu0 0.0
        %1260 = vmatprep.subr.mxu0 0.0
        %1261 = vmatpush1.msra.mxu0 0.0
        %1262 = vmatprep.subr.mxu0 0.0
        %1263 = vmatpush1.msra.mxu0 0.0
        %1264 = vmatprep.subr.mxu0 0.0
        %1265 = vmatpush1.msra.mxu0 0.0
        %1266 = vmatprep.subr.mxu0 0.0
        %1267 = vmatpush1.msra.mxu0 0.0
        %1268 = vmatprep.subr.mxu0 0.0
        %1269 = vmatpush1.msra.mxu0 0.0
        %1270 = vmatprep.subr.mxu0 0.0
        %1271 = vmatpush1.msra.mxu0 0.0
        %1272 = vmatprep.subr.mxu0 0.0
        %1273 = vmatpush1.msra.mxu0 0.0
        %1274 = vmatprep.subr.mxu0 0.0
        %1275 = vmatpush1.msra.mxu0 0.0
        %1276 = vmatprep.subr.mxu0 0.0
        %1277 = vmatpush1.msra.mxu0 0.0
        %1278 = vmatprep.subr.mxu0 0.0
        %1279 = vmatpush1.msra.mxu0 0.0
        %1280 = vmatprep.subr.mxu0 0.0
        %1281 = vmatpush1.msra.mxu0 0.0
        %1282 = vmatprep.subr.mxu0 0.0
        %1283 = vmatpush1.msra.mxu0 0.0
        %1284 = vmatprep.subr.mxu0 0.0
        %1285 = vmatpush1.msra.mxu0 0.0
        %1286 = vmatprep.subr.mxu0 0.0
        %1287 = vmatpush1.msra.mxu0 0.0
        %1288 = vmatprep.subr.mxu0 0.0
        %1289 = vmatpush1.msra.mxu0 0.0
        %1290 = vmatprep.subr.mxu0 0.0
        %1291 = vmatpush1.msra.mxu0 0.0
        %1292 = vmatprep.mubr.f32.mxu0 0.0
        %v1293 = vand.u32 %v1036, 4294901760
        %1294 = vmatmul.mubr.f32.gmra.mrb[0].mxu0 %v1293
        %v1295 = vpop.f32.mrb[0].mxu0
        %v1296 = vadd.f32 %v1135, %v1295
        %v1297 = vpop.f32.mrb[0].mxu0
        %1298 = vmatprep.mubr.f32.mxu0 0.0
        %v1299 = vand.u32 %v1039, 4294901760
        %1300 = vmatmul.mubr.f32.gmra.mrb[0].mxu0 %v1299
        %v1301 = vpop.f32.mrb[0].mxu0
        %v1302 = vadd.f32 %v1145, %v1301
        %v1303 = vpop.f32.mrb[0].mxu0
        %1304 = vmatprep.mubr.f32.mxu0 0.0
        %v1305 = vand.u32 %v1042, 4294901760
        %1306 = vmatmul.mubr.f32.gmra.mrb[0].mxu0 %v1305
        %v1307 = vpop.f32.mrb[0].mxu0
        %v1308 = vadd.f32 %v1155, %v1307
        %v1309 = vpop.f32.mrb[0].mxu0
        %1310 = vmatprep.mubr.f32.mxu0 0.0
        %v1311 = vand.u32 %v1045, 4294901760
        %1312 = vmatmul.mubr.f32.gmra.mrb[0].mxu0 %v1311
        %v1313 = vpop.f32.mrb[0].mxu0
        %v1314 = vadd.f32 %v1165, %v1313
        %v1315 = vpop.f32.mrb[0].mxu0
        %1316 = vmatprep.mubr.f32.mxu0 0.0
        %v1317 = vand.u32 %v1048, 4294901760
        %1318 = vmatmul.mubr.f32.gmra.mrb[0].mxu0 %v1317
        %v1319 = vpop.f32.mrb[0].mxu0
        %v1320 = vadd.f32 %v1175, %v1319
        %v1321 = vpop.f32.mrb[0].mxu0
        %1322 = vmatprep.mubr.f32.mxu0 0.0
        %v1323 = vand.u32 %v1051, 4294901760
        %1324 = vmatmul.mubr.f32.gmra.mrb[0].mxu0 %v1323
        %v1325 = vpop.f32.mrb[0].mxu0
        %v1326 = vadd.f32 %v1185, %v1325
        %v1327 = vpop.f32.mrb[0].mxu0
        %1328 = vmatprep.mubr.f32.mxu0 0.0
        %v1329 = vand.u32 %v1054, 4294901760
        %1330 = vmatmul.mubr.f32.gmra.mrb[0].mxu0 %v1329
        %v1331 = vpop.f32.mrb[0].mxu0
        %v1332 = vadd.f32 %v1195, %v1331
        %v1333 = vpop.f32.mrb[0].mxu0
        %1334 = vmatprep.mubr.f32.mxu0 0.0
        %v1335 = vand.u32 %v1057, 4294901760
        %1336 = vmatmul.mubr.f32.gmra.mrb[0].mxu0 %v1335
        %v1337 = vpop.f32.mrb[0].mxu0
        %v1338 = vadd.f32 %v1205, %v1337
        %v1339 = vpop.f32.mrb[0].mxu0
        %1340 = vdwg.mxu0
        %1341 = vmatprep.subr.mxu0 0.0
        %v1342 = vand.u32 %v1027, 4294901760
        %v1343 = vsub.f32 %v1027, %v1342
        %1344 = vmatpush1.msra.mxu0 %v1343
        %1345 = vmatprep.subr.mxu0 0.0
        %v1346 = vand.u32 %v1028, 4294901760
        %v1347 = vsub.f32 %v1028, %v1346
        %1348 = vmatpush1.msra.mxu0 %v1347
        %1349 = vmatprep.subr.mxu0 0.0
        %v1350 = vand.u32 %v1029, 4294901760
        %v1351 = vsub.f32 %v1029, %v1350
        %1352 = vmatpush1.msra.mxu0 %v1351
        %1353 = vmatprep.subr.mxu0 0.0
        %v1354 = vand.u32 %v1030, 4294901760
        %v1355 = vsub.f32 %v1030, %v1354
        %1356 = vmatpush1.msra.mxu0 %v1355
        %1357 = vmatprep.subr.mxu0 0.0
        %1358 = vmatpush1.msra.mxu0 0.0
        %1359 = vmatprep.subr.mxu0 0.0
        %1360 = vmatpush1.msra.mxu0 0.0
        %1361 = vmatprep.subr.mxu0 0.0
        %1362 = vmatpush1.msra.mxu0 0.0
        %1363 = vmatprep.subr.mxu0 0.0
        %1364 = vmatpush1.msra.mxu0 0.0
        %1365 = vmatprep.subr.mxu0 0.0
        %1366 = vmatpush1.msra.mxu0 0.0
        %1367 = vmatprep.subr.mxu0 0.0
        %1368 = vmatpush1.msra.mxu0 0.0
        %1369 = vmatprep.subr.mxu0 0.0
        %1370 = vmatpush1.msra.mxu0 0.0
        %1371 = vmatprep.subr.mxu0 0.0
        %1372 = vmatpush1.msra.mxu0 0.0
        %1373 = vmatprep.subr.mxu0 0.0
        %1374 = vmatpush1.msra.mxu0 0.0
        %1375 = vmatprep.subr.mxu0 0.0
        %1376 = vmatpush1.msra.mxu0 0.0
        %1377 = vmatprep.subr.mxu0 0.0
        %1378 = vmatpush1.msra.mxu0 0.0
        %1379 = vmatprep.subr.mxu0 0.0
        %1380 = vmatpush1.msra.mxu0 0.0
        %1381 = vmatprep.subr.mxu0 0.0
        %1382 = vmatpush1.msra.mxu0 0.0
        %1383 = vmatprep.subr.mxu0 0.0
        %1384 = vmatpush1.msra.mxu0 0.0
        %1385 = vmatprep.subr.mxu0 0.0
        %1386 = vmatpush1.msra.mxu0 0.0
        %1387 = vmatprep.subr.mxu0 0.0
        %1388 = vmatpush1.msra.mxu0 0.0
        %1389 = vmatprep.subr.mxu0 0.0
        %1390 = vmatpush1.msra.mxu0 0.0
        %1391 = vmatprep.subr.mxu0 0.0
        %1392 = vmatpush1.msra.mxu0 0.0
        %1393 = vmatprep.subr.mxu0 0.0
        %1394 = vmatpush1.msra.mxu0 0.0
        %1395 = vmatprep.subr.mxu0 0.0
        %1396 = vmatpush1.msra.mxu0 0.0
        %1397 = vmatprep.subr.mxu0 0.0
        %1398 = vmatpush1.msra.mxu0 0.0
        %1399 = vmatprep.subr.mxu0 0.0
        %1400 = vmatpush1.msra.mxu0 0.0
        %1401 = vmatprep.subr.mxu0 0.0
        %1402 = vmatpush1.msra.mxu0 0.0
        %1403 = vmatprep.subr.mxu0 0.0
        %1404 = vmatpush1.msra.mxu0 0.0
        %1405 = vmatprep.subr.mxu0 0.0
        %1406 = vmatpush1.msra.mxu0 0.0
        %1407 = vmatprep.subr.mxu0 0.0
        %1408 = vmatpush1.msra.mxu0 0.0
        %1409 = vmatprep.subr.mxu0 0.0
        %1410 = vmatpush1.msra.mxu0 0.0
        %1411 = vmatprep.subr.mxu0 0.0
        %1412 = vmatpush1.msra.mxu0 0.0
        %1413 = vmatprep.mubr.f32.mxu0 0.0
        %v1414 = vand.u32 %v1036, 4294901760
        %v1415 = vsub.f32 %v1036, %v1414
        %1416 = vmatmul.mubr.f32.gmra.mrb[0].mxu0 %v1415
        %v1417 = vpop.f32.mrb[0].mxu0
        %v1418 = vadd.f32 %v1296, %v1417
        %v1419 = vpop.f32.mrb[0].mxu0
        %1420 = vmatprep.mubr.f32.mxu0 0.0
        %v1421 = vand.u32 %v1039, 4294901760
        %v1422 = vsub.f32 %v1039, %v1421
        %1423 = vmatmul.mubr.f32.gmra.mrb[0].mxu0 %v1422
        %v1424 = vpop.f32.mrb[0].mxu0
        %v1425 = vadd.f32 %v1302, %v1424
        %v1426 = vpop.f32.mrb[0].mxu0
        %1427 = vmatprep.mubr.f32.mxu0 0.0
        %v1428 = vand.u32 %v1042, 4294901760
        %v1429 = vsub.f32 %v1042, %v1428
        %1430 = vmatmul.mubr.f32.gmra.mrb[0].mxu0 %v1429
        %v1431 = vpop.f32.mrb[0].mxu0
        %v1432 = vadd.f32 %v1308, %v1431
        %v1433 = vpop.f32.mrb[0].mxu0
        %1434 = vmatprep.mubr.f32.mxu0 0.0
        %v1435 = vand.u32 %v1045, 4294901760
        %v1436 = vsub.f32 %v1045, %v1435
        %1437 = vmatmul.mubr.f32.gmra.mrb[0].mxu0 %v1436
        %v1438 = vpop.f32.mrb[0].mxu0
        %v1439 = vadd.f32 %v1314, %v1438
        %v1440 = vpop.f32.mrb[0].mxu0
        %1441 = vmatprep.mubr.f32.mxu0 0.0
        %v1442 = vand.u32 %v1048, 4294901760
        %v1443 = vsub.f32 %v1048, %v1442
        %1444 = vmatmul.mubr.f32.gmra.mrb[0].mxu0 %v1443
        %v1445 = vpop.f32.mrb[0].mxu0
        %v1446 = vadd.f32 %v1320, %v1445
        %v1447 = vpop.f32.mrb[0].mxu0
        %1448 = vmatprep.mubr.f32.mxu0 0.0
        %v1449 = vand.u32 %v1051, 4294901760
        %v1450 = vsub.f32 %v1051, %v1449
        %1451 = vmatmul.mubr.f32.gmra.mrb[0].mxu0 %v1450
        %v1452 = vpop.f32.mrb[0].mxu0
        %v1453 = vadd.f32 %v1326, %v1452
        %v1454 = vpop.f32.mrb[0].mxu0
        %1455 = vmatprep.mubr.f32.mxu0 0.0
        %v1456 = vand.u32 %v1054, 4294901760
        %v1457 = vsub.f32 %v1054, %v1456
        %1458 = vmatmul.mubr.f32.gmra.mrb[0].mxu0 %v1457
        %v1459 = vpop.f32.mrb[0].mxu0
        %v1460 = vadd.f32 %v1332, %v1459
        %v1461 = vpop.f32.mrb[0].mxu0
        %1462 = vmatprep.mubr.f32.mxu0 0.0
        %v1463 = vand.u32 %v1057, 4294901760
        %v1464 = vsub.f32 %v1057, %v1463
        %1465 = vmatmul.mubr.f32.gmra.mrb[0].mxu0 %v1464
        %v1466 = vpop.f32.mrb[0].mxu0
        %v1467 = vadd.f32 %v1338, %v1466
        %v1468 = vpop.f32.mrb[0].mxu0
        %1469 = vdwg.mxu0
        %1470 = vmatprep.subr.mxu0 0.0
        %v1471 = vand.u32 %v1027, 4294901760
        %1472 = vmatpush1.msra.mxu0 %v1471
        %1473 = vmatprep.subr.mxu0 0.0
        %v1474 = vand.u32 %v1028, 4294901760
        %1475 = vmatpush1.msra.mxu0 %v1474
        %1476 = vmatprep.subr.mxu0 0.0
        %v1477 = vand.u32 %v1029, 4294901760
        %1478 = vmatpush1.msra.mxu0 %v1477
        %1479 = vmatprep.subr.mxu0 0.0
        %v1480 = vand.u32 %v1030, 4294901760
        %1481 = vmatpush1.msra.mxu0 %v1480
        %1482 = vmatprep.subr.mxu0 0.0
        %1483 = vmatpush1.msra.mxu0 0.0
        %1484 = vmatprep.subr.mxu0 0.0
        %1485 = vmatpush1.msra.mxu0 0.0
        %1486 = vmatprep.subr.mxu0 0.0
        %1487 = vmatpush1.msra.mxu0 0.0
        %1488 = vmatprep.subr.mxu0 0.0
        %1489 = vmatpush1.msra.mxu0 0.0
        %1490 = vmatprep.subr.mxu0 0.0
        %1491 = vmatpush1.msra.mxu0 0.0
        %1492 = vmatprep.subr.mxu0 0.0
        %1493 = vmatpush1.msra.mxu0 0.0
        %1494 = vmatprep.subr.mxu0 0.0
        %1495 = vmatpush1.msra.mxu0 0.0
        %1496 = vmatprep.subr.mxu0 0.0
        %1497 = vmatpush1.msra.mxu0 0.0
        %1498 = vmatprep.subr.mxu0 0.0
        %1499 = vmatpush1.msra.mxu0 0.0
        %1500 = vmatprep.subr.mxu0 0.0
        %1501 = vmatpush1.msra.mxu0 0.0
        %1502 = vmatprep.subr.mxu0 0.0
        %1503 = vmatpush1.msra.mxu0 0.0
        %1504 = vmatprep.subr.mxu0 0.0
        %1505 = vmatpush1.msra.mxu0 0.0
        %1506 = vmatprep.subr.mxu0 0.0
        %1507 = vmatpush1.msra.mxu0 0.0
        %1508 = vmatprep.subr.mxu0 0.0
        %1509 = vmatpush1.msra.mxu0 0.0
        %1510 = vmatprep.subr.mxu0 0.0
        %1511 = vmatpush1.msra.mxu0 0.0
        %1512 = vmatprep.subr.mxu0 0.0
        %1513 = vmatpush1.msra.mxu0 0.0
        %1514 = vmatprep.subr.mxu0 0.0
        %1515 = vmatpush1.msra.mxu0 0.0
        %1516 = vmatprep.subr.mxu0 0.0
        %1517 = vmatpush1.msra.mxu0 0.0
        %1518 = vmatprep.subr.mxu0 0.0
        %1519 = vmatpush1.msra.mxu0 0.0
        %1520 = vmatprep.subr.mxu0 0.0
        %1521 = vmatpush1.msra.mxu0 0.0
        %1522 = vmatprep.subr.mxu0 0.0
        %1523 = vmatpush1.msra.mxu0 0.0
        %1524 = vmatprep.subr.mxu0 0.0
        %1525 = vmatpush1.msra.mxu0 0.0
        %1526 = vmatprep.subr.mxu0 0.0
        %1527 = vmatpush1.msra.mxu0 0.0
        %1528 = vmatprep.subr.mxu0 0.0
        %1529 = vmatpush1.msra.mxu0 0.0
        %1530 = vmatprep.subr.mxu0 0.0
        %1531 = vmatpush1.msra.mxu0 0.0
        %1532 = vmatprep.subr.mxu0 0.0
        %1533 = vmatpush1.msra.mxu0 0.0
        %1534 = vmatprep.subr.mxu0 0.0
        %1535 = vmatpush1.msra.mxu0 0.0
        %1536 = vmatprep.subr.mxu0 0.0
        %1537 = vmatpush1.msra.mxu0 0.0
        %1538 = vmatprep.mubr.f32.mxu0 0.0
        %v1539 = vand.u32 %v1036, 4294901760
        %v1540 = vsub.f32 %v1036, %v1539
        %v1541 = vand.u32 %v1540, 4294901760
        %1542 = vmatmul.mubr.f32.gmra.mrb[0].mxu0 %v1541
        %v1543 = vpop.f32.mrb[0].mxu0
        %v1544 = vadd.f32 %v1418, %v1543
        %v1545 = vpop.f32.mrb[0].mxu0
        %1546 = vmatprep.mubr.f32.mxu0 0.0
        %v1547 = vand.u32 %v1039, 4294901760
        %v1548 = vsub.f32 %v1039, %v1547
        %v1549 = vand.u32 %v1548, 4294901760
        %1550 = vmatmul.mubr.f32.gmra.mrb[0].mxu0 %v1549
        %v1551 = vpop.f32.mrb[0].mxu0
        %v1552 = vadd.f32 %v1425, %v1551
        %v1553 = vpop.f32.mrb[0].mxu0
        %1554 = vmatprep.mubr.f32.mxu0 0.0
        %v1555 = vand.u32 %v1042, 4294901760
        %v1556 = vsub.f32 %v1042, %v1555
        %v1557 = vand.u32 %v1556, 4294901760
        %1558 = vmatmul.mubr.f32.gmra.mrb[0].mxu0 %v1557
        %v1559 = vpop.f32.mrb[0].mxu0
        %v1560 = vadd.f32 %v1432, %v1559
        %v1561 = vpop.f32.mrb[0].mxu0
        %1562 = vmatprep.mubr.f32.mxu0 0.0
        %v1563 = vand.u32 %v1045, 4294901760
        %v1564 = vsub.f32 %v1045, %v1563
        %v1565 = vand.u32 %v1564, 4294901760
        %1566 = vmatmul.mubr.f32.gmra.mrb[0].mxu0 %v1565
        %v1567 = vpop.f32.mrb[0].mxu0
        %v1568 = vadd.f32 %v1439, %v1567
        %v1569 = vpop.f32.mrb[0].mxu0
        %1570 = vmatprep.mubr.f32.mxu0 0.0
        %v1571 = vand.u32 %v1048, 4294901760
        %v1572 = vsub.f32 %v1048, %v1571
        %v1573 = vand.u32 %v1572, 4294901760
        %1574 = vmatmul.mubr.f32.gmra.mrb[0].mxu0 %v1573
        %v1575 = vpop.f32.mrb[0].mxu0
        %v1576 = vadd.f32 %v1446, %v1575
        %v1577 = vpop.f32.mrb[0].mxu0
        %1578 = vmatprep.mubr.f32.mxu0 0.0
        %v1579 = vand.u32 %v1051, 4294901760
        %v1580 = vsub.f32 %v1051, %v1579
        %v1581 = vand.u32 %v1580, 4294901760
        %1582 = vmatmul.mubr.f32.gmra.mrb[0].mxu0 %v1581
        %v1583 = vpop.f32.mrb[0].mxu0
        %v1584 = vadd.f32 %v1453, %v1583
        %v1585 = vpop.f32.mrb[0].mxu0
        %1586 = vmatprep.mubr.f32.mxu0 0.0
        %v1587 = vand.u32 %v1054, 4294901760
        %v1588 = vsub.f32 %v1054, %v1587
        %v1589 = vand.u32 %v1588, 4294901760
        %1590 = vmatmul.mubr.f32.gmra.mrb[0].mxu0 %v1589
        %v1591 = vpop.f32.mrb[0].mxu0
        %v1592 = vadd.f32 %v1460, %v1591
        %v1593 = vpop.f32.mrb[0].mxu0
        %1594 = vmatprep.mubr.f32.mxu0 0.0
        %v1595 = vand.u32 %v1057, 4294901760
        %v1596 = vsub.f32 %v1057, %v1595
        %v1597 = vand.u32 %v1596, 4294901760
        %1598 = vmatmul.mubr.f32.gmra.mrb[0].mxu0 %v1597
        %v1599 = vpop.f32.mrb[0].mxu0
        %v1600 = vadd.f32 %v1467, %v1599
        %v1601 = vpop.f32.mrb[0].mxu0
        %1602 = vdwg.mxu0
        %1603 = vmatprep.subr.mxu0 0.0
        %v1604 = vand.u32 %v1027, 4294901760
        %v1605 = vsub.f32 %v1027, %v1604
        %v1606 = vand.u32 %v1605, 4294901760
        %1607 = vmatpush1.msra.mxu0 %v1606
        %1608 = vmatprep.subr.mxu0 0.0
        %v1609 = vand.u32 %v1028, 4294901760
        %v1610 = vsub.f32 %v1028, %v1609
        %v1611 = vand.u32 %v1610, 4294901760
        %1612 = vmatpush1.msra.mxu0 %v1611
        %1613 = vmatprep.subr.mxu0 0.0
        %v1614 = vand.u32 %v1029, 4294901760
        %v1615 = vsub.f32 %v1029, %v1614
        %v1616 = vand.u32 %v1615, 4294901760
        %1617 = vmatpush1.msra.mxu0 %v1616
        %1618 = vmatprep.subr.mxu0 0.0
        %v1619 = vand.u32 %v1030, 4294901760
        %v1620 = vsub.f32 %v1030, %v1619
        %v1621 = vand.u32 %v1620, 4294901760
        %1622 = vmatpush1.msra.mxu0 %v1621
        %1623 = vmatprep.subr.mxu0 0.0
        %1624 = vmatpush1.msra.mxu0 0.0
        %1625 = vmatprep.subr.mxu0 0.0
        %1626 = vmatpush1.msra.mxu0 0.0
        %1627 = vmatprep.subr.mxu0 0.0
        %1628 = vmatpush1.msra.mxu0 0.0
        %1629 = vmatprep.subr.mxu0 0.0
        %1630 = vmatpush1.msra.mxu0 0.0
        %1631 = vmatprep.subr.mxu0 0.0
        %1632 = vmatpush1.msra.mxu0 0.0
        %1633 = vmatprep.subr.mxu0 0.0
        %1634 = vmatpush1.msra.mxu0 0.0
        %1635 = vmatprep.subr.mxu0 0.0
        %1636 = vmatpush1.msra.mxu0 0.0
        %1637 = vmatprep.subr.mxu0 0.0
        %1638 = vmatpush1.msra.mxu0 0.0
        %1639 = vmatprep.subr.mxu0 0.0
        %1640 = vmatpush1.msra.mxu0 0.0
        %1641 = vmatprep.subr.mxu0 0.0
        %1642 = vmatpush1.msra.mxu0 0.0
        %1643 = vmatprep.subr.mxu0 0.0
        %1644 = vmatpush1.msra.mxu0 0.0
        %1645 = vmatprep.subr.mxu0 0.0
        %1646 = vmatpush1.msra.mxu0 0.0
        %1647 = vmatprep.subr.mxu0 0.0
        %1648 = vmatpush1.msra.mxu0 0.0
        %1649 = vmatprep.subr.mxu0 0.0
        %1650 = vmatpush1.msra.mxu0 0.0
        %1651 = vmatprep.subr.mxu0 0.0
        %1652 = vmatpush1.msra.mxu0 0.0
        %1653 = vmatprep.subr.mxu0 0.0
        %1654 = vmatpush1.msra.mxu0 0.0
        %1655 = vmatprep.subr.mxu0 0.0
        %1656 = vmatpush1.msra.mxu0 0.0
        %1657 = vmatprep.subr.mxu0 0.0
        %1658 = vmatpush1.msra.mxu0 0.0
        %1659 = vmatprep.subr.mxu0 0.0
        %1660 = vmatpush1.msra.mxu0 0.0
        %1661 = vmatprep.subr.mxu0 0.0
        %1662 = vmatpush1.msra.mxu0 0.0
        %1663 = vmatprep.subr.mxu0 0.0
        %1664 = vmatpush1.msra.mxu0 0.0
        %1665 = vmatprep.subr.mxu0 0.0
        %1666 = vmatpush1.msra.mxu0 0.0
        %1667 = vmatprep.subr.mxu0 0.0
        %1668 = vmatpush1.msra.mxu0 0.0
        %1669 = vmatprep.subr.mxu0 0.0
        %1670 = vmatpush1.msra.mxu0 0.0
        %1671 = vmatprep.subr.mxu0 0.0
        %1672 = vmatpush1.msra.mxu0 0.0
        %1673 = vmatprep.subr.mxu0 0.0
        %1674 = vmatpush1.msra.mxu0 0.0
        %1675 = vmatprep.subr.mxu0 0.0
        %1676 = vmatpush1.msra.mxu0 0.0
        %1677 = vmatprep.subr.mxu0 0.0
        %1678 = vmatpush1.msra.mxu0 0.0
        %1679 = vmatprep.mubr.f32.mxu0 0.0
        %v1680 = vand.u32 %v1036, 4294901760
        %1681 = vmatmul.mubr.f32.gmra.mrb[0].mxu0 %v1680
        %v1682 = vpop.f32.mrb[0].mxu0
        %v1683 = vadd.f32 %v1544, %v1682
        %v1684 = vpop.f32.mrb[0].mxu0
        %1685 = vmatprep.mubr.f32.mxu0 0.0
        %v1686 = vand.u32 %v1039, 4294901760
        %1687 = vmatmul.mubr.f32.gmra.mrb[0].mxu0 %v1686
        %v1688 = vpop.f32.mrb[0].mxu0
        %v1689 = vadd.f32 %v1552, %v1688
        %v1690 = vpop.f32.mrb[0].mxu0
        %1691 = vmatprep.mubr.f32.mxu0 0.0
        %v1692 = vand.u32 %v1042, 4294901760
        %1693 = vmatmul.mubr.f32.gmra.mrb[0].mxu0 %v1692
        %v1694 = vpop.f32.mrb[0].mxu0
        %v1695 = vadd.f32 %v1560, %v1694
        %v1696 = vpop.f32.mrb[0].mxu0
        %1697 = vmatprep.mubr.f32.mxu0 0.0
        %v1698 = vand.u32 %v1045, 4294901760
        %1699 = vmatmul.mubr.f32.gmra.mrb[0].mxu0 %v1698
        %v1700 = vpop.f32.mrb[0].mxu0
        %v1701 = vadd.f32 %v1568, %v1700
        %v1702 = vpop.f32.mrb[0].mxu0
        %1703 = vmatprep.mubr.f32.mxu0 0.0
        %v1704 = vand.u32 %v1048, 4294901760
        %1705 = vmatmul.mubr.f32.gmra.mrb[0].mxu0 %v1704
        %v1706 = vpop.f32.mrb[0].mxu0
        %v1707 = vadd.f32 %v1576, %v1706
        %v1708 = vpop.f32.mrb[0].mxu0
        %1709 = vmatprep.mubr.f32.mxu0 0.0
        %v1710 = vand.u32 %v1051, 4294901760
        %1711 = vmatmul.mubr.f32.gmra.mrb[0].mxu0 %v1710
        %v1712 = vpop.f32.mrb[0].mxu0
        %v1713 = vadd.f32 %v1584, %v1712
        %v1714 = vpop.f32.mrb[0].mxu0
        %1715 = vmatprep.mubr.f32.mxu0 0.0
        %v1716 = vand.u32 %v1054, 4294901760
        %1717 = vmatmul.mubr.f32.gmra.mrb[0].mxu0 %v1716
        %v1718 = vpop.f32.mrb[0].mxu0
        %v1719 = vadd.f32 %v1592, %v1718
        %v1720 = vpop.f32.mrb[0].mxu0
        %1721 = vmatprep.mubr.f32.mxu0 0.0
        %v1722 = vand.u32 %v1057, 4294901760
        %1723 = vmatmul.mubr.f32.gmra.mrb[0].mxu0 %v1722
        %v1724 = vpop.f32.mrb[0].mxu0
        %v1725 = vadd.f32 %v1600, %v1724
        %v1726 = vpop.f32.mrb[0].mxu0
        %1727 = vdwg.mxu0
        %1728 = vmatprep.subr.mxu0 0.0
        %v1729 = vand.u32 %v1027, 4294901760
        %1730 = vmatpush1.msra.mxu0 %v1729
        %1731 = vmatprep.subr.mxu0 0.0
        %v1732 = vand.u32 %v1028, 4294901760
        %1733 = vmatpush1.msra.mxu0 %v1732
        %1734 = vmatprep.subr.mxu0 0.0
        %v1735 = vand.u32 %v1029, 4294901760
        %1736 = vmatpush1.msra.mxu0 %v1735
        %1737 = vmatprep.subr.mxu0 0.0
        %v1738 = vand.u32 %v1030, 4294901760
        %1739 = vmatpush1.msra.mxu0 %v1738
        %1740 = vmatprep.subr.mxu0 0.0
        %1741 = vmatpush1.msra.mxu0 0.0
        %1742 = vmatprep.subr.mxu0 0.0
        %1743 = vmatpush1.msra.mxu0 0.0
        %1744 = vmatprep.subr.mxu0 0.0
        %1745 = vmatpush1.msra.mxu0 0.0
        %1746 = vmatprep.subr.mxu0 0.0
        %1747 = vmatpush1.msra.mxu0 0.0
        %1748 = vmatprep.subr.mxu0 0.0
        %1749 = vmatpush1.msra.mxu0 0.0
        %1750 = vmatprep.subr.mxu0 0.0
        %1751 = vmatpush1.msra.mxu0 0.0
        %1752 = vmatprep.subr.mxu0 0.0
        %1753 = vmatpush1.msra.mxu0 0.0
        %1754 = vmatprep.subr.mxu0 0.0
        %1755 = vmatpush1.msra.mxu0 0.0
        %1756 = vmatprep.subr.mxu0 0.0
        %1757 = vmatpush1.msra.mxu0 0.0
        %1758 = vmatprep.subr.mxu0 0.0
        %1759 = vmatpush1.msra.mxu0 0.0
        %1760 = vmatprep.subr.mxu0 0.0
        %1761 = vmatpush1.msra.mxu0 0.0
        %1762 = vmatprep.subr.mxu0 0.0
        %1763 = vmatpush1.msra.mxu0 0.0
        %1764 = vmatprep.subr.mxu0 0.0
        %1765 = vmatpush1.msra.mxu0 0.0
        %1766 = vmatprep.subr.mxu0 0.0
        %1767 = vmatpush1.msra.mxu0 0.0
        %1768 = vmatprep.subr.mxu0 0.0
        %1769 = vmatpush1.msra.mxu0 0.0
        %1770 = vmatprep.subr.mxu0 0.0
        %1771 = vmatpush1.msra.mxu0 0.0
        %1772 = vmatprep.subr.mxu0 0.0
        %1773 = vmatpush1.msra.mxu0 0.0
        %1774 = vmatprep.subr.mxu0 0.0
        %1775 = vmatpush1.msra.mxu0 0.0
        %1776 = vmatprep.subr.mxu0 0.0
        %1777 = vmatpush1.msra.mxu0 0.0
        %1778 = vmatprep.subr.mxu0 0.0
        %1779 = vmatpush1.msra.mxu0 0.0
        %1780 = vmatprep.subr.mxu0 0.0
        %1781 = vmatpush1.msra.mxu0 0.0
        %1782 = vmatprep.subr.mxu0 0.0
        %1783 = vmatpush1.msra.mxu0 0.0
        %1784 = vmatprep.subr.mxu0 0.0
        %1785 = vmatpush1.msra.mxu0 0.0
        %1786 = vmatprep.subr.mxu0 0.0
        %1787 = vmatpush1.msra.mxu0 0.0
        %1788 = vmatprep.subr.mxu0 0.0
        %1789 = vmatpush1.msra.mxu0 0.0
        %1790 = vmatprep.subr.mxu0 0.0
        %1791 = vmatpush1.msra.mxu0 0.0
        %1792 = vmatprep.subr.mxu0 0.0
        %1793 = vmatpush1.msra.mxu0 0.0
        %1794 = vmatprep.subr.mxu0 0.0
        %1795 = vmatpush1.msra.mxu0 0.0
        %1796 = vmatprep.mubr.f32.mxu0 0.0
        %v1797 = vand.u32 %v1036, 4294901760
        %1798 = vmatmul.mubr.f32.gmra.mrb[0].mxu0 %v1797
        %v1799 = vpop.f32.mrb[0].mxu0
        %v1800 = vadd.f32 %v1683, %v1799
        %v1801 = vpop.f32.mrb[0].mxu0
        %1802 = vmatprep.mubr.f32.mxu0 0.0
        %v1803 = vand.u32 %v1039, 4294901760
        %1804 = vmatmul.mubr.f32.gmra.mrb[0].mxu0 %v1803
        %v1805 = vpop.f32.mrb[0].mxu0
        %v1806 = vadd.f32 %v1689, %v1805
        %v1807 = vpop.f32.mrb[0].mxu0
        %1808 = vmatprep.mubr.f32.mxu0 0.0
        %v1809 = vand.u32 %v1042, 4294901760
        %1810 = vmatmul.mubr.f32.gmra.mrb[0].mxu0 %v1809
        %v1811 = vpop.f32.mrb[0].mxu0
        %v1812 = vadd.f32 %v1695, %v1811
        %v1813 = vpop.f32.mrb[0].mxu0
        %1814 = vmatprep.mubr.f32.mxu0 0.0
        %v1815 = vand.u32 %v1045, 4294901760
        %1816 = vmatmul.mubr.f32.gmra.mrb[0].mxu0 %v1815
        %v1817 = vpop.f32.mrb[0].mxu0
        %v1818 = vadd.f32 %v1701, %v1817
        %v1819 = vpop.f32.mrb[0].mxu0
        %1820 = vmatprep.mubr.f32.mxu0 0.0
        %v1821 = vand.u32 %v1048, 4294901760
        %1822 = vmatmul.mubr.f32.gmra.mrb[0].mxu0 %v1821
        %v1823 = vpop.f32.mrb[0].mxu0
        %v1824 = vadd.f32 %v1707, %v1823
        %v1825 = vpop.f32.mrb[0].mxu0
        %1826 = vmatprep.mubr.f32.mxu0 0.0
        %v1827 = vand.u32 %v1051, 4294901760
        %1828 = vmatmul.mubr.f32.gmra.mrb[0].mxu0 %v1827
        %v1829 = vpop.f32.mrb[0].mxu0
        %v1830 = vadd.f32 %v1713, %v1829
        %v1831 = vpop.f32.mrb[0].mxu0
        %1832 = vmatprep.mubr.f32.mxu0 0.0
        %v1833 = vand.u32 %v1054, 4294901760
        %1834 = vmatmul.mubr.f32.gmra.mrb[0].mxu0 %v1833
        %v1835 = vpop.f32.mrb[0].mxu0
        %v1836 = vadd.f32 %v1719, %v1835
        %v1837 = vpop.f32.mrb[0].mxu0
        %1838 = vmatprep.mubr.f32.mxu0 0.0
        %v1839 = vand.u32 %v1057, 4294901760
        %1840 = vmatmul.mubr.f32.gmra.mrb[0].mxu0 %v1839
        %v1841 = vpop.f32.mrb[0].mxu0
        %v1842 = vadd.f32 %v1725, %v1841
        %v1843 = vpop.f32.mrb[0].mxu0
        %1844 = vdwg.mxu0
        %v1845 = vtanh.pop %v1800
        %v1846 = vtanh.pop %v1806
        %v1847 = vtanh.pop %v1812
        %v1848 = vtanh.pop %v1818
        %v1849 = vtanh.pop %v1824
        %v1850 = vtanh.pop %v1830
        %v1851 = vtanh.pop %v1836
        %v1852 = vtanh.pop %v1842
        %v1853 = vld [vmem:[#allocation4 + $0x40] sm:$0xff]
        %v1854 = vld [vmem:[#allocation4 + $0x48] sm:$0xff]
        %v1855 = vld [vmem:[#allocation4 + $0x50] sm:$0xff]
        %v1856 = vld [vmem:[#allocation4 + $0x58] sm:$0xff]
        %v1857 = vlaneseq
        %v1858 = vshrl.u32 %v1857, 7
        %v1859 = vsub.s32 2, %v1858
        %v1860 = vrot.slane %v198, %v1859
        %v1862 = vsel %vm208, %v1845, 0
        %v1865 = vsel %vm208, %v1846, 0
        %v1868 = vsel %vm208, %v1847, 0
        %v1871 = vsel %vm208, %v1848, 0
        %v1874 = vsel %vm208, %v1849, 0
        %v1877 = vsel %vm208, %v1850, 0
        %v1880 = vsel %vm208, %v1851, 0
        %v1883 = vsel %vm208, %v1852, 0
        %1885 = vmatprep.subr.mxu0 0.0
        %v1886 = vand.u32 %v1853, 4294901760
        %1887 = vmatpush1.msra.mxu0 %v1886
        %1888 = vmatprep.subr.mxu0 0.0
        %v1889 = vand.u32 %v1854, 4294901760
        %1890 = vmatpush1.msra.mxu0 %v1889
        %1891 = vmatprep.subr.mxu0 0.0
        %v1892 = vand.u32 %v1855, 4294901760
        %1893 = vmatpush1.msra.mxu0 %v1892
        %1894 = vmatprep.subr.mxu0 0.0
        %v1895 = vand.u32 %v1856, 4294901760
        %1896 = vmatpush1.msra.mxu0 %v1895
        %1897 = vmatprep.subr.mxu0 0.0
        %1898 = vmatpush1.msra.mxu0 0.0
        %1899 = vmatprep.subr.mxu0 0.0
        %1900 = vmatpush1.msra.mxu0 0.0
        %1901 = vmatprep.subr.mxu0 0.0
        %1902 = vmatpush1.msra.mxu0 0.0
        %1903 = vmatprep.subr.mxu0 0.0
        %1904 = vmatpush1.msra.mxu0 0.0
        %1905 = vmatprep.subr.mxu0 0.0
        %1906 = vmatpush1.msra.mxu0 0.0
        %1907 = vmatprep.subr.mxu0 0.0
        %1908 = vmatpush1.msra.mxu0 0.0
        %1909 = vmatprep.subr.mxu0 0.0
        %1910 = vmatpush1.msra.mxu0 0.0
        %1911 = vmatprep.subr.mxu0 0.0
        %1912 = vmatpush1.msra.mxu0 0.0
        %1913 = vmatprep.subr.mxu0 0.0
        %1914 = vmatpush1.msra.mxu0 0.0
        %1915 = vmatprep.subr.mxu0 0.0
        %1916 = vmatpush1.msra.mxu0 0.0
        %1917 = vmatprep.subr.mxu0 0.0
        %1918 = vmatpush1.msra.mxu0 0.0
        %1919 = vmatprep.subr.mxu0 0.0
        %1920 = vmatpush1.msra.mxu0 0.0
        %1921 = vmatprep.subr.mxu0 0.0
        %1922 = vmatpush1.msra.mxu0 0.0
        %1923 = vmatprep.subr.mxu0 0.0
        %1924 = vmatpush1.msra.mxu0 0.0
        %1925 = vmatprep.subr.mxu0 0.0
        %1926 = vmatpush1.msra.mxu0 0.0
        %1927 = vmatprep.subr.mxu0 0.0
        %1928 = vmatpush1.msra.mxu0 0.0
        %1929 = vmatprep.subr.mxu0 0.0
        %1930 = vmatpush1.msra.mxu0 0.0
        %1931 = vmatprep.subr.mxu0 0.0
        %1932 = vmatpush1.msra.mxu0 0.0
        %1933 = vmatprep.subr.mxu0 0.0
        %1934 = vmatpush1.msra.mxu0 0.0
        %1935 = vmatprep.subr.mxu0 0.0
        %1936 = vmatpush1.msra.mxu0 0.0
        %1937 = vmatprep.subr.mxu0 0.0
        %1938 = vmatpush1.msra.mxu0 0.0
        %1939 = vmatprep.subr.mxu0 0.0
        %1940 = vmatpush1.msra.mxu0 0.0
        %1941 = vmatprep.subr.mxu0 0.0
        %1942 = vmatpush1.msra.mxu0 0.0
        %1943 = vmatprep.subr.mxu0 0.0
        %1944 = vmatpush1.msra.mxu0 0.0
        %1945 = vmatprep.subr.mxu0 0.0
        %1946 = vmatpush1.msra.mxu0 0.0
        %1947 = vmatprep.subr.mxu0 0.0
        %1948 = vmatpush1.msra.mxu0 0.0
        %1949 = vmatprep.subr.mxu0 0.0
        %1950 = vmatpush1.msra.mxu0 0.0
        %1951 = vmatprep.subr.mxu0 0.0
        %1952 = vmatpush1.msra.mxu0 0.0
        %1953 = vmatprep.mubr.f32.mxu0 0.0
        %v1954 = vand.u32 %v1862, 4294901760
        %v1955 = vsub.f32 %v1862, %v1954
        %v1956 = vand.u32 %v1955, 4294901760
        %v1957 = vsub.f32 %v1955, %v1956
        %v1958 = vand.u32 %v1957, 4294901760
        %1959 = vmatmul.mubr.f32.gmra.mrb[0].mxu0 %v1958
        %v1960 = vpop.f32.mrb[0].mxu0
        %v1961 = vadd.f32 %v1860, %v1960
        %v1962 = vpop.f32.mrb[0].mxu0
        %1963 = vmatprep.mubr.f32.mxu0 0.0
        %v1964 = vand.u32 %v1865, 4294901760
        %v1965 = vsub.f32 %v1865, %v1964
        %v1966 = vand.u32 %v1965, 4294901760
        %v1967 = vsub.f32 %v1965, %v1966
        %v1968 = vand.u32 %v1967, 4294901760
        %1969 = vmatmul.mubr.f32.gmra.mrb[0].mxu0 %v1968
        %v1970 = vpop.f32.mrb[0].mxu0
        %v1971 = vadd.f32 %v1860, %v1970
        %v1972 = vpop.f32.mrb[0].mxu0
        %1973 = vmatprep.mubr.f32.mxu0 0.0
        %v1974 = vand.u32 %v1868, 4294901760
        %v1975 = vsub.f32 %v1868, %v1974
        %v1976 = vand.u32 %v1975, 4294901760
        %v1977 = vsub.f32 %v1975, %v1976
        %v1978 = vand.u32 %v1977, 4294901760
        %1979 = vmatmul.mubr.f32.gmra.mrb[0].mxu0 %v1978
        %v1980 = vpop.f32.mrb[0].mxu0
        %v1981 = vadd.f32 %v1860, %v1980
        %v1982 = vpop.f32.mrb[0].mxu0
        %1983 = vmatprep.mubr.f32.mxu0 0.0
        %v1984 = vand.u32 %v1871, 4294901760
        %v1985 = vsub.f32 %v1871, %v1984
        %v1986 = vand.u32 %v1985, 4294901760
        %v1987 = vsub.f32 %v1985, %v1986
        %v1988 = vand.u32 %v1987, 4294901760
        %1989 = vmatmul.mubr.f32.gmra.mrb[0].mxu0 %v1988
        %v1990 = vpop.f32.mrb[0].mxu0
        %v1991 = vadd.f32 %v1860, %v1990
        %v1992 = vpop.f32.mrb[0].mxu0
        %1993 = vmatprep.mubr.f32.mxu0 0.0
        %v1994 = vand.u32 %v1874, 4294901760
        %v1995 = vsub.f32 %v1874, %v1994
        %v1996 = vand.u32 %v1995, 4294901760
        %v1997 = vsub.f32 %v1995, %v1996
        %v1998 = vand.u32 %v1997, 4294901760
        %1999 = vmatmul.mubr.f32.gmra.mrb[0].mxu0 %v1998
        %v2000 = vpop.f32.mrb[0].mxu0
        %v2001 = vadd.f32 %v1860, %v2000
        %v2002 = vpop.f32.mrb[0].mxu0
        %2003 = vmatprep.mubr.f32.mxu0 0.0
        %v2004 = vand.u32 %v1877, 4294901760
        %v2005 = vsub.f32 %v1877, %v2004
        %v2006 = vand.u32 %v2005, 4294901760
        %v2007 = vsub.f32 %v2005, %v2006
        %v2008 = vand.u32 %v2007, 4294901760
        %2009 = vmatmul.mubr.f32.gmra.mrb[0].mxu0 %v2008
        %v2010 = vpop.f32.mrb[0].mxu0
        %v2011 = vadd.f32 %v1860, %v2010
        %v2012 = vpop.f32.mrb[0].mxu0
        %2013 = vmatprep.mubr.f32.mxu0 0.0
        %v2014 = vand.u32 %v1880, 4294901760
        %v2015 = vsub.f32 %v1880, %v2014
        %v2016 = vand.u32 %v2015, 4294901760
        %v2017 = vsub.f32 %v2015, %v2016
        %v2018 = vand.u32 %v2017, 4294901760
        %2019 = vmatmul.mubr.f32.gmra.mrb[0].mxu0 %v2018
        %v2020 = vpop.f32.mrb[0].mxu0
        %v2021 = vadd.f32 %v1860, %v2020
        %v2022 = vpop.f32.mrb[0].mxu0
        %2023 = vmatprep.mubr.f32.mxu0 0.0
        %v2024 = vand.u32 %v1883, 4294901760
        %v2025 = vsub.f32 %v1883, %v2024
        %v2026 = vand.u32 %v2025, 4294901760
        %v2027 = vsub.f32 %v2025, %v2026
        %v2028 = vand.u32 %v2027, 4294901760
        %2029 = vmatmul.mubr.f32.gmra.mrb[0].mxu0 %v2028
        %v2030 = vpop.f32.mrb[0].mxu0
        %v2031 = vadd.f32 %v1860, %v2030
        %v2032 = vpop.f32.mrb[0].mxu0
        %2033 = vdwg.mxu0
        %2034 = vmatprep.subr.mxu0 0.0
        %v2035 = vand.u32 %v1853, 4294901760
        %v2036 = vsub.f32 %v1853, %v2035
        %v2037 = vand.u32 %v2036, 4294901760
        %v2038 = vsub.f32 %v2036, %v2037
        %v2039 = vand.u32 %v2038, 4294901760
        %2040 = vmatpush1.msra.mxu0 %v2039
        %2041 = vmatprep.subr.mxu0 0.0
        %v2042 = vand.u32 %v1854, 4294901760
        %v2043 = vsub.f32 %v1854, %v2042
        %v2044 = vand.u32 %v2043, 4294901760
        %v2045 = vsub.f32 %v2043, %v2044
        %v2046 = vand.u32 %v2045, 4294901760
        %2047 = vmatpush1.msra.mxu0 %v2046
        %2048 = vmatprep.subr.mxu0 0.0
        %v2049 = vand.u32 %v1855, 4294901760
        %v2050 = vsub.f32 %v1855, %v2049
        %v2051 = vand.u32 %v2050, 4294901760
        %v2052 = vsub.f32 %v2050, %v2051
        %v2053 = vand.u32 %v2052, 4294901760
        %2054 = vmatpush1.msra.mxu0 %v2053
        %2055 = vmatprep.subr.mxu0 0.0
        %v2056 = vand.u32 %v1856, 4294901760
        %v2057 = vsub.f32 %v1856, %v2056
        %v2058 = vand.u32 %v2057, 4294901760
        %v2059 = vsub.f32 %v2057, %v2058
        %v2060 = vand.u32 %v2059, 4294901760
        %2061 = vmatpush1.msra.mxu0 %v2060
        %2062 = vmatprep.subr.mxu0 0.0
        %2063 = vmatpush1.msra.mxu0 0.0
        %2064 = vmatprep.subr.mxu0 0.0
        %2065 = vmatpush1.msra.mxu0 0.0
        %2066 = vmatprep.subr.mxu0 0.0
        %2067 = vmatpush1.msra.mxu0 0.0
        %2068 = vmatprep.subr.mxu0 0.0
        %2069 = vmatpush1.msra.mxu0 0.0
        %2070 = vmatprep.subr.mxu0 0.0
        %2071 = vmatpush1.msra.mxu0 0.0
        %2072 = vmatprep.subr.mxu0 0.0
        %2073 = vmatpush1.msra.mxu0 0.0
        %2074 = vmatprep.subr.mxu0 0.0
        %2075 = vmatpush1.msra.mxu0 0.0
        %2076 = vmatprep.subr.mxu0 0.0
        %2077 = vmatpush1.msra.mxu0 0.0
        %2078 = vmatprep.subr.mxu0 0.0
        %2079 = vmatpush1.msra.mxu0 0.0
        %2080 = vmatprep.subr.mxu0 0.0
        %2081 = vmatpush1.msra.mxu0 0.0
        %2082 = vmatprep.subr.mxu0 0.0
        %2083 = vmatpush1.msra.mxu0 0.0
        %2084 = vmatprep.subr.mxu0 0.0
        %2085 = vmatpush1.msra.mxu0 0.0
        %2086 = vmatprep.subr.mxu0 0.0
        %2087 = vmatpush1.msra.mxu0 0.0
        %2088 = vmatprep.subr.mxu0 0.0
        %2089 = vmatpush1.msra.mxu0 0.0
        %2090 = vmatprep.subr.mxu0 0.0
        %2091 = vmatpush1.msra.mxu0 0.0
        %2092 = vmatprep.subr.mxu0 0.0
        %2093 = vmatpush1.msra.mxu0 0.0
        %2094 = vmatprep.subr.mxu0 0.0
        %2095 = vmatpush1.msra.mxu0 0.0
        %2096 = vmatprep.subr.mxu0 0.0
        %2097 = vmatpush1.msra.mxu0 0.0
        %2098 = vmatprep.subr.mxu0 0.0
        %2099 = vmatpush1.msra.mxu0 0.0
        %2100 = vmatprep.subr.mxu0 0.0
        %2101 = vmatpush1.msra.mxu0 0.0
        %2102 = vmatprep.subr.mxu0 0.0
        %2103 = vmatpush1.msra.mxu0 0.0
        %2104 = vmatprep.subr.mxu0 0.0
        %2105 = vmatpush1.msra.mxu0 0.0
        %2106 = vmatprep.subr.mxu0 0.0
        %2107 = vmatpush1.msra.mxu0 0.0
        %2108 = vmatprep.subr.mxu0 0.0
        %2109 = vmatpush1.msra.mxu0 0.0
        %2110 = vmatprep.subr.mxu0 0.0
        %2111 = vmatpush1.msra.mxu0 0.0
        %2112 = vmatprep.subr.mxu0 0.0
        %2113 = vmatpush1.msra.mxu0 0.0
        %2114 = vmatprep.subr.mxu0 0.0
        %2115 = vmatpush1.msra.mxu0 0.0
        %2116 = vmatprep.subr.mxu0 0.0
        %2117 = vmatpush1.msra.mxu0 0.0
        %2118 = vmatprep.mubr.f32.mxu0 0.0
        %v2119 = vand.u32 %v1862, 4294901760
        %2120 = vmatmul.mubr.f32.gmra.mrb[0].mxu0 %v2119
        %v2121 = vpop.f32.mrb[0].mxu0
        %v2122 = vadd.f32 %v1961, %v2121
        %v2123 = vpop.f32.mrb[0].mxu0
        %2124 = vmatprep.mubr.f32.mxu0 0.0
        %v2125 = vand.u32 %v1865, 4294901760
        %2126 = vmatmul.mubr.f32.gmra.mrb[0].mxu0 %v2125
        %v2127 = vpop.f32.mrb[0].mxu0
        %v2128 = vadd.f32 %v1971, %v2127
        %v2129 = vpop.f32.mrb[0].mxu0
        %2130 = vmatprep.mubr.f32.mxu0 0.0
        %v2131 = vand.u32 %v1868, 4294901760
        %2132 = vmatmul.mubr.f32.gmra.mrb[0].mxu0 %v2131
        %v2133 = vpop.f32.mrb[0].mxu0
        %v2134 = vadd.f32 %v1981, %v2133
        %v2135 = vpop.f32.mrb[0].mxu0
        %2136 = vmatprep.mubr.f32.mxu0 0.0
        %v2137 = vand.u32 %v1871, 4294901760
        %2138 = vmatmul.mubr.f32.gmra.mrb[0].mxu0 %v2137
        %v2139 = vpop.f32.mrb[0].mxu0
        %v2140 = vadd.f32 %v1991, %v2139
        %v2141 = vpop.f32.mrb[0].mxu0
        %2142 = vmatprep.mubr.f32.mxu0 0.0
        %v2143 = vand.u32 %v1874, 4294901760
        %2144 = vmatmul.mubr.f32.gmra.mrb[0].mxu0 %v2143
        %v2145 = vpop.f32.mrb[0].mxu0
        %v2146 = vadd.f32 %v2001, %v2145
        %v2147 = vpop.f32.mrb[0].mxu0
        %2148 = vmatprep.mubr.f32.mxu0 0.0
        %v2149 = vand.u32 %v1877, 4294901760
        %2150 = vmatmul.mubr.f32.gmra.mrb[0].mxu0 %v2149
        %v2151 = vpop.f32.mrb[0].mxu0
        %v2152 = vadd.f32 %v2011, %v2151
        %v2153 = vpop.f32.mrb[0].mxu0
        %2154 = vmatprep.mubr.f32.mxu0 0.0
        %v2155 = vand.u32 %v1880, 4294901760
        %2156 = vmatmul.mubr.f32.gmra.mrb[0].mxu0 %v2155
        %v2157 = vpop.f32.mrb[0].mxu0
        %v2158 = vadd.f32 %v2021, %v2157
        %v2159 = vpop.f32.mrb[0].mxu0
        %2160 = vmatprep.mubr.f32.mxu0 0.0
        %v2161 = vand.u32 %v1883, 4294901760
        %2162 = vmatmul.mubr.f32.gmra.mrb[0].mxu0 %v2161
        %v2163 = vpop.f32.mrb[0].mxu0
        %v2164 = vadd.f32 %v2031, %v2163
        %v2165 = vpop.f32.mrb[0].mxu0
        %2166 = vdwg.mxu0
        %2167 = vmatprep.subr.mxu0 0.0
        %v2168 = vand.u32 %v1853, 4294901760
        %v2169 = vsub.f32 %v1853, %v2168
        %2170 = vmatpush1.msra.mxu0 %v2169
        %2171 = vmatprep.subr.mxu0 0.0
        %v2172 = vand.u32 %v1854, 4294901760
        %v2173 = vsub.f32 %v1854, %v2172
        %2174 = vmatpush1.msra.mxu0 %v2173
        %2175 = vmatprep.subr.mxu0 0.0
        %v2176 = vand.u32 %v1855, 4294901760
        %v2177 = vsub.f32 %v1855, %v2176
        %2178 = vmatpush1.msra.mxu0 %v2177
        %2179 = vmatprep.subr.mxu0 0.0
        %v2180 = vand.u32 %v1856, 4294901760
        %v2181 = vsub.f32 %v1856, %v2180
        %2182 = vmatpush1.msra.mxu0 %v2181
        %2183 = vmatprep.subr.mxu0 0.0
        %2184 = vmatpush1.msra.mxu0 0.0
        %2185 = vmatprep.subr.mxu0 0.0
        %2186 = vmatpush1.msra.mxu0 0.0
        %2187 = vmatprep.subr.mxu0 0.0
        %2188 = vmatpush1.msra.mxu0 0.0
        %2189 = vmatprep.subr.mxu0 0.0
        %2190 = vmatpush1.msra.mxu0 0.0
        %2191 = vmatprep.subr.mxu0 0.0
        %2192 = vmatpush1.msra.mxu0 0.0
        %2193 = vmatprep.subr.mxu0 0.0
        %2194 = vmatpush1.msra.mxu0 0.0
        %2195 = vmatprep.subr.mxu0 0.0
        %2196 = vmatpush1.msra.mxu0 0.0
        %2197 = vmatprep.subr.mxu0 0.0
        %2198 = vmatpush1.msra.mxu0 0.0
        %2199 = vmatprep.subr.mxu0 0.0
        %2200 = vmatpush1.msra.mxu0 0.0
        %2201 = vmatprep.subr.mxu0 0.0
        %2202 = vmatpush1.msra.mxu0 0.0
        %2203 = vmatprep.subr.mxu0 0.0
        %2204 = vmatpush1.msra.mxu0 0.0
        %2205 = vmatprep.subr.mxu0 0.0
        %2206 = vmatpush1.msra.mxu0 0.0
        %2207 = vmatprep.subr.mxu0 0.0
        %2208 = vmatpush1.msra.mxu0 0.0
        %2209 = vmatprep.subr.mxu0 0.0
        %2210 = vmatpush1.msra.mxu0 0.0
        %2211 = vmatprep.subr.mxu0 0.0
        %2212 = vmatpush1.msra.mxu0 0.0
        %2213 = vmatprep.subr.mxu0 0.0
        %2214 = vmatpush1.msra.mxu0 0.0
        %2215 = vmatprep.subr.mxu0 0.0
        %2216 = vmatpush1.msra.mxu0 0.0
        %2217 = vmatprep.subr.mxu0 0.0
        %2218 = vmatpush1.msra.mxu0 0.0
        %2219 = vmatprep.subr.mxu0 0.0
        %2220 = vmatpush1.msra.mxu0 0.0
        %2221 = vmatprep.subr.mxu0 0.0
        %2222 = vmatpush1.msra.mxu0 0.0
        %2223 = vmatprep.subr.mxu0 0.0
        %2224 = vmatpush1.msra.mxu0 0.0
        %2225 = vmatprep.subr.mxu0 0.0
        %2226 = vmatpush1.msra.mxu0 0.0
        %2227 = vmatprep.subr.mxu0 0.0
        %2228 = vmatpush1.msra.mxu0 0.0
        %2229 = vmatprep.subr.mxu0 0.0
        %2230 = vmatpush1.msra.mxu0 0.0
        %2231 = vmatprep.subr.mxu0 0.0
        %2232 = vmatpush1.msra.mxu0 0.0
        %2233 = vmatprep.subr.mxu0 0.0
        %2234 = vmatpush1.msra.mxu0 0.0
        %2235 = vmatprep.subr.mxu0 0.0
        %2236 = vmatpush1.msra.mxu0 0.0
        %2237 = vmatprep.subr.mxu0 0.0
        %2238 = vmatpush1.msra.mxu0 0.0
        %2239 = vmatprep.mubr.f32.mxu0 0.0
        %v2240 = vand.u32 %v1862, 4294901760
        %v2241 = vsub.f32 %v1862, %v2240
        %2242 = vmatmul.mubr.f32.gmra.mrb[0].mxu0 %v2241
        %v2243 = vpop.f32.mrb[0].mxu0
        %v2244 = vadd.f32 %v2122, %v2243
        %v2245 = vpop.f32.mrb[0].mxu0
        %2246 = vmatprep.mubr.f32.mxu0 0.0
        %v2247 = vand.u32 %v1865, 4294901760
        %v2248 = vsub.f32 %v1865, %v2247
        %2249 = vmatmul.mubr.f32.gmra.mrb[0].mxu0 %v2248
        %v2250 = vpop.f32.mrb[0].mxu0
        %v2251 = vadd.f32 %v2128, %v2250
        %v2252 = vpop.f32.mrb[0].mxu0
        %2253 = vmatprep.mubr.f32.mxu0 0.0
        %v2254 = vand.u32 %v1868, 4294901760
        %v2255 = vsub.f32 %v1868, %v2254
        %2256 = vmatmul.mubr.f32.gmra.mrb[0].mxu0 %v2255
        %v2257 = vpop.f32.mrb[0].mxu0
        %v2258 = vadd.f32 %v2134, %v2257
        %v2259 = vpop.f32.mrb[0].mxu0
        %2260 = vmatprep.mubr.f32.mxu0 0.0
        %v2261 = vand.u32 %v1871, 4294901760
        %v2262 = vsub.f32 %v1871, %v2261
        %2263 = vmatmul.mubr.f32.gmra.mrb[0].mxu0 %v2262
        %v2264 = vpop.f32.mrb[0].mxu0
        %v2265 = vadd.f32 %v2140, %v2264
        %v2266 = vpop.f32.mrb[0].mxu0
        %2267 = vmatprep.mubr.f32.mxu0 0.0
        %v2268 = vand.u32 %v1874, 4294901760
        %v2269 = vsub.f32 %v1874, %v2268
        %2270 = vmatmul.mubr.f32.gmra.mrb[0].mxu0 %v2269
        %v2271 = vpop.f32.mrb[0].mxu0
        %v2272 = vadd.f32 %v2146, %v2271
        %v2273 = vpop.f32.mrb[0].mxu0
        %2274 = vmatprep.mubr.f32.mxu0 0.0
        %v2275 = vand.u32 %v1877, 4294901760
        %v2276 = vsub.f32 %v1877, %v2275
        %2277 = vmatmul.mubr.f32.gmra.mrb[0].mxu0 %v2276
        %v2278 = vpop.f32.mrb[0].mxu0
        %v2279 = vadd.f32 %v2152, %v2278
        %v2280 = vpop.f32.mrb[0].mxu0
        %2281 = vmatprep.mubr.f32.mxu0 0.0
        %v2282 = vand.u32 %v1880, 4294901760
        %v2283 = vsub.f32 %v1880, %v2282
        %2284 = vmatmul.mubr.f32.gmra.mrb[0].mxu0 %v2283
        %v2285 = vpop.f32.mrb[0].mxu0
        %v2286 = vadd.f32 %v2158, %v2285
        %v2287 = vpop.f32.mrb[0].mxu0
        %2288 = vmatprep.mubr.f32.mxu0 0.0
        %v2289 = vand.u32 %v1883, 4294901760
        %v2290 = vsub.f32 %v1883, %v2289
        %2291 = vmatmul.mubr.f32.gmra.mrb[0].mxu0 %v2290
        %v2292 = vpop.f32.mrb[0].mxu0
        %v2293 = vadd.f32 %v2164, %v2292
        %v2294 = vpop.f32.mrb[0].mxu0
        %2295 = vdwg.mxu0
        %2296 = vmatprep.subr.mxu0 0.0
        %v2297 = vand.u32 %v1853, 4294901760
        %2298 = vmatpush1.msra.mxu0 %v2297
        %2299 = vmatprep.subr.mxu0 0.0
        %v2300 = vand.u32 %v1854, 4294901760
        %2301 = vmatpush1.msra.mxu0 %v2300
        %2302 = vmatprep.subr.mxu0 0.0
        %v2303 = vand.u32 %v1855, 4294901760
        %2304 = vmatpush1.msra.mxu0 %v2303
        %2305 = vmatprep.subr.mxu0 0.0
        %v2306 = vand.u32 %v1856, 4294901760
        %2307 = vmatpush1.msra.mxu0 %v2306
        %2308 = vmatprep.subr.mxu0 0.0
        %2309 = vmatpush1.msra.mxu0 0.0
        %2310 = vmatprep.subr.mxu0 0.0
        %2311 = vmatpush1.msra.mxu0 0.0
        %2312 = vmatprep.subr.mxu0 0.0
        %2313 = vmatpush1.msra.mxu0 0.0
        %2314 = vmatprep.subr.mxu0 0.0
        %2315 = vmatpush1.msra.mxu0 0.0
        %2316 = vmatprep.subr.mxu0 0.0
        %2317 = vmatpush1.msra.mxu0 0.0
        %2318 = vmatprep.subr.mxu0 0.0
        %2319 = vmatpush1.msra.mxu0 0.0
        %2320 = vmatprep.subr.mxu0 0.0
        %2321 = vmatpush1.msra.mxu0 0.0
        %2322 = vmatprep.subr.mxu0 0.0
        %2323 = vmatpush1.msra.mxu0 0.0
        %2324 = vmatprep.subr.mxu0 0.0
        %2325 = vmatpush1.msra.mxu0 0.0
        %2326 = vmatprep.subr.mxu0 0.0
        %2327 = vmatpush1.msra.mxu0 0.0
        %2328 = vmatprep.subr.mxu0 0.0
        %2329 = vmatpush1.msra.mxu0 0.0
        %2330 = vmatprep.subr.mxu0 0.0
        %2331 = vmatpush1.msra.mxu0 0.0
        %2332 = vmatprep.subr.mxu0 0.0
        %2333 = vmatpush1.msra.mxu0 0.0
        %2334 = vmatprep.subr.mxu0 0.0
        %2335 = vmatpush1.msra.mxu0 0.0
        %2336 = vmatprep.subr.mxu0 0.0
        %2337 = vmatpush1.msra.mxu0 0.0
        %2338 = vmatprep.subr.mxu0 0.0
        %2339 = vmatpush1.msra.mxu0 0.0
        %2340 = vmatprep.subr.mxu0 0.0
        %2341 = vmatpush1.msra.mxu0 0.0
        %2342 = vmatprep.subr.mxu0 0.0
        %2343 = vmatpush1.msra.mxu0 0.0
        %2344 = vmatprep.subr.mxu0 0.0
        %2345 = vmatpush1.msra.mxu0 0.0
        %2346 = vmatprep.subr.mxu0 0.0
        %2347 = vmatpush1.msra.mxu0 0.0
        %2348 = vmatprep.subr.mxu0 0.0
        %2349 = vmatpush1.msra.mxu0 0.0
        %2350 = vmatprep.subr.mxu0 0.0
        %2351 = vmatpush1.msra.mxu0 0.0
        %2352 = vmatprep.subr.mxu0 0.0
        %2353 = vmatpush1.msra.mxu0 0.0
        %2354 = vmatprep.subr.mxu0 0.0
        %2355 = vmatpush1.msra.mxu0 0.0
        %2356 = vmatprep.subr.mxu0 0.0
        %2357 = vmatpush1.msra.mxu0 0.0
        %2358 = vmatprep.subr.mxu0 0.0
        %2359 = vmatpush1.msra.mxu0 0.0
        %2360 = vmatprep.subr.mxu0 0.0
        %2361 = vmatpush1.msra.mxu0 0.0
        %2362 = vmatprep.subr.mxu0 0.0
        %2363 = vmatpush1.msra.mxu0 0.0
        %2364 = vmatprep.mubr.f32.mxu0 0.0
        %v2365 = vand.u32 %v1862, 4294901760
        %v2366 = vsub.f32 %v1862, %v2365
        %v2367 = vand.u32 %v2366, 4294901760
        %2368 = vmatmul.mubr.f32.gmra.mrb[0].mxu0 %v2367
        %v2369 = vpop.f32.mrb[0].mxu0
        %v2370 = vadd.f32 %v2244, %v2369
        %v2371 = vpop.f32.mrb[0].mxu0
        %2372 = vmatprep.mubr.f32.mxu0 0.0
        %v2373 = vand.u32 %v1865, 4294901760
        %v2374 = vsub.f32 %v1865, %v2373
        %v2375 = vand.u32 %v2374, 4294901760
        %2376 = vmatmul.mubr.f32.gmra.mrb[0].mxu0 %v2375
        %v2377 = vpop.f32.mrb[0].mxu0
        %v2378 = vadd.f32 %v2251, %v2377
        %v2379 = vpop.f32.mrb[0].mxu0
        %2380 = vmatprep.mubr.f32.mxu0 0.0
        %v2381 = vand.u32 %v1868, 4294901760
        %v2382 = vsub.f32 %v1868, %v2381
        %v2383 = vand.u32 %v2382, 4294901760
        %2384 = vmatmul.mubr.f32.gmra.mrb[0].mxu0 %v2383
        %v2385 = vpop.f32.mrb[0].mxu0
        %v2386 = vadd.f32 %v2258, %v2385
        %v2387 = vpop.f32.mrb[0].mxu0
        %2388 = vmatprep.mubr.f32.mxu0 0.0
        %v2389 = vand.u32 %v1871, 4294901760
        %v2390 = vsub.f32 %v1871, %v2389
        %v2391 = vand.u32 %v2390, 4294901760
        %2392 = vmatmul.mubr.f32.gmra.mrb[0].mxu0 %v2391
        %v2393 = vpop.f32.mrb[0].mxu0
        %v2394 = vadd.f32 %v2265, %v2393
        %v2395 = vpop.f32.mrb[0].mxu0
        %2396 = vmatprep.mubr.f32.mxu0 0.0
        %v2397 = vand.u32 %v1874, 4294901760
        %v2398 = vsub.f32 %v1874, %v2397
        %v2399 = vand.u32 %v2398, 4294901760
        %2400 = vmatmul.mubr.f32.gmra.mrb[0].mxu0 %v2399
        %v2401 = vpop.f32.mrb[0].mxu0
        %v2402 = vadd.f32 %v2272, %v2401
        %v2403 = vpop.f32.mrb[0].mxu0
        %2404 = vmatprep.mubr.f32.mxu0 0.0
        %v2405 = vand.u32 %v1877, 4294901760
        %v2406 = vsub.f32 %v1877, %v2405
        %v2407 = vand.u32 %v2406, 4294901760
        %2408 = vmatmul.mubr.f32.gmra.mrb[0].mxu0 %v2407
        %v2409 = vpop.f32.mrb[0].mxu0
        %v2410 = vadd.f32 %v2279, %v2409
        %v2411 = vpop.f32.mrb[0].mxu0
        %2412 = vmatprep.mubr.f32.mxu0 0.0
        %v2413 = vand.u32 %v1880, 4294901760
        %v2414 = vsub.f32 %v1880, %v2413
        %v2415 = vand.u32 %v2414, 4294901760
        %2416 = vmatmul.mubr.f32.gmra.mrb[0].mxu0 %v2415
        %v2417 = vpop.f32.mrb[0].mxu0
        %v2418 = vadd.f32 %v2286, %v2417
        %v2419 = vpop.f32.mrb[0].mxu0
        %2420 = vmatprep.mubr.f32.mxu0 0.0
        %v2421 = vand.u32 %v1883, 4294901760
        %v2422 = vsub.f32 %v1883, %v2421
        %v2423 = vand.u32 %v2422, 4294901760
        %2424 = vmatmul.mubr.f32.gmra.mrb[0].mxu0 %v2423
        %v2425 = vpop.f32.mrb[0].mxu0
        %v2426 = vadd.f32 %v2293, %v2425
        %v2427 = vpop.f32.mrb[0].mxu0
        %2428 = vdwg.mxu0
        %2429 = vmatprep.subr.mxu0 0.0
        %v2430 = vand.u32 %v1853, 4294901760
        %v2431 = vsub.f32 %v1853, %v2430
        %v2432 = vand.u32 %v2431, 4294901760
        %2433 = vmatpush1.msra.mxu0 %v2432
        %2434 = vmatprep.subr.mxu0 0.0
        %v2435 = vand.u32 %v1854, 4294901760
        %v2436 = vsub.f32 %v1854, %v2435
        %v2437 = vand.u32 %v2436, 4294901760
        %2438 = vmatpush1.msra.mxu0 %v2437
        %2439 = vmatprep.subr.mxu0 0.0
        %v2440 = vand.u32 %v1855, 4294901760
        %v2441 = vsub.f32 %v1855, %v2440
        %v2442 = vand.u32 %v2441, 4294901760
        %2443 = vmatpush1.msra.mxu0 %v2442
        %2444 = vmatprep.subr.mxu0 0.0
        %v2445 = vand.u32 %v1856, 4294901760
        %v2446 = vsub.f32 %v1856, %v2445
        %v2447 = vand.u32 %v2446, 4294901760
        %2448 = vmatpush1.msra.mxu0 %v2447
        %2449 = vmatprep.subr.mxu0 0.0
        %2450 = vmatpush1.msra.mxu0 0.0
        %2451 = vmatprep.subr.mxu0 0.0
        %2452 = vmatpush1.msra.mxu0 0.0
        %2453 = vmatprep.subr.mxu0 0.0
        %2454 = vmatpush1.msra.mxu0 0.0
        %2455 = vmatprep.subr.mxu0 0.0
        %2456 = vmatpush1.msra.mxu0 0.0
        %2457 = vmatprep.subr.mxu0 0.0
        %2458 = vmatpush1.msra.mxu0 0.0
        %2459 = vmatprep.subr.mxu0 0.0
        %2460 = vmatpush1.msra.mxu0 0.0
        %2461 = vmatprep.subr.mxu0 0.0
        %2462 = vmatpush1.msra.mxu0 0.0
        %2463 = vmatprep.subr.mxu0 0.0
        %2464 = vmatpush1.msra.mxu0 0.0
        %2465 = vmatprep.subr.mxu0 0.0
        %2466 = vmatpush1.msra.mxu0 0.0
        %2467 = vmatprep.subr.mxu0 0.0
        %2468 = vmatpush1.msra.mxu0 0.0
        %2469 = vmatprep.subr.mxu0 0.0
        %2470 = vmatpush1.msra.mxu0 0.0
        %2471 = vmatprep.subr.mxu0 0.0
        %2472 = vmatpush1.msra.mxu0 0.0
        %2473 = vmatprep.subr.mxu0 0.0
        %2474 = vmatpush1.msra.mxu0 0.0
        %2475 = vmatprep.subr.mxu0 0.0
        %2476 = vmatpush1.msra.mxu0 0.0
        %2477 = vmatprep.subr.mxu0 0.0
        %2478 = vmatpush1.msra.mxu0 0.0
        %2479 = vmatprep.subr.mxu0 0.0
        %2480 = vmatpush1.msra.mxu0 0.0
        %2481 = vmatprep.subr.mxu0 0.0
        %2482 = vmatpush1.msra.mxu0 0.0
        %2483 = vmatprep.subr.mxu0 0.0
        %2484 = vmatpush1.msra.mxu0 0.0
        %2485 = vmatprep.subr.mxu0 0.0
        %2486 = vmatpush1.msra.mxu0 0.0
        %2487 = vmatprep.subr.mxu0 0.0
        %2488 = vmatpush1.msra.mxu0 0.0
        %2489 = vmatprep.subr.mxu0 0.0
        %2490 = vmatpush1.msra.mxu0 0.0
        %2491 = vmatprep.subr.mxu0 0.0
        %2492 = vmatpush1.msra.mxu0 0.0
        %2493 = vmatprep.subr.mxu0 0.0
        %2494 = vmatpush1.msra.mxu0 0.0
        %2495 = vmatprep.subr.mxu0 0.0
        %2496 = vmatpush1.msra.mxu0 0.0
        %2497 = vmatprep.subr.mxu0 0.0
        %2498 = vmatpush1.msra.mxu0 0.0
        %2499 = vmatprep.subr.mxu0 0.0
        %2500 = vmatpush1.msra.mxu0 0.0
        %2501 = vmatprep.subr.mxu0 0.0
        %2502 = vmatpush1.msra.mxu0 0.0
        %2503 = vmatprep.subr.mxu0 0.0
        %2504 = vmatpush1.msra.mxu0 0.0
        %2505 = vmatprep.mubr.f32.mxu0 0.0
        %v2506 = vand.u32 %v1862, 4294901760
        %2507 = vmatmul.mubr.f32.gmra.mrb[0].mxu0 %v2506
        %v2508 = vpop.f32.mrb[0].mxu0
        %v2509 = vadd.f32 %v2370, %v2508
        %v2510 = vpop.f32.mrb[0].mxu0
        %2511 = vmatprep.mubr.f32.mxu0 0.0
        %v2512 = vand.u32 %v1865, 4294901760
        %2513 = vmatmul.mubr.f32.gmra.mrb[0].mxu0 %v2512
        %v2514 = vpop.f32.mrb[0].mxu0
        %v2515 = vadd.f32 %v2378, %v2514
        %v2516 = vpop.f32.mrb[0].mxu0
        %2517 = vmatprep.mubr.f32.mxu0 0.0
        %v2518 = vand.u32 %v1868, 4294901760
        %2519 = vmatmul.mubr.f32.gmra.mrb[0].mxu0 %v2518
        %v2520 = vpop.f32.mrb[0].mxu0
        %v2521 = vadd.f32 %v2386, %v2520
        %v2522 = vpop.f32.mrb[0].mxu0
        %2523 = vmatprep.mubr.f32.mxu0 0.0
        %v2524 = vand.u32 %v1871, 4294901760
        %2525 = vmatmul.mubr.f32.gmra.mrb[0].mxu0 %v2524
        %v2526 = vpop.f32.mrb[0].mxu0
        %v2527 = vadd.f32 %v2394, %v2526
        %v2528 = vpop.f32.mrb[0].mxu0
        %2529 = vmatprep.mubr.f32.mxu0 0.0
        %v2530 = vand.u32 %v1874, 4294901760
        %2531 = vmatmul.mubr.f32.gmra.mrb[0].mxu0 %v2530
        %v2532 = vpop.f32.mrb[0].mxu0
        %v2533 = vadd.f32 %v2402, %v2532
        %v2534 = vpop.f32.mrb[0].mxu0
        %2535 = vmatprep.mubr.f32.mxu0 0.0
        %v2536 = vand.u32 %v1877, 4294901760
        %2537 = vmatmul.mubr.f32.gmra.mrb[0].mxu0 %v2536
        %v2538 = vpop.f32.mrb[0].mxu0
        %v2539 = vadd.f32 %v2410, %v2538
        %v2540 = vpop.f32.mrb[0].mxu0
        %2541 = vmatprep.mubr.f32.mxu0 0.0
        %v2542 = vand.u32 %v1880, 4294901760
        %2543 = vmatmul.mubr.f32.gmra.mrb[0].mxu0 %v2542
        %v2544 = vpop.f32.mrb[0].mxu0
        %v2545 = vadd.f32 %v2418, %v2544
        %v2546 = vpop.f32.mrb[0].mxu0
        %2547 = vmatprep.mubr.f32.mxu0 0.0
        %v2548 = vand.u32 %v1883, 4294901760
        %2549 = vmatmul.mubr.f32.gmra.mrb[0].mxu0 %v2548
        %v2550 = vpop.f32.mrb[0].mxu0
        %v2551 = vadd.f32 %v2426, %v2550
        %v2552 = vpop.f32.mrb[0].mxu0
        %2553 = vdwg.mxu0
        %2554 = vmatprep.subr.mxu0 0.0
        %v2555 = vand.u32 %v1853, 4294901760
        %2556 = vmatpush1.msra.mxu0 %v2555
        %2557 = vmatprep.subr.mxu0 0.0
        %v2558 = vand.u32 %v1854, 4294901760
        %2559 = vmatpush1.msra.mxu0 %v2558
        %2560 = vmatprep.subr.mxu0 0.0
        %v2561 = vand.u32 %v1855, 4294901760
        %2562 = vmatpush1.msra.mxu0 %v2561
        %2563 = vmatprep.subr.mxu0 0.0
        %v2564 = vand.u32 %v1856, 4294901760
        %2565 = vmatpush1.msra.mxu0 %v2564
        %2566 = vmatprep.subr.mxu0 0.0
        %2567 = vmatpush1.msra.mxu0 0.0
        %2568 = vmatprep.subr.mxu0 0.0
        %2569 = vmatpush1.msra.mxu0 0.0
        %2570 = vmatprep.subr.mxu0 0.0
        %2571 = vmatpush1.msra.mxu0 0.0
        %2572 = vmatprep.subr.mxu0 0.0
        %2573 = vmatpush1.msra.mxu0 0.0
        %2574 = vmatprep.subr.mxu0 0.0
        %2575 = vmatpush1.msra.mxu0 0.0
        %2576 = vmatprep.subr.mxu0 0.0
        %2577 = vmatpush1.msra.mxu0 0.0
        %2578 = vmatprep.subr.mxu0 0.0
        %2579 = vmatpush1.msra.mxu0 0.0
        %2580 = vmatprep.subr.mxu0 0.0
        %2581 = vmatpush1.msra.mxu0 0.0
        %2582 = vmatprep.subr.mxu0 0.0
        %2583 = vmatpush1.msra.mxu0 0.0
        %2584 = vmatprep.subr.mxu0 0.0
        %2585 = vmatpush1.msra.mxu0 0.0
        %2586 = vmatprep.subr.mxu0 0.0
        %2587 = vmatpush1.msra.mxu0 0.0
        %2588 = vmatprep.subr.mxu0 0.0
        %2589 = vmatpush1.msra.mxu0 0.0
        %2590 = vmatprep.subr.mxu0 0.0
        %2591 = vmatpush1.msra.mxu0 0.0
        %2592 = vmatprep.subr.mxu0 0.0
        %2593 = vmatpush1.msra.mxu0 0.0
        %2594 = vmatprep.subr.mxu0 0.0
        %2595 = vmatpush1.msra.mxu0 0.0
        %2596 = vmatprep.subr.mxu0 0.0
        %2597 = vmatpush1.msra.mxu0 0.0
        %2598 = vmatprep.subr.mxu0 0.0
        %2599 = vmatpush1.msra.mxu0 0.0
        %2600 = vmatprep.subr.mxu0 0.0
        %2601 = vmatpush1.msra.mxu0 0.0
        %2602 = vmatprep.subr.mxu0 0.0
        %2603 = vmatpush1.msra.mxu0 0.0
        %2604 = vmatprep.subr.mxu0 0.0
        %2605 = vmatpush1.msra.mxu0 0.0
        %2606 = vmatprep.subr.mxu0 0.0
        %2607 = vmatpush1.msra.mxu0 0.0
        %2608 = vmatprep.subr.mxu0 0.0
        %2609 = vmatpush1.msra.mxu0 0.0
        %2610 = vmatprep.subr.mxu0 0.0
        %2611 = vmatpush1.msra.mxu0 0.0
        %2612 = vmatprep.subr.mxu0 0.0
        %2613 = vmatpush1.msra.mxu0 0.0
        %2614 = vmatprep.subr.mxu0 0.0
        %2615 = vmatpush1.msra.mxu0 0.0
        %2616 = vmatprep.subr.mxu0 0.0
        %2617 = vmatpush1.msra.mxu0 0.0
        %2618 = vmatprep.subr.mxu0 0.0
        %2619 = vmatpush1.msra.mxu0 0.0
        %2620 = vmatprep.subr.mxu0 0.0
        %2621 = vmatpush1.msra.mxu0 0.0
        %2622 = vmatprep.mubr.f32.mxu0 0.0
        %v2623 = vand.u32 %v1862, 4294901760
        %2624 = vmatmul.mubr.f32.gmra.mrb[0].mxu0 %v2623
        %v2625 = vpop.f32.mrb[0].mxu0
        %v2626 = vadd.f32 %v2509, %v2625
        %v2627 = vpop.f32.mrb[0].mxu0
        %2628 = vmatprep.mubr.f32.mxu0 0.0
        %v2629 = vand.u32 %v1865, 4294901760
        %2630 = vmatmul.mubr.f32.gmra.mrb[0].mxu0 %v2629
        %v2631 = vpop.f32.mrb[0].mxu0
        %v2632 = vadd.f32 %v2515, %v2631
        %v2633 = vpop.f32.mrb[0].mxu0
        %2634 = vmatprep.mubr.f32.mxu0 0.0
        %v2635 = vand.u32 %v1868, 4294901760
        %2636 = vmatmul.mubr.f32.gmra.mrb[0].mxu0 %v2635
        %v2637 = vpop.f32.mrb[0].mxu0
        %v2638 = vadd.f32 %v2521, %v2637
        %v2639 = vpop.f32.mrb[0].mxu0
        %2640 = vmatprep.mubr.f32.mxu0 0.0
        %v2641 = vand.u32 %v1871, 4294901760
        %2642 = vmatmul.mubr.f32.gmra.mrb[0].mxu0 %v2641
        %v2643 = vpop.f32.mrb[0].mxu0
        %v2644 = vadd.f32 %v2527, %v2643
        %v2645 = vpop.f32.mrb[0].mxu0
        %2646 = vmatprep.mubr.f32.mxu0 0.0
        %v2647 = vand.u32 %v1874, 4294901760
        %2648 = vmatmul.mubr.f32.gmra.mrb[0].mxu0 %v2647
        %v2649 = vpop.f32.mrb[0].mxu0
        %v2650 = vadd.f32 %v2533, %v2649
        %v2651 = vpop.f32.mrb[0].mxu0
        %2652 = vmatprep.mubr.f32.mxu0 0.0
        %v2653 = vand.u32 %v1877, 4294901760
        %2654 = vmatmul.mubr.f32.gmra.mrb[0].mxu0 %v2653
        %v2655 = vpop.f32.mrb[0].mxu0
        %v2656 = vadd.f32 %v2539, %v2655
        %v2657 = vpop.f32.mrb[0].mxu0
        %2658 = vmatprep.mubr.f32.mxu0 0.0
        %v2659 = vand.u32 %v1880, 4294901760
        %2660 = vmatmul.mubr.f32.gmra.mrb[0].mxu0 %v2659
        %v2661 = vpop.f32.mrb[0].mxu0
        %v2662 = vadd.f32 %v2545, %v2661
        %v2663 = vpop.f32.mrb[0].mxu0
        %2664 = vmatprep.mubr.f32.mxu0 0.0
        %v2665 = vand.u32 %v1883, 4294901760
        %2666 = vmatmul.mubr.f32.gmra.mrb[0].mxu0 %v2665
        %v2667 = vpop.f32.mrb[0].mxu0
        %v2668 = vadd.f32 %v2551, %v2667
        %v2669 = vpop.f32.mrb[0].mxu0
        %2670 = vdwg.mxu0
        %v2671 = vtanh.pop %v2626
        %v2672 = vtanh.pop %v2632
        %v2673 = vtanh.pop %v2638
        %v2674 = vtanh.pop %v2644
        %v2675 = vtanh.pop %v2650
        %v2676 = vtanh.pop %v2656
        %v2677 = vtanh.pop %v2662
        %v2678 = vtanh.pop %v2668
        %v2679 = vld [vmem:[#allocation4 + $0x60] sm:$0xff]
        %v2680 = vld [vmem:[#allocation4 + $0x68] sm:$0xff]
        %v2681 = vld [vmem:[#allocation4 + $0x70] sm:$0xff]
        %v2682 = vld [vmem:[#allocation4 + $0x78] sm:$0xff]
        %v2683 = vlaneseq
        %v2684 = vshrl.u32 %v2683, 7
        %v2685 = vsub.s32 3, %v2684
        %v2686 = vrot.slane %v198, %v2685
        %v2688 = vsel %vm208, %v2671, 0
        %v2691 = vsel %vm208, %v2672, 0
        %v2694 = vsel %vm208, %v2673, 0
        %v2697 = vsel %vm208, %v2674, 0
        %v2700 = vsel %vm208, %v2675, 0
        %v2703 = vsel %vm208, %v2676, 0
        %v2706 = vsel %vm208, %v2677, 0
        %v2709 = vsel %vm208, %v2678, 0
        %2711 = vmatprep.subr.mxu0 0.0
        %v2712 = vand.u32 %v2679, 4294901760
        %2713 = vmatpush1.msra.mxu0 %v2712
        %2714 = vmatprep.subr.mxu0 0.0
        %v2715 = vand.u32 %v2680, 4294901760
        %2716 = vmatpush1.msra.mxu0 %v2715
        %2717 = vmatprep.subr.mxu0 0.0
        %v2718 = vand.u32 %v2681, 4294901760
        %2719 = vmatpush1.msra.mxu0 %v2718
        %2720 = vmatprep.subr.mxu0 0.0
        %v2721 = vand.u32 %v2682, 4294901760
        %2722 = vmatpush1.msra.mxu0 %v2721
        %2723 = vmatprep.subr.mxu0 0.0
        %2724 = vmatpush1.msra.mxu0 0.0
        %2725 = vmatprep.subr.mxu0 0.0
        %2726 = vmatpush1.msra.mxu0 0.0
        %2727 = vmatprep.subr.mxu0 0.0
        %2728 = vmatpush1.msra.mxu0 0.0
        %2729 = vmatprep.subr.mxu0 0.0
        %2730 = vmatpush1.msra.mxu0 0.0
        %2731 = vmatprep.subr.mxu0 0.0
        %2732 = vmatpush1.msra.mxu0 0.0
        %2733 = vmatprep.subr.mxu0 0.0
        %2734 = vmatpush1.msra.mxu0 0.0
        %2735 = vmatprep.subr.mxu0 0.0
        %2736 = vmatpush1.msra.mxu0 0.0
        %2737 = vmatprep.subr.mxu0 0.0
        %2738 = vmatpush1.msra.mxu0 0.0
        %2739 = vmatprep.subr.mxu0 0.0
        %2740 = vmatpush1.msra.mxu0 0.0
        %2741 = vmatprep.subr.mxu0 0.0
        %2742 = vmatpush1.msra.mxu0 0.0
        %2743 = vmatprep.subr.mxu0 0.0
        %2744 = vmatpush1.msra.mxu0 0.0
        %2745 = vmatprep.subr.mxu0 0.0
        %2746 = vmatpush1.msra.mxu0 0.0
        %2747 = vmatprep.subr.mxu0 0.0
        %2748 = vmatpush1.msra.mxu0 0.0
        %2749 = vmatprep.subr.mxu0 0.0
        %2750 = vmatpush1.msra.mxu0 0.0
        %2751 = vmatprep.subr.mxu0 0.0
        %2752 = vmatpush1.msra.mxu0 0.0
        %2753 = vmatprep.subr.mxu0 0.0
        %2754 = vmatpush1.msra.mxu0 0.0
        %2755 = vmatprep.subr.mxu0 0.0
        %2756 = vmatpush1.msra.mxu0 0.0
        %2757 = vmatprep.subr.mxu0 0.0
        %2758 = vmatpush1.msra.mxu0 0.0
        %2759 = vmatprep.subr.mxu0 0.0
        %2760 = vmatpush1.msra.mxu0 0.0
        %2761 = vmatprep.subr.mxu0 0.0
        %2762 = vmatpush1.msra.mxu0 0.0
        %2763 = vmatprep.subr.mxu0 0.0
        %2764 = vmatpush1.msra.mxu0 0.0
        %2765 = vmatprep.subr.mxu0 0.0
        %2766 = vmatpush1.msra.mxu0 0.0
        %2767 = vmatprep.subr.mxu0 0.0
        %2768 = vmatpush1.msra.mxu0 0.0
        %2769 = vmatprep.subr.mxu0 0.0
        %2770 = vmatpush1.msra.mxu0 0.0
        %2771 = vmatprep.subr.mxu0 0.0
        %2772 = vmatpush1.msra.mxu0 0.0
        %2773 = vmatprep.subr.mxu0 0.0
        %2774 = vmatpush1.msra.mxu0 0.0
        %2775 = vmatprep.subr.mxu0 0.0
        %2776 = vmatpush1.msra.mxu0 0.0
        %2777 = vmatprep.subr.mxu0 0.0
        %2778 = vmatpush1.msra.mxu0 0.0
        %2779 = vmatprep.mubr.f32.mxu0 0.0
        %v2780 = vand.u32 %v2688, 4294901760
        %v2781 = vsub.f32 %v2688, %v2780
        %v2782 = vand.u32 %v2781, 4294901760
        %v2783 = vsub.f32 %v2781, %v2782
        %v2784 = vand.u32 %v2783, 4294901760
        %2785 = vmatmul.mubr.f32.gmra.mrb[0].mxu0 %v2784
        %v2786 = vpop.f32.mrb[0].mxu0
        %v2787 = vadd.f32 %v2686, %v2786
        %v2788 = vpop.f32.mrb[0].mxu0
        %2789 = vmatprep.mubr.f32.mxu0 0.0
        %v2790 = vand.u32 %v2691, 4294901760
        %v2791 = vsub.f32 %v2691, %v2790
        %v2792 = vand.u32 %v2791, 4294901760
        %v2793 = vsub.f32 %v2791, %v2792
        %v2794 = vand.u32 %v2793, 4294901760
        %2795 = vmatmul.mubr.f32.gmra.mrb[0].mxu0 %v2794
        %v2796 = vpop.f32.mrb[0].mxu0
        %v2797 = vadd.f32 %v2686, %v2796
        %v2798 = vpop.f32.mrb[0].mxu0
        %2799 = vmatprep.mubr.f32.mxu0 0.0
        %v2800 = vand.u32 %v2694, 4294901760
        %v2801 = vsub.f32 %v2694, %v2800
        %v2802 = vand.u32 %v2801, 4294901760
        %v2803 = vsub.f32 %v2801, %v2802
        %v2804 = vand.u32 %v2803, 4294901760
        %2805 = vmatmul.mubr.f32.gmra.mrb[0].mxu0 %v2804
        %v2806 = vpop.f32.mrb[0].mxu0
        %v2807 = vadd.f32 %v2686, %v2806
        %v2808 = vpop.f32.mrb[0].mxu0
        %2809 = vmatprep.mubr.f32.mxu0 0.0
        %v2810 = vand.u32 %v2697, 4294901760
        %v2811 = vsub.f32 %v2697, %v2810
        %v2812 = vand.u32 %v2811, 4294901760
        %v2813 = vsub.f32 %v2811, %v2812
        %v2814 = vand.u32 %v2813, 4294901760
        %2815 = vmatmul.mubr.f32.gmra.mrb[0].mxu0 %v2814
        %v2816 = vpop.f32.mrb[0].mxu0
        %v2817 = vadd.f32 %v2686, %v2816
        %v2818 = vpop.f32.mrb[0].mxu0
        %2819 = vmatprep.mubr.f32.mxu0 0.0
        %v2820 = vand.u32 %v2700, 4294901760
        %v2821 = vsub.f32 %v2700, %v2820
        %v2822 = vand.u32 %v2821, 4294901760
        %v2823 = vsub.f32 %v2821, %v2822
        %v2824 = vand.u32 %v2823, 4294901760
        %2825 = vmatmul.mubr.f32.gmra.mrb[0].mxu0 %v2824
        %v2826 = vpop.f32.mrb[0].mxu0
        %v2827 = vadd.f32 %v2686, %v2826
        %v2828 = vpop.f32.mrb[0].mxu0
        %2829 = vmatprep.mubr.f32.mxu0 0.0
        %v2830 = vand.u32 %v2703, 4294901760
        %v2831 = vsub.f32 %v2703, %v2830
        %v2832 = vand.u32 %v2831, 4294901760
        %v2833 = vsub.f32 %v2831, %v2832
        %v2834 = vand.u32 %v2833, 4294901760
        %2835 = vmatmul.mubr.f32.gmra.mrb[0].mxu0 %v2834
        %v2836 = vpop.f32.mrb[0].mxu0
        %v2837 = vadd.f32 %v2686, %v2836
        %v2838 = vpop.f32.mrb[0].mxu0
        %2839 = vmatprep.mubr.f32.mxu0 0.0
        %v2840 = vand.u32 %v2706, 4294901760
        %v2841 = vsub.f32 %v2706, %v2840
        %v2842 = vand.u32 %v2841, 4294901760
        %v2843 = vsub.f32 %v2841, %v2842
        %v2844 = vand.u32 %v2843, 4294901760
        %2845 = vmatmul.mubr.f32.gmra.mrb[0].mxu0 %v2844
        %v2846 = vpop.f32.mrb[0].mxu0
        %v2847 = vadd.f32 %v2686, %v2846
        %v2848 = vpop.f32.mrb[0].mxu0
        %2849 = vmatprep.mubr.f32.mxu0 0.0
        %v2850 = vand.u32 %v2709, 4294901760
        %v2851 = vsub.f32 %v2709, %v2850
        %v2852 = vand.u32 %v2851, 4294901760
        %v2853 = vsub.f32 %v2851, %v2852
        %v2854 = vand.u32 %v2853, 4294901760
        %2855 = vmatmul.mubr.f32.gmra.mrb[0].mxu0 %v2854
        %v2856 = vpop.f32.mrb[0].mxu0
        %v2857 = vadd.f32 %v2686, %v2856
        %v2858 = vpop.f32.mrb[0].mxu0
        %2859 = vdwg.mxu0
        %2860 = vmatprep.subr.mxu0 0.0
        %v2861 = vand.u32 %v2679, 4294901760
        %v2862 = vsub.f32 %v2679, %v2861
        %v2863 = vand.u32 %v2862, 4294901760
        %v2864 = vsub.f32 %v2862, %v2863
        %v2865 = vand.u32 %v2864, 4294901760
        %2866 = vmatpush1.msra.mxu0 %v2865
        %2867 = vmatprep.subr.mxu0 0.0
        %v2868 = vand.u32 %v2680, 4294901760
        %v2869 = vsub.f32 %v2680, %v2868
        %v2870 = vand.u32 %v2869, 4294901760
        %v2871 = vsub.f32 %v2869, %v2870
        %v2872 = vand.u32 %v2871, 4294901760
        %2873 = vmatpush1.msra.mxu0 %v2872
        %2874 = vmatprep.subr.mxu0 0.0
        %v2875 = vand.u32 %v2681, 4294901760
        %v2876 = vsub.f32 %v2681, %v2875
        %v2877 = vand.u32 %v2876, 4294901760
        %v2878 = vsub.f32 %v2876, %v2877
        %v2879 = vand.u32 %v2878, 4294901760
        %2880 = vmatpush1.msra.mxu0 %v2879
        %2881 = vmatprep.subr.mxu0 0.0
        %v2882 = vand.u32 %v2682, 4294901760
        %v2883 = vsub.f32 %v2682, %v2882
        %v2884 = vand.u32 %v2883, 4294901760
        %v2885 = vsub.f32 %v2883, %v2884
        %v2886 = vand.u32 %v2885, 4294901760
        %2887 = vmatpush1.msra.mxu0 %v2886
        %2888 = vmatprep.subr.mxu0 0.0
        %2889 = vmatpush1.msra.mxu0 0.0
        %2890 = vmatprep.subr.mxu0 0.0
        %2891 = vmatpush1.msra.mxu0 0.0
        %2892 = vmatprep.subr.mxu0 0.0
        %2893 = vmatpush1.msra.mxu0 0.0
        %2894 = vmatprep.subr.mxu0 0.0
        %2895 = vmatpush1.msra.mxu0 0.0
        %2896 = vmatprep.subr.mxu0 0.0
        %2897 = vmatpush1.msra.mxu0 0.0
        %2898 = vmatprep.subr.mxu0 0.0
        %2899 = vmatpush1.msra.mxu0 0.0
        %2900 = vmatprep.subr.mxu0 0.0
        %2901 = vmatpush1.msra.mxu0 0.0
        %2902 = vmatprep.subr.mxu0 0.0
        %2903 = vmatpush1.msra.mxu0 0.0
        %2904 = vmatprep.subr.mxu0 0.0
        %2905 = vmatpush1.msra.mxu0 0.0
        %2906 = vmatprep.subr.mxu0 0.0
        %2907 = vmatpush1.msra.mxu0 0.0
        %2908 = vmatprep.subr.mxu0 0.0
        %2909 = vmatpush1.msra.mxu0 0.0
        %2910 = vmatprep.subr.mxu0 0.0
        %2911 = vmatpush1.msra.mxu0 0.0
        %2912 = vmatprep.subr.mxu0 0.0
        %2913 = vmatpush1.msra.mxu0 0.0
        %2914 = vmatprep.subr.mxu0 0.0
        %2915 = vmatpush1.msra.mxu0 0.0
        %2916 = vmatprep.subr.mxu0 0.0
        %2917 = vmatpush1.msra.mxu0 0.0
        %2918 = vmatprep.subr.mxu0 0.0
        %2919 = vmatpush1.msra.mxu0 0.0
        %2920 = vmatprep.subr.mxu0 0.0
        %2921 = vmatpush1.msra.mxu0 0.0
        %2922 = vmatprep.subr.mxu0 0.0
        %2923 = vmatpush1.msra.mxu0 0.0
        %2924 = vmatprep.subr.mxu0 0.0
        %2925 = vmatpush1.msra.mxu0 0.0
        %2926 = vmatprep.subr.mxu0 0.0
        %2927 = vmatpush1.msra.mxu0 0.0
        %2928 = vmatprep.subr.mxu0 0.0
        %2929 = vmatpush1.msra.mxu0 0.0
        %2930 = vmatprep.subr.mxu0 0.0
        %2931 = vmatpush1.msra.mxu0 0.0
        %2932 = vmatprep.subr.mxu0 0.0
        %2933 = vmatpush1.msra.mxu0 0.0
        %2934 = vmatprep.subr.mxu0 0.0
        %2935 = vmatpush1.msra.mxu0 0.0
        %2936 = vmatprep.subr.mxu0 0.0
        %2937 = vmatpush1.msra.mxu0 0.0
        %2938 = vmatprep.subr.mxu0 0.0
        %2939 = vmatpush1.msra.mxu0 0.0
        %2940 = vmatprep.subr.mxu0 0.0
        %2941 = vmatpush1.msra.mxu0 0.0
        %2942 = vmatprep.subr.mxu0 0.0
        %2943 = vmatpush1.msra.mxu0 0.0
        %2944 = vmatprep.mubr.f32.mxu0 0.0
        %v2945 = vand.u32 %v2688, 4294901760
        %2946 = vmatmul.mubr.f32.gmra.mrb[0].mxu0 %v2945
        %v2947 = vpop.f32.mrb[0].mxu0
        %v2948 = vadd.f32 %v2787, %v2947
        %v2949 = vpop.f32.mrb[0].mxu0
        %2950 = vmatprep.mubr.f32.mxu0 0.0
        %v2951 = vand.u32 %v2691, 4294901760
        %2952 = vmatmul.mubr.f32.gmra.mrb[0].mxu0 %v2951
        %v2953 = vpop.f32.mrb[0].mxu0
        %v2954 = vadd.f32 %v2797, %v2953
        %v2955 = vpop.f32.mrb[0].mxu0
        %2956 = vmatprep.mubr.f32.mxu0 0.0
        %v2957 = vand.u32 %v2694, 4294901760
        %2958 = vmatmul.mubr.f32.gmra.mrb[0].mxu0 %v2957
        %v2959 = vpop.f32.mrb[0].mxu0
        %v2960 = vadd.f32 %v2807, %v2959
        %v2961 = vpop.f32.mrb[0].mxu0
        %2962 = vmatprep.mubr.f32.mxu0 0.0
        %v2963 = vand.u32 %v2697, 4294901760
        %2964 = vmatmul.mubr.f32.gmra.mrb[0].mxu0 %v2963
        %v2965 = vpop.f32.mrb[0].mxu0
        %v2966 = vadd.f32 %v2817, %v2965
        %v2967 = vpop.f32.mrb[0].mxu0
        %2968 = vmatprep.mubr.f32.mxu0 0.0
        %v2969 = vand.u32 %v2700, 4294901760
        %2970 = vmatmul.mubr.f32.gmra.mrb[0].mxu0 %v2969
        %v2971 = vpop.f32.mrb[0].mxu0
        %v2972 = vadd.f32 %v2827, %v2971
        %v2973 = vpop.f32.mrb[0].mxu0
        %2974 = vmatprep.mubr.f32.mxu0 0.0
        %v2975 = vand.u32 %v2703, 4294901760
        %2976 = vmatmul.mubr.f32.gmra.mrb[0].mxu0 %v2975
        %v2977 = vpop.f32.mrb[0].mxu0
        %v2978 = vadd.f32 %v2837, %v2977
        %v2979 = vpop.f32.mrb[0].mxu0
        %2980 = vmatprep.mubr.f32.mxu0 0.0
        %v2981 = vand.u32 %v2706, 4294901760
        %2982 = vmatmul.mubr.f32.gmra.mrb[0].mxu0 %v2981
        %v2983 = vpop.f32.mrb[0].mxu0
        %v2984 = vadd.f32 %v2847, %v2983
        %v2985 = vpop.f32.mrb[0].mxu0
        %2986 = vmatprep.mubr.f32.mxu0 0.0
        %v2987 = vand.u32 %v2709, 4294901760
        %2988 = vmatmul.mubr.f32.gmra.mrb[0].mxu0 %v2987
        %v2989 = vpop.f32.mrb[0].mxu0
        %v2990 = vadd.f32 %v2857, %v2989
        %v2991 = vpop.f32.mrb[0].mxu0
        %2992 = vdwg.mxu0
        %2993 = vmatprep.subr.mxu0 0.0
        %v2994 = vand.u32 %v2679, 4294901760
        %v2995 = vsub.f32 %v2679, %v2994
        %2996 = vmatpush1.msra.mxu0 %v2995
        %2997 = vmatprep.subr.mxu0 0.0
        %v2998 = vand.u32 %v2680, 4294901760
        %v2999 = vsub.f32 %v2680, %v2998
        %3000 = vmatpush1.msra.mxu0 %v2999
        %3001 = vmatprep.subr.mxu0 0.0
        %v3002 = vand.u32 %v2681, 4294901760
        %v3003 = vsub.f32 %v2681, %v3002
        %3004 = vmatpush1.msra.mxu0 %v3003
        %3005 = vmatprep.subr.mxu0 0.0
        %v3006 = vand.u32 %v2682, 4294901760
        %v3007 = vsub.f32 %v2682, %v3006
        %3008 = vmatpush1.msra.mxu0 %v3007
        %3009 = vmatprep.subr.mxu0 0.0
        %3010 = vmatpush1.msra.mxu0 0.0
        %3011 = vmatprep.subr.mxu0 0.0
        %3012 = vmatpush1.msra.mxu0 0.0
        %3013 = vmatprep.subr.mxu0 0.0
        %3014 = vmatpush1.msra.mxu0 0.0
        %3015 = vmatprep.subr.mxu0 0.0
        %3016 = vmatpush1.msra.mxu0 0.0
        %3017 = vmatprep.subr.mxu0 0.0
        %3018 = vmatpush1.msra.mxu0 0.0
        %3019 = vmatprep.subr.mxu0 0.0
        %3020 = vmatpush1.msra.mxu0 0.0
        %3021 = vmatprep.subr.mxu0 0.0
        %3022 = vmatpush1.msra.mxu0 0.0
        %3023 = vmatprep.subr.mxu0 0.0
        %3024 = vmatpush1.msra.mxu0 0.0
        %3025 = vmatprep.subr.mxu0 0.0
        %3026 = vmatpush1.msra.mxu0 0.0
        %3027 = vmatprep.subr.mxu0 0.0
        %3028 = vmatpush1.msra.mxu0 0.0
        %3029 = vmatprep.subr.mxu0 0.0
        %3030 = vmatpush1.msra.mxu0 0.0
        %3031 = vmatprep.subr.mxu0 0.0
        %3032 = vmatpush1.msra.mxu0 0.0
        %3033 = vmatprep.subr.mxu0 0.0
        %3034 = vmatpush1.msra.mxu0 0.0
        %3035 = vmatprep.subr.mxu0 0.0
        %3036 = vmatpush1.msra.mxu0 0.0
        %3037 = vmatprep.subr.mxu0 0.0
        %3038 = vmatpush1.msra.mxu0 0.0
        %3039 = vmatprep.subr.mxu0 0.0
        %3040 = vmatpush1.msra.mxu0 0.0
        %3041 = vmatprep.subr.mxu0 0.0
        %3042 = vmatpush1.msra.mxu0 0.0
        %3043 = vmatprep.subr.mxu0 0.0
        %3044 = vmatpush1.msra.mxu0 0.0
        %3045 = vmatprep.subr.mxu0 0.0
        %3046 = vmatpush1.msra.mxu0 0.0
        %3047 = vmatprep.subr.mxu0 0.0
        %3048 = vmatpush1.msra.mxu0 0.0
        %3049 = vmatprep.subr.mxu0 0.0
        %3050 = vmatpush1.msra.mxu0 0.0
        %3051 = vmatprep.subr.mxu0 0.0
        %3052 = vmatpush1.msra.mxu0 0.0
        %3053 = vmatprep.subr.mxu0 0.0
        %3054 = vmatpush1.msra.mxu0 0.0
        %3055 = vmatprep.subr.mxu0 0.0
        %3056 = vmatpush1.msra.mxu0 0.0
        %3057 = vmatprep.subr.mxu0 0.0
        %3058 = vmatpush1.msra.mxu0 0.0
        %3059 = vmatprep.subr.mxu0 0.0
        %3060 = vmatpush1.msra.mxu0 0.0
        %3061 = vmatprep.subr.mxu0 0.0
        %3062 = vmatpush1.msra.mxu0 0.0
        %3063 = vmatprep.subr.mxu0 0.0
        %3064 = vmatpush1.msra.mxu0 0.0
        %3065 = vmatprep.mubr.f32.mxu0 0.0
        %v3066 = vand.u32 %v2688, 4294901760
        %v3067 = vsub.f32 %v2688, %v3066
        %3068 = vmatmul.mubr.f32.gmra.mrb[0].mxu0 %v3067
        %v3069 = vpop.f32.mrb[0].mxu0
        %v3070 = vadd.f32 %v2948, %v3069
        %v3071 = vpop.f32.mrb[0].mxu0
        %3072 = vmatprep.mubr.f32.mxu0 0.0
        %v3073 = vand.u32 %v2691, 4294901760
        %v3074 = vsub.f32 %v2691, %v3073
        %3075 = vmatmul.mubr.f32.gmra.mrb[0].mxu0 %v3074
        %v3076 = vpop.f32.mrb[0].mxu0
        %v3077 = vadd.f32 %v2954, %v3076
        %v3078 = vpop.f32.mrb[0].mxu0
        %3079 = vmatprep.mubr.f32.mxu0 0.0
        %v3080 = vand.u32 %v2694, 4294901760
        %v3081 = vsub.f32 %v2694, %v3080
        %3082 = vmatmul.mubr.f32.gmra.mrb[0].mxu0 %v3081
        %v3083 = vpop.f32.mrb[0].mxu0
        %v3084 = vadd.f32 %v2960, %v3083
        %v3085 = vpop.f32.mrb[0].mxu0
        %3086 = vmatprep.mubr.f32.mxu0 0.0
        %v3087 = vand.u32 %v2697, 4294901760
        %v3088 = vsub.f32 %v2697, %v3087
        %3089 = vmatmul.mubr.f32.gmra.mrb[0].mxu0 %v3088
        %v3090 = vpop.f32.mrb[0].mxu0
        %v3091 = vadd.f32 %v2966, %v3090
        %v3092 = vpop.f32.mrb[0].mxu0
        %3093 = vmatprep.mubr.f32.mxu0 0.0
        %v3094 = vand.u32 %v2700, 4294901760
        %v3095 = vsub.f32 %v2700, %v3094
        %3096 = vmatmul.mubr.f32.gmra.mrb[0].mxu0 %v3095
        %v3097 = vpop.f32.mrb[0].mxu0
        %v3098 = vadd.f32 %v2972, %v3097
        %v3099 = vpop.f32.mrb[0].mxu0
        %3100 = vmatprep.mubr.f32.mxu0 0.0
        %v3101 = vand.u32 %v2703, 4294901760
        %v3102 = vsub.f32 %v2703, %v3101
        %3103 = vmatmul.mubr.f32.gmra.mrb[0].mxu0 %v3102
        %v3104 = vpop.f32.mrb[0].mxu0
        %v3105 = vadd.f32 %v2978, %v3104
        %v3106 = vpop.f32.mrb[0].mxu0
        %3107 = vmatprep.mubr.f32.mxu0 0.0
        %v3108 = vand.u32 %v2706, 4294901760
        %v3109 = vsub.f32 %v2706, %v3108
        %3110 = vmatmul.mubr.f32.gmra.mrb[0].mxu0 %v3109
        %v3111 = vpop.f32.mrb[0].mxu0
        %v3112 = vadd.f32 %v2984, %v3111
        %v3113 = vpop.f32.mrb[0].mxu0
        %3114 = vmatprep.mubr.f32.mxu0 0.0
        %v3115 = vand.u32 %v2709, 4294901760
        %v3116 = vsub.f32 %v2709, %v3115
        %3117 = vmatmul.mubr.f32.gmra.mrb[0].mxu0 %v3116
        %v3118 = vpop.f32.mrb[0].mxu0
        %v3119 = vadd.f32 %v2990, %v3118
        %v3120 = vpop.f32.mrb[0].mxu0
        %3121 = vdwg.mxu0
        %3122 = vmatprep.subr.mxu0 0.0
        %v3123 = vand.u32 %v2679, 4294901760
        %3124 = vmatpush1.msra.mxu0 %v3123
        %3125 = vmatprep.subr.mxu0 0.0
        %v3126 = vand.u32 %v2680, 4294901760
        %3127 = vmatpush1.msra.mxu0 %v3126
        %3128 = vmatprep.subr.mxu0 0.0
        %v3129 = vand.u32 %v2681, 4294901760
        %3130 = vmatpush1.msra.mxu0 %v3129
        %3131 = vmatprep.subr.mxu0 0.0
        %v3132 = vand.u32 %v2682, 4294901760
        %3133 = vmatpush1.msra.mxu0 %v3132
        %3134 = vmatprep.subr.mxu0 0.0
        %3135 = vmatpush1.msra.mxu0 0.0
        %3136 = vmatprep.subr.mxu0 0.0
        %3137 = vmatpush1.msra.mxu0 0.0
        %3138 = vmatprep.subr.mxu0 0.0
        %3139 = vmatpush1.msra.mxu0 0.0
        %3140 = vmatprep.subr.mxu0 0.0
        %3141 = vmatpush1.msra.mxu0 0.0
        %3142 = vmatprep.subr.mxu0 0.0
        %3143 = vmatpush1.msra.mxu0 0.0
        %3144 = vmatprep.subr.mxu0 0.0
        %3145 = vmatpush1.msra.mxu0 0.0
        %3146 = vmatprep.subr.mxu0 0.0
        %3147 = vmatpush1.msra.mxu0 0.0
        %3148 = vmatprep.subr.mxu0 0.0
        %3149 = vmatpush1.msra.mxu0 0.0
        %3150 = vmatprep.subr.mxu0 0.0
        %3151 = vmatpush1.msra.mxu0 0.0
        %3152 = vmatprep.subr.mxu0 0.0
        %3153 = vmatpush1.msra.mxu0 0.0
        %3154 = vmatprep.subr.mxu0 0.0
        %3155 = vmatpush1.msra.mxu0 0.0
        %3156 = vmatprep.subr.mxu0 0.0
        %3157 = vmatpush1.msra.mxu0 0.0
        %3158 = vmatprep.subr.mxu0 0.0
        %3159 = vmatpush1.msra.mxu0 0.0
        %3160 = vmatprep.subr.mxu0 0.0
        %3161 = vmatpush1.msra.mxu0 0.0
        %3162 = vmatprep.subr.mxu0 0.0
        %3163 = vmatpush1.msra.mxu0 0.0
        %3164 = vmatprep.subr.mxu0 0.0
        %3165 = vmatpush1.msra.mxu0 0.0
        %3166 = vmatprep.subr.mxu0 0.0
        %3167 = vmatpush1.msra.mxu0 0.0
        %3168 = vmatprep.subr.mxu0 0.0
        %3169 = vmatpush1.msra.mxu0 0.0
        %3170 = vmatprep.subr.mxu0 0.0
        %3171 = vmatpush1.msra.mxu0 0.0
        %3172 = vmatprep.subr.mxu0 0.0
        %3173 = vmatpush1.msra.mxu0 0.0
        %3174 = vmatprep.subr.mxu0 0.0
        %3175 = vmatpush1.msra.mxu0 0.0
        %3176 = vmatprep.subr.mxu0 0.0
        %3177 = vmatpush1.msra.mxu0 0.0
        %3178 = vmatprep.subr.mxu0 0.0
        %3179 = vmatpush1.msra.mxu0 0.0
        %3180 = vmatprep.subr.mxu0 0.0
        %3181 = vmatpush1.msra.mxu0 0.0
        %3182 = vmatprep.subr.mxu0 0.0
        %3183 = vmatpush1.msra.mxu0 0.0
        %3184 = vmatprep.subr.mxu0 0.0
        %3185 = vmatpush1.msra.mxu0 0.0
        %3186 = vmatprep.subr.mxu0 0.0
        %3187 = vmatpush1.msra.mxu0 0.0
        %3188 = vmatprep.subr.mxu0 0.0
        %3189 = vmatpush1.msra.mxu0 0.0
        %3190 = vmatprep.mubr.f32.mxu0 0.0
        %v3191 = vand.u32 %v2688, 4294901760
        %v3192 = vsub.f32 %v2688, %v3191
        %v3193 = vand.u32 %v3192, 4294901760
        %3194 = vmatmul.mubr.f32.gmra.mrb[0].mxu0 %v3193
        %v3195 = vpop.f32.mrb[0].mxu0
        %v3196 = vadd.f32 %v3070, %v3195
        %v3197 = vpop.f32.mrb[0].mxu0
        %3198 = vmatprep.mubr.f32.mxu0 0.0
        %v3199 = vand.u32 %v2691, 4294901760
        %v3200 = vsub.f32 %v2691, %v3199
        %v3201 = vand.u32 %v3200, 4294901760
        %3202 = vmatmul.mubr.f32.gmra.mrb[0].mxu0 %v3201
        %v3203 = vpop.f32.mrb[0].mxu0
        %v3204 = vadd.f32 %v3077, %v3203
        %v3205 = vpop.f32.mrb[0].mxu0
        %3206 = vmatprep.mubr.f32.mxu0 0.0
        %v3207 = vand.u32 %v2694, 4294901760
        %v3208 = vsub.f32 %v2694, %v3207
        %v3209 = vand.u32 %v3208, 4294901760
        %3210 = vmatmul.mubr.f32.gmra.mrb[0].mxu0 %v3209
        %v3211 = vpop.f32.mrb[0].mxu0
        %v3212 = vadd.f32 %v3084, %v3211
        %v3213 = vpop.f32.mrb[0].mxu0
        %3214 = vmatprep.mubr.f32.mxu0 0.0
        %v3215 = vand.u32 %v2697, 4294901760
        %v3216 = vsub.f32 %v2697, %v3215
        %v3217 = vand.u32 %v3216, 4294901760
        %3218 = vmatmul.mubr.f32.gmra.mrb[0].mxu0 %v3217
        %v3219 = vpop.f32.mrb[0].mxu0
        %v3220 = vadd.f32 %v3091, %v3219
        %v3221 = vpop.f32.mrb[0].mxu0
        %3222 = vmatprep.mubr.f32.mxu0 0.0
        %v3223 = vand.u32 %v2700, 4294901760
        %v3224 = vsub.f32 %v2700, %v3223
        %v3225 = vand.u32 %v3224, 4294901760
        %3226 = vmatmul.mubr.f32.gmra.mrb[0].mxu0 %v3225
        %v3227 = vpop.f32.mrb[0].mxu0
        %v3228 = vadd.f32 %v3098, %v3227
        %v3229 = vpop.f32.mrb[0].mxu0
        %3230 = vmatprep.mubr.f32.mxu0 0.0
        %v3231 = vand.u32 %v2703, 4294901760
        %v3232 = vsub.f32 %v2703, %v3231
        %v3233 = vand.u32 %v3232, 4294901760
        %3234 = vmatmul.mubr.f32.gmra.mrb[0].mxu0 %v3233
        %v3235 = vpop.f32.mrb[0].mxu0
        %v3236 = vadd.f32 %v3105, %v3235
        %v3237 = vpop.f32.mrb[0].mxu0
        %3238 = vmatprep.mubr.f32.mxu0 0.0
        %v3239 = vand.u32 %v2706, 4294901760
        %v3240 = vsub.f32 %v2706, %v3239
        %v3241 = vand.u32 %v3240, 4294901760
        %3242 = vmatmul.mubr.f32.gmra.mrb[0].mxu0 %v3241
        %v3243 = vpop.f32.mrb[0].mxu0
        %v3244 = vadd.f32 %v3112, %v3243
        %v3245 = vpop.f32.mrb[0].mxu0
        %3246 = vmatprep.mubr.f32.mxu0 0.0
        %v3247 = vand.u32 %v2709, 4294901760
        %v3248 = vsub.f32 %v2709, %v3247
        %v3249 = vand.u32 %v3248, 4294901760
        %3250 = vmatmul.mubr.f32.gmra.mrb[0].mxu0 %v3249
        %v3251 = vpop.f32.mrb[0].mxu0
        %v3252 = vadd.f32 %v3119, %v3251
        %v3253 = vpop.f32.mrb[0].mxu0
        %3254 = vdwg.mxu0
        %3255 = vmatprep.subr.mxu0 0.0
        %v3256 = vand.u32 %v2679, 4294901760
        %v3257 = vsub.f32 %v2679, %v3256
        %v3258 = vand.u32 %v3257, 4294901760
        %3259 = vmatpush1.msra.mxu0 %v3258
        %3260 = vmatprep.subr.mxu0 0.0
        %v3261 = vand.u32 %v2680, 4294901760
        %v3262 = vsub.f32 %v2680, %v3261
        %v3263 = vand.u32 %v3262, 4294901760
        %3264 = vmatpush1.msra.mxu0 %v3263
        %3265 = vmatprep.subr.mxu0 0.0
        %v3266 = vand.u32 %v2681, 4294901760
        %v3267 = vsub.f32 %v2681, %v3266
        %v3268 = vand.u32 %v3267, 4294901760
        %3269 = vmatpush1.msra.mxu0 %v3268
        %3270 = vmatprep.subr.mxu0 0.0
        %v3271 = vand.u32 %v2682, 4294901760
        %v3272 = vsub.f32 %v2682, %v3271
        %v3273 = vand.u32 %v3272, 4294901760
        %3274 = vmatpush1.msra.mxu0 %v3273
        %3275 = vmatprep.subr.mxu0 0.0
        %3276 = vmatpush1.msra.mxu0 0.0
        %3277 = vmatprep.subr.mxu0 0.0
        %3278 = vmatpush1.msra.mxu0 0.0
        %3279 = vmatprep.subr.mxu0 0.0
        %3280 = vmatpush1.msra.mxu0 0.0
        %3281 = vmatprep.subr.mxu0 0.0
        %3282 = vmatpush1.msra.mxu0 0.0
        %3283 = vmatprep.subr.mxu0 0.0
        %3284 = vmatpush1.msra.mxu0 0.0
        %3285 = vmatprep.subr.mxu0 0.0
        %3286 = vmatpush1.msra.mxu0 0.0
        %3287 = vmatprep.subr.mxu0 0.0
        %3288 = vmatpush1.msra.mxu0 0.0
        %3289 = vmatprep.subr.mxu0 0.0
        %3290 = vmatpush1.msra.mxu0 0.0
        %3291 = vmatprep.subr.mxu0 0.0
        %3292 = vmatpush1.msra.mxu0 0.0
        %3293 = vmatprep.subr.mxu0 0.0
        %3294 = vmatpush1.msra.mxu0 0.0
        %3295 = vmatprep.subr.mxu0 0.0
        %3296 = vmatpush1.msra.mxu0 0.0
        %3297 = vmatprep.subr.mxu0 0.0
        %3298 = vmatpush1.msra.mxu0 0.0
        %3299 = vmatprep.subr.mxu0 0.0
        %3300 = vmatpush1.msra.mxu0 0.0
        %3301 = vmatprep.subr.mxu0 0.0
        %3302 = vmatpush1.msra.mxu0 0.0
        %3303 = vmatprep.subr.mxu0 0.0
        %3304 = vmatpush1.msra.mxu0 0.0
        %3305 = vmatprep.subr.mxu0 0.0
        %3306 = vmatpush1.msra.mxu0 0.0
        %3307 = vmatprep.subr.mxu0 0.0
        %3308 = vmatpush1.msra.mxu0 0.0
        %3309 = vmatprep.subr.mxu0 0.0
        %3310 = vmatpush1.msra.mxu0 0.0
        %3311 = vmatprep.subr.mxu0 0.0
        %3312 = vmatpush1.msra.mxu0 0.0
        %3313 = vmatprep.subr.mxu0 0.0
        %3314 = vmatpush1.msra.mxu0 0.0
        %3315 = vmatprep.subr.mxu0 0.0
        %3316 = vmatpush1.msra.mxu0 0.0
        %3317 = vmatprep.subr.mxu0 0.0
        %3318 = vmatpush1.msra.mxu0 0.0
        %3319 = vmatprep.subr.mxu0 0.0
        %3320 = vmatpush1.msra.mxu0 0.0
        %3321 = vmatprep.subr.mxu0 0.0
        %3322 = vmatpush1.msra.mxu0 0.0
        %3323 = vmatprep.subr.mxu0 0.0
        %3324 = vmatpush1.msra.mxu0 0.0
        %3325 = vmatprep.subr.mxu0 0.0
        %3326 = vmatpush1.msra.mxu0 0.0
        %3327 = vmatprep.subr.mxu0 0.0
        %3328 = vmatpush1.msra.mxu0 0.0
        %3329 = vmatprep.subr.mxu0 0.0
        %3330 = vmatpush1.msra.mxu0 0.0
        %3331 = vmatprep.mubr.f32.mxu0 0.0
        %v3332 = vand.u32 %v2688, 4294901760
        %3333 = vmatmul.mubr.f32.gmra.mrb[0].mxu0 %v3332
        %v3334 = vpop.f32.mrb[0].mxu0
        %v3335 = vadd.f32 %v3196, %v3334
        %v3336 = vpop.f32.mrb[0].mxu0
        %3337 = vmatprep.mubr.f32.mxu0 0.0
        %v3338 = vand.u32 %v2691, 4294901760
        %3339 = vmatmul.mubr.f32.gmra.mrb[0].mxu0 %v3338
        %v3340 = vpop.f32.mrb[0].mxu0
        %v3341 = vadd.f32 %v3204, %v3340
        %v3342 = vpop.f32.mrb[0].mxu0
        %3343 = vmatprep.mubr.f32.mxu0 0.0
        %v3344 = vand.u32 %v2694, 4294901760
        %3345 = vmatmul.mubr.f32.gmra.mrb[0].mxu0 %v3344
        %v3346 = vpop.f32.mrb[0].mxu0
        %v3347 = vadd.f32 %v3212, %v3346
        %v3348 = vpop.f32.mrb[0].mxu0
        %3349 = vmatprep.mubr.f32.mxu0 0.0
        %v3350 = vand.u32 %v2697, 4294901760
        %3351 = vmatmul.mubr.f32.gmra.mrb[0].mxu0 %v3350
        %v3352 = vpop.f32.mrb[0].mxu0
        %v3353 = vadd.f32 %v3220, %v3352
        %v3354 = vpop.f32.mrb[0].mxu0
        %3355 = vmatprep.mubr.f32.mxu0 0.0
        %v3356 = vand.u32 %v2700, 4294901760
        %3357 = vmatmul.mubr.f32.gmra.mrb[0].mxu0 %v3356
        %v3358 = vpop.f32.mrb[0].mxu0
        %v3359 = vadd.f32 %v3228, %v3358
        %v3360 = vpop.f32.mrb[0].mxu0
        %3361 = vmatprep.mubr.f32.mxu0 0.0
        %v3362 = vand.u32 %v2703, 4294901760
        %3363 = vmatmul.mubr.f32.gmra.mrb[0].mxu0 %v3362
        %v3364 = vpop.f32.mrb[0].mxu0
        %v3365 = vadd.f32 %v3236, %v3364
        %v3366 = vpop.f32.mrb[0].mxu0
        %3367 = vmatprep.mubr.f32.mxu0 0.0
        %v3368 = vand.u32 %v2706, 4294901760
        %3369 = vmatmul.mubr.f32.gmra.mrb[0].mxu0 %v3368
        %v3370 = vpop.f32.mrb[0].mxu0
        %v3371 = vadd.f32 %v3244, %v3370
        %v3372 = vpop.f32.mrb[0].mxu0
        %3373 = vmatprep.mubr.f32.mxu0 0.0
        %v3374 = vand.u32 %v2709, 4294901760
        %3375 = vmatmul.mubr.f32.gmra.mrb[0].mxu0 %v3374
        %v3376 = vpop.f32.mrb[0].mxu0
        %v3377 = vadd.f32 %v3252, %v3376
        %v3378 = vpop.f32.mrb[0].mxu0
        %3379 = vdwg.mxu0
        %3380 = vmatprep.subr.mxu0 0.0
        %v3381 = vand.u32 %v2679, 4294901760
        %3382 = vmatpush1.msra.mxu0 %v3381
        %3383 = vmatprep.subr.mxu0 0.0
        %v3384 = vand.u32 %v2680, 4294901760
        %3385 = vmatpush1.msra.mxu0 %v3384
        %3386 = vmatprep.subr.mxu0 0.0
        %v3387 = vand.u32 %v2681, 4294901760
        %3388 = vmatpush1.msra.mxu0 %v3387
        %3389 = vmatprep.subr.mxu0 0.0
        %v3390 = vand.u32 %v2682, 4294901760
        %3391 = vmatpush1.msra.mxu0 %v3390
        %3392 = vmatprep.subr.mxu0 0.0
        %3393 = vmatpush1.msra.mxu0 0.0
        %3394 = vmatprep.subr.mxu0 0.0
        %3395 = vmatpush1.msra.mxu0 0.0
        %3396 = vmatprep.subr.mxu0 0.0
        %3397 = vmatpush1.msra.mxu0 0.0
        %3398 = vmatprep.subr.mxu0 0.0
        %3399 = vmatpush1.msra.mxu0 0.0
        %3400 = vmatprep.subr.mxu0 0.0
        %3401 = vmatpush1.msra.mxu0 0.0
        %3402 = vmatprep.subr.mxu0 0.0
        %3403 = vmatpush1.msra.mxu0 0.0
        %3404 = vmatprep.subr.mxu0 0.0
        %3405 = vmatpush1.msra.mxu0 0.0
        %3406 = vmatprep.subr.mxu0 0.0
        %3407 = vmatpush1.msra.mxu0 0.0
        %3408 = vmatprep.subr.mxu0 0.0
        %3409 = vmatpush1.msra.mxu0 0.0
        %3410 = vmatprep.subr.mxu0 0.0
        %3411 = vmatpush1.msra.mxu0 0.0
        %3412 = vmatprep.subr.mxu0 0.0
        %3413 = vmatpush1.msra.mxu0 0.0
        %3414 = vmatprep.subr.mxu0 0.0
        %3415 = vmatpush1.msra.mxu0 0.0
        %3416 = vmatprep.subr.mxu0 0.0
        %3417 = vmatpush1.msra.mxu0 0.0
        %3418 = vmatprep.subr.mxu0 0.0
        %3419 = vmatpush1.msra.mxu0 0.0
        %3420 = vmatprep.subr.mxu0 0.0
        %3421 = vmatpush1.msra.mxu0 0.0
        %3422 = vmatprep.subr.mxu0 0.0
        %3423 = vmatpush1.msra.mxu0 0.0
        %3424 = vmatprep.subr.mxu0 0.0
        %3425 = vmatpush1.msra.mxu0 0.0
        %3426 = vmatprep.subr.mxu0 0.0
        %3427 = vmatpush1.msra.mxu0 0.0
        %3428 = vmatprep.subr.mxu0 0.0
        %3429 = vmatpush1.msra.mxu0 0.0
        %3430 = vmatprep.subr.mxu0 0.0
        %3431 = vmatpush1.msra.mxu0 0.0
        %3432 = vmatprep.subr.mxu0 0.0
        %3433 = vmatpush1.msra.mxu0 0.0
        %3434 = vmatprep.subr.mxu0 0.0
        %3435 = vmatpush1.msra.mxu0 0.0
        %3436 = vmatprep.subr.mxu0 0.0
        %3437 = vmatpush1.msra.mxu0 0.0
        %3438 = vmatprep.subr.mxu0 0.0
        %3439 = vmatpush1.msra.mxu0 0.0
        %3440 = vmatprep.subr.mxu0 0.0
        %3441 = vmatpush1.msra.mxu0 0.0
        %3442 = vmatprep.subr.mxu0 0.0
        %3443 = vmatpush1.msra.mxu0 0.0
        %3444 = vmatprep.subr.mxu0 0.0
        %3445 = vmatpush1.msra.mxu0 0.0
        %3446 = vmatprep.subr.mxu0 0.0
        %3447 = vmatpush1.msra.mxu0 0.0
        %3448 = vmatprep.mubr.f32.mxu0 0.0
        %v3449 = vand.u32 %v2688, 4294901760
        %3450 = vmatmul.mubr.f32.gmra.mrb[0].mxu0 %v3449
        %v3451 = vpop.f32.mrb[0].mxu0
        %v3452 = vadd.f32 %v3335, %v3451
        %v3453 = vpop.f32.mrb[0].mxu0
        %3454 = vmatprep.mubr.f32.mxu0 0.0
        %v3455 = vand.u32 %v2691, 4294901760
        %3456 = vmatmul.mubr.f32.gmra.mrb[0].mxu0 %v3455
        %v3457 = vpop.f32.mrb[0].mxu0
        %v3458 = vadd.f32 %v3341, %v3457
        %v3459 = vpop.f32.mrb[0].mxu0
        %3460 = vmatprep.mubr.f32.mxu0 0.0
        %v3461 = vand.u32 %v2694, 4294901760
        %3462 = vmatmul.mubr.f32.gmra.mrb[0].mxu0 %v3461
        %v3463 = vpop.f32.mrb[0].mxu0
        %v3464 = vadd.f32 %v3347, %v3463
        %v3465 = vpop.f32.mrb[0].mxu0
        %3466 = vmatprep.mubr.f32.mxu0 0.0
        %v3467 = vand.u32 %v2697, 4294901760
        %3468 = vmatmul.mubr.f32.gmra.mrb[0].mxu0 %v3467
        %v3469 = vpop.f32.mrb[0].mxu0
        %v3470 = vadd.f32 %v3353, %v3469
        %v3471 = vpop.f32.mrb[0].mxu0
        %3472 = vmatprep.mubr.f32.mxu0 0.0
        %v3473 = vand.u32 %v2700, 4294901760
        %3474 = vmatmul.mubr.f32.gmra.mrb[0].mxu0 %v3473
        %v3475 = vpop.f32.mrb[0].mxu0
        %v3476 = vadd.f32 %v3359, %v3475
        %v3477 = vpop.f32.mrb[0].mxu0
        %3478 = vmatprep.mubr.f32.mxu0 0.0
        %v3479 = vand.u32 %v2703, 4294901760
        %3480 = vmatmul.mubr.f32.gmra.mrb[0].mxu0 %v3479
        %v3481 = vpop.f32.mrb[0].mxu0
        %v3482 = vadd.f32 %v3365, %v3481
        %v3483 = vpop.f32.mrb[0].mxu0
        %3484 = vmatprep.mubr.f32.mxu0 0.0
        %v3485 = vand.u32 %v2706, 4294901760
        %3486 = vmatmul.mubr.f32.gmra.mrb[0].mxu0 %v3485
        %v3487 = vpop.f32.mrb[0].mxu0
        %v3488 = vadd.f32 %v3371, %v3487
        %v3489 = vpop.f32.mrb[0].mxu0
        %3490 = vmatprep.mubr.f32.mxu0 0.0
        %v3491 = vand.u32 %v2709, 4294901760
        %3492 = vmatmul.mubr.f32.gmra.mrb[0].mxu0 %v3491
        %v3493 = vpop.f32.mrb[0].mxu0
        %v3494 = vadd.f32 %v3377, %v3493
        %v3495 = vpop.f32.mrb[0].mxu0
        %3496 = vdwg.mxu0
        %v3497 = vtanh.pop %v3452
        %v3498 = vtanh.pop %v3458
        %v3499 = vtanh.pop %v3464
        %v3500 = vtanh.pop %v3470
        %v3501 = vtanh.pop %v3476
        %v3502 = vtanh.pop %v3482
        %v3503 = vtanh.pop %v3488
        %v3504 = vtanh.pop %v3494
        %v3505 = vld [vmem:[#allocation4 + $0x80] sm:$0xff]
        %v3506 = vld [vmem:[#allocation4 + $0x88] sm:$0xff]
        %v3507 = vld [vmem:[#allocation4 + $0x90] sm:$0xff]
        %v3508 = vld [vmem:[#allocation4 + $0x98] sm:$0xff]
        %v3509 = vlaneseq
        %v3510 = vshrl.u32 %v3509, 7
        %v3511 = vsub.s32 4, %v3510
        %v3512 = vrot.slane %v198, %v3511
        %v3514 = vsel %vm208, %v3497, 0
        %v3517 = vsel %vm208, %v3498, 0
        %v3520 = vsel %vm208, %v3499, 0
        %v3523 = vsel %vm208, %v3500, 0
        %v3526 = vsel %vm208, %v3501, 0
        %v3529 = vsel %vm208, %v3502, 0
        %v3532 = vsel %vm208, %v3503, 0
        %v3535 = vsel %vm208, %v3504, 0
        %3537 = vmatprep.subr.mxu0 0.0
        %v3538 = vand.u32 %v3505, 4294901760
        %3539 = vmatpush1.msra.mxu0 %v3538
        %3540 = vmatprep.subr.mxu0 0.0
        %v3541 = vand.u32 %v3506, 4294901760
        %3542 = vmatpush1.msra.mxu0 %v3541
        %3543 = vmatprep.subr.mxu0 0.0
        %v3544 = vand.u32 %v3507, 4294901760
        %3545 = vmatpush1.msra.mxu0 %v3544
        %3546 = vmatprep.subr.mxu0 0.0
        %v3547 = vand.u32 %v3508, 4294901760
        %3548 = vmatpush1.msra.mxu0 %v3547
        %3549 = vmatprep.subr.mxu0 0.0
        %3550 = vmatpush1.msra.mxu0 0.0
        %3551 = vmatprep.subr.mxu0 0.0
        %3552 = vmatpush1.msra.mxu0 0.0
        %3553 = vmatprep.subr.mxu0 0.0
        %3554 = vmatpush1.msra.mxu0 0.0
        %3555 = vmatprep.subr.mxu0 0.0
        %3556 = vmatpush1.msra.mxu0 0.0
        %3557 = vmatprep.subr.mxu0 0.0
        %3558 = vmatpush1.msra.mxu0 0.0
        %3559 = vmatprep.subr.mxu0 0.0
        %3560 = vmatpush1.msra.mxu0 0.0
        %3561 = vmatprep.subr.mxu0 0.0
        %3562 = vmatpush1.msra.mxu0 0.0
        %3563 = vmatprep.subr.mxu0 0.0
        %3564 = vmatpush1.msra.mxu0 0.0
        %3565 = vmatprep.subr.mxu0 0.0
        %3566 = vmatpush1.msra.mxu0 0.0
        %3567 = vmatprep.subr.mxu0 0.0
        %3568 = vmatpush1.msra.mxu0 0.0
        %3569 = vmatprep.subr.mxu0 0.0
        %3570 = vmatpush1.msra.mxu0 0.0
        %3571 = vmatprep.subr.mxu0 0.0
        %3572 = vmatpush1.msra.mxu0 0.0
        %3573 = vmatprep.subr.mxu0 0.0
        %3574 = vmatpush1.msra.mxu0 0.0
        %3575 = vmatprep.subr.mxu0 0.0
        %3576 = vmatpush1.msra.mxu0 0.0
        %3577 = vmatprep.subr.mxu0 0.0
        %3578 = vmatpush1.msra.mxu0 0.0
        %3579 = vmatprep.subr.mxu0 0.0
        %3580 = vmatpush1.msra.mxu0 0.0
        %3581 = vmatprep.subr.mxu0 0.0
        %3582 = vmatpush1.msra.mxu0 0.0
        %3583 = vmatprep.subr.mxu0 0.0
        %3584 = vmatpush1.msra.mxu0 0.0
        %3585 = vmatprep.subr.mxu0 0.0
        %3586 = vmatpush1.msra.mxu0 0.0
        %3587 = vmatprep.subr.mxu0 0.0
        %3588 = vmatpush1.msra.mxu0 0.0
        %3589 = vmatprep.subr.mxu0 0.0
        %3590 = vmatpush1.msra.mxu0 0.0
        %3591 = vmatprep.subr.mxu0 0.0
        %3592 = vmatpush1.msra.mxu0 0.0
        %3593 = vmatprep.subr.mxu0 0.0
        %3594 = vmatpush1.msra.mxu0 0.0
        %3595 = vmatprep.subr.mxu0 0.0
        %3596 = vmatpush1.msra.mxu0 0.0
        %3597 = vmatprep.subr.mxu0 0.0
        %3598 = vmatpush1.msra.mxu0 0.0
        %3599 = vmatprep.subr.mxu0 0.0
        %3600 = vmatpush1.msra.mxu0 0.0
        %3601 = vmatprep.subr.mxu0 0.0
        %3602 = vmatpush1.msra.mxu0 0.0
        %3603 = vmatprep.subr.mxu0 0.0
        %3604 = vmatpush1.msra.mxu0 0.0
        %3605 = vmatprep.mubr.f32.mxu0 0.0
        %v3606 = vand.u32 %v3514, 4294901760
        %v3607 = vsub.f32 %v3514, %v3606
        %v3608 = vand.u32 %v3607, 4294901760
        %v3609 = vsub.f32 %v3607, %v3608
        %v3610 = vand.u32 %v3609, 4294901760
        %3611 = vmatmul.mubr.f32.gmra.mrb[0].mxu0 %v3610
        %v3612 = vpop.f32.mrb[0].mxu0
        %v3613 = vadd.f32 %v3512, %v3612
        %v3614 = vpop.f32.mrb[0].mxu0
        %3615 = vmatprep.mubr.f32.mxu0 0.0
        %v3616 = vand.u32 %v3517, 4294901760
        %v3617 = vsub.f32 %v3517, %v3616
        %v3618 = vand.u32 %v3617, 4294901760
        %v3619 = vsub.f32 %v3617, %v3618
        %v3620 = vand.u32 %v3619, 4294901760
        %3621 = vmatmul.mubr.f32.gmra.mrb[0].mxu0 %v3620
        %v3622 = vpop.f32.mrb[0].mxu0
        %v3623 = vadd.f32 %v3512, %v3622
        %v3624 = vpop.f32.mrb[0].mxu0
        %3625 = vmatprep.mubr.f32.mxu0 0.0
        %v3626 = vand.u32 %v3520, 4294901760
        %v3627 = vsub.f32 %v3520, %v3626
        %v3628 = vand.u32 %v3627, 4294901760
        %v3629 = vsub.f32 %v3627, %v3628
        %v3630 = vand.u32 %v3629, 4294901760
        %3631 = vmatmul.mubr.f32.gmra.mrb[0].mxu0 %v3630
        %v3632 = vpop.f32.mrb[0].mxu0
        %v3633 = vadd.f32 %v3512, %v3632
        %v3634 = vpop.f32.mrb[0].mxu0
        %3635 = vmatprep.mubr.f32.mxu0 0.0
        %v3636 = vand.u32 %v3523, 4294901760
        %v3637 = vsub.f32 %v3523, %v3636
        %v3638 = vand.u32 %v3637, 4294901760
        %v3639 = vsub.f32 %v3637, %v3638
        %v3640 = vand.u32 %v3639, 4294901760
        %3641 = vmatmul.mubr.f32.gmra.mrb[0].mxu0 %v3640
        %v3642 = vpop.f32.mrb[0].mxu0
        %v3643 = vadd.f32 %v3512, %v3642
        %v3644 = vpop.f32.mrb[0].mxu0
        %3645 = vmatprep.mubr.f32.mxu0 0.0
        %v3646 = vand.u32 %v3526, 4294901760
        %v3647 = vsub.f32 %v3526, %v3646
        %v3648 = vand.u32 %v3647, 4294901760
        %v3649 = vsub.f32 %v3647, %v3648
        %v3650 = vand.u32 %v3649, 4294901760
        %3651 = vmatmul.mubr.f32.gmra.mrb[0].mxu0 %v3650
        %v3652 = vpop.f32.mrb[0].mxu0
        %v3653 = vadd.f32 %v3512, %v3652
        %v3654 = vpop.f32.mrb[0].mxu0
        %3655 = vmatprep.mubr.f32.mxu0 0.0
        %v3656 = vand.u32 %v3529, 4294901760
        %v3657 = vsub.f32 %v3529, %v3656
        %v3658 = vand.u32 %v3657, 4294901760
        %v3659 = vsub.f32 %v3657, %v3658
        %v3660 = vand.u32 %v3659, 4294901760
        %3661 = vmatmul.mubr.f32.gmra.mrb[0].mxu0 %v3660
        %v3662 = vpop.f32.mrb[0].mxu0
        %v3663 = vadd.f32 %v3512, %v3662
        %v3664 = vpop.f32.mrb[0].mxu0
        %3665 = vmatprep.mubr.f32.mxu0 0.0
        %v3666 = vand.u32 %v3532, 4294901760
        %v3667 = vsub.f32 %v3532, %v3666
        %v3668 = vand.u32 %v3667, 4294901760
        %v3669 = vsub.f32 %v3667, %v3668
        %v3670 = vand.u32 %v3669, 4294901760
        %3671 = vmatmul.mubr.f32.gmra.mrb[0].mxu0 %v3670
        %v3672 = vpop.f32.mrb[0].mxu0
        %v3673 = vadd.f32 %v3512, %v3672
        %v3674 = vpop.f32.mrb[0].mxu0
        %3675 = vmatprep.mubr.f32.mxu0 0.0
        %v3676 = vand.u32 %v3535, 4294901760
        %v3677 = vsub.f32 %v3535, %v3676
        %v3678 = vand.u32 %v3677, 4294901760
        %v3679 = vsub.f32 %v3677, %v3678
        %v3680 = vand.u32 %v3679, 4294901760
        %3681 = vmatmul.mubr.f32.gmra.mrb[0].mxu0 %v3680
        %v3682 = vpop.f32.mrb[0].mxu0
        %v3683 = vadd.f32 %v3512, %v3682
        %v3684 = vpop.f32.mrb[0].mxu0
        %3685 = vdwg.mxu0
        %3686 = vmatprep.subr.mxu0 0.0
        %v3687 = vand.u32 %v3505, 4294901760
        %v3688 = vsub.f32 %v3505, %v3687
        %v3689 = vand.u32 %v3688, 4294901760
        %v3690 = vsub.f32 %v3688, %v3689
        %v3691 = vand.u32 %v3690, 4294901760
        %3692 = vmatpush1.msra.mxu0 %v3691
        %3693 = vmatprep.subr.mxu0 0.0
        %v3694 = vand.u32 %v3506, 4294901760
        %v3695 = vsub.f32 %v3506, %v3694
        %v3696 = vand.u32 %v3695, 4294901760
        %v3697 = vsub.f32 %v3695, %v3696
        %v3698 = vand.u32 %v3697, 4294901760
        %3699 = vmatpush1.msra.mxu0 %v3698
        %3700 = vmatprep.subr.mxu0 0.0
        %v3701 = vand.u32 %v3507, 4294901760
        %v3702 = vsub.f32 %v3507, %v3701
        %v3703 = vand.u32 %v3702, 4294901760
        %v3704 = vsub.f32 %v3702, %v3703
        %v3705 = vand.u32 %v3704, 4294901760
        %3706 = vmatpush1.msra.mxu0 %v3705
        %3707 = vmatprep.subr.mxu0 0.0
        %v3708 = vand.u32 %v3508, 4294901760
        %v3709 = vsub.f32 %v3508, %v3708
        %v3710 = vand.u32 %v3709, 4294901760
        %v3711 = vsub.f32 %v3709, %v3710
        %v3712 = vand.u32 %v3711, 4294901760
        %3713 = vmatpush1.msra.mxu0 %v3712
        %3714 = vmatprep.subr.mxu0 0.0
        %3715 = vmatpush1.msra.mxu0 0.0
        %3716 = vmatprep.subr.mxu0 0.0
        %3717 = vmatpush1.msra.mxu0 0.0
        %3718 = vmatprep.subr.mxu0 0.0
        %3719 = vmatpush1.msra.mxu0 0.0
        %3720 = vmatprep.subr.mxu0 0.0
        %3721 = vmatpush1.msra.mxu0 0.0
        %3722 = vmatprep.subr.mxu0 0.0
        %3723 = vmatpush1.msra.mxu0 0.0
        %3724 = vmatprep.subr.mxu0 0.0
        %3725 = vmatpush1.msra.mxu0 0.0
        %3726 = vmatprep.subr.mxu0 0.0
        %3727 = vmatpush1.msra.mxu0 0.0
        %3728 = vmatprep.subr.mxu0 0.0
        %3729 = vmatpush1.msra.mxu0 0.0
        %3730 = vmatprep.subr.mxu0 0.0
        %3731 = vmatpush1.msra.mxu0 0.0
        %3732 = vmatprep.subr.mxu0 0.0
        %3733 = vmatpush1.msra.mxu0 0.0
        %3734 = vmatprep.subr.mxu0 0.0
        %3735 = vmatpush1.msra.mxu0 0.0
        %3736 = vmatprep.subr.mxu0 0.0
        %3737 = vmatpush1.msra.mxu0 0.0
        %3738 = vmatprep.subr.mxu0 0.0
        %3739 = vmatpush1.msra.mxu0 0.0
        %3740 = vmatprep.subr.mxu0 0.0
        %3741 = vmatpush1.msra.mxu0 0.0
        %3742 = vmatprep.subr.mxu0 0.0
        %3743 = vmatpush1.msra.mxu0 0.0
        %3744 = vmatprep.subr.mxu0 0.0
        %3745 = vmatpush1.msra.mxu0 0.0
        %3746 = vmatprep.subr.mxu0 0.0
        %3747 = vmatpush1.msra.mxu0 0.0
        %3748 = vmatprep.subr.mxu0 0.0
        %3749 = vmatpush1.msra.mxu0 0.0
        %3750 = vmatprep.subr.mxu0 0.0
        %3751 = vmatpush1.msra.mxu0 0.0
        %3752 = vmatprep.subr.mxu0 0.0
        %3753 = vmatpush1.msra.mxu0 0.0
        %3754 = vmatprep.subr.mxu0 0.0
        %3755 = vmatpush1.msra.mxu0 0.0
        %3756 = vmatprep.subr.mxu0 0.0
        %3757 = vmatpush1.msra.mxu0 0.0
        %3758 = vmatprep.subr.mxu0 0.0
        %3759 = vmatpush1.msra.mxu0 0.0
        %3760 = vmatprep.subr.mxu0 0.0
        %3761 = vmatpush1.msra.mxu0 0.0
        %3762 = vmatprep.subr.mxu0 0.0
        %3763 = vmatpush1.msra.mxu0 0.0
        %3764 = vmatprep.subr.mxu0 0.0
        %3765 = vmatpush1.msra.mxu0 0.0
        %3766 = vmatprep.subr.mxu0 0.0
        %3767 = vmatpush1.msra.mxu0 0.0
        %3768 = vmatprep.subr.mxu0 0.0
        %3769 = vmatpush1.msra.mxu0 0.0
        %3770 = vmatprep.mubr.f32.mxu0 0.0
        %v3771 = vand.u32 %v3514, 4294901760
        %3772 = vmatmul.mubr.f32.gmra.mrb[0].mxu0 %v3771
        %v3773 = vpop.f32.mrb[0].mxu0
        %v3774 = vadd.f32 %v3613, %v3773
        %v3775 = vpop.f32.mrb[0].mxu0
        %3776 = vmatprep.mubr.f32.mxu0 0.0
        %v3777 = vand.u32 %v3517, 4294901760
        %3778 = vmatmul.mubr.f32.gmra.mrb[0].mxu0 %v3777
        %v3779 = vpop.f32.mrb[0].mxu0
        %v3780 = vadd.f32 %v3623, %v3779
        %v3781 = vpop.f32.mrb[0].mxu0
        %3782 = vmatprep.mubr.f32.mxu0 0.0
        %v3783 = vand.u32 %v3520, 4294901760
        %3784 = vmatmul.mubr.f32.gmra.mrb[0].mxu0 %v3783
        %v3785 = vpop.f32.mrb[0].mxu0
        %v3786 = vadd.f32 %v3633, %v3785
        %v3787 = vpop.f32.mrb[0].mxu0
        %3788 = vmatprep.mubr.f32.mxu0 0.0
        %v3789 = vand.u32 %v3523, 4294901760
        %3790 = vmatmul.mubr.f32.gmra.mrb[0].mxu0 %v3789
        %v3791 = vpop.f32.mrb[0].mxu0
        %v3792 = vadd.f32 %v3643, %v3791
        %v3793 = vpop.f32.mrb[0].mxu0
        %3794 = vmatprep.mubr.f32.mxu0 0.0
        %v3795 = vand.u32 %v3526, 4294901760
        %3796 = vmatmul.mubr.f32.gmra.mrb[0].mxu0 %v3795
        %v3797 = vpop.f32.mrb[0].mxu0
        %v3798 = vadd.f32 %v3653, %v3797
        %v3799 = vpop.f32.mrb[0].mxu0
        %3800 = vmatprep.mubr.f32.mxu0 0.0
        %v3801 = vand.u32 %v3529, 4294901760
        %3802 = vmatmul.mubr.f32.gmra.mrb[0].mxu0 %v3801
        %v3803 = vpop.f32.mrb[0].mxu0
        %v3804 = vadd.f32 %v3663, %v3803
        %v3805 = vpop.f32.mrb[0].mxu0
        %3806 = vmatprep.mubr.f32.mxu0 0.0
        %v3807 = vand.u32 %v3532, 4294901760
        %3808 = vmatmul.mubr.f32.gmra.mrb[0].mxu0 %v3807
        %v3809 = vpop.f32.mrb[0].mxu0
        %v3810 = vadd.f32 %v3673, %v3809
        %v3811 = vpop.f32.mrb[0].mxu0
        %3812 = vmatprep.mubr.f32.mxu0 0.0
        %v3813 = vand.u32 %v3535, 4294901760
        %3814 = vmatmul.mubr.f32.gmra.mrb[0].mxu0 %v3813
        %v3815 = vpop.f32.mrb[0].mxu0
        %v3816 = vadd.f32 %v3683, %v3815
        %v3817 = vpop.f32.mrb[0].mxu0
        %3818 = vdwg.mxu0
        %3819 = vmatprep.subr.mxu0 0.0
        %v3820 = vand.u32 %v3505, 4294901760
        %v3821 = vsub.f32 %v3505, %v3820
        %3822 = vmatpush1.msra.mxu0 %v3821
        %3823 = vmatprep.subr.mxu0 0.0
        %v3824 = vand.u32 %v3506, 4294901760
        %v3825 = vsub.f32 %v3506, %v3824
        %3826 = vmatpush1.msra.mxu0 %v3825
        %3827 = vmatprep.subr.mxu0 0.0
        %v3828 = vand.u32 %v3507, 4294901760
        %v3829 = vsub.f32 %v3507, %v3828
        %3830 = vmatpush1.msra.mxu0 %v3829
        %3831 = vmatprep.subr.mxu0 0.0
        %v3832 = vand.u32 %v3508, 4294901760
        %v3833 = vsub.f32 %v3508, %v3832
        %3834 = vmatpush1.msra.mxu0 %v3833
        %3835 = vmatprep.subr.mxu0 0.0
        %3836 = vmatpush1.msra.mxu0 0.0
        %3837 = vmatprep.subr.mxu0 0.0
        %3838 = vmatpush1.msra.mxu0 0.0
        %3839 = vmatprep.subr.mxu0 0.0
        %3840 = vmatpush1.msra.mxu0 0.0
        %3841 = vmatprep.subr.mxu0 0.0
        %3842 = vmatpush1.msra.mxu0 0.0
        %3843 = vmatprep.subr.mxu0 0.0
        %3844 = vmatpush1.msra.mxu0 0.0
        %3845 = vmatprep.subr.mxu0 0.0
        %3846 = vmatpush1.msra.mxu0 0.0
        %3847 = vmatprep.subr.mxu0 0.0
        %3848 = vmatpush1.msra.mxu0 0.0
        %3849 = vmatprep.subr.mxu0 0.0
        %3850 = vmatpush1.msra.mxu0 0.0
        %3851 = vmatprep.subr.mxu0 0.0
        %3852 = vmatpush1.msra.mxu0 0.0
        %3853 = vmatprep.subr.mxu0 0.0
        %3854 = vmatpush1.msra.mxu0 0.0
        %3855 = vmatprep.subr.mxu0 0.0
        %3856 = vmatpush1.msra.mxu0 0.0
        %3857 = vmatprep.subr.mxu0 0.0
        %3858 = vmatpush1.msra.mxu0 0.0
        %3859 = vmatprep.subr.mxu0 0.0
        %3860 = vmatpush1.msra.mxu0 0.0
        %3861 = vmatprep.subr.mxu0 0.0
        %3862 = vmatpush1.msra.mxu0 0.0
        %3863 = vmatprep.subr.mxu0 0.0
        %3864 = vmatpush1.msra.mxu0 0.0
        %3865 = vmatprep.subr.mxu0 0.0
        %3866 = vmatpush1.msra.mxu0 0.0
        %3867 = vmatprep.subr.mxu0 0.0
        %3868 = vmatpush1.msra.mxu0 0.0
        %3869 = vmatprep.subr.mxu0 0.0
        %3870 = vmatpush1.msra.mxu0 0.0
        %3871 = vmatprep.subr.mxu0 0.0
        %3872 = vmatpush1.msra.mxu0 0.0
        %3873 = vmatprep.subr.mxu0 0.0
        %3874 = vmatpush1.msra.mxu0 0.0
        %3875 = vmatprep.subr.mxu0 0.0
        %3876 = vmatpush1.msra.mxu0 0.0
        %3877 = vmatprep.subr.mxu0 0.0
        %3878 = vmatpush1.msra.mxu0 0.0
        %3879 = vmatprep.subr.mxu0 0.0
        %3880 = vmatpush1.msra.mxu0 0.0
        %3881 = vmatprep.subr.mxu0 0.0
        %3882 = vmatpush1.msra.mxu0 0.0
        %3883 = vmatprep.subr.mxu0 0.0
        %3884 = vmatpush1.msra.mxu0 0.0
        %3885 = vmatprep.subr.mxu0 0.0
        %3886 = vmatpush1.msra.mxu0 0.0
        %3887 = vmatprep.subr.mxu0 0.0
        %3888 = vmatpush1.msra.mxu0 0.0
        %3889 = vmatprep.subr.mxu0 0.0
        %3890 = vmatpush1.msra.mxu0 0.0
        %3891 = vmatprep.mubr.f32.mxu0 0.0
        %v3892 = vand.u32 %v3514, 4294901760
        %v3893 = vsub.f32 %v3514, %v3892
        %3894 = vmatmul.mubr.f32.gmra.mrb[0].mxu0 %v3893
        %v3895 = vpop.f32.mrb[0].mxu0
        %v3896 = vadd.f32 %v3774, %v3895
        %v3897 = vpop.f32.mrb[0].mxu0
        %3898 = vmatprep.mubr.f32.mxu0 0.0
        %v3899 = vand.u32 %v3517, 4294901760
        %v3900 = vsub.f32 %v3517, %v3899
        %3901 = vmatmul.mubr.f32.gmra.mrb[0].mxu0 %v3900
        %v3902 = vpop.f32.mrb[0].mxu0
        %v3903 = vadd.f32 %v3780, %v3902
        %v3904 = vpop.f32.mrb[0].mxu0
        %3905 = vmatprep.mubr.f32.mxu0 0.0
        %v3906 = vand.u32 %v3520, 4294901760
        %v3907 = vsub.f32 %v3520, %v3906
        %3908 = vmatmul.mubr.f32.gmra.mrb[0].mxu0 %v3907
        %v3909 = vpop.f32.mrb[0].mxu0
        %v3910 = vadd.f32 %v3786, %v3909
        %v3911 = vpop.f32.mrb[0].mxu0
        %3912 = vmatprep.mubr.f32.mxu0 0.0
        %v3913 = vand.u32 %v3523, 4294901760
        %v3914 = vsub.f32 %v3523, %v3913
        %3915 = vmatmul.mubr.f32.gmra.mrb[0].mxu0 %v3914
        %v3916 = vpop.f32.mrb[0].mxu0
        %v3917 = vadd.f32 %v3792, %v3916
        %v3918 = vpop.f32.mrb[0].mxu0
        %3919 = vmatprep.mubr.f32.mxu0 0.0
        %v3920 = vand.u32 %v3526, 4294901760
        %v3921 = vsub.f32 %v3526, %v3920
        %3922 = vmatmul.mubr.f32.gmra.mrb[0].mxu0 %v3921
        %v3923 = vpop.f32.mrb[0].mxu0
        %v3924 = vadd.f32 %v3798, %v3923
        %v3925 = vpop.f32.mrb[0].mxu0
        %3926 = vmatprep.mubr.f32.mxu0 0.0
        %v3927 = vand.u32 %v3529, 4294901760
        %v3928 = vsub.f32 %v3529, %v3927
        %3929 = vmatmul.mubr.f32.gmra.mrb[0].mxu0 %v3928
        %v3930 = vpop.f32.mrb[0].mxu0
        %v3931 = vadd.f32 %v3804, %v3930
        %v3932 = vpop.f32.mrb[0].mxu0
        %3933 = vmatprep.mubr.f32.mxu0 0.0
        %v3934 = vand.u32 %v3532, 4294901760
        %v3935 = vsub.f32 %v3532, %v3934
        %3936 = vmatmul.mubr.f32.gmra.mrb[0].mxu0 %v3935
        %v3937 = vpop.f32.mrb[0].mxu0
        %v3938 = vadd.f32 %v3810, %v3937
        %v3939 = vpop.f32.mrb[0].mxu0
        %3940 = vmatprep.mubr.f32.mxu0 0.0
        %v3941 = vand.u32 %v3535, 4294901760
        %v3942 = vsub.f32 %v3535, %v3941
        %3943 = vmatmul.mubr.f32.gmra.mrb[0].mxu0 %v3942
        %v3944 = vpop.f32.mrb[0].mxu0
        %v3945 = vadd.f32 %v3816, %v3944
        %v3946 = vpop.f32.mrb[0].mxu0
        %3947 = vdwg.mxu0
        %3948 = vmatprep.subr.mxu0 0.0
        %v3949 = vand.u32 %v3505, 4294901760
        %3950 = vmatpush1.msra.mxu0 %v3949
        %3951 = vmatprep.subr.mxu0 0.0
        %v3952 = vand.u32 %v3506, 4294901760
        %3953 = vmatpush1.msra.mxu0 %v3952
        %3954 = vmatprep.subr.mxu0 0.0
        %v3955 = vand.u32 %v3507, 4294901760
        %3956 = vmatpush1.msra.mxu0 %v3955
        %3957 = vmatprep.subr.mxu0 0.0
        %v3958 = vand.u32 %v3508, 4294901760
        %3959 = vmatpush1.msra.mxu0 %v3958
        %3960 = vmatprep.subr.mxu0 0.0
        %3961 = vmatpush1.msra.mxu0 0.0
        %3962 = vmatprep.subr.mxu0 0.0
        %3963 = vmatpush1.msra.mxu0 0.0
        %3964 = vmatprep.subr.mxu0 0.0
        %3965 = vmatpush1.msra.mxu0 0.0
        %3966 = vmatprep.subr.mxu0 0.0
        %3967 = vmatpush1.msra.mxu0 0.0
        %3968 = vmatprep.subr.mxu0 0.0
        %3969 = vmatpush1.msra.mxu0 0.0
        %3970 = vmatprep.subr.mxu0 0.0
        %3971 = vmatpush1.msra.mxu0 0.0
        %3972 = vmatprep.subr.mxu0 0.0
        %3973 = vmatpush1.msra.mxu0 0.0
        %3974 = vmatprep.subr.mxu0 0.0
        %3975 = vmatpush1.msra.mxu0 0.0
        %3976 = vmatprep.subr.mxu0 0.0
        %3977 = vmatpush1.msra.mxu0 0.0
        %3978 = vmatprep.subr.mxu0 0.0
        %3979 = vmatpush1.msra.mxu0 0.0
        %3980 = vmatprep.subr.mxu0 0.0
        %3981 = vmatpush1.msra.mxu0 0.0
        %3982 = vmatprep.subr.mxu0 0.0
        %3983 = vmatpush1.msra.mxu0 0.0
        %3984 = vmatprep.subr.mxu0 0.0
        %3985 = vmatpush1.msra.mxu0 0.0
        %3986 = vmatprep.subr.mxu0 0.0
        %3987 = vmatpush1.msra.mxu0 0.0
        %3988 = vmatprep.subr.mxu0 0.0
        %3989 = vmatpush1.msra.mxu0 0.0
        %3990 = vmatprep.subr.mxu0 0.0
        %3991 = vmatpush1.msra.mxu0 0.0
        %3992 = vmatprep.subr.mxu0 0.0
        %3993 = vmatpush1.msra.mxu0 0.0
        %3994 = vmatprep.subr.mxu0 0.0
        %3995 = vmatpush1.msra.mxu0 0.0
        %3996 = vmatprep.subr.mxu0 0.0
        %3997 = vmatpush1.msra.mxu0 0.0
        %3998 = vmatprep.subr.mxu0 0.0
        %3999 = vmatpush1.msra.mxu0 0.0
        %4000 = vmatprep.subr.mxu0 0.0
        %4001 = vmatpush1.msra.mxu0 0.0
        %4002 = vmatprep.subr.mxu0 0.0
        %4003 = vmatpush1.msra.mxu0 0.0
        %4004 = vmatprep.subr.mxu0 0.0
        %4005 = vmatpush1.msra.mxu0 0.0
        %4006 = vmatprep.subr.mxu0 0.0
        %4007 = vmatpush1.msra.mxu0 0.0
        %4008 = vmatprep.subr.mxu0 0.0
        %4009 = vmatpush1.msra.mxu0 0.0
        %4010 = vmatprep.subr.mxu0 0.0
        %4011 = vmatpush1.msra.mxu0 0.0
        %4012 = vmatprep.subr.mxu0 0.0
        %4013 = vmatpush1.msra.mxu0 0.0
        %4014 = vmatprep.subr.mxu0 0.0
        %4015 = vmatpush1.msra.mxu0 0.0
        %4016 = vmatprep.mubr.f32.mxu0 0.0
        %v4017 = vand.u32 %v3514, 4294901760
        %v4018 = vsub.f32 %v3514, %v4017
        %v4019 = vand.u32 %v4018, 4294901760
        %4020 = vmatmul.mubr.f32.gmra.mrb[0].mxu0 %v4019
        %v4021 = vpop.f32.mrb[0].mxu0
        %v4022 = vadd.f32 %v3896, %v4021
        %v4023 = vpop.f32.mrb[0].mxu0
        %4024 = vmatprep.mubr.f32.mxu0 0.0
        %v4025 = vand.u32 %v3517, 4294901760
        %v4026 = vsub.f32 %v3517, %v4025
        %v4027 = vand.u32 %v4026, 4294901760
        %4028 = vmatmul.mubr.f32.gmra.mrb[0].mxu0 %v4027
        %v4029 = vpop.f32.mrb[0].mxu0
        %v4030 = vadd.f32 %v3903, %v4029
        %v4031 = vpop.f32.mrb[0].mxu0
        %4032 = vmatprep.mubr.f32.mxu0 0.0
        %v4033 = vand.u32 %v3520, 4294901760
        %v4034 = vsub.f32 %v3520, %v4033
        %v4035 = vand.u32 %v4034, 4294901760
        %4036 = vmatmul.mubr.f32.gmra.mrb[0].mxu0 %v4035
        %v4037 = vpop.f32.mrb[0].mxu0
        %v4038 = vadd.f32 %v3910, %v4037
        %v4039 = vpop.f32.mrb[0].mxu0
        %4040 = vmatprep.mubr.f32.mxu0 0.0
        %v4041 = vand.u32 %v3523, 4294901760
        %v4042 = vsub.f32 %v3523, %v4041
        %v4043 = vand.u32 %v4042, 4294901760
        %4044 = vmatmul.mubr.f32.gmra.mrb[0].mxu0 %v4043
        %v4045 = vpop.f32.mrb[0].mxu0
        %v4046 = vadd.f32 %v3917, %v4045
        %v4047 = vpop.f32.mrb[0].mxu0
        %4048 = vmatprep.mubr.f32.mxu0 0.0
        %v4049 = vand.u32 %v3526, 4294901760
        %v4050 = vsub.f32 %v3526, %v4049
        %v4051 = vand.u32 %v4050, 4294901760
        %4052 = vmatmul.mubr.f32.gmra.mrb[0].mxu0 %v4051
        %v4053 = vpop.f32.mrb[0].mxu0
        %v4054 = vadd.f32 %v3924, %v4053
        %v4055 = vpop.f32.mrb[0].mxu0
        %4056 = vmatprep.mubr.f32.mxu0 0.0
        %v4057 = vand.u32 %v3529, 4294901760
        %v4058 = vsub.f32 %v3529, %v4057
        %v4059 = vand.u32 %v4058, 4294901760
        %4060 = vmatmul.mubr.f32.gmra.mrb[0].mxu0 %v4059
        %v4061 = vpop.f32.mrb[0].mxu0
        %v4062 = vadd.f32 %v3931, %v4061
        %v4063 = vpop.f32.mrb[0].mxu0
        %4064 = vmatprep.mubr.f32.mxu0 0.0
        %v4065 = vand.u32 %v3532, 4294901760
        %v4066 = vsub.f32 %v3532, %v4065
        %v4067 = vand.u32 %v4066, 4294901760
        %4068 = vmatmul.mubr.f32.gmra.mrb[0].mxu0 %v4067
        %v4069 = vpop.f32.mrb[0].mxu0
        %v4070 = vadd.f32 %v3938, %v4069
        %v4071 = vpop.f32.mrb[0].mxu0
        %4072 = vmatprep.mubr.f32.mxu0 0.0
        %v4073 = vand.u32 %v3535, 4294901760
        %v4074 = vsub.f32 %v3535, %v4073
        %v4075 = vand.u32 %v4074, 4294901760
        %4076 = vmatmul.mubr.f32.gmra.mrb[0].mxu0 %v4075
        %v4077 = vpop.f32.mrb[0].mxu0
        %v4078 = vadd.f32 %v3945, %v4077
        %v4079 = vpop.f32.mrb[0].mxu0
        %4080 = vdwg.mxu0
        %4081 = vmatprep.subr.mxu0 0.0
        %v4082 = vand.u32 %v3505, 4294901760
        %v4083 = vsub.f32 %v3505, %v4082
        %v4084 = vand.u32 %v4083, 4294901760
        %4085 = vmatpush1.msra.mxu0 %v4084
        %4086 = vmatprep.subr.mxu0 0.0
        %v4087 = vand.u32 %v3506, 4294901760
        %v4088 = vsub.f32 %v3506, %v4087
        %v4089 = vand.u32 %v4088, 4294901760
        %4090 = vmatpush1.msra.mxu0 %v4089
        %4091 = vmatprep.subr.mxu0 0.0
        %v4092 = vand.u32 %v3507, 4294901760
        %v4093 = vsub.f32 %v3507, %v4092
        %v4094 = vand.u32 %v4093, 4294901760
        %4095 = vmatpush1.msra.mxu0 %v4094
        %4096 = vmatprep.subr.mxu0 0.0
        %v4097 = vand.u32 %v3508, 4294901760
        %v4098 = vsub.f32 %v3508, %v4097
        %v4099 = vand.u32 %v4098, 4294901760
        %4100 = vmatpush1.msra.mxu0 %v4099
        %4101 = vmatprep.subr.mxu0 0.0
        %4102 = vmatpush1.msra.mxu0 0.0
        %4103 = vmatprep.subr.mxu0 0.0
        %4104 = vmatpush1.msra.mxu0 0.0
        %4105 = vmatprep.subr.mxu0 0.0
        %4106 = vmatpush1.msra.mxu0 0.0
        %4107 = vmatprep.subr.mxu0 0.0
        %4108 = vmatpush1.msra.mxu0 0.0
        %4109 = vmatprep.subr.mxu0 0.0
        %4110 = vmatpush1.msra.mxu0 0.0
        %4111 = vmatprep.subr.mxu0 0.0
        %4112 = vmatpush1.msra.mxu0 0.0
        %4113 = vmatprep.subr.mxu0 0.0
        %4114 = vmatpush1.msra.mxu0 0.0
        %4115 = vmatprep.subr.mxu0 0.0
        %4116 = vmatpush1.msra.mxu0 0.0
        %4117 = vmatprep.subr.mxu0 0.0
        %4118 = vmatpush1.msra.mxu0 0.0
        %4119 = vmatprep.subr.mxu0 0.0
        %4120 = vmatpush1.msra.mxu0 0.0
        %4121 = vmatprep.subr.mxu0 0.0
        %4122 = vmatpush1.msra.mxu0 0.0
        %4123 = vmatprep.subr.mxu0 0.0
        %4124 = vmatpush1.msra.mxu0 0.0
        %4125 = vmatprep.subr.mxu0 0.0
        %4126 = vmatpush1.msra.mxu0 0.0
        %4127 = vmatprep.subr.mxu0 0.0
        %4128 = vmatpush1.msra.mxu0 0.0
        %4129 = vmatprep.subr.mxu0 0.0
        %4130 = vmatpush1.msra.mxu0 0.0
        %4131 = vmatprep.subr.mxu0 0.0
        %4132 = vmatpush1.msra.mxu0 0.0
        %4133 = vmatprep.subr.mxu0 0.0
        %4134 = vmatpush1.msra.mxu0 0.0
        %4135 = vmatprep.subr.mxu0 0.0
        %4136 = vmatpush1.msra.mxu0 0.0
        %4137 = vmatprep.subr.mxu0 0.0
        %4138 = vmatpush1.msra.mxu0 0.0
        %4139 = vmatprep.subr.mxu0 0.0
        %4140 = vmatpush1.msra.mxu0 0.0
        %4141 = vmatprep.subr.mxu0 0.0
        %4142 = vmatpush1.msra.mxu0 0.0
        %4143 = vmatprep.subr.mxu0 0.0
        %4144 = vmatpush1.msra.mxu0 0.0
        %4145 = vmatprep.subr.mxu0 0.0
        %4146 = vmatpush1.msra.mxu0 0.0
        %4147 = vmatprep.subr.mxu0 0.0
        %4148 = vmatpush1.msra.mxu0 0.0
        %4149 = vmatprep.subr.mxu0 0.0
        %4150 = vmatpush1.msra.mxu0 0.0
        %4151 = vmatprep.subr.mxu0 0.0
        %4152 = vmatpush1.msra.mxu0 0.0
        %4153 = vmatprep.subr.mxu0 0.0
        %4154 = vmatpush1.msra.mxu0 0.0
        %4155 = vmatprep.subr.mxu0 0.0
        %4156 = vmatpush1.msra.mxu0 0.0
        %4157 = vmatprep.mubr.f32.mxu0 0.0
        %v4158 = vand.u32 %v3514, 4294901760
        %4159 = vmatmul.mubr.f32.gmra.mrb[0].mxu0 %v4158
        %v4160 = vpop.f32.mrb[0].mxu0
        %v4161 = vadd.f32 %v4022, %v4160
        %v4162 = vpop.f32.mrb[0].mxu0
        %4163 = vmatprep.mubr.f32.mxu0 0.0
        %v4164 = vand.u32 %v3517, 4294901760
        %4165 = vmatmul.mubr.f32.gmra.mrb[0].mxu0 %v4164
        %v4166 = vpop.f32.mrb[0].mxu0
        %v4167 = vadd.f32 %v4030, %v4166
        %v4168 = vpop.f32.mrb[0].mxu0
        %4169 = vmatprep.mubr.f32.mxu0 0.0
        %v4170 = vand.u32 %v3520, 4294901760
        %4171 = vmatmul.mubr.f32.gmra.mrb[0].mxu0 %v4170
        %v4172 = vpop.f32.mrb[0].mxu0
        %v4173 = vadd.f32 %v4038, %v4172
        %v4174 = vpop.f32.mrb[0].mxu0
        %4175 = vmatprep.mubr.f32.mxu0 0.0
        %v4176 = vand.u32 %v3523, 4294901760
        %4177 = vmatmul.mubr.f32.gmra.mrb[0].mxu0 %v4176
        %v4178 = vpop.f32.mrb[0].mxu0
        %v4179 = vadd.f32 %v4046, %v4178
        %v4180 = vpop.f32.mrb[0].mxu0
        %4181 = vmatprep.mubr.f32.mxu0 0.0
        %v4182 = vand.u32 %v3526, 4294901760
        %4183 = vmatmul.mubr.f32.gmra.mrb[0].mxu0 %v4182
        %v4184 = vpop.f32.mrb[0].mxu0
        %v4185 = vadd.f32 %v4054, %v4184
        %v4186 = vpop.f32.mrb[0].mxu0
        %4187 = vmatprep.mubr.f32.mxu0 0.0
        %v4188 = vand.u32 %v3529, 4294901760
        %4189 = vmatmul.mubr.f32.gmra.mrb[0].mxu0 %v4188
        %v4190 = vpop.f32.mrb[0].mxu0
        %v4191 = vadd.f32 %v4062, %v4190
        %v4192 = vpop.f32.mrb[0].mxu0
        %4193 = vmatprep.mubr.f32.mxu0 0.0
        %v4194 = vand.u32 %v3532, 4294901760
        %4195 = vmatmul.mubr.f32.gmra.mrb[0].mxu0 %v4194
        %v4196 = vpop.f32.mrb[0].mxu0
        %v4197 = vadd.f32 %v4070, %v4196
        %v4198 = vpop.f32.mrb[0].mxu0
        %4199 = vmatprep.mubr.f32.mxu0 0.0
        %v4200 = vand.u32 %v3535, 4294901760
        %4201 = vmatmul.mubr.f32.gmra.mrb[0].mxu0 %v4200
        %v4202 = vpop.f32.mrb[0].mxu0
        %v4203 = vadd.f32 %v4078, %v4202
        %v4204 = vpop.f32.mrb[0].mxu0
        %4205 = vdwg.mxu0
        %4206 = vmatprep.subr.mxu0 0.0
        %v4207 = vand.u32 %v3505, 4294901760
        %4208 = vmatpush1.msra.mxu0 %v4207
        %4209 = vmatprep.subr.mxu0 0.0
        %v4210 = vand.u32 %v3506, 4294901760
        %4211 = vmatpush1.msra.mxu0 %v4210
        %4212 = vmatprep.subr.mxu0 0.0
        %v4213 = vand.u32 %v3507, 4294901760
        %4214 = vmatpush1.msra.mxu0 %v4213
        %4215 = vmatprep.subr.mxu0 0.0
        %v4216 = vand.u32 %v3508, 4294901760
        %4217 = vmatpush1.msra.mxu0 %v4216
        %4218 = vmatprep.subr.mxu0 0.0
        %4219 = vmatpush1.msra.mxu0 0.0
        %4220 = vmatprep.subr.mxu0 0.0
        %4221 = vmatpush1.msra.mxu0 0.0
        %4222 = vmatprep.subr.mxu0 0.0
        %4223 = vmatpush1.msra.mxu0 0.0
        %4224 = vmatprep.subr.mxu0 0.0
        %4225 = vmatpush1.msra.mxu0 0.0
        %4226 = vmatprep.subr.mxu0 0.0
        %4227 = vmatpush1.msra.mxu0 0.0
        %4228 = vmatprep.subr.mxu0 0.0
        %4229 = vmatpush1.msra.mxu0 0.0
        %4230 = vmatprep.subr.mxu0 0.0
        %4231 = vmatpush1.msra.mxu0 0.0
        %4232 = vmatprep.subr.mxu0 0.0
        %4233 = vmatpush1.msra.mxu0 0.0
        %4234 = vmatprep.subr.mxu0 0.0
        %4235 = vmatpush1.msra.mxu0 0.0
        %4236 = vmatprep.subr.mxu0 0.0
        %4237 = vmatpush1.msra.mxu0 0.0
        %4238 = vmatprep.subr.mxu0 0.0
        %4239 = vmatpush1.msra.mxu0 0.0
        %4240 = vmatprep.subr.mxu0 0.0
        %4241 = vmatpush1.msra.mxu0 0.0
        %4242 = vmatprep.subr.mxu0 0.0
        %4243 = vmatpush1.msra.mxu0 0.0
        %4244 = vmatprep.subr.mxu0 0.0
        %4245 = vmatpush1.msra.mxu0 0.0
        %4246 = vmatprep.subr.mxu0 0.0
        %4247 = vmatpush1.msra.mxu0 0.0
        %4248 = vmatprep.subr.mxu0 0.0
        %4249 = vmatpush1.msra.mxu0 0.0
        %4250 = vmatprep.subr.mxu0 0.0
        %4251 = vmatpush1.msra.mxu0 0.0
        %4252 = vmatprep.subr.mxu0 0.0
        %4253 = vmatpush1.msra.mxu0 0.0
        %4254 = vmatprep.subr.mxu0 0.0
        %4255 = vmatpush1.msra.mxu0 0.0
        %4256 = vmatprep.subr.mxu0 0.0
        %4257 = vmatpush1.msra.mxu0 0.0
        %4258 = vmatprep.subr.mxu0 0.0
        %4259 = vmatpush1.msra.mxu0 0.0
        %4260 = vmatprep.subr.mxu0 0.0
        %4261 = vmatpush1.msra.mxu0 0.0
        %4262 = vmatprep.subr.mxu0 0.0
        %4263 = vmatpush1.msra.mxu0 0.0
        %4264 = vmatprep.subr.mxu0 0.0
        %4265 = vmatpush1.msra.mxu0 0.0
        %4266 = vmatprep.subr.mxu0 0.0
        %4267 = vmatpush1.msra.mxu0 0.0
        %4268 = vmatprep.subr.mxu0 0.0
        %4269 = vmatpush1.msra.mxu0 0.0
        %4270 = vmatprep.subr.mxu0 0.0
        %4271 = vmatpush1.msra.mxu0 0.0
        %4272 = vmatprep.subr.mxu0 0.0
        %4273 = vmatpush1.msra.mxu0 0.0
        %4274 = vmatprep.mubr.f32.mxu0 0.0
        %v4275 = vand.u32 %v3514, 4294901760
        %4276 = vmatmul.mubr.f32.gmra.mrb[0].mxu0 %v4275
        %v4277 = vpop.f32.mrb[0].mxu0
        %v4278 = vadd.f32 %v4161, %v4277
        %v4279 = vpop.f32.mrb[0].mxu0
        %4280 = vmatprep.mubr.f32.mxu0 0.0
        %v4281 = vand.u32 %v3517, 4294901760
        %4282 = vmatmul.mubr.f32.gmra.mrb[0].mxu0 %v4281
        %v4283 = vpop.f32.mrb[0].mxu0
        %v4284 = vadd.f32 %v4167, %v4283
        %v4285 = vpop.f32.mrb[0].mxu0
        %4286 = vmatprep.mubr.f32.mxu0 0.0
        %v4287 = vand.u32 %v3520, 4294901760
        %4288 = vmatmul.mubr.f32.gmra.mrb[0].mxu0 %v4287
        %v4289 = vpop.f32.mrb[0].mxu0
        %v4290 = vadd.f32 %v4173, %v4289
        %v4291 = vpop.f32.mrb[0].mxu0
        %4292 = vmatprep.mubr.f32.mxu0 0.0
        %v4293 = vand.u32 %v3523, 4294901760
        %4294 = vmatmul.mubr.f32.gmra.mrb[0].mxu0 %v4293
        %v4295 = vpop.f32.mrb[0].mxu0
        %v4296 = vadd.f32 %v4179, %v4295
        %v4297 = vpop.f32.mrb[0].mxu0
        %4298 = vmatprep.mubr.f32.mxu0 0.0
        %v4299 = vand.u32 %v3526, 4294901760
        %4300 = vmatmul.mubr.f32.gmra.mrb[0].mxu0 %v4299
        %v4301 = vpop.f32.mrb[0].mxu0
        %v4302 = vadd.f32 %v4185, %v4301
        %v4303 = vpop.f32.mrb[0].mxu0
        %4304 = vmatprep.mubr.f32.mxu0 0.0
        %v4305 = vand.u32 %v3529, 4294901760
        %4306 = vmatmul.mubr.f32.gmra.mrb[0].mxu0 %v4305
        %v4307 = vpop.f32.mrb[0].mxu0
        %v4308 = vadd.f32 %v4191, %v4307
        %v4309 = vpop.f32.mrb[0].mxu0
        %4310 = vmatprep.mubr.f32.mxu0 0.0
        %v4311 = vand.u32 %v3532, 4294901760
        %4312 = vmatmul.mubr.f32.gmra.mrb[0].mxu0 %v4311
        %v4313 = vpop.f32.mrb[0].mxu0
        %v4314 = vadd.f32 %v4197, %v4313
        %v4315 = vpop.f32.mrb[0].mxu0
        %4316 = vmatprep.mubr.f32.mxu0 0.0
        %v4317 = vand.u32 %v3535, 4294901760
        %4318 = vmatmul.mubr.f32.gmra.mrb[0].mxu0 %v4317
        %v4319 = vpop.f32.mrb[0].mxu0
        %v4320 = vadd.f32 %v4203, %v4319
        %v4321 = vpop.f32.mrb[0].mxu0
        %4322 = vdwg.mxu0
        %v4323 = vtanh.pop %v4278
        %v4324 = vtanh.pop %v4284
        %v4325 = vtanh.pop %v4290
        %v4326 = vtanh.pop %v4296
        %v4327 = vtanh.pop %v4302
        %v4328 = vtanh.pop %v4308
        %v4329 = vtanh.pop %v4314
        %v4330 = vtanh.pop %v4320
        %v4331 = vld [vmem:[#allocation4 + $0xa0] sm:$0xff]
        %v4332 = vld [vmem:[#allocation4 + $0xa8] sm:$0xff]
        %v4333 = vlaneseq
        %v4334 = vshrl.u32 %v4333, 7
        %v4335 = vsub.s32 5, %v4334
        %v4336 = vrot.slane %v198, %v4335
        %vm4337 = vcmask 130048
        %v4339 = vsel %vm4337, %v4323, 0
        %v4342 = vsel %vm4337, %v4324, 0
        %v4345 = vsel %vm4337, %v4325, 0
        %v4348 = vsel %vm4337, %v4326, 0
        %v4351 = vsel %vm4337, %v4327, 0
        %v4354 = vsel %vm4337, %v4328, 0
        %v4357 = vsel %vm4337, %v4329, 0
        %v4360 = vsel %vm4337, %v4330, 0
        %4362 = vmatprep.subr.mxu0 0.0
        %v4363 = vand.u32 %v4331, 4294901760
        %4364 = vmatpush1.msra.mxu0 %v4363
        %4365 = vmatprep.subr.mxu0 0.0
        %v4366 = vand.u32 %v4332, 4294901760
        %4367 = vmatpush1.msra.mxu0 %v4366
        %4368 = vmatprep.subr.mxu0 0.0
        %4369 = vmatpush1.msra.mxu0 0.0
        %4370 = vmatprep.subr.mxu0 0.0
        %4371 = vmatpush1.msra.mxu0 0.0
        %4372 = vmatprep.subr.mxu0 0.0
        %4373 = vmatpush1.msra.mxu0 0.0
        %4374 = vmatprep.subr.mxu0 0.0
        %4375 = vmatpush1.msra.mxu0 0.0
        %4376 = vmatprep.subr.mxu0 0.0
        %4377 = vmatpush1.msra.mxu0 0.0
        %4378 = vmatprep.subr.mxu0 0.0
        %4379 = vmatpush1.msra.mxu0 0.0
        %4380 = vmatprep.subr.mxu0 0.0
        %4381 = vmatpush1.msra.mxu0 0.0
        %4382 = vmatprep.subr.mxu0 0.0
        %4383 = vmatpush1.msra.mxu0 0.0
        %4384 = vmatprep.subr.mxu0 0.0
        %4385 = vmatpush1.msra.mxu0 0.0
        %4386 = vmatprep.subr.mxu0 0.0
        %4387 = vmatpush1.msra.mxu0 0.0
        %4388 = vmatprep.subr.mxu0 0.0
        %4389 = vmatpush1.msra.mxu0 0.0
        %4390 = vmatprep.subr.mxu0 0.0
        %4391 = vmatpush1.msra.mxu0 0.0
        %4392 = vmatprep.subr.mxu0 0.0
        %4393 = vmatpush1.msra.mxu0 0.0
        %4394 = vmatprep.subr.mxu0 0.0
        %4395 = vmatpush1.msra.mxu0 0.0
        %4396 = vmatprep.subr.mxu0 0.0
        %4397 = vmatpush1.msra.mxu0 0.0
        %4398 = vmatprep.subr.mxu0 0.0
        %4399 = vmatpush1.msra.mxu0 0.0
        %4400 = vmatprep.subr.mxu0 0.0
        %4401 = vmatpush1.msra.mxu0 0.0
        %4402 = vmatprep.subr.mxu0 0.0
        %4403 = vmatpush1.msra.mxu0 0.0
        %4404 = vmatprep.subr.mxu0 0.0
        %4405 = vmatpush1.msra.mxu0 0.0
        %4406 = vmatprep.subr.mxu0 0.0
        %4407 = vmatpush1.msra.mxu0 0.0
        %4408 = vmatprep.subr.mxu0 0.0
        %4409 = vmatpush1.msra.mxu0 0.0
        %4410 = vmatprep.subr.mxu0 0.0
        %4411 = vmatpush1.msra.mxu0 0.0
        %4412 = vmatprep.subr.mxu0 0.0
        %4413 = vmatpush1.msra.mxu0 0.0
        %4414 = vmatprep.subr.mxu0 0.0
        %4415 = vmatpush1.msra.mxu0 0.0
        %4416 = vmatprep.subr.mxu0 0.0
        %4417 = vmatpush1.msra.mxu0 0.0
        %4418 = vmatprep.subr.mxu0 0.0
        %4419 = vmatpush1.msra.mxu0 0.0
        %4420 = vmatprep.subr.mxu0 0.0
        %4421 = vmatpush1.msra.mxu0 0.0
        %4422 = vmatprep.subr.mxu0 0.0
        %4423 = vmatpush1.msra.mxu0 0.0
        %4424 = vmatprep.subr.mxu0 0.0
        %4425 = vmatpush1.msra.mxu0 0.0
        %4426 = vmatprep.subr.mxu0 0.0
        %4427 = vmatpush1.msra.mxu0 0.0
        %4428 = vmatprep.mubr.f32.mxu0 0.0
        %v4429 = vand.u32 %v4339, 4294901760
        %v4430 = vsub.f32 %v4339, %v4429
        %v4431 = vand.u32 %v4430, 4294901760
        %v4432 = vsub.f32 %v4430, %v4431
        %v4433 = vand.u32 %v4432, 4294901760
        %4434 = vmatmul.mubr.f32.gmra.mrb[0].mxu0 %v4433
        %v4435 = vpop.f32.mrb[0].mxu0
        %v4436 = vadd.f32 %v4336, %v4435
        %v4437 = vpop.f32.mrb[0].mxu0
        %4438 = vmatprep.mubr.f32.mxu0 0.0
        %v4439 = vand.u32 %v4342, 4294901760
        %v4440 = vsub.f32 %v4342, %v4439
        %v4441 = vand.u32 %v4440, 4294901760
        %v4442 = vsub.f32 %v4440, %v4441
        %v4443 = vand.u32 %v4442, 4294901760
        %4444 = vmatmul.mubr.f32.gmra.mrb[0].mxu0 %v4443
        %v4445 = vpop.f32.mrb[0].mxu0
        %v4446 = vadd.f32 %v4336, %v4445
        %v4447 = vpop.f32.mrb[0].mxu0
        %4448 = vmatprep.mubr.f32.mxu0 0.0
        %v4449 = vand.u32 %v4345, 4294901760
        %v4450 = vsub.f32 %v4345, %v4449
        %v4451 = vand.u32 %v4450, 4294901760
        %v4452 = vsub.f32 %v4450, %v4451
        %v4453 = vand.u32 %v4452, 4294901760
        %4454 = vmatmul.mubr.f32.gmra.mrb[0].mxu0 %v4453
        %v4455 = vpop.f32.mrb[0].mxu0
        %v4456 = vadd.f32 %v4336, %v4455
        %v4457 = vpop.f32.mrb[0].mxu0
        %4458 = vmatprep.mubr.f32.mxu0 0.0
        %v4459 = vand.u32 %v4348, 4294901760
        %v4460 = vsub.f32 %v4348, %v4459
        %v4461 = vand.u32 %v4460, 4294901760
        %v4462 = vsub.f32 %v4460, %v4461
        %v4463 = vand.u32 %v4462, 4294901760
        %4464 = vmatmul.mubr.f32.gmra.mrb[0].mxu0 %v4463
        %v4465 = vpop.f32.mrb[0].mxu0
        %v4466 = vadd.f32 %v4336, %v4465
        %v4467 = vpop.f32.mrb[0].mxu0
        %4468 = vmatprep.mubr.f32.mxu0 0.0
        %v4469 = vand.u32 %v4351, 4294901760
        %v4470 = vsub.f32 %v4351, %v4469
        %v4471 = vand.u32 %v4470, 4294901760
        %v4472 = vsub.f32 %v4470, %v4471
        %v4473 = vand.u32 %v4472, 4294901760
        %4474 = vmatmul.mubr.f32.gmra.mrb[0].mxu0 %v4473
        %v4475 = vpop.f32.mrb[0].mxu0
        %v4476 = vadd.f32 %v4336, %v4475
        %v4477 = vpop.f32.mrb[0].mxu0
        %4478 = vmatprep.mubr.f32.mxu0 0.0
        %v4479 = vand.u32 %v4354, 4294901760
        %v4480 = vsub.f32 %v4354, %v4479
        %v4481 = vand.u32 %v4480, 4294901760
        %v4482 = vsub.f32 %v4480, %v4481
        %v4483 = vand.u32 %v4482, 4294901760
        %4484 = vmatmul.mubr.f32.gmra.mrb[0].mxu0 %v4483
        %v4485 = vpop.f32.mrb[0].mxu0
        %v4486 = vadd.f32 %v4336, %v4485
        %v4487 = vpop.f32.mrb[0].mxu0
        %4488 = vmatprep.mubr.f32.mxu0 0.0
        %v4489 = vand.u32 %v4357, 4294901760
        %v4490 = vsub.f32 %v4357, %v4489
        %v4491 = vand.u32 %v4490, 4294901760
        %v4492 = vsub.f32 %v4490, %v4491
        %v4493 = vand.u32 %v4492, 4294901760
        %4494 = vmatmul.mubr.f32.gmra.mrb[0].mxu0 %v4493
        %v4495 = vpop.f32.mrb[0].mxu0
        %v4496 = vadd.f32 %v4336, %v4495
        %v4497 = vpop.f32.mrb[0].mxu0
        %4498 = vmatprep.mubr.f32.mxu0 0.0
        %v4499 = vand.u32 %v4360, 4294901760
        %v4500 = vsub.f32 %v4360, %v4499
        %v4501 = vand.u32 %v4500, 4294901760
        %v4502 = vsub.f32 %v4500, %v4501
        %v4503 = vand.u32 %v4502, 4294901760
        %4504 = vmatmul.mubr.f32.gmra.mrb[0].mxu0 %v4503
        %v4505 = vpop.f32.mrb[0].mxu0
        %v4506 = vadd.f32 %v4336, %v4505
        %v4507 = vpop.f32.mrb[0].mxu0
        %4508 = vdwg.mxu0
        %4509 = vmatprep.subr.mxu0 0.0
        %v4510 = vand.u32 %v4331, 4294901760
        %v4511 = vsub.f32 %v4331, %v4510
        %v4512 = vand.u32 %v4511, 4294901760
        %v4513 = vsub.f32 %v4511, %v4512
        %v4514 = vand.u32 %v4513, 4294901760
        %4515 = vmatpush1.msra.mxu0 %v4514
        %4516 = vmatprep.subr.mxu0 0.0
        %v4517 = vand.u32 %v4332, 4294901760
        %v4518 = vsub.f32 %v4332, %v4517
        %v4519 = vand.u32 %v4518, 4294901760
        %v4520 = vsub.f32 %v4518, %v4519
        %v4521 = vand.u32 %v4520, 4294901760
        %4522 = vmatpush1.msra.mxu0 %v4521
        %4523 = vmatprep.subr.mxu0 0.0
        %4524 = vmatpush1.msra.mxu0 0.0
        %4525 = vmatprep.subr.mxu0 0.0
        %4526 = vmatpush1.msra.mxu0 0.0
        %4527 = vmatprep.subr.mxu0 0.0
        %4528 = vmatpush1.msra.mxu0 0.0
        %4529 = vmatprep.subr.mxu0 0.0
        %4530 = vmatpush1.msra.mxu0 0.0
        %4531 = vmatprep.subr.mxu0 0.0
        %4532 = vmatpush1.msra.mxu0 0.0
        %4533 = vmatprep.subr.mxu0 0.0
        %4534 = vmatpush1.msra.mxu0 0.0
        %4535 = vmatprep.subr.mxu0 0.0
        %4536 = vmatpush1.msra.mxu0 0.0
        %4537 = vmatprep.subr.mxu0 0.0
        %4538 = vmatpush1.msra.mxu0 0.0
        %4539 = vmatprep.subr.mxu0 0.0
        %4540 = vmatpush1.msra.mxu0 0.0
        %4541 = vmatprep.subr.mxu0 0.0
        %4542 = vmatpush1.msra.mxu0 0.0
        %4543 = vmatprep.subr.mxu0 0.0
        %4544 = vmatpush1.msra.mxu0 0.0
        %4545 = vmatprep.subr.mxu0 0.0
        %4546 = vmatpush1.msra.mxu0 0.0
        %4547 = vmatprep.subr.mxu0 0.0
        %4548 = vmatpush1.msra.mxu0 0.0
        %4549 = vmatprep.subr.mxu0 0.0
        %4550 = vmatpush1.msra.mxu0 0.0
        %4551 = vmatprep.subr.mxu0 0.0
        %4552 = vmatpush1.msra.mxu0 0.0
        %4553 = vmatprep.subr.mxu0 0.0
        %4554 = vmatpush1.msra.mxu0 0.0
        %4555 = vmatprep.subr.mxu0 0.0
        %4556 = vmatpush1.msra.mxu0 0.0
        %4557 = vmatprep.subr.mxu0 0.0
        %4558 = vmatpush1.msra.mxu0 0.0
        %4559 = vmatprep.subr.mxu0 0.0
        %4560 = vmatpush1.msra.mxu0 0.0
        %4561 = vmatprep.subr.mxu0 0.0
        %4562 = vmatpush1.msra.mxu0 0.0
        %4563 = vmatprep.subr.mxu0 0.0
        %4564 = vmatpush1.msra.mxu0 0.0
        %4565 = vmatprep.subr.mxu0 0.0
        %4566 = vmatpush1.msra.mxu0 0.0
        %4567 = vmatprep.subr.mxu0 0.0
        %4568 = vmatpush1.msra.mxu0 0.0
        %4569 = vmatprep.subr.mxu0 0.0
        %4570 = vmatpush1.msra.mxu0 0.0
        %4571 = vmatprep.subr.mxu0 0.0
        %4572 = vmatpush1.msra.mxu0 0.0
        %4573 = vmatprep.subr.mxu0 0.0
        %4574 = vmatpush1.msra.mxu0 0.0
        %4575 = vmatprep.subr.mxu0 0.0
        %4576 = vmatpush1.msra.mxu0 0.0
        %4577 = vmatprep.subr.mxu0 0.0
        %4578 = vmatpush1.msra.mxu0 0.0
        %4579 = vmatprep.subr.mxu0 0.0
        %4580 = vmatpush1.msra.mxu0 0.0
        %4581 = vmatprep.subr.mxu0 0.0
        %4582 = vmatpush1.msra.mxu0 0.0
        %4583 = vmatprep.mubr.f32.mxu0 0.0
        %v4584 = vand.u32 %v4339, 4294901760
        %4585 = vmatmul.mubr.f32.gmra.mrb[0].mxu0 %v4584
        %v4586 = vpop.f32.mrb[0].mxu0
        %v4587 = vadd.f32 %v4436, %v4586
        %v4588 = vpop.f32.mrb[0].mxu0
        %4589 = vmatprep.mubr.f32.mxu0 0.0
        %v4590 = vand.u32 %v4342, 4294901760
        %4591 = vmatmul.mubr.f32.gmra.mrb[0].mxu0 %v4590
        %v4592 = vpop.f32.mrb[0].mxu0
        %v4593 = vadd.f32 %v4446, %v4592
        %v4594 = vpop.f32.mrb[0].mxu0
        %4595 = vmatprep.mubr.f32.mxu0 0.0
        %v4596 = vand.u32 %v4345, 4294901760
        %4597 = vmatmul.mubr.f32.gmra.mrb[0].mxu0 %v4596
        %v4598 = vpop.f32.mrb[0].mxu0
        %v4599 = vadd.f32 %v4456, %v4598
        %v4600 = vpop.f32.mrb[0].mxu0
        %4601 = vmatprep.mubr.f32.mxu0 0.0
        %v4602 = vand.u32 %v4348, 4294901760
        %4603 = vmatmul.mubr.f32.gmra.mrb[0].mxu0 %v4602
        %v4604 = vpop.f32.mrb[0].mxu0
        %v4605 = vadd.f32 %v4466, %v4604
        %v4606 = vpop.f32.mrb[0].mxu0
        %4607 = vmatprep.mubr.f32.mxu0 0.0
        %v4608 = vand.u32 %v4351, 4294901760
        %4609 = vmatmul.mubr.f32.gmra.mrb[0].mxu0 %v4608
        %v4610 = vpop.f32.mrb[0].mxu0
        %v4611 = vadd.f32 %v4476, %v4610
        %v4612 = vpop.f32.mrb[0].mxu0
        %4613 = vmatprep.mubr.f32.mxu0 0.0
        %v4614 = vand.u32 %v4354, 4294901760
        %4615 = vmatmul.mubr.f32.gmra.mrb[0].mxu0 %v4614
        %v4616 = vpop.f32.mrb[0].mxu0
        %v4617 = vadd.f32 %v4486, %v4616
        %v4618 = vpop.f32.mrb[0].mxu0
        %4619 = vmatprep.mubr.f32.mxu0 0.0
        %v4620 = vand.u32 %v4357, 4294901760
        %4621 = vmatmul.mubr.f32.gmra.mrb[0].mxu0 %v4620
        %v4622 = vpop.f32.mrb[0].mxu0
        %v4623 = vadd.f32 %v4496, %v4622
        %v4624 = vpop.f32.mrb[0].mxu0
        %4625 = vmatprep.mubr.f32.mxu0 0.0
        %v4626 = vand.u32 %v4360, 4294901760
        %4627 = vmatmul.mubr.f32.gmra.mrb[0].mxu0 %v4626
        %v4628 = vpop.f32.mrb[0].mxu0
        %v4629 = vadd.f32 %v4506, %v4628
        %v4630 = vpop.f32.mrb[0].mxu0
        %4631 = vdwg.mxu0
        %4632 = vmatprep.subr.mxu0 0.0
        %v4633 = vand.u32 %v4331, 4294901760
        %v4634 = vsub.f32 %v4331, %v4633
        %4635 = vmatpush1.msra.mxu0 %v4634
        %4636 = vmatprep.subr.mxu0 0.0
        %v4637 = vand.u32 %v4332, 4294901760
        %v4638 = vsub.f32 %v4332, %v4637
        %4639 = vmatpush1.msra.mxu0 %v4638
        %4640 = vmatprep.subr.mxu0 0.0
        %4641 = vmatpush1.msra.mxu0 0.0
        %4642 = vmatprep.subr.mxu0 0.0
        %4643 = vmatpush1.msra.mxu0 0.0
        %4644 = vmatprep.subr.mxu0 0.0
        %4645 = vmatpush1.msra.mxu0 0.0
        %4646 = vmatprep.subr.mxu0 0.0
        %4647 = vmatpush1.msra.mxu0 0.0
        %4648 = vmatprep.subr.mxu0 0.0
        %4649 = vmatpush1.msra.mxu0 0.0
        %4650 = vmatprep.subr.mxu0 0.0
        %4651 = vmatpush1.msra.mxu0 0.0
        %4652 = vmatprep.subr.mxu0 0.0
        %4653 = vmatpush1.msra.mxu0 0.0
        %4654 = vmatprep.subr.mxu0 0.0
        %4655 = vmatpush1.msra.mxu0 0.0
        %4656 = vmatprep.subr.mxu0 0.0
        %4657 = vmatpush1.msra.mxu0 0.0
        %4658 = vmatprep.subr.mxu0 0.0
        %4659 = vmatpush1.msra.mxu0 0.0
        %4660 = vmatprep.subr.mxu0 0.0
        %4661 = vmatpush1.msra.mxu0 0.0
        %4662 = vmatprep.subr.mxu0 0.0
        %4663 = vmatpush1.msra.mxu0 0.0
        %4664 = vmatprep.subr.mxu0 0.0
        %4665 = vmatpush1.msra.mxu0 0.0
        %4666 = vmatprep.subr.mxu0 0.0
        %4667 = vmatpush1.msra.mxu0 0.0
        %4668 = vmatprep.subr.mxu0 0.0
        %4669 = vmatpush1.msra.mxu0 0.0
        %4670 = vmatprep.subr.mxu0 0.0
        %4671 = vmatpush1.msra.mxu0 0.0
        %4672 = vmatprep.subr.mxu0 0.0
        %4673 = vmatpush1.msra.mxu0 0.0
        %4674 = vmatprep.subr.mxu0 0.0
        %4675 = vmatpush1.msra.mxu0 0.0
        %4676 = vmatprep.subr.mxu0 0.0
        %4677 = vmatpush1.msra.mxu0 0.0
        %4678 = vmatprep.subr.mxu0 0.0
        %4679 = vmatpush1.msra.mxu0 0.0
        %4680 = vmatprep.subr.mxu0 0.0
        %4681 = vmatpush1.msra.mxu0 0.0
        %4682 = vmatprep.subr.mxu0 0.0
        %4683 = vmatpush1.msra.mxu0 0.0
        %4684 = vmatprep.subr.mxu0 0.0
        %4685 = vmatpush1.msra.mxu0 0.0
        %4686 = vmatprep.subr.mxu0 0.0
        %4687 = vmatpush1.msra.mxu0 0.0
        %4688 = vmatprep.subr.mxu0 0.0
        %4689 = vmatpush1.msra.mxu0 0.0
        %4690 = vmatprep.subr.mxu0 0.0
        %4691 = vmatpush1.msra.mxu0 0.0
        %4692 = vmatprep.subr.mxu0 0.0
        %4693 = vmatpush1.msra.mxu0 0.0
        %4694 = vmatprep.subr.mxu0 0.0
        %4695 = vmatpush1.msra.mxu0 0.0
        %4696 = vmatprep.subr.mxu0 0.0
        %4697 = vmatpush1.msra.mxu0 0.0
        %4698 = vmatprep.subr.mxu0 0.0
        %4699 = vmatpush1.msra.mxu0 0.0
        %4700 = vmatprep.mubr.f32.mxu0 0.0
        %v4701 = vand.u32 %v4339, 4294901760
        %v4702 = vsub.f32 %v4339, %v4701
        %4703 = vmatmul.mubr.f32.gmra.mrb[0].mxu0 %v4702
        %v4704 = vpop.f32.mrb[0].mxu0
        %v4705 = vadd.f32 %v4587, %v4704
        %v4706 = vpop.f32.mrb[0].mxu0
        %4707 = vmatprep.mubr.f32.mxu0 0.0
        %v4708 = vand.u32 %v4342, 4294901760
        %v4709 = vsub.f32 %v4342, %v4708
        %4710 = vmatmul.mubr.f32.gmra.mrb[0].mxu0 %v4709
        %v4711 = vpop.f32.mrb[0].mxu0
        %v4712 = vadd.f32 %v4593, %v4711
        %v4713 = vpop.f32.mrb[0].mxu0
        %4714 = vmatprep.mubr.f32.mxu0 0.0
        %v4715 = vand.u32 %v4345, 4294901760
        %v4716 = vsub.f32 %v4345, %v4715
        %4717 = vmatmul.mubr.f32.gmra.mrb[0].mxu0 %v4716
        %v4718 = vpop.f32.mrb[0].mxu0
        %v4719 = vadd.f32 %v4599, %v4718
        %v4720 = vpop.f32.mrb[0].mxu0
        %4721 = vmatprep.mubr.f32.mxu0 0.0
        %v4722 = vand.u32 %v4348, 4294901760
        %v4723 = vsub.f32 %v4348, %v4722
        %4724 = vmatmul.mubr.f32.gmra.mrb[0].mxu0 %v4723
        %v4725 = vpop.f32.mrb[0].mxu0
        %v4726 = vadd.f32 %v4605, %v4725
        %v4727 = vpop.f32.mrb[0].mxu0
        %4728 = vmatprep.mubr.f32.mxu0 0.0
        %v4729 = vand.u32 %v4351, 4294901760
        %v4730 = vsub.f32 %v4351, %v4729
        %4731 = vmatmul.mubr.f32.gmra.mrb[0].mxu0 %v4730
        %v4732 = vpop.f32.mrb[0].mxu0
        %v4733 = vadd.f32 %v4611, %v4732
        %v4734 = vpop.f32.mrb[0].mxu0
        %4735 = vmatprep.mubr.f32.mxu0 0.0
        %v4736 = vand.u32 %v4354, 4294901760
        %v4737 = vsub.f32 %v4354, %v4736
        %4738 = vmatmul.mubr.f32.gmra.mrb[0].mxu0 %v4737
        %v4739 = vpop.f32.mrb[0].mxu0
        %v4740 = vadd.f32 %v4617, %v4739
        %v4741 = vpop.f32.mrb[0].mxu0
        %4742 = vmatprep.mubr.f32.mxu0 0.0
        %v4743 = vand.u32 %v4357, 4294901760
        %v4744 = vsub.f32 %v4357, %v4743
        %4745 = vmatmul.mubr.f32.gmra.mrb[0].mxu0 %v4744
        %v4746 = vpop.f32.mrb[0].mxu0
        %v4747 = vadd.f32 %v4623, %v4746
        %v4748 = vpop.f32.mrb[0].mxu0
        %4749 = vmatprep.mubr.f32.mxu0 0.0
        %v4750 = vand.u32 %v4360, 4294901760
        %v4751 = vsub.f32 %v4360, %v4750
        %4752 = vmatmul.mubr.f32.gmra.mrb[0].mxu0 %v4751
        %v4753 = vpop.f32.mrb[0].mxu0
        %v4754 = vadd.f32 %v4629, %v4753
        %v4755 = vpop.f32.mrb[0].mxu0
        %4756 = vdwg.mxu0
        %4757 = vmatprep.subr.mxu0 0.0
        %v4758 = vand.u32 %v4331, 4294901760
        %4759 = vmatpush1.msra.mxu0 %v4758
        %4760 = vmatprep.subr.mxu0 0.0
        %v4761 = vand.u32 %v4332, 4294901760
        %4762 = vmatpush1.msra.mxu0 %v4761
        %4763 = vmatprep.subr.mxu0 0.0
        %4764 = vmatpush1.msra.mxu0 0.0
        %4765 = vmatprep.subr.mxu0 0.0
        %4766 = vmatpush1.msra.mxu0 0.0
        %4767 = vmatprep.subr.mxu0 0.0
        %4768 = vmatpush1.msra.mxu0 0.0
        %4769 = vmatprep.subr.mxu0 0.0
        %4770 = vmatpush1.msra.mxu0 0.0
        %4771 = vmatprep.subr.mxu0 0.0
        %4772 = vmatpush1.msra.mxu0 0.0
        %4773 = vmatprep.subr.mxu0 0.0
        %4774 = vmatpush1.msra.mxu0 0.0
        %4775 = vmatprep.subr.mxu0 0.0
        %4776 = vmatpush1.msra.mxu0 0.0
        %4777 = vmatprep.subr.mxu0 0.0
        %4778 = vmatpush1.msra.mxu0 0.0
        %4779 = vmatprep.subr.mxu0 0.0
        %4780 = vmatpush1.msra.mxu0 0.0
        %4781 = vmatprep.subr.mxu0 0.0
        %4782 = vmatpush1.msra.mxu0 0.0
        %4783 = vmatprep.subr.mxu0 0.0
        %4784 = vmatpush1.msra.mxu0 0.0
        %4785 = vmatprep.subr.mxu0 0.0
        %4786 = vmatpush1.msra.mxu0 0.0
        %4787 = vmatprep.subr.mxu0 0.0
        %4788 = vmatpush1.msra.mxu0 0.0
        %4789 = vmatprep.subr.mxu0 0.0
        %4790 = vmatpush1.msra.mxu0 0.0
        %4791 = vmatprep.subr.mxu0 0.0
        %4792 = vmatpush1.msra.mxu0 0.0
        %4793 = vmatprep.subr.mxu0 0.0
        %4794 = vmatpush1.msra.mxu0 0.0
        %4795 = vmatprep.subr.mxu0 0.0
        %4796 = vmatpush1.msra.mxu0 0.0
        %4797 = vmatprep.subr.mxu0 0.0
        %4798 = vmatpush1.msra.mxu0 0.0
        %4799 = vmatprep.subr.mxu0 0.0
        %4800 = vmatpush1.msra.mxu0 0.0
        %4801 = vmatprep.subr.mxu0 0.0
        %4802 = vmatpush1.msra.mxu0 0.0
        %4803 = vmatprep.subr.mxu0 0.0
        %4804 = vmatpush1.msra.mxu0 0.0
        %4805 = vmatprep.subr.mxu0 0.0
        %4806 = vmatpush1.msra.mxu0 0.0
        %4807 = vmatprep.subr.mxu0 0.0
        %4808 = vmatpush1.msra.mxu0 0.0
        %4809 = vmatprep.subr.mxu0 0.0
        %4810 = vmatpush1.msra.mxu0 0.0
        %4811 = vmatprep.subr.mxu0 0.0
        %4812 = vmatpush1.msra.mxu0 0.0
        %4813 = vmatprep.subr.mxu0 0.0
        %4814 = vmatpush1.msra.mxu0 0.0
        %4815 = vmatprep.subr.mxu0 0.0
        %4816 = vmatpush1.msra.mxu0 0.0
        %4817 = vmatprep.subr.mxu0 0.0
        %4818 = vmatpush1.msra.mxu0 0.0
        %4819 = vmatprep.subr.mxu0 0.0
        %4820 = vmatpush1.msra.mxu0 0.0
        %4821 = vmatprep.subr.mxu0 0.0
        %4822 = vmatpush1.msra.mxu0 0.0
        %4823 = vmatprep.mubr.f32.mxu0 0.0
        %v4824 = vand.u32 %v4339, 4294901760
        %v4825 = vsub.f32 %v4339, %v4824
        %v4826 = vand.u32 %v4825, 4294901760
        %4827 = vmatmul.mubr.f32.gmra.mrb[0].mxu0 %v4826
        %v4828 = vpop.f32.mrb[0].mxu0
        %v4829 = vadd.f32 %v4705, %v4828
        %v4830 = vpop.f32.mrb[0].mxu0
        %4831 = vmatprep.mubr.f32.mxu0 0.0
        %v4832 = vand.u32 %v4342, 4294901760
        %v4833 = vsub.f32 %v4342, %v4832
        %v4834 = vand.u32 %v4833, 4294901760
        %4835 = vmatmul.mubr.f32.gmra.mrb[0].mxu0 %v4834
        %v4836 = vpop.f32.mrb[0].mxu0
        %v4837 = vadd.f32 %v4712, %v4836
        %v4838 = vpop.f32.mrb[0].mxu0
        %4839 = vmatprep.mubr.f32.mxu0 0.0
        %v4840 = vand.u32 %v4345, 4294901760
        %v4841 = vsub.f32 %v4345, %v4840
        %v4842 = vand.u32 %v4841, 4294901760
        %4843 = vmatmul.mubr.f32.gmra.mrb[0].mxu0 %v4842
        %v4844 = vpop.f32.mrb[0].mxu0
        %v4845 = vadd.f32 %v4719, %v4844
        %v4846 = vpop.f32.mrb[0].mxu0
        %4847 = vmatprep.mubr.f32.mxu0 0.0
        %v4848 = vand.u32 %v4348, 4294901760
        %v4849 = vsub.f32 %v4348, %v4848
        %v4850 = vand.u32 %v4849, 4294901760
        %4851 = vmatmul.mubr.f32.gmra.mrb[0].mxu0 %v4850
        %v4852 = vpop.f32.mrb[0].mxu0
        %v4853 = vadd.f32 %v4726, %v4852
        %v4854 = vpop.f32.mrb[0].mxu0
        %4855 = vmatprep.mubr.f32.mxu0 0.0
        %v4856 = vand.u32 %v4351, 4294901760
        %v4857 = vsub.f32 %v4351, %v4856
        %v4858 = vand.u32 %v4857, 4294901760
        %4859 = vmatmul.mubr.f32.gmra.mrb[0].mxu0 %v4858
        %v4860 = vpop.f32.mrb[0].mxu0
        %v4861 = vadd.f32 %v4733, %v4860
        %v4862 = vpop.f32.mrb[0].mxu0
        %4863 = vmatprep.mubr.f32.mxu0 0.0
        %v4864 = vand.u32 %v4354, 4294901760
        %v4865 = vsub.f32 %v4354, %v4864
        %v4866 = vand.u32 %v4865, 4294901760
        %4867 = vmatmul.mubr.f32.gmra.mrb[0].mxu0 %v4866
        %v4868 = vpop.f32.mrb[0].mxu0
        %v4869 = vadd.f32 %v4740, %v4868
        %v4870 = vpop.f32.mrb[0].mxu0
        %4871 = vmatprep.mubr.f32.mxu0 0.0
        %v4872 = vand.u32 %v4357, 4294901760
        %v4873 = vsub.f32 %v4357, %v4872
        %v4874 = vand.u32 %v4873, 4294901760
        %4875 = vmatmul.mubr.f32.gmra.mrb[0].mxu0 %v4874
        %v4876 = vpop.f32.mrb[0].mxu0
        %v4877 = vadd.f32 %v4747, %v4876
        %v4878 = vpop.f32.mrb[0].mxu0
        %4879 = vmatprep.mubr.f32.mxu0 0.0
        %v4880 = vand.u32 %v4360, 4294901760
        %v4881 = vsub.f32 %v4360, %v4880
        %v4882 = vand.u32 %v4881, 4294901760
        %4883 = vmatmul.mubr.f32.gmra.mrb[0].mxu0 %v4882
        %v4884 = vpop.f32.mrb[0].mxu0
        %v4885 = vadd.f32 %v4754, %v4884
        %v4886 = vpop.f32.mrb[0].mxu0
        %4887 = vdwg.mxu0
        %4888 = vmatprep.subr.mxu0 0.0
        %v4889 = vand.u32 %v4331, 4294901760
        %v4890 = vsub.f32 %v4331, %v4889
        %v4891 = vand.u32 %v4890, 4294901760
        %4892 = vmatpush1.msra.mxu0 %v4891
        %4893 = vmatprep.subr.mxu0 0.0
        %v4894 = vand.u32 %v4332, 4294901760
        %v4895 = vsub.f32 %v4332, %v4894
        %v4896 = vand.u32 %v4895, 4294901760
        %4897 = vmatpush1.msra.mxu0 %v4896
        %4898 = vmatprep.subr.mxu0 0.0
        %4899 = vmatpush1.msra.mxu0 0.0
        %4900 = vmatprep.subr.mxu0 0.0
        %4901 = vmatpush1.msra.mxu0 0.0
        %4902 = vmatprep.subr.mxu0 0.0
        %4903 = vmatpush1.msra.mxu0 0.0
        %4904 = vmatprep.subr.mxu0 0.0
        %4905 = vmatpush1.msra.mxu0 0.0
        %4906 = vmatprep.subr.mxu0 0.0
        %4907 = vmatpush1.msra.mxu0 0.0
        %4908 = vmatprep.subr.mxu0 0.0
        %4909 = vmatpush1.msra.mxu0 0.0
        %4910 = vmatprep.subr.mxu0 0.0
        %4911 = vmatpush1.msra.mxu0 0.0
        %4912 = vmatprep.subr.mxu0 0.0
        %4913 = vmatpush1.msra.mxu0 0.0
        %4914 = vmatprep.subr.mxu0 0.0
        %4915 = vmatpush1.msra.mxu0 0.0
        %4916 = vmatprep.subr.mxu0 0.0
        %4917 = vmatpush1.msra.mxu0 0.0
        %4918 = vmatprep.subr.mxu0 0.0
        %4919 = vmatpush1.msra.mxu0 0.0
        %4920 = vmatprep.subr.mxu0 0.0
        %4921 = vmatpush1.msra.mxu0 0.0
        %4922 = vmatprep.subr.mxu0 0.0
        %4923 = vmatpush1.msra.mxu0 0.0
        %4924 = vmatprep.subr.mxu0 0.0
        %4925 = vmatpush1.msra.mxu0 0.0
        %4926 = vmatprep.subr.mxu0 0.0
        %4927 = vmatpush1.msra.mxu0 0.0
        %4928 = vmatprep.subr.mxu0 0.0
        %4929 = vmatpush1.msra.mxu0 0.0
        %4930 = vmatprep.subr.mxu0 0.0
        %4931 = vmatpush1.msra.mxu0 0.0
        %4932 = vmatprep.subr.mxu0 0.0
        %4933 = vmatpush1.msra.mxu0 0.0
        %4934 = vmatprep.subr.mxu0 0.0
        %4935 = vmatpush1.msra.mxu0 0.0
        %4936 = vmatprep.subr.mxu0 0.0
        %4937 = vmatpush1.msra.mxu0 0.0
        %4938 = vmatprep.subr.mxu0 0.0
        %4939 = vmatpush1.msra.mxu0 0.0
        %4940 = vmatprep.subr.mxu0 0.0
        %4941 = vmatpush1.msra.mxu0 0.0
        %4942 = vmatprep.subr.mxu0 0.0
        %4943 = vmatpush1.msra.mxu0 0.0
        %4944 = vmatprep.subr.mxu0 0.0
        %4945 = vmatpush1.msra.mxu0 0.0
        %4946 = vmatprep.subr.mxu0 0.0
        %4947 = vmatpush1.msra.mxu0 0.0
        %4948 = vmatprep.subr.mxu0 0.0
        %4949 = vmatpush1.msra.mxu0 0.0
        %4950 = vmatprep.subr.mxu0 0.0
        %4951 = vmatpush1.msra.mxu0 0.0
        %4952 = vmatprep.subr.mxu0 0.0
        %4953 = vmatpush1.msra.mxu0 0.0
        %4954 = vmatprep.subr.mxu0 0.0
        %4955 = vmatpush1.msra.mxu0 0.0
        %4956 = vmatprep.subr.mxu0 0.0
        %4957 = vmatpush1.msra.mxu0 0.0
        %4958 = vmatprep.mubr.f32.mxu0 0.0
        %v4959 = vand.u32 %v4339, 4294901760
        %4960 = vmatmul.mubr.f32.gmra.mrb[0].mxu0 %v4959
        %v4961 = vpop.f32.mrb[0].mxu0
        %v4962 = vadd.f32 %v4829, %v4961
        %v4963 = vpop.f32.mrb[0].mxu0
        %4964 = vmatprep.mubr.f32.mxu0 0.0
        %v4965 = vand.u32 %v4342, 4294901760
        %4966 = vmatmul.mubr.f32.gmra.mrb[0].mxu0 %v4965
        %v4967 = vpop.f32.mrb[0].mxu0
        %v4968 = vadd.f32 %v4837, %v4967
        %v4969 = vpop.f32.mrb[0].mxu0
        %4970 = vmatprep.mubr.f32.mxu0 0.0
        %v4971 = vand.u32 %v4345, 4294901760
        %4972 = vmatmul.mubr.f32.gmra.mrb[0].mxu0 %v4971
        %v4973 = vpop.f32.mrb[0].mxu0
        %v4974 = vadd.f32 %v4845, %v4973
        %v4975 = vpop.f32.mrb[0].mxu0
        %4976 = vmatprep.mubr.f32.mxu0 0.0
        %v4977 = vand.u32 %v4348, 4294901760
        %4978 = vmatmul.mubr.f32.gmra.mrb[0].mxu0 %v4977
        %v4979 = vpop.f32.mrb[0].mxu0
        %v4980 = vadd.f32 %v4853, %v4979
        %v4981 = vpop.f32.mrb[0].mxu0
        %4982 = vmatprep.mubr.f32.mxu0 0.0
        %v4983 = vand.u32 %v4351, 4294901760
        %4984 = vmatmul.mubr.f32.gmra.mrb[0].mxu0 %v4983
        %v4985 = vpop.f32.mrb[0].mxu0
        %v4986 = vadd.f32 %v4861, %v4985
        %v4987 = vpop.f32.mrb[0].mxu0
        %4988 = vmatprep.mubr.f32.mxu0 0.0
        %v4989 = vand.u32 %v4354, 4294901760
        %4990 = vmatmul.mubr.f32.gmra.mrb[0].mxu0 %v4989
        %v4991 = vpop.f32.mrb[0].mxu0
        %v4992 = vadd.f32 %v4869, %v4991
        %v4993 = vpop.f32.mrb[0].mxu0
        %4994 = vmatprep.mubr.f32.mxu0 0.0
        %v4995 = vand.u32 %v4357, 4294901760
        %4996 = vmatmul.mubr.f32.gmra.mrb[0].mxu0 %v4995
        %v4997 = vpop.f32.mrb[0].mxu0
        %v4998 = vadd.f32 %v4877, %v4997
        %v4999 = vpop.f32.mrb[0].mxu0
        %5000 = vmatprep.mubr.f32.mxu0 0.0
        %v5001 = vand.u32 %v4360, 4294901760
        %5002 = vmatmul.mubr.f32.gmra.mrb[0].mxu0 %v5001
        %v5003 = vpop.f32.mrb[0].mxu0
        %v5004 = vadd.f32 %v4885, %v5003
        %v5005 = vpop.f32.mrb[0].mxu0
        %5006 = vdwg.mxu0
        %5007 = vmatprep.subr.mxu0 0.0
        %v5008 = vand.u32 %v4331, 4294901760
        %5009 = vmatpush1.msra.mxu0 %v5008
        %5010 = vmatprep.subr.mxu0 0.0
        %v5011 = vand.u32 %v4332, 4294901760
        %5012 = vmatpush1.msra.mxu0 %v5011
        %5013 = vmatprep.subr.mxu0 0.0
        %5014 = vmatpush1.msra.mxu0 0.0
        %5015 = vmatprep.subr.mxu0 0.0
        %5016 = vmatpush1.msra.mxu0 0.0
        %5017 = vmatprep.subr.mxu0 0.0
        %5018 = vmatpush1.msra.mxu0 0.0
        %5019 = vmatprep.subr.mxu0 0.0
        %5020 = vmatpush1.msra.mxu0 0.0
        %5021 = vmatprep.subr.mxu0 0.0
        %5022 = vmatpush1.msra.mxu0 0.0
        %5023 = vmatprep.subr.mxu0 0.0
        %5024 = vmatpush1.msra.mxu0 0.0
        %5025 = vmatprep.subr.mxu0 0.0
        %5026 = vmatpush1.msra.mxu0 0.0
        %5027 = vmatprep.subr.mxu0 0.0
        %5028 = vmatpush1.msra.mxu0 0.0
        %5029 = vmatprep.subr.mxu0 0.0
        %5030 = vmatpush1.msra.mxu0 0.0
        %5031 = vmatprep.subr.mxu0 0.0
        %5032 = vmatpush1.msra.mxu0 0.0
        %5033 = vmatprep.subr.mxu0 0.0
        %5034 = vmatpush1.msra.mxu0 0.0
        %5035 = vmatprep.subr.mxu0 0.0
        %5036 = vmatpush1.msra.mxu0 0.0
        %5037 = vmatprep.subr.mxu0 0.0
        %5038 = vmatpush1.msra.mxu0 0.0
        %5039 = vmatprep.subr.mxu0 0.0
        %5040 = vmatpush1.msra.mxu0 0.0
        %5041 = vmatprep.subr.mxu0 0.0
        %5042 = vmatpush1.msra.mxu0 0.0
        %5043 = vmatprep.subr.mxu0 0.0
        %5044 = vmatpush1.msra.mxu0 0.0
        %5045 = vmatprep.subr.mxu0 0.0
        %5046 = vmatpush1.msra.mxu0 0.0
        %5047 = vmatprep.subr.mxu0 0.0
        %5048 = vmatpush1.msra.mxu0 0.0
        %5049 = vmatprep.subr.mxu0 0.0
        %5050 = vmatpush1.msra.mxu0 0.0
        %5051 = vmatprep.subr.mxu0 0.0
        %5052 = vmatpush1.msra.mxu0 0.0
        %5053 = vmatprep.subr.mxu0 0.0
        %5054 = vmatpush1.msra.mxu0 0.0
        %5055 = vmatprep.subr.mxu0 0.0
        %5056 = vmatpush1.msra.mxu0 0.0
        %5057 = vmatprep.subr.mxu0 0.0
        %5058 = vmatpush1.msra.mxu0 0.0
        %5059 = vmatprep.subr.mxu0 0.0
        %5060 = vmatpush1.msra.mxu0 0.0
        %5061 = vmatprep.subr.mxu0 0.0
        %5062 = vmatpush1.msra.mxu0 0.0
        %5063 = vmatprep.subr.mxu0 0.0
        %5064 = vmatpush1.msra.mxu0 0.0
        %5065 = vmatprep.subr.mxu0 0.0
        %5066 = vmatpush1.msra.mxu0 0.0
        %5067 = vmatprep.subr.mxu0 0.0
        %5068 = vmatpush1.msra.mxu0 0.0
        %5069 = vmatprep.subr.mxu0 0.0
        %5070 = vmatpush1.msra.mxu0 0.0
        %5071 = vmatprep.subr.mxu0 0.0
        %5072 = vmatpush1.msra.mxu0 0.0
        %5073 = vmatprep.mubr.f32.mxu0 0.0
        %v5074 = vand.u32 %v4339, 4294901760
        %5075 = vmatmul.mubr.f32.gmra.mrb[0].mxu0 %v5074
        %v5076 = vpop.f32.mrb[0].mxu0
        %v5077 = vadd.f32 %v4962, %v5076
        %v5078 = vpop.f32.mrb[0].mxu0
        %5079 = vmatprep.mubr.f32.mxu0 0.0
        %v5080 = vand.u32 %v4342, 4294901760
        %5081 = vmatmul.mubr.f32.gmra.mrb[0].mxu0 %v5080
        %v5082 = vpop.f32.mrb[0].mxu0
        %v5083 = vadd.f32 %v4968, %v5082
        %v5084 = vpop.f32.mrb[0].mxu0
        %5085 = vmatprep.mubr.f32.mxu0 0.0
        %v5086 = vand.u32 %v4345, 4294901760
        %5087 = vmatmul.mubr.f32.gmra.mrb[0].mxu0 %v5086
        %v5088 = vpop.f32.mrb[0].mxu0
        %v5089 = vadd.f32 %v4974, %v5088
        %v5090 = vpop.f32.mrb[0].mxu0
        %5091 = vmatprep.mubr.f32.mxu0 0.0
        %v5092 = vand.u32 %v4348, 4294901760
        %5093 = vmatmul.mubr.f32.gmra.mrb[0].mxu0 %v5092
        %v5094 = vpop.f32.mrb[0].mxu0
        %v5095 = vadd.f32 %v4980, %v5094
        %v5096 = vpop.f32.mrb[0].mxu0
        %5097 = vmatprep.mubr.f32.mxu0 0.0
        %v5098 = vand.u32 %v4351, 4294901760
        %5099 = vmatmul.mubr.f32.gmra.mrb[0].mxu0 %v5098
        %v5100 = vpop.f32.mrb[0].mxu0
        %v5101 = vadd.f32 %v4986, %v5100
        %v5102 = vpop.f32.mrb[0].mxu0
        %5103 = vmatprep.mubr.f32.mxu0 0.0
        %v5104 = vand.u32 %v4354, 4294901760
        %5105 = vmatmul.mubr.f32.gmra.mrb[0].mxu0 %v5104
        %v5106 = vpop.f32.mrb[0].mxu0
        %v5107 = vadd.f32 %v4992, %v5106
        %v5108 = vpop.f32.mrb[0].mxu0
        %5109 = vmatprep.mubr.f32.mxu0 0.0
        %v5110 = vand.u32 %v4357, 4294901760
        %5111 = vmatmul.mubr.f32.gmra.mrb[0].mxu0 %v5110
        %v5112 = vpop.f32.mrb[0].mxu0
        %v5113 = vadd.f32 %v4998, %v5112
        %v5114 = vpop.f32.mrb[0].mxu0
        %5115 = vmatprep.mubr.f32.mxu0 0.0
        %v5116 = vand.u32 %v4360, 4294901760
        %5117 = vmatmul.mubr.f32.gmra.mrb[0].mxu0 %v5116
        %v5118 = vpop.f32.mrb[0].mxu0
        %v5119 = vadd.f32 %v5004, %v5118
        %v5120 = vpop.f32.mrb[0].mxu0
        %5121 = vdwg.mxu0
        %v5122 = vtanh.pop %v5077
        %v5123 = vtanh.pop %v5083
        %v5124 = vtanh.pop %v5089
        %v5125 = vtanh.pop %v5095
        %v5126 = vtanh.pop %v5101
        %v5127 = vtanh.pop %v5107
        %v5128 = vtanh.pop %v5113
        %v5129 = vtanh.pop %v5119
        %v5130 = vld [vmem:[#allocation4 + $0xb0] sm:$0xff]
        %v5131 = vld [vmem:[#allocation4 + $0xb8] sm:$0xff]
        %v5132 = vlaneseq
        %v5133 = vshrl.u32 %v5132, 7
        %v5134 = vsub.s32 6, %v5133
        %v5135 = vrot.slane %v198, %v5134
        %v5137 = vsel %vm4337, %v5122, 0
        %v5140 = vsel %vm4337, %v5123, 0
        %v5143 = vsel %vm4337, %v5124, 0
        %v5146 = vsel %vm4337, %v5125, 0
        %v5149 = vsel %vm4337, %v5126, 0
        %v5152 = vsel %vm4337, %v5127, 0
        %v5155 = vsel %vm4337, %v5128, 0
        %v5158 = vsel %vm4337, %v5129, 0
        %5160 = vmatprep.subr.mxu0 0.0
        %v5161 = vand.u32 %v5130, 4294901760
        %5162 = vmatpush1.msra.mxu0 %v5161
        %5163 = vmatprep.subr.mxu0 0.0
        %v5164 = vand.u32 %v5131, 4294901760
        %5165 = vmatpush1.msra.mxu0 %v5164
        %5166 = vmatprep.subr.mxu0 0.0
        %5167 = vmatpush1.msra.mxu0 0.0
        %5168 = vmatprep.subr.mxu0 0.0
        %5169 = vmatpush1.msra.mxu0 0.0
        %5170 = vmatprep.subr.mxu0 0.0
        %5171 = vmatpush1.msra.mxu0 0.0
        %5172 = vmatprep.subr.mxu0 0.0
        %5173 = vmatpush1.msra.mxu0 0.0
        %5174 = vmatprep.subr.mxu0 0.0
        %5175 = vmatpush1.msra.mxu0 0.0
        %5176 = vmatprep.subr.mxu0 0.0
        %5177 = vmatpush1.msra.mxu0 0.0
        %5178 = vmatprep.subr.mxu0 0.0
        %5179 = vmatpush1.msra.mxu0 0.0
        %5180 = vmatprep.subr.mxu0 0.0
        %5181 = vmatpush1.msra.mxu0 0.0
        %5182 = vmatprep.subr.mxu0 0.0
        %5183 = vmatpush1.msra.mxu0 0.0
        %5184 = vmatprep.subr.mxu0 0.0
        %5185 = vmatpush1.msra.mxu0 0.0
        %5186 = vmatprep.subr.mxu0 0.0
        %5187 = vmatpush1.msra.mxu0 0.0
        %5188 = vmatprep.subr.mxu0 0.0
        %5189 = vmatpush1.msra.mxu0 0.0
        %5190 = vmatprep.subr.mxu0 0.0
        %5191 = vmatpush1.msra.mxu0 0.0
        %5192 = vmatprep.subr.mxu0 0.0
        %5193 = vmatpush1.msra.mxu0 0.0
        %5194 = vmatprep.subr.mxu0 0.0
        %5195 = vmatpush1.msra.mxu0 0.0
        %5196 = vmatprep.subr.mxu0 0.0
        %5197 = vmatpush1.msra.mxu0 0.0
        %5198 = vmatprep.subr.mxu0 0.0
        %5199 = vmatpush1.msra.mxu0 0.0
        %5200 = vmatprep.subr.mxu0 0.0
        %5201 = vmatpush1.msra.mxu0 0.0
        %5202 = vmatprep.subr.mxu0 0.0
        %5203 = vmatpush1.msra.mxu0 0.0
        %5204 = vmatprep.subr.mxu0 0.0
        %5205 = vmatpush1.msra.mxu0 0.0
        %5206 = vmatprep.subr.mxu0 0.0
        %5207 = vmatpush1.msra.mxu0 0.0
        %5208 = vmatprep.subr.mxu0 0.0
        %5209 = vmatpush1.msra.mxu0 0.0
        %5210 = vmatprep.subr.mxu0 0.0
        %5211 = vmatpush1.msra.mxu0 0.0
        %5212 = vmatprep.subr.mxu0 0.0
        %5213 = vmatpush1.msra.mxu0 0.0
        %5214 = vmatprep.subr.mxu0 0.0
        %5215 = vmatpush1.msra.mxu0 0.0
        %5216 = vmatprep.subr.mxu0 0.0
        %5217 = vmatpush1.msra.mxu0 0.0
        %5218 = vmatprep.subr.mxu0 0.0
        %5219 = vmatpush1.msra.mxu0 0.0
        %5220 = vmatprep.subr.mxu0 0.0
        %5221 = vmatpush1.msra.mxu0 0.0
        %5222 = vmatprep.subr.mxu0 0.0
        %5223 = vmatpush1.msra.mxu0 0.0
        %5224 = vmatprep.subr.mxu0 0.0
        %5225 = vmatpush1.msra.mxu0 0.0
        %5226 = vmatprep.mubr.f32.mxu0 0.0
        %v5227 = vand.u32 %v5137, 4294901760
        %v5228 = vsub.f32 %v5137, %v5227
        %v5229 = vand.u32 %v5228, 4294901760
        %v5230 = vsub.f32 %v5228, %v5229
        %v5231 = vand.u32 %v5230, 4294901760
        %5232 = vmatmul.mubr.f32.gmra.mrb[0].mxu0 %v5231
        %v5233 = vpop.f32.mrb[0].mxu0
        %v5234 = vadd.f32 %v5135, %v5233
        %v5235 = vpop.f32.mrb[0].mxu0
        %5236 = vmatprep.mubr.f32.mxu0 0.0
        %v5237 = vand.u32 %v5140, 4294901760
        %v5238 = vsub.f32 %v5140, %v5237
        %v5239 = vand.u32 %v5238, 4294901760
        %v5240 = vsub.f32 %v5238, %v5239
        %v5241 = vand.u32 %v5240, 4294901760
        %5242 = vmatmul.mubr.f32.gmra.mrb[0].mxu0 %v5241
        %v5243 = vpop.f32.mrb[0].mxu0
        %v5244 = vadd.f32 %v5135, %v5243
        %v5245 = vpop.f32.mrb[0].mxu0
        %5246 = vmatprep.mubr.f32.mxu0 0.0
        %v5247 = vand.u32 %v5143, 4294901760
        %v5248 = vsub.f32 %v5143, %v5247
        %v5249 = vand.u32 %v5248, 4294901760
        %v5250 = vsub.f32 %v5248, %v5249
        %v5251 = vand.u32 %v5250, 4294901760
        %5252 = vmatmul.mubr.f32.gmra.mrb[0].mxu0 %v5251
        %v5253 = vpop.f32.mrb[0].mxu0
        %v5254 = vadd.f32 %v5135, %v5253
        %v5255 = vpop.f32.mrb[0].mxu0
        %5256 = vmatprep.mubr.f32.mxu0 0.0
        %v5257 = vand.u32 %v5146, 4294901760
        %v5258 = vsub.f32 %v5146, %v5257
        %v5259 = vand.u32 %v5258, 4294901760
        %v5260 = vsub.f32 %v5258, %v5259
        %v5261 = vand.u32 %v5260, 4294901760
        %5262 = vmatmul.mubr.f32.gmra.mrb[0].mxu0 %v5261
        %v5263 = vpop.f32.mrb[0].mxu0
        %v5264 = vadd.f32 %v5135, %v5263
        %v5265 = vpop.f32.mrb[0].mxu0
        %5266 = vmatprep.mubr.f32.mxu0 0.0
        %v5267 = vand.u32 %v5149, 4294901760
        %v5268 = vsub.f32 %v5149, %v5267
        %v5269 = vand.u32 %v5268, 4294901760
        %v5270 = vsub.f32 %v5268, %v5269
        %v5271 = vand.u32 %v5270, 4294901760
        %5272 = vmatmul.mubr.f32.gmra.mrb[0].mxu0 %v5271
        %v5273 = vpop.f32.mrb[0].mxu0
        %v5274 = vadd.f32 %v5135, %v5273
        %v5275 = vpop.f32.mrb[0].mxu0
        %5276 = vmatprep.mubr.f32.mxu0 0.0
        %v5277 = vand.u32 %v5152, 4294901760
        %v5278 = vsub.f32 %v5152, %v5277
        %v5279 = vand.u32 %v5278, 4294901760
        %v5280 = vsub.f32 %v5278, %v5279
        %v5281 = vand.u32 %v5280, 4294901760
        %5282 = vmatmul.mubr.f32.gmra.mrb[0].mxu0 %v5281
        %v5283 = vpop.f32.mrb[0].mxu0
        %v5284 = vadd.f32 %v5135, %v5283
        %v5285 = vpop.f32.mrb[0].mxu0
        %5286 = vmatprep.mubr.f32.mxu0 0.0
        %v5287 = vand.u32 %v5155, 4294901760
        %v5288 = vsub.f32 %v5155, %v5287
        %v5289 = vand.u32 %v5288, 4294901760
        %v5290 = vsub.f32 %v5288, %v5289
        %v5291 = vand.u32 %v5290, 4294901760
        %5292 = vmatmul.mubr.f32.gmra.mrb[0].mxu0 %v5291
        %v5293 = vpop.f32.mrb[0].mxu0
        %v5294 = vadd.f32 %v5135, %v5293
        %v5295 = vpop.f32.mrb[0].mxu0
        %5296 = vmatprep.mubr.f32.mxu0 0.0
        %v5297 = vand.u32 %v5158, 4294901760
        %v5298 = vsub.f32 %v5158, %v5297
        %v5299 = vand.u32 %v5298, 4294901760
        %v5300 = vsub.f32 %v5298, %v5299
        %v5301 = vand.u32 %v5300, 4294901760
        %5302 = vmatmul.mubr.f32.gmra.mrb[0].mxu0 %v5301
        %v5303 = vpop.f32.mrb[0].mxu0
        %v5304 = vadd.f32 %v5135, %v5303
        %v5305 = vpop.f32.mrb[0].mxu0
        %5306 = vdwg.mxu0
        %5307 = vmatprep.subr.mxu0 0.0
        %v5308 = vand.u32 %v5130, 4294901760
        %v5309 = vsub.f32 %v5130, %v5308
        %v5310 = vand.u32 %v5309, 4294901760
        %v5311 = vsub.f32 %v5309, %v5310
        %v5312 = vand.u32 %v5311, 4294901760
        %5313 = vmatpush1.msra.mxu0 %v5312
        %5314 = vmatprep.subr.mxu0 0.0
        %v5315 = vand.u32 %v5131, 4294901760
        %v5316 = vsub.f32 %v5131, %v5315
        %v5317 = vand.u32 %v5316, 4294901760
        %v5318 = vsub.f32 %v5316, %v5317
        %v5319 = vand.u32 %v5318, 4294901760
        %5320 = vmatpush1.msra.mxu0 %v5319
        %5321 = vmatprep.subr.mxu0 0.0
        %5322 = vmatpush1.msra.mxu0 0.0
        %5323 = vmatprep.subr.mxu0 0.0
        %5324 = vmatpush1.msra.mxu0 0.0
        %5325 = vmatprep.subr.mxu0 0.0
        %5326 = vmatpush1.msra.mxu0 0.0
        %5327 = vmatprep.subr.mxu0 0.0
        %5328 = vmatpush1.msra.mxu0 0.0
        %5329 = vmatprep.subr.mxu0 0.0
        %5330 = vmatpush1.msra.mxu0 0.0
        %5331 = vmatprep.subr.mxu0 0.0
        %5332 = vmatpush1.msra.mxu0 0.0
        %5333 = vmatprep.subr.mxu0 0.0
        %5334 = vmatpush1.msra.mxu0 0.0
        %5335 = vmatprep.subr.mxu0 0.0
        %5336 = vmatpush1.msra.mxu0 0.0
        %5337 = vmatprep.subr.mxu0 0.0
        %5338 = vmatpush1.msra.mxu0 0.0
        %5339 = vmatprep.subr.mxu0 0.0
        %5340 = vmatpush1.msra.mxu0 0.0
        %5341 = vmatprep.subr.mxu0 0.0
        %5342 = vmatpush1.msra.mxu0 0.0
        %5343 = vmatprep.subr.mxu0 0.0
        %5344 = vmatpush1.msra.mxu0 0.0
        %5345 = vmatprep.subr.mxu0 0.0
        %5346 = vmatpush1.msra.mxu0 0.0
        %5347 = vmatprep.subr.mxu0 0.0
        %5348 = vmatpush1.msra.mxu0 0.0
        %5349 = vmatprep.subr.mxu0 0.0
        %5350 = vmatpush1.msra.mxu0 0.0
        %5351 = vmatprep.subr.mxu0 0.0
        %5352 = vmatpush1.msra.mxu0 0.0
        %5353 = vmatprep.subr.mxu0 0.0
        %5354 = vmatpush1.msra.mxu0 0.0
        %5355 = vmatprep.subr.mxu0 0.0
        %5356 = vmatpush1.msra.mxu0 0.0
        %5357 = vmatprep.subr.mxu0 0.0
        %5358 = vmatpush1.msra.mxu0 0.0
        %5359 = vmatprep.subr.mxu0 0.0
        %5360 = vmatpush1.msra.mxu0 0.0
        %5361 = vmatprep.subr.mxu0 0.0
        %5362 = vmatpush1.msra.mxu0 0.0
        %5363 = vmatprep.subr.mxu0 0.0
        %5364 = vmatpush1.msra.mxu0 0.0
        %5365 = vmatprep.subr.mxu0 0.0
        %5366 = vmatpush1.msra.mxu0 0.0
        %5367 = vmatprep.subr.mxu0 0.0
        %5368 = vmatpush1.msra.mxu0 0.0
        %5369 = vmatprep.subr.mxu0 0.0
        %5370 = vmatpush1.msra.mxu0 0.0
        %5371 = vmatprep.subr.mxu0 0.0
        %5372 = vmatpush1.msra.mxu0 0.0
        %5373 = vmatprep.subr.mxu0 0.0
        %5374 = vmatpush1.msra.mxu0 0.0
        %5375 = vmatprep.subr.mxu0 0.0
        %5376 = vmatpush1.msra.mxu0 0.0
        %5377 = vmatprep.subr.mxu0 0.0
        %5378 = vmatpush1.msra.mxu0 0.0
        %5379 = vmatprep.subr.mxu0 0.0
        %5380 = vmatpush1.msra.mxu0 0.0
        %5381 = vmatprep.mubr.f32.mxu0 0.0
        %v5382 = vand.u32 %v5137, 4294901760
        %5383 = vmatmul.mubr.f32.gmra.mrb[0].mxu0 %v5382
        %v5384 = vpop.f32.mrb[0].mxu0
        %v5385 = vadd.f32 %v5234, %v5384
        %v5386 = vpop.f32.mrb[0].mxu0
        %5387 = vmatprep.mubr.f32.mxu0 0.0
        %v5388 = vand.u32 %v5140, 4294901760
        %5389 = vmatmul.mubr.f32.gmra.mrb[0].mxu0 %v5388
        %v5390 = vpop.f32.mrb[0].mxu0
        %v5391 = vadd.f32 %v5244, %v5390
        %v5392 = vpop.f32.mrb[0].mxu0
        %5393 = vmatprep.mubr.f32.mxu0 0.0
        %v5394 = vand.u32 %v5143, 4294901760
        %5395 = vmatmul.mubr.f32.gmra.mrb[0].mxu0 %v5394
        %v5396 = vpop.f32.mrb[0].mxu0
        %v5397 = vadd.f32 %v5254, %v5396
        %v5398 = vpop.f32.mrb[0].mxu0
        %5399 = vmatprep.mubr.f32.mxu0 0.0
        %v5400 = vand.u32 %v5146, 4294901760
        %5401 = vmatmul.mubr.f32.gmra.mrb[0].mxu0 %v5400
        %v5402 = vpop.f32.mrb[0].mxu0
        %v5403 = vadd.f32 %v5264, %v5402
        %v5404 = vpop.f32.mrb[0].mxu0
        %5405 = vmatprep.mubr.f32.mxu0 0.0
        %v5406 = vand.u32 %v5149, 4294901760
        %5407 = vmatmul.mubr.f32.gmra.mrb[0].mxu0 %v5406
        %v5408 = vpop.f32.mrb[0].mxu0
        %v5409 = vadd.f32 %v5274, %v5408
        %v5410 = vpop.f32.mrb[0].mxu0
        %5411 = vmatprep.mubr.f32.mxu0 0.0
        %v5412 = vand.u32 %v5152, 4294901760
        %5413 = vmatmul.mubr.f32.gmra.mrb[0].mxu0 %v5412
        %v5414 = vpop.f32.mrb[0].mxu0
        %v5415 = vadd.f32 %v5284, %v5414
        %v5416 = vpop.f32.mrb[0].mxu0
        %5417 = vmatprep.mubr.f32.mxu0 0.0
        %v5418 = vand.u32 %v5155, 4294901760
        %5419 = vmatmul.mubr.f32.gmra.mrb[0].mxu0 %v5418
        %v5420 = vpop.f32.mrb[0].mxu0
        %v5421 = vadd.f32 %v5294, %v5420
        %v5422 = vpop.f32.mrb[0].mxu0
        %5423 = vmatprep.mubr.f32.mxu0 0.0
        %v5424 = vand.u32 %v5158, 4294901760
        %5425 = vmatmul.mubr.f32.gmra.mrb[0].mxu0 %v5424
        %v5426 = vpop.f32.mrb[0].mxu0
        %v5427 = vadd.f32 %v5304, %v5426
        %v5428 = vpop.f32.mrb[0].mxu0
        %5429 = vdwg.mxu0
        %5430 = vmatprep.subr.mxu0 0.0
        %v5431 = vand.u32 %v5130, 4294901760
        %v5432 = vsub.f32 %v5130, %v5431
        %5433 = vmatpush1.msra.mxu0 %v5432
        %5434 = vmatprep.subr.mxu0 0.0
        %v5435 = vand.u32 %v5131, 4294901760
        %v5436 = vsub.f32 %v5131, %v5435
        %5437 = vmatpush1.msra.mxu0 %v5436
        %5438 = vmatprep.subr.mxu0 0.0
        %5439 = vmatpush1.msra.mxu0 0.0
        %5440 = vmatprep.subr.mxu0 0.0
        %5441 = vmatpush1.msra.mxu0 0.0
        %5442 = vmatprep.subr.mxu0 0.0
        %5443 = vmatpush1.msra.mxu0 0.0
        %5444 = vmatprep.subr.mxu0 0.0
        %5445 = vmatpush1.msra.mxu0 0.0
        %5446 = vmatprep.subr.mxu0 0.0
        %5447 = vmatpush1.msra.mxu0 0.0
        %5448 = vmatprep.subr.mxu0 0.0
        %5449 = vmatpush1.msra.mxu0 0.0
        %5450 = vmatprep.subr.mxu0 0.0
        %5451 = vmatpush1.msra.mxu0 0.0
        %5452 = vmatprep.subr.mxu0 0.0
        %5453 = vmatpush1.msra.mxu0 0.0
        %5454 = vmatprep.subr.mxu0 0.0
        %5455 = vmatpush1.msra.mxu0 0.0
        %5456 = vmatprep.subr.mxu0 0.0
        %5457 = vmatpush1.msra.mxu0 0.0
        %5458 = vmatprep.subr.mxu0 0.0
        %5459 = vmatpush1.msra.mxu0 0.0
        %5460 = vmatprep.subr.mxu0 0.0
        %5461 = vmatpush1.msra.mxu0 0.0
        %5462 = vmatprep.subr.mxu0 0.0
        %5463 = vmatpush1.msra.mxu0 0.0
        %5464 = vmatprep.subr.mxu0 0.0
        %5465 = vmatpush1.msra.mxu0 0.0
        %5466 = vmatprep.subr.mxu0 0.0
        %5467 = vmatpush1.msra.mxu0 0.0
        %5468 = vmatprep.subr.mxu0 0.0
        %5469 = vmatpush1.msra.mxu0 0.0
        %5470 = vmatprep.subr.mxu0 0.0
        %5471 = vmatpush1.msra.mxu0 0.0
        %5472 = vmatprep.subr.mxu0 0.0
        %5473 = vmatpush1.msra.mxu0 0.0
        %5474 = vmatprep.subr.mxu0 0.0
        %5475 = vmatpush1.msra.mxu0 0.0
        %5476 = vmatprep.subr.mxu0 0.0
        %5477 = vmatpush1.msra.mxu0 0.0
        %5478 = vmatprep.subr.mxu0 0.0
        %5479 = vmatpush1.msra.mxu0 0.0
        %5480 = vmatprep.subr.mxu0 0.0
        %5481 = vmatpush1.msra.mxu0 0.0
        %5482 = vmatprep.subr.mxu0 0.0
        %5483 = vmatpush1.msra.mxu0 0.0
        %5484 = vmatprep.subr.mxu0 0.0
        %5485 = vmatpush1.msra.mxu0 0.0
        %5486 = vmatprep.subr.mxu0 0.0
        %5487 = vmatpush1.msra.mxu0 0.0
        %5488 = vmatprep.subr.mxu0 0.0
        %5489 = vmatpush1.msra.mxu0 0.0
        %5490 = vmatprep.subr.mxu0 0.0
        %5491 = vmatpush1.msra.mxu0 0.0
        %5492 = vmatprep.subr.mxu0 0.0
        %5493 = vmatpush1.msra.mxu0 0.0
        %5494 = vmatprep.subr.mxu0 0.0
        %5495 = vmatpush1.msra.mxu0 0.0
        %5496 = vmatprep.subr.mxu0 0.0
        %5497 = vmatpush1.msra.mxu0 0.0
        %5498 = vmatprep.mubr.f32.mxu0 0.0
        %v5499 = vand.u32 %v5137, 4294901760
        %v5500 = vsub.f32 %v5137, %v5499
        %5501 = vmatmul.mubr.f32.gmra.mrb[0].mxu0 %v5500
        %v5502 = vpop.f32.mrb[0].mxu0
        %v5503 = vadd.f32 %v5385, %v5502
        %v5504 = vpop.f32.mrb[0].mxu0
        %5505 = vmatprep.mubr.f32.mxu0 0.0
        %v5506 = vand.u32 %v5140, 4294901760
        %v5507 = vsub.f32 %v5140, %v5506
        %5508 = vmatmul.mubr.f32.gmra.mrb[0].mxu0 %v5507
        %v5509 = vpop.f32.mrb[0].mxu0
        %v5510 = vadd.f32 %v5391, %v5509
        %v5511 = vpop.f32.mrb[0].mxu0
        %5512 = vmatprep.mubr.f32.mxu0 0.0
        %v5513 = vand.u32 %v5143, 4294901760
        %v5514 = vsub.f32 %v5143, %v5513
        %5515 = vmatmul.mubr.f32.gmra.mrb[0].mxu0 %v5514
        %v5516 = vpop.f32.mrb[0].mxu0
        %v5517 = vadd.f32 %v5397, %v5516
        %v5518 = vpop.f32.mrb[0].mxu0
        %5519 = vmatprep.mubr.f32.mxu0 0.0
        %v5520 = vand.u32 %v5146, 4294901760
        %v5521 = vsub.f32 %v5146, %v5520
        %5522 = vmatmul.mubr.f32.gmra.mrb[0].mxu0 %v5521
        %v5523 = vpop.f32.mrb[0].mxu0
        %v5524 = vadd.f32 %v5403, %v5523
        %v5525 = vpop.f32.mrb[0].mxu0
        %5526 = vmatprep.mubr.f32.mxu0 0.0
        %v5527 = vand.u32 %v5149, 4294901760
        %v5528 = vsub.f32 %v5149, %v5527
        %5529 = vmatmul.mubr.f32.gmra.mrb[0].mxu0 %v5528
        %v5530 = vpop.f32.mrb[0].mxu0
        %v5531 = vadd.f32 %v5409, %v5530
        %v5532 = vpop.f32.mrb[0].mxu0
        %5533 = vmatprep.mubr.f32.mxu0 0.0
        %v5534 = vand.u32 %v5152, 4294901760
        %v5535 = vsub.f32 %v5152, %v5534
        %5536 = vmatmul.mubr.f32.gmra.mrb[0].mxu0 %v5535
        %v5537 = vpop.f32.mrb[0].mxu0
        %v5538 = vadd.f32 %v5415, %v5537
        %v5539 = vpop.f32.mrb[0].mxu0
        %5540 = vmatprep.mubr.f32.mxu0 0.0
        %v5541 = vand.u32 %v5155, 4294901760
        %v5542 = vsub.f32 %v5155, %v5541
        %5543 = vmatmul.mubr.f32.gmra.mrb[0].mxu0 %v5542
        %v5544 = vpop.f32.mrb[0].mxu0
        %v5545 = vadd.f32 %v5421, %v5544
        %v5546 = vpop.f32.mrb[0].mxu0
        %5547 = vmatprep.mubr.f32.mxu0 0.0
        %v5548 = vand.u32 %v5158, 4294901760
        %v5549 = vsub.f32 %v5158, %v5548
        %5550 = vmatmul.mubr.f32.gmra.mrb[0].mxu0 %v5549
        %v5551 = vpop.f32.mrb[0].mxu0
        %v5552 = vadd.f32 %v5427, %v5551
        %v5553 = vpop.f32.mrb[0].mxu0
        %5554 = vdwg.mxu0
        %5555 = vmatprep.subr.mxu0 0.0
        %v5556 = vand.u32 %v5130, 4294901760
        %5557 = vmatpush1.msra.mxu0 %v5556
        %5558 = vmatprep.subr.mxu0 0.0
        %v5559 = vand.u32 %v5131, 4294901760
        %5560 = vmatpush1.msra.mxu0 %v5559
        %5561 = vmatprep.subr.mxu0 0.0
        %5562 = vmatpush1.msra.mxu0 0.0
        %5563 = vmatprep.subr.mxu0 0.0
        %5564 = vmatpush1.msra.mxu0 0.0
        %5565 = vmatprep.subr.mxu0 0.0
        %5566 = vmatpush1.msra.mxu0 0.0
        %5567 = vmatprep.subr.mxu0 0.0
        %5568 = vmatpush1.msra.mxu0 0.0
        %5569 = vmatprep.subr.mxu0 0.0
        %5570 = vmatpush1.msra.mxu0 0.0
        %5571 = vmatprep.subr.mxu0 0.0
        %5572 = vmatpush1.msra.mxu0 0.0
        %5573 = vmatprep.subr.mxu0 0.0
        %5574 = vmatpush1.msra.mxu0 0.0
        %5575 = vmatprep.subr.mxu0 0.0
        %5576 = vmatpush1.msra.mxu0 0.0
        %5577 = vmatprep.subr.mxu0 0.0
        %5578 = vmatpush1.msra.mxu0 0.0
        %5579 = vmatprep.subr.mxu0 0.0
        %5580 = vmatpush1.msra.mxu0 0.0
        %5581 = vmatprep.subr.mxu0 0.0
        %5582 = vmatpush1.msra.mxu0 0.0
        %5583 = vmatprep.subr.mxu0 0.0
        %5584 = vmatpush1.msra.mxu0 0.0
        %5585 = vmatprep.subr.mxu0 0.0
        %5586 = vmatpush1.msra.mxu0 0.0
        %5587 = vmatprep.subr.mxu0 0.0
        %5588 = vmatpush1.msra.mxu0 0.0
        %5589 = vmatprep.subr.mxu0 0.0
        %5590 = vmatpush1.msra.mxu0 0.0
        %5591 = vmatprep.subr.mxu0 0.0
        %5592 = vmatpush1.msra.mxu0 0.0
        %5593 = vmatprep.subr.mxu0 0.0
        %5594 = vmatpush1.msra.mxu0 0.0
        %5595 = vmatprep.subr.mxu0 0.0
        %5596 = vmatpush1.msra.mxu0 0.0
        %5597 = vmatprep.subr.mxu0 0.0
        %5598 = vmatpush1.msra.mxu0 0.0
        %5599 = vmatprep.subr.mxu0 0.0
        %5600 = vmatpush1.msra.mxu0 0.0
        %5601 = vmatprep.subr.mxu0 0.0
        %5602 = vmatpush1.msra.mxu0 0.0
        %5603 = vmatprep.subr.mxu0 0.0
        %5604 = vmatpush1.msra.mxu0 0.0
        %5605 = vmatprep.subr.mxu0 0.0
        %5606 = vmatpush1.msra.mxu0 0.0
        %5607 = vmatprep.subr.mxu0 0.0
        %5608 = vmatpush1.msra.mxu0 0.0
        %5609 = vmatprep.subr.mxu0 0.0
        %5610 = vmatpush1.msra.mxu0 0.0
        %5611 = vmatprep.subr.mxu0 0.0
        %5612 = vmatpush1.msra.mxu0 0.0
        %5613 = vmatprep.subr.mxu0 0.0
        %5614 = vmatpush1.msra.mxu0 0.0
        %5615 = vmatprep.subr.mxu0 0.0
        %5616 = vmatpush1.msra.mxu0 0.0
        %5617 = vmatprep.subr.mxu0 0.0
        %5618 = vmatpush1.msra.mxu0 0.0
        %5619 = vmatprep.subr.mxu0 0.0
        %5620 = vmatpush1.msra.mxu0 0.0
        %5621 = vmatprep.mubr.f32.mxu0 0.0
        %v5622 = vand.u32 %v5137, 4294901760
        %v5623 = vsub.f32 %v5137, %v5622
        %v5624 = vand.u32 %v5623, 4294901760
        %5625 = vmatmul.mubr.f32.gmra.mrb[0].mxu0 %v5624
        %v5626 = vpop.f32.mrb[0].mxu0
        %v5627 = vadd.f32 %v5503, %v5626
        %v5628 = vpop.f32.mrb[0].mxu0
        %5629 = vmatprep.mubr.f32.mxu0 0.0
        %v5630 = vand.u32 %v5140, 4294901760
        %v5631 = vsub.f32 %v5140, %v5630
        %v5632 = vand.u32 %v5631, 4294901760
        %5633 = vmatmul.mubr.f32.gmra.mrb[0].mxu0 %v5632
        %v5634 = vpop.f32.mrb[0].mxu0
        %v5635 = vadd.f32 %v5510, %v5634
        %v5636 = vpop.f32.mrb[0].mxu0
        %5637 = vmatprep.mubr.f32.mxu0 0.0
        %v5638 = vand.u32 %v5143, 4294901760
        %v5639 = vsub.f32 %v5143, %v5638
        %v5640 = vand.u32 %v5639, 4294901760
        %5641 = vmatmul.mubr.f32.gmra.mrb[0].mxu0 %v5640
        %v5642 = vpop.f32.mrb[0].mxu0
        %v5643 = vadd.f32 %v5517, %v5642
        %v5644 = vpop.f32.mrb[0].mxu0
        %5645 = vmatprep.mubr.f32.mxu0 0.0
        %v5646 = vand.u32 %v5146, 4294901760
        %v5647 = vsub.f32 %v5146, %v5646
        %v5648 = vand.u32 %v5647, 4294901760
        %5649 = vmatmul.mubr.f32.gmra.mrb[0].mxu0 %v5648
        %v5650 = vpop.f32.mrb[0].mxu0
        %v5651 = vadd.f32 %v5524, %v5650
        %v5652 = vpop.f32.mrb[0].mxu0
        %5653 = vmatprep.mubr.f32.mxu0 0.0
        %v5654 = vand.u32 %v5149, 4294901760
        %v5655 = vsub.f32 %v5149, %v5654
        %v5656 = vand.u32 %v5655, 4294901760
        %5657 = vmatmul.mubr.f32.gmra.mrb[0].mxu0 %v5656
        %v5658 = vpop.f32.mrb[0].mxu0
        %v5659 = vadd.f32 %v5531, %v5658
        %v5660 = vpop.f32.mrb[0].mxu0
        %5661 = vmatprep.mubr.f32.mxu0 0.0
        %v5662 = vand.u32 %v5152, 4294901760
        %v5663 = vsub.f32 %v5152, %v5662
        %v5664 = vand.u32 %v5663, 4294901760
        %5665 = vmatmul.mubr.f32.gmra.mrb[0].mxu0 %v5664
        %v5666 = vpop.f32.mrb[0].mxu0
        %v5667 = vadd.f32 %v5538, %v5666
        %v5668 = vpop.f32.mrb[0].mxu0
        %5669 = vmatprep.mubr.f32.mxu0 0.0
        %v5670 = vand.u32 %v5155, 4294901760
        %v5671 = vsub.f32 %v5155, %v5670
        %v5672 = vand.u32 %v5671, 4294901760
        %5673 = vmatmul.mubr.f32.gmra.mrb[0].mxu0 %v5672
        %v5674 = vpop.f32.mrb[0].mxu0
        %v5675 = vadd.f32 %v5545, %v5674
        %v5676 = vpop.f32.mrb[0].mxu0
        %5677 = vmatprep.mubr.f32.mxu0 0.0
        %v5678 = vand.u32 %v5158, 4294901760
        %v5679 = vsub.f32 %v5158, %v5678
        %v5680 = vand.u32 %v5679, 4294901760
        %5681 = vmatmul.mubr.f32.gmra.mrb[0].mxu0 %v5680
        %v5682 = vpop.f32.mrb[0].mxu0
        %v5683 = vadd.f32 %v5552, %v5682
        %v5684 = vpop.f32.mrb[0].mxu0
        %5685 = vdwg.mxu0
        %5686 = vmatprep.subr.mxu0 0.0
        %v5687 = vand.u32 %v5130, 4294901760
        %v5688 = vsub.f32 %v5130, %v5687
        %v5689 = vand.u32 %v5688, 4294901760
        %5690 = vmatpush1.msra.mxu0 %v5689
        %5691 = vmatprep.subr.mxu0 0.0
        %v5692 = vand.u32 %v5131, 4294901760
        %v5693 = vsub.f32 %v5131, %v5692
        %v5694 = vand.u32 %v5693, 4294901760
        %5695 = vmatpush1.msra.mxu0 %v5694
        %5696 = vmatprep.subr.mxu0 0.0
        %5697 = vmatpush1.msra.mxu0 0.0
        %5698 = vmatprep.subr.mxu0 0.0
        %5699 = vmatpush1.msra.mxu0 0.0
        %5700 = vmatprep.subr.mxu0 0.0
        %5701 = vmatpush1.msra.mxu0 0.0
        %5702 = vmatprep.subr.mxu0 0.0
        %5703 = vmatpush1.msra.mxu0 0.0
        %5704 = vmatprep.subr.mxu0 0.0
        %5705 = vmatpush1.msra.mxu0 0.0
        %5706 = vmatprep.subr.mxu0 0.0
        %5707 = vmatpush1.msra.mxu0 0.0
        %5708 = vmatprep.subr.mxu0 0.0
        %5709 = vmatpush1.msra.mxu0 0.0
        %5710 = vmatprep.subr.mxu0 0.0
        %5711 = vmatpush1.msra.mxu0 0.0
        %5712 = vmatprep.subr.mxu0 0.0
        %5713 = vmatpush1.msra.mxu0 0.0
        %5714 = vmatprep.subr.mxu0 0.0
        %5715 = vmatpush1.msra.mxu0 0.0
        %5716 = vmatprep.subr.mxu0 0.0
        %5717 = vmatpush1.msra.mxu0 0.0
        %5718 = vmatprep.subr.mxu0 0.0
        %5719 = vmatpush1.msra.mxu0 0.0
        %5720 = vmatprep.subr.mxu0 0.0
        %5721 = vmatpush1.msra.mxu0 0.0
        %5722 = vmatprep.subr.mxu0 0.0
        %5723 = vmatpush1.msra.mxu0 0.0
        %5724 = vmatprep.subr.mxu0 0.0
        %5725 = vmatpush1.msra.mxu0 0.0
        %5726 = vmatprep.subr.mxu0 0.0
        %5727 = vmatpush1.msra.mxu0 0.0
        %5728 = vmatprep.subr.mxu0 0.0
        %5729 = vmatpush1.msra.mxu0 0.0
        %5730 = vmatprep.subr.mxu0 0.0
        %5731 = vmatpush1.msra.mxu0 0.0
        %5732 = vmatprep.subr.mxu0 0.0
        %5733 = vmatpush1.msra.mxu0 0.0
        %5734 = vmatprep.subr.mxu0 0.0
        %5735 = vmatpush1.msra.mxu0 0.0
        %5736 = vmatprep.subr.mxu0 0.0
        %5737 = vmatpush1.msra.mxu0 0.0
        %5738 = vmatprep.subr.mxu0 0.0
        %5739 = vmatpush1.msra.mxu0 0.0
        %5740 = vmatprep.subr.mxu0 0.0
        %5741 = vmatpush1.msra.mxu0 0.0
        %5742 = vmatprep.subr.mxu0 0.0
        %5743 = vmatpush1.msra.mxu0 0.0
        %5744 = vmatprep.subr.mxu0 0.0
        %5745 = vmatpush1.msra.mxu0 0.0
        %5746 = vmatprep.subr.mxu0 0.0
        %5747 = vmatpush1.msra.mxu0 0.0
        %5748 = vmatprep.subr.mxu0 0.0
        %5749 = vmatpush1.msra.mxu0 0.0
        %5750 = vmatprep.subr.mxu0 0.0
        %5751 = vmatpush1.msra.mxu0 0.0
        %5752 = vmatprep.subr.mxu0 0.0
        %5753 = vmatpush1.msra.mxu0 0.0
        %5754 = vmatprep.subr.mxu0 0.0
        %5755 = vmatpush1.msra.mxu0 0.0
        %5756 = vmatprep.mubr.f32.mxu0 0.0
        %v5757 = vand.u32 %v5137, 4294901760
        %5758 = vmatmul.mubr.f32.gmra.mrb[0].mxu0 %v5757
        %v5759 = vpop.f32.mrb[0].mxu0
        %v5760 = vadd.f32 %v5627, %v5759
        %v5761 = vpop.f32.mrb[0].mxu0
        %5762 = vmatprep.mubr.f32.mxu0 0.0
        %v5763 = vand.u32 %v5140, 4294901760
        %5764 = vmatmul.mubr.f32.gmra.mrb[0].mxu0 %v5763
        %v5765 = vpop.f32.mrb[0].mxu0
        %v5766 = vadd.f32 %v5635, %v5765
        %v5767 = vpop.f32.mrb[0].mxu0
        %5768 = vmatprep.mubr.f32.mxu0 0.0
        %v5769 = vand.u32 %v5143, 4294901760
        %5770 = vmatmul.mubr.f32.gmra.mrb[0].mxu0 %v5769
        %v5771 = vpop.f32.mrb[0].mxu0
        %v5772 = vadd.f32 %v5643, %v5771
        %v5773 = vpop.f32.mrb[0].mxu0
        %5774 = vmatprep.mubr.f32.mxu0 0.0
        %v5775 = vand.u32 %v5146, 4294901760
        %5776 = vmatmul.mubr.f32.gmra.mrb[0].mxu0 %v5775
        %v5777 = vpop.f32.mrb[0].mxu0
        %v5778 = vadd.f32 %v5651, %v5777
        %v5779 = vpop.f32.mrb[0].mxu0
        %5780 = vmatprep.mubr.f32.mxu0 0.0
        %v5781 = vand.u32 %v5149, 4294901760
        %5782 = vmatmul.mubr.f32.gmra.mrb[0].mxu0 %v5781
        %v5783 = vpop.f32.mrb[0].mxu0
        %v5784 = vadd.f32 %v5659, %v5783
        %v5785 = vpop.f32.mrb[0].mxu0
        %5786 = vmatprep.mubr.f32.mxu0 0.0
        %v5787 = vand.u32 %v5152, 4294901760
        %5788 = vmatmul.mubr.f32.gmra.mrb[0].mxu0 %v5787
        %v5789 = vpop.f32.mrb[0].mxu0
        %v5790 = vadd.f32 %v5667, %v5789
        %v5791 = vpop.f32.mrb[0].mxu0
        %5792 = vmatprep.mubr.f32.mxu0 0.0
        %v5793 = vand.u32 %v5155, 4294901760
        %5794 = vmatmul.mubr.f32.gmra.mrb[0].mxu0 %v5793
        %v5795 = vpop.f32.mrb[0].mxu0
        %v5796 = vadd.f32 %v5675, %v5795
        %v5797 = vpop.f32.mrb[0].mxu0
        %5798 = vmatprep.mubr.f32.mxu0 0.0
        %v5799 = vand.u32 %v5158, 4294901760
        %5800 = vmatmul.mubr.f32.gmra.mrb[0].mxu0 %v5799
        %v5801 = vpop.f32.mrb[0].mxu0
        %v5802 = vadd.f32 %v5683, %v5801
        %v5803 = vpop.f32.mrb[0].mxu0
        %5804 = vdwg.mxu0
        %5805 = vmatprep.subr.mxu0 0.0
        %v5806 = vand.u32 %v5130, 4294901760
        %5807 = vmatpush1.msra.mxu0 %v5806
        %5808 = vmatprep.subr.mxu0 0.0
        %v5809 = vand.u32 %v5131, 4294901760
        %5810 = vmatpush1.msra.mxu0 %v5809
        %5811 = vmatprep.subr.mxu0 0.0
        %5812 = vmatpush1.msra.mxu0 0.0
        %5813 = vmatprep.subr.mxu0 0.0
        %5814 = vmatpush1.msra.mxu0 0.0
        %5815 = vmatprep.subr.mxu0 0.0
        %5816 = vmatpush1.msra.mxu0 0.0
        %5817 = vmatprep.subr.mxu0 0.0
        %5818 = vmatpush1.msra.mxu0 0.0
        %5819 = vmatprep.subr.mxu0 0.0
        %5820 = vmatpush1.msra.mxu0 0.0
        %5821 = vmatprep.subr.mxu0 0.0
        %5822 = vmatpush1.msra.mxu0 0.0
        %5823 = vmatprep.subr.mxu0 0.0
        %5824 = vmatpush1.msra.mxu0 0.0
        %5825 = vmatprep.subr.mxu0 0.0
        %5826 = vmatpush1.msra.mxu0 0.0
        %5827 = vmatprep.subr.mxu0 0.0
        %5828 = vmatpush1.msra.mxu0 0.0
        %5829 = vmatprep.subr.mxu0 0.0
        %5830 = vmatpush1.msra.mxu0 0.0
        %5831 = vmatprep.subr.mxu0 0.0
        %5832 = vmatpush1.msra.mxu0 0.0
        %5833 = vmatprep.subr.mxu0 0.0
        %5834 = vmatpush1.msra.mxu0 0.0
        %5835 = vmatprep.subr.mxu0 0.0
        %5836 = vmatpush1.msra.mxu0 0.0
        %5837 = vmatprep.subr.mxu0 0.0
        %5838 = vmatpush1.msra.mxu0 0.0
        %5839 = vmatprep.subr.mxu0 0.0
        %5840 = vmatpush1.msra.mxu0 0.0
        %5841 = vmatprep.subr.mxu0 0.0
        %5842 = vmatpush1.msra.mxu0 0.0
        %5843 = vmatprep.subr.mxu0 0.0
        %5844 = vmatpush1.msra.mxu0 0.0
        %5845 = vmatprep.subr.mxu0 0.0
        %5846 = vmatpush1.msra.mxu0 0.0
        %5847 = vmatprep.subr.mxu0 0.0
        %5848 = vmatpush1.msra.mxu0 0.0
        %5849 = vmatprep.subr.mxu0 0.0
        %5850 = vmatpush1.msra.mxu0 0.0
        %5851 = vmatprep.subr.mxu0 0.0
        %5852 = vmatpush1.msra.mxu0 0.0
        %5853 = vmatprep.subr.mxu0 0.0
        %5854 = vmatpush1.msra.mxu0 0.0
        %5855 = vmatprep.subr.mxu0 0.0
        %5856 = vmatpush1.msra.mxu0 0.0
        %5857 = vmatprep.subr.mxu0 0.0
        %5858 = vmatpush1.msra.mxu0 0.0
        %5859 = vmatprep.subr.mxu0 0.0
        %5860 = vmatpush1.msra.mxu0 0.0
        %5861 = vmatprep.subr.mxu0 0.0
        %5862 = vmatpush1.msra.mxu0 0.0
        %5863 = vmatprep.subr.mxu0 0.0
        %5864 = vmatpush1.msra.mxu0 0.0
        %5865 = vmatprep.subr.mxu0 0.0
        %5866 = vmatpush1.msra.mxu0 0.0
        %5867 = vmatprep.subr.mxu0 0.0
        %5868 = vmatpush1.msra.mxu0 0.0
        %5869 = vmatprep.subr.mxu0 0.0
        %5870 = vmatpush1.msra.mxu0 0.0
        %5871 = vmatprep.mubr.f32.mxu0 0.0
        %v5872 = vand.u32 %v5137, 4294901760
        %5873 = vmatmul.mubr.f32.gmra.mrb[0].mxu0 %v5872
        %v5874 = vpop.f32.mrb[0].mxu0
        %v5875 = vadd.f32 %v5760, %v5874
        %v5876 = vpop.f32.mrb[0].mxu0
        %5877 = vmatprep.mubr.f32.mxu0 0.0
        %v5878 = vand.u32 %v5140, 4294901760
        %5879 = vmatmul.mubr.f32.gmra.mrb[0].mxu0 %v5878
        %v5880 = vpop.f32.mrb[0].mxu0
        %v5881 = vadd.f32 %v5766, %v5880
        %v5882 = vpop.f32.mrb[0].mxu0
        %5883 = vmatprep.mubr.f32.mxu0 0.0
        %v5884 = vand.u32 %v5143, 4294901760
        %5885 = vmatmul.mubr.f32.gmra.mrb[0].mxu0 %v5884
        %v5886 = vpop.f32.mrb[0].mxu0
        %v5887 = vadd.f32 %v5772, %v5886
        %v5888 = vpop.f32.mrb[0].mxu0
        %5889 = vmatprep.mubr.f32.mxu0 0.0
        %v5890 = vand.u32 %v5146, 4294901760
        %5891 = vmatmul.mubr.f32.gmra.mrb[0].mxu0 %v5890
        %v5892 = vpop.f32.mrb[0].mxu0
        %v5893 = vadd.f32 %v5778, %v5892
        %v5894 = vpop.f32.mrb[0].mxu0
        %5895 = vmatprep.mubr.f32.mxu0 0.0
        %v5896 = vand.u32 %v5149, 4294901760
        %5897 = vmatmul.mubr.f32.gmra.mrb[0].mxu0 %v5896
        %v5898 = vpop.f32.mrb[0].mxu0
        %v5899 = vadd.f32 %v5784, %v5898
        %v5900 = vpop.f32.mrb[0].mxu0
        %5901 = vmatprep.mubr.f32.mxu0 0.0
        %v5902 = vand.u32 %v5152, 4294901760
        %5903 = vmatmul.mubr.f32.gmra.mrb[0].mxu0 %v5902
        %v5904 = vpop.f32.mrb[0].mxu0
        %v5905 = vadd.f32 %v5790, %v5904
        %v5906 = vpop.f32.mrb[0].mxu0
        %5907 = vmatprep.mubr.f32.mxu0 0.0
        %v5908 = vand.u32 %v5155, 4294901760
        %5909 = vmatmul.mubr.f32.gmra.mrb[0].mxu0 %v5908
        %v5910 = vpop.f32.mrb[0].mxu0
        %v5911 = vadd.f32 %v5796, %v5910
        %v5912 = vpop.f32.mrb[0].mxu0
        %5913 = vmatprep.mubr.f32.mxu0 0.0
        %v5914 = vand.u32 %v5158, 4294901760
        %5915 = vmatmul.mubr.f32.gmra.mrb[0].mxu0 %v5914
        %v5916 = vpop.f32.mrb[0].mxu0
        %v5917 = vadd.f32 %v5802, %v5916
        %v5918 = vpop.f32.mrb[0].mxu0
        %5919 = vdwg.mxu0
        %v5920 = vtanh.pop %v5875
        %v5921 = vtanh.pop %v5881
        %v5922 = vtanh.pop %v5887
        %v5923 = vtanh.pop %v5893
        %v5924 = vtanh.pop %v5899
        %v5925 = vtanh.pop %v5905
        %v5926 = vtanh.pop %v5911
        %v5927 = vtanh.pop %v5917
        %v5928 = vld [vmem:[#allocation4 + $0xc0] sm:$0xff]
        %v5929 = vld [vmem:[#allocation4 + $0xc8] sm:$0xff]
        %v5930 = vlaneseq
        %v5931 = vshrl.u32 %v5930, 7
        %v5932 = vsub.s32 7, %v5931
        %v5933 = vrot.slane %v198, %v5932
        %v5935 = vsel %vm4337, %v5920, 0
        %v5938 = vsel %vm4337, %v5921, 0
        %v5941 = vsel %vm4337, %v5922, 0
        %v5944 = vsel %vm4337, %v5923, 0
        %v5947 = vsel %vm4337, %v5924, 0
        %v5950 = vsel %vm4337, %v5925, 0
        %v5953 = vsel %vm4337, %v5926, 0
        %v5956 = vsel %vm4337, %v5927, 0
        %5958 = vmatprep.subr.mxu0 0.0
        %v5959 = vand.u32 %v5928, 4294901760
        %5960 = vmatpush1.msra.mxu0 %v5959
        %5961 = vmatprep.subr.mxu0 0.0
        %v5962 = vand.u32 %v5929, 4294901760
        %5963 = vmatpush1.msra.mxu0 %v5962
        %5964 = vmatprep.subr.mxu0 0.0
        %5965 = vmatpush1.msra.mxu0 0.0
        %5966 = vmatprep.subr.mxu0 0.0
        %5967 = vmatpush1.msra.mxu0 0.0
        %5968 = vmatprep.subr.mxu0 0.0
        %5969 = vmatpush1.msra.mxu0 0.0
        %5970 = vmatprep.subr.mxu0 0.0
        %5971 = vmatpush1.msra.mxu0 0.0
        %5972 = vmatprep.subr.mxu0 0.0
        %5973 = vmatpush1.msra.mxu0 0.0
        %5974 = vmatprep.subr.mxu0 0.0
        %5975 = vmatpush1.msra.mxu0 0.0
        %5976 = vmatprep.subr.mxu0 0.0
        %5977 = vmatpush1.msra.mxu0 0.0
        %5978 = vmatprep.subr.mxu0 0.0
        %5979 = vmatpush1.msra.mxu0 0.0
        %5980 = vmatprep.subr.mxu0 0.0
        %5981 = vmatpush1.msra.mxu0 0.0
        %5982 = vmatprep.subr.mxu0 0.0
        %5983 = vmatpush1.msra.mxu0 0.0
        %5984 = vmatprep.subr.mxu0 0.0
        %5985 = vmatpush1.msra.mxu0 0.0
        %5986 = vmatprep.subr.mxu0 0.0
        %5987 = vmatpush1.msra.mxu0 0.0
        %5988 = vmatprep.subr.mxu0 0.0
        %5989 = vmatpush1.msra.mxu0 0.0
        %5990 = vmatprep.subr.mxu0 0.0
        %5991 = vmatpush1.msra.mxu0 0.0
        %5992 = vmatprep.subr.mxu0 0.0
        %5993 = vmatpush1.msra.mxu0 0.0
        %5994 = vmatprep.subr.mxu0 0.0
        %5995 = vmatpush1.msra.mxu0 0.0
        %5996 = vmatprep.subr.mxu0 0.0
        %5997 = vmatpush1.msra.mxu0 0.0
        %5998 = vmatprep.subr.mxu0 0.0
        %5999 = vmatpush1.msra.mxu0 0.0
        %6000 = vmatprep.subr.mxu0 0.0
        %6001 = vmatpush1.msra.mxu0 0.0
        %6002 = vmatprep.subr.mxu0 0.0
        %6003 = vmatpush1.msra.mxu0 0.0
        %6004 = vmatprep.subr.mxu0 0.0
        %6005 = vmatpush1.msra.mxu0 0.0
        %6006 = vmatprep.subr.mxu0 0.0
        %6007 = vmatpush1.msra.mxu0 0.0
        %6008 = vmatprep.subr.mxu0 0.0
        %6009 = vmatpush1.msra.mxu0 0.0
        %6010 = vmatprep.subr.mxu0 0.0
        %6011 = vmatpush1.msra.mxu0 0.0
        %6012 = vmatprep.subr.mxu0 0.0
        %6013 = vmatpush1.msra.mxu0 0.0
        %6014 = vmatprep.subr.mxu0 0.0
        %6015 = vmatpush1.msra.mxu0 0.0
        %6016 = vmatprep.subr.mxu0 0.0
        %6017 = vmatpush1.msra.mxu0 0.0
        %6018 = vmatprep.subr.mxu0 0.0
        %6019 = vmatpush1.msra.mxu0 0.0
        %6020 = vmatprep.subr.mxu0 0.0
        %6021 = vmatpush1.msra.mxu0 0.0
        %6022 = vmatprep.subr.mxu0 0.0
        %6023 = vmatpush1.msra.mxu0 0.0
        %6024 = vmatprep.mubr.f32.mxu0 0.0
        %v6025 = vand.u32 %v5935, 4294901760
        %v6026 = vsub.f32 %v5935, %v6025
        %v6027 = vand.u32 %v6026, 4294901760
        %v6028 = vsub.f32 %v6026, %v6027
        %v6029 = vand.u32 %v6028, 4294901760
        %6030 = vmatmul.mubr.f32.gmra.mrb[0].mxu0 %v6029
        %v6031 = vpop.f32.mrb[0].mxu0
        %v6032 = vadd.f32 %v5933, %v6031
        %v6033 = vpop.f32.mrb[0].mxu0
        %6034 = vmatprep.mubr.f32.mxu0 0.0
        %v6035 = vand.u32 %v5938, 4294901760
        %v6036 = vsub.f32 %v5938, %v6035
        %v6037 = vand.u32 %v6036, 4294901760
        %v6038 = vsub.f32 %v6036, %v6037
        %v6039 = vand.u32 %v6038, 4294901760
        %6040 = vmatmul.mubr.f32.gmra.mrb[0].mxu0 %v6039
        %v6041 = vpop.f32.mrb[0].mxu0
        %v6042 = vadd.f32 %v5933, %v6041
        %v6043 = vpop.f32.mrb[0].mxu0
        %6044 = vmatprep.mubr.f32.mxu0 0.0
        %v6045 = vand.u32 %v5941, 4294901760
        %v6046 = vsub.f32 %v5941, %v6045
        %v6047 = vand.u32 %v6046, 4294901760
        %v6048 = vsub.f32 %v6046, %v6047
        %v6049 = vand.u32 %v6048, 4294901760
        %6050 = vmatmul.mubr.f32.gmra.mrb[0].mxu0 %v6049
        %v6051 = vpop.f32.mrb[0].mxu0
        %v6052 = vadd.f32 %v5933, %v6051
        %v6053 = vpop.f32.mrb[0].mxu0
        %6054 = vmatprep.mubr.f32.mxu0 0.0
        %v6055 = vand.u32 %v5944, 4294901760
        %v6056 = vsub.f32 %v5944, %v6055
        %v6057 = vand.u32 %v6056, 4294901760
        %v6058 = vsub.f32 %v6056, %v6057
        %v6059 = vand.u32 %v6058, 4294901760
        %6060 = vmatmul.mubr.f32.gmra.mrb[0].mxu0 %v6059
        %v6061 = vpop.f32.mrb[0].mxu0
        %v6062 = vadd.f32 %v5933, %v6061
        %v6063 = vpop.f32.mrb[0].mxu0
        %6064 = vmatprep.mubr.f32.mxu0 0.0
        %v6065 = vand.u32 %v5947, 4294901760
        %v6066 = vsub.f32 %v5947, %v6065
        %v6067 = vand.u32 %v6066, 4294901760
        %v6068 = vsub.f32 %v6066, %v6067
        %v6069 = vand.u32 %v6068, 4294901760
        %6070 = vmatmul.mubr.f32.gmra.mrb[0].mxu0 %v6069
        %v6071 = vpop.f32.mrb[0].mxu0
        %v6072 = vadd.f32 %v5933, %v6071
        %v6073 = vpop.f32.mrb[0].mxu0
        %6074 = vmatprep.mubr.f32.mxu0 0.0
        %v6075 = vand.u32 %v5950, 4294901760
        %v6076 = vsub.f32 %v5950, %v6075
        %v6077 = vand.u32 %v6076, 4294901760
        %v6078 = vsub.f32 %v6076, %v6077
        %v6079 = vand.u32 %v6078, 4294901760
        %6080 = vmatmul.mubr.f32.gmra.mrb[0].mxu0 %v6079
        %v6081 = vpop.f32.mrb[0].mxu0
        %v6082 = vadd.f32 %v5933, %v6081
        %v6083 = vpop.f32.mrb[0].mxu0
        %6084 = vmatprep.mubr.f32.mxu0 0.0
        %v6085 = vand.u32 %v5953, 4294901760
        %v6086 = vsub.f32 %v5953, %v6085
        %v6087 = vand.u32 %v6086, 4294901760
        %v6088 = vsub.f32 %v6086, %v6087
        %v6089 = vand.u32 %v6088, 4294901760
        %6090 = vmatmul.mubr.f32.gmra.mrb[0].mxu0 %v6089
        %v6091 = vpop.f32.mrb[0].mxu0
        %v6092 = vadd.f32 %v5933, %v6091
        %v6093 = vpop.f32.mrb[0].mxu0
        %6094 = vmatprep.mubr.f32.mxu0 0.0
        %v6095 = vand.u32 %v5956, 4294901760
        %v6096 = vsub.f32 %v5956, %v6095
        %v6097 = vand.u32 %v6096, 4294901760
        %v6098 = vsub.f32 %v6096, %v6097
        %v6099 = vand.u32 %v6098, 4294901760
        %6100 = vmatmul.mubr.f32.gmra.mrb[0].mxu0 %v6099
        %v6101 = vpop.f32.mrb[0].mxu0
        %v6102 = vadd.f32 %v5933, %v6101
        %v6103 = vpop.f32.mrb[0].mxu0
        %6104 = vdwg.mxu0
        %6105 = vmatprep.subr.mxu0 0.0
        %v6106 = vand.u32 %v5928, 4294901760
        %v6107 = vsub.f32 %v5928, %v6106
        %v6108 = vand.u32 %v6107, 4294901760
        %v6109 = vsub.f32 %v6107, %v6108
        %v6110 = vand.u32 %v6109, 4294901760
        %6111 = vmatpush1.msra.mxu0 %v6110
        %6112 = vmatprep.subr.mxu0 0.0
        %v6113 = vand.u32 %v5929, 4294901760
        %v6114 = vsub.f32 %v5929, %v6113
        %v6115 = vand.u32 %v6114, 4294901760
        %v6116 = vsub.f32 %v6114, %v6115
        %v6117 = vand.u32 %v6116, 4294901760
        %6118 = vmatpush1.msra.mxu0 %v6117
        %6119 = vmatprep.subr.mxu0 0.0
        %6120 = vmatpush1.msra.mxu0 0.0
        %6121 = vmatprep.subr.mxu0 0.0
        %6122 = vmatpush1.msra.mxu0 0.0
        %6123 = vmatprep.subr.mxu0 0.0
        %6124 = vmatpush1.msra.mxu0 0.0
        %6125 = vmatprep.subr.mxu0 0.0
        %6126 = vmatpush1.msra.mxu0 0.0
        %6127 = vmatprep.subr.mxu0 0.0
        %6128 = vmatpush1.msra.mxu0 0.0
        %6129 = vmatprep.subr.mxu0 0.0
        %6130 = vmatpush1.msra.mxu0 0.0
        %6131 = vmatprep.subr.mxu0 0.0
        %6132 = vmatpush1.msra.mxu0 0.0
        %6133 = vmatprep.subr.mxu0 0.0
        %6134 = vmatpush1.msra.mxu0 0.0
        %6135 = vmatprep.subr.mxu0 0.0
        %6136 = vmatpush1.msra.mxu0 0.0
        %6137 = vmatprep.subr.mxu0 0.0
        %6138 = vmatpush1.msra.mxu0 0.0
        %6139 = vmatprep.subr.mxu0 0.0
        %6140 = vmatpush1.msra.mxu0 0.0
        %6141 = vmatprep.subr.mxu0 0.0
        %6142 = vmatpush1.msra.mxu0 0.0
        %6143 = vmatprep.subr.mxu0 0.0
        %6144 = vmatpush1.msra.mxu0 0.0
        %6145 = vmatprep.subr.mxu0 0.0
        %6146 = vmatpush1.msra.mxu0 0.0
        %6147 = vmatprep.subr.mxu0 0.0
        %6148 = vmatpush1.msra.mxu0 0.0
        %6149 = vmatprep.subr.mxu0 0.0
        %6150 = vmatpush1.msra.mxu0 0.0
        %6151 = vmatprep.subr.mxu0 0.0
        %6152 = vmatpush1.msra.mxu0 0.0
        %6153 = vmatprep.subr.mxu0 0.0
        %6154 = vmatpush1.msra.mxu0 0.0
        %6155 = vmatprep.subr.mxu0 0.0
        %6156 = vmatpush1.msra.mxu0 0.0
        %6157 = vmatprep.subr.mxu0 0.0
        %6158 = vmatpush1.msra.mxu0 0.0
        %6159 = vmatprep.subr.mxu0 0.0
        %6160 = vmatpush1.msra.mxu0 0.0
        %6161 = vmatprep.subr.mxu0 0.0
        %6162 = vmatpush1.msra.mxu0 0.0
        %6163 = vmatprep.subr.mxu0 0.0
        %6164 = vmatpush1.msra.mxu0 0.0
        %6165 = vmatprep.subr.mxu0 0.0
        %6166 = vmatpush1.msra.mxu0 0.0
        %6167 = vmatprep.subr.mxu0 0.0
        %6168 = vmatpush1.msra.mxu0 0.0
        %6169 = vmatprep.subr.mxu0 0.0
        %6170 = vmatpush1.msra.mxu0 0.0
        %6171 = vmatprep.subr.mxu0 0.0
        %6172 = vmatpush1.msra.mxu0 0.0
        %6173 = vmatprep.subr.mxu0 0.0
        %6174 = vmatpush1.msra.mxu0 0.0
        %6175 = vmatprep.subr.mxu0 0.0
        %6176 = vmatpush1.msra.mxu0 0.0
        %6177 = vmatprep.subr.mxu0 0.0
        %6178 = vmatpush1.msra.mxu0 0.0
        %6179 = vmatprep.mubr.f32.mxu0 0.0
        %v6180 = vand.u32 %v5935, 4294901760
        %6181 = vmatmul.mubr.f32.gmra.mrb[0].mxu0 %v6180
        %v6182 = vpop.f32.mrb[0].mxu0
        %v6183 = vadd.f32 %v6032, %v6182
        %v6184 = vpop.f32.mrb[0].mxu0
        %6185 = vmatprep.mubr.f32.mxu0 0.0
        %v6186 = vand.u32 %v5938, 4294901760
        %6187 = vmatmul.mubr.f32.gmra.mrb[0].mxu0 %v6186
        %v6188 = vpop.f32.mrb[0].mxu0
        %v6189 = vadd.f32 %v6042, %v6188
        %v6190 = vpop.f32.mrb[0].mxu0
        %6191 = vmatprep.mubr.f32.mxu0 0.0
        %v6192 = vand.u32 %v5941, 4294901760
        %6193 = vmatmul.mubr.f32.gmra.mrb[0].mxu0 %v6192
        %v6194 = vpop.f32.mrb[0].mxu0
        %v6195 = vadd.f32 %v6052, %v6194
        %v6196 = vpop.f32.mrb[0].mxu0
        %6197 = vmatprep.mubr.f32.mxu0 0.0
        %v6198 = vand.u32 %v5944, 4294901760
        %6199 = vmatmul.mubr.f32.gmra.mrb[0].mxu0 %v6198
        %v6200 = vpop.f32.mrb[0].mxu0
        %v6201 = vadd.f32 %v6062, %v6200
        %v6202 = vpop.f32.mrb[0].mxu0
        %6203 = vmatprep.mubr.f32.mxu0 0.0
        %v6204 = vand.u32 %v5947, 4294901760
        %6205 = vmatmul.mubr.f32.gmra.mrb[0].mxu0 %v6204
        %v6206 = vpop.f32.mrb[0].mxu0
        %v6207 = vadd.f32 %v6072, %v6206
        %v6208 = vpop.f32.mrb[0].mxu0
        %6209 = vmatprep.mubr.f32.mxu0 0.0
        %v6210 = vand.u32 %v5950, 4294901760
        %6211 = vmatmul.mubr.f32.gmra.mrb[0].mxu0 %v6210
        %v6212 = vpop.f32.mrb[0].mxu0
        %v6213 = vadd.f32 %v6082, %v6212
        %v6214 = vpop.f32.mrb[0].mxu0
        %6215 = vmatprep.mubr.f32.mxu0 0.0
        %v6216 = vand.u32 %v5953, 4294901760
        %6217 = vmatmul.mubr.f32.gmra.mrb[0].mxu0 %v6216
        %v6218 = vpop.f32.mrb[0].mxu0
        %v6219 = vadd.f32 %v6092, %v6218
        %v6220 = vpop.f32.mrb[0].mxu0
        %6221 = vmatprep.mubr.f32.mxu0 0.0
        %v6222 = vand.u32 %v5956, 4294901760
        %6223 = vmatmul.mubr.f32.gmra.mrb[0].mxu0 %v6222
        %v6224 = vpop.f32.mrb[0].mxu0
        %v6225 = vadd.f32 %v6102, %v6224
        %v6226 = vpop.f32.mrb[0].mxu0
        %6227 = vdwg.mxu0
        %6228 = vmatprep.subr.mxu0 0.0
        %v6229 = vand.u32 %v5928, 4294901760
        %v6230 = vsub.f32 %v5928, %v6229
        %6231 = vmatpush1.msra.mxu0 %v6230
        %6232 = vmatprep.subr.mxu0 0.0
        %v6233 = vand.u32 %v5929, 4294901760
        %v6234 = vsub.f32 %v5929, %v6233
        %6235 = vmatpush1.msra.mxu0 %v6234
        %6236 = vmatprep.subr.mxu0 0.0
        %6237 = vmatpush1.msra.mxu0 0.0
        %6238 = vmatprep.subr.mxu0 0.0
        %6239 = vmatpush1.msra.mxu0 0.0
        %6240 = vmatprep.subr.mxu0 0.0
        %6241 = vmatpush1.msra.mxu0 0.0
        %6242 = vmatprep.subr.mxu0 0.0
        %6243 = vmatpush1.msra.mxu0 0.0
        %6244 = vmatprep.subr.mxu0 0.0
        %6245 = vmatpush1.msra.mxu0 0.0
        %6246 = vmatprep.subr.mxu0 0.0
        %6247 = vmatpush1.msra.mxu0 0.0
        %6248 = vmatprep.subr.mxu0 0.0
        %6249 = vmatpush1.msra.mxu0 0.0
        %6250 = vmatprep.subr.mxu0 0.0
        %6251 = vmatpush1.msra.mxu0 0.0
        %6252 = vmatprep.subr.mxu0 0.0
        %6253 = vmatpush1.msra.mxu0 0.0
        %6254 = vmatprep.subr.mxu0 0.0
        %6255 = vmatpush1.msra.mxu0 0.0
        %6256 = vmatprep.subr.mxu0 0.0
        %6257 = vmatpush1.msra.mxu0 0.0
        %6258 = vmatprep.subr.mxu0 0.0
        %6259 = vmatpush1.msra.mxu0 0.0
        %6260 = vmatprep.subr.mxu0 0.0
        %6261 = vmatpush1.msra.mxu0 0.0
        %6262 = vmatprep.subr.mxu0 0.0
        %6263 = vmatpush1.msra.mxu0 0.0
        %6264 = vmatprep.subr.mxu0 0.0
        %6265 = vmatpush1.msra.mxu0 0.0
        %6266 = vmatprep.subr.mxu0 0.0
        %6267 = vmatpush1.msra.mxu0 0.0
        %6268 = vmatprep.subr.mxu0 0.0
        %6269 = vmatpush1.msra.mxu0 0.0
        %6270 = vmatprep.subr.mxu0 0.0
        %6271 = vmatpush1.msra.mxu0 0.0
        %6272 = vmatprep.subr.mxu0 0.0
        %6273 = vmatpush1.msra.mxu0 0.0
        %6274 = vmatprep.subr.mxu0 0.0
        %6275 = vmatpush1.msra.mxu0 0.0
        %6276 = vmatprep.subr.mxu0 0.0
        %6277 = vmatpush1.msra.mxu0 0.0
        %6278 = vmatprep.subr.mxu0 0.0
        %6279 = vmatpush1.msra.mxu0 0.0
        %6280 = vmatprep.subr.mxu0 0.0
        %6281 = vmatpush1.msra.mxu0 0.0
        %6282 = vmatprep.subr.mxu0 0.0
        %6283 = vmatpush1.msra.mxu0 0.0
        %6284 = vmatprep.subr.mxu0 0.0
        %6285 = vmatpush1.msra.mxu0 0.0
        %6286 = vmatprep.subr.mxu0 0.0
        %6287 = vmatpush1.msra.mxu0 0.0
        %6288 = vmatprep.subr.mxu0 0.0
        %6289 = vmatpush1.msra.mxu0 0.0
        %6290 = vmatprep.subr.mxu0 0.0
        %6291 = vmatpush1.msra.mxu0 0.0
        %6292 = vmatprep.subr.mxu0 0.0
        %6293 = vmatpush1.msra.mxu0 0.0
        %6294 = vmatprep.subr.mxu0 0.0
        %6295 = vmatpush1.msra.mxu0 0.0
        %6296 = vmatprep.mubr.f32.mxu0 0.0
        %v6297 = vand.u32 %v5935, 4294901760
        %v6298 = vsub.f32 %v5935, %v6297
        %6299 = vmatmul.mubr.f32.gmra.mrb[0].mxu0 %v6298
        %v6300 = vpop.f32.mrb[0].mxu0
        %v6301 = vadd.f32 %v6183, %v6300
        %v6302 = vpop.f32.mrb[0].mxu0
        %6303 = vmatprep.mubr.f32.mxu0 0.0
        %v6304 = vand.u32 %v5938, 4294901760
        %v6305 = vsub.f32 %v5938, %v6304
        %6306 = vmatmul.mubr.f32.gmra.mrb[0].mxu0 %v6305
        %v6307 = vpop.f32.mrb[0].mxu0
        %v6308 = vadd.f32 %v6189, %v6307
        %v6309 = vpop.f32.mrb[0].mxu0
        %6310 = vmatprep.mubr.f32.mxu0 0.0
        %v6311 = vand.u32 %v5941, 4294901760
        %v6312 = vsub.f32 %v5941, %v6311
        %6313 = vmatmul.mubr.f32.gmra.mrb[0].mxu0 %v6312
        %v6314 = vpop.f32.mrb[0].mxu0
        %v6315 = vadd.f32 %v6195, %v6314
        %v6316 = vpop.f32.mrb[0].mxu0
        %6317 = vmatprep.mubr.f32.mxu0 0.0
        %v6318 = vand.u32 %v5944, 4294901760
        %v6319 = vsub.f32 %v5944, %v6318
        %6320 = vmatmul.mubr.f32.gmra.mrb[0].mxu0 %v6319
        %v6321 = vpop.f32.mrb[0].mxu0
        %v6322 = vadd.f32 %v6201, %v6321
        %v6323 = vpop.f32.mrb[0].mxu0
        %6324 = vmatprep.mubr.f32.mxu0 0.0
        %v6325 = vand.u32 %v5947, 4294901760
        %v6326 = vsub.f32 %v5947, %v6325
        %6327 = vmatmul.mubr.f32.gmra.mrb[0].mxu0 %v6326
        %v6328 = vpop.f32.mrb[0].mxu0
        %v6329 = vadd.f32 %v6207, %v6328
        %v6330 = vpop.f32.mrb[0].mxu0
        %6331 = vmatprep.mubr.f32.mxu0 0.0
        %v6332 = vand.u32 %v5950, 4294901760
        %v6333 = vsub.f32 %v5950, %v6332
        %6334 = vmatmul.mubr.f32.gmra.mrb[0].mxu0 %v6333
        %v6335 = vpop.f32.mrb[0].mxu0
        %v6336 = vadd.f32 %v6213, %v6335
        %v6337 = vpop.f32.mrb[0].mxu0
        %6338 = vmatprep.mubr.f32.mxu0 0.0
        %v6339 = vand.u32 %v5953, 4294901760
        %v6340 = vsub.f32 %v5953, %v6339
        %6341 = vmatmul.mubr.f32.gmra.mrb[0].mxu0 %v6340
        %v6342 = vpop.f32.mrb[0].mxu0
        %v6343 = vadd.f32 %v6219, %v6342
        %v6344 = vpop.f32.mrb[0].mxu0
        %6345 = vmatprep.mubr.f32.mxu0 0.0
        %v6346 = vand.u32 %v5956, 4294901760
        %v6347 = vsub.f32 %v5956, %v6346
        %6348 = vmatmul.mubr.f32.gmra.mrb[0].mxu0 %v6347
        %v6349 = vpop.f32.mrb[0].mxu0
        %v6350 = vadd.f32 %v6225, %v6349
        %v6351 = vpop.f32.mrb[0].mxu0
        %6352 = vdwg.mxu0
        %6353 = vmatprep.subr.mxu0 0.0
        %v6354 = vand.u32 %v5928, 4294901760
        %6355 = vmatpush1.msra.mxu0 %v6354
        %6356 = vmatprep.subr.mxu0 0.0
        %v6357 = vand.u32 %v5929, 4294901760
        %6358 = vmatpush1.msra.mxu0 %v6357
        %6359 = vmatprep.subr.mxu0 0.0
        %6360 = vmatpush1.msra.mxu0 0.0
        %6361 = vmatprep.subr.mxu0 0.0
        %6362 = vmatpush1.msra.mxu0 0.0
        %6363 = vmatprep.subr.mxu0 0.0
        %6364 = vmatpush1.msra.mxu0 0.0
        %6365 = vmatprep.subr.mxu0 0.0
        %6366 = vmatpush1.msra.mxu0 0.0
        %6367 = vmatprep.subr.mxu0 0.0
        %6368 = vmatpush1.msra.mxu0 0.0
        %6369 = vmatprep.subr.mxu0 0.0
        %6370 = vmatpush1.msra.mxu0 0.0
        %6371 = vmatprep.subr.mxu0 0.0
        %6372 = vmatpush1.msra.mxu0 0.0
        %6373 = vmatprep.subr.mxu0 0.0
        %6374 = vmatpush1.msra.mxu0 0.0
        %6375 = vmatprep.subr.mxu0 0.0
        %6376 = vmatpush1.msra.mxu0 0.0
        %6377 = vmatprep.subr.mxu0 0.0
        %6378 = vmatpush1.msra.mxu0 0.0
        %6379 = vmatprep.subr.mxu0 0.0
        %6380 = vmatpush1.msra.mxu0 0.0
        %6381 = vmatprep.subr.mxu0 0.0
        %6382 = vmatpush1.msra.mxu0 0.0
        %6383 = vmatprep.subr.mxu0 0.0
        %6384 = vmatpush1.msra.mxu0 0.0
        %6385 = vmatprep.subr.mxu0 0.0
        %6386 = vmatpush1.msra.mxu0 0.0
        %6387 = vmatprep.subr.mxu0 0.0
        %6388 = vmatpush1.msra.mxu0 0.0
        %6389 = vmatprep.subr.mxu0 0.0
        %6390 = vmatpush1.msra.mxu0 0.0
        %6391 = vmatprep.subr.mxu0 0.0
        %6392 = vmatpush1.msra.mxu0 0.0
        %6393 = vmatprep.subr.mxu0 0.0
        %6394 = vmatpush1.msra.mxu0 0.0
        %6395 = vmatprep.subr.mxu0 0.0
        %6396 = vmatpush1.msra.mxu0 0.0
        %6397 = vmatprep.subr.mxu0 0.0
        %6398 = vmatpush1.msra.mxu0 0.0
        %6399 = vmatprep.subr.mxu0 0.0
        %6400 = vmatpush1.msra.mxu0 0.0
        %6401 = vmatprep.subr.mxu0 0.0
        %6402 = vmatpush1.msra.mxu0 0.0
        %6403 = vmatprep.subr.mxu0 0.0
        %6404 = vmatpush1.msra.mxu0 0.0
        %6405 = vmatprep.subr.mxu0 0.0
        %6406 = vmatpush1.msra.mxu0 0.0
        %6407 = vmatprep.subr.mxu0 0.0
        %6408 = vmatpush1.msra.mxu0 0.0
        %6409 = vmatprep.subr.mxu0 0.0
        %6410 = vmatpush1.msra.mxu0 0.0
        %6411 = vmatprep.subr.mxu0 0.0
        %6412 = vmatpush1.msra.mxu0 0.0
        %6413 = vmatprep.subr.mxu0 0.0
        %6414 = vmatpush1.msra.mxu0 0.0
        %6415 = vmatprep.subr.mxu0 0.0
        %6416 = vmatpush1.msra.mxu0 0.0
        %6417 = vmatprep.subr.mxu0 0.0
        %6418 = vmatpush1.msra.mxu0 0.0
        %6419 = vmatprep.mubr.f32.mxu0 0.0
        %v6420 = vand.u32 %v5935, 4294901760
        %v6421 = vsub.f32 %v5935, %v6420
        %v6422 = vand.u32 %v6421, 4294901760
        %6423 = vmatmul.mubr.f32.gmra.mrb[0].mxu0 %v6422
        %v6424 = vpop.f32.mrb[0].mxu0
        %v6425 = vadd.f32 %v6301, %v6424
        %v6426 = vpop.f32.mrb[0].mxu0
        %6427 = vmatprep.mubr.f32.mxu0 0.0
        %v6428 = vand.u32 %v5938, 4294901760
        %v6429 = vsub.f32 %v5938, %v6428
        %v6430 = vand.u32 %v6429, 4294901760
        %6431 = vmatmul.mubr.f32.gmra.mrb[0].mxu0 %v6430
        %v6432 = vpop.f32.mrb[0].mxu0
        %v6433 = vadd.f32 %v6308, %v6432
        %v6434 = vpop.f32.mrb[0].mxu0
        %6435 = vmatprep.mubr.f32.mxu0 0.0
        %v6436 = vand.u32 %v5941, 4294901760
        %v6437 = vsub.f32 %v5941, %v6436
        %v6438 = vand.u32 %v6437, 4294901760
        %6439 = vmatmul.mubr.f32.gmra.mrb[0].mxu0 %v6438
        %v6440 = vpop.f32.mrb[0].mxu0
        %v6441 = vadd.f32 %v6315, %v6440
        %v6442 = vpop.f32.mrb[0].mxu0
        %6443 = vmatprep.mubr.f32.mxu0 0.0
        %v6444 = vand.u32 %v5944, 4294901760
        %v6445 = vsub.f32 %v5944, %v6444
        %v6446 = vand.u32 %v6445, 4294901760
        %6447 = vmatmul.mubr.f32.gmra.mrb[0].mxu0 %v6446
        %v6448 = vpop.f32.mrb[0].mxu0
        %v6449 = vadd.f32 %v6322, %v6448
        %v6450 = vpop.f32.mrb[0].mxu0
        %6451 = vmatprep.mubr.f32.mxu0 0.0
        %v6452 = vand.u32 %v5947, 4294901760
        %v6453 = vsub.f32 %v5947, %v6452
        %v6454 = vand.u32 %v6453, 4294901760
        %6455 = vmatmul.mubr.f32.gmra.mrb[0].mxu0 %v6454
        %v6456 = vpop.f32.mrb[0].mxu0
        %v6457 = vadd.f32 %v6329, %v6456
        %v6458 = vpop.f32.mrb[0].mxu0
        %6459 = vmatprep.mubr.f32.mxu0 0.0
        %v6460 = vand.u32 %v5950, 4294901760
        %v6461 = vsub.f32 %v5950, %v6460
        %v6462 = vand.u32 %v6461, 4294901760
        %6463 = vmatmul.mubr.f32.gmra.mrb[0].mxu0 %v6462
        %v6464 = vpop.f32.mrb[0].mxu0
        %v6465 = vadd.f32 %v6336, %v6464
        %v6466 = vpop.f32.mrb[0].mxu0
        %6467 = vmatprep.mubr.f32.mxu0 0.0
        %v6468 = vand.u32 %v5953, 4294901760
        %v6469 = vsub.f32 %v5953, %v6468
        %v6470 = vand.u32 %v6469, 4294901760
        %6471 = vmatmul.mubr.f32.gmra.mrb[0].mxu0 %v6470
        %v6472 = vpop.f32.mrb[0].mxu0
        %v6473 = vadd.f32 %v6343, %v6472
        %v6474 = vpop.f32.mrb[0].mxu0
        %6475 = vmatprep.mubr.f32.mxu0 0.0
        %v6476 = vand.u32 %v5956, 4294901760
        %v6477 = vsub.f32 %v5956, %v6476
        %v6478 = vand.u32 %v6477, 4294901760
        %6479 = vmatmul.mubr.f32.gmra.mrb[0].mxu0 %v6478
        %v6480 = vpop.f32.mrb[0].mxu0
        %v6481 = vadd.f32 %v6350, %v6480
        %v6482 = vpop.f32.mrb[0].mxu0
        %6483 = vdwg.mxu0
        %6484 = vmatprep.subr.mxu0 0.0
        %v6485 = vand.u32 %v5928, 4294901760
        %v6486 = vsub.f32 %v5928, %v6485
        %v6487 = vand.u32 %v6486, 4294901760
        %6488 = vmatpush1.msra.mxu0 %v6487
        %6489 = vmatprep.subr.mxu0 0.0
        %v6490 = vand.u32 %v5929, 4294901760
        %v6491 = vsub.f32 %v5929, %v6490
        %v6492 = vand.u32 %v6491, 4294901760
        %6493 = vmatpush1.msra.mxu0 %v6492
        %6494 = vmatprep.subr.mxu0 0.0
        %6495 = vmatpush1.msra.mxu0 0.0
        %6496 = vmatprep.subr.mxu0 0.0
        %6497 = vmatpush1.msra.mxu0 0.0
        %6498 = vmatprep.subr.mxu0 0.0
        %6499 = vmatpush1.msra.mxu0 0.0
        %6500 = vmatprep.subr.mxu0 0.0
        %6501 = vmatpush1.msra.mxu0 0.0
        %6502 = vmatprep.subr.mxu0 0.0
        %6503 = vmatpush1.msra.mxu0 0.0
        %6504 = vmatprep.subr.mxu0 0.0
        %6505 = vmatpush1.msra.mxu0 0.0
        %6506 = vmatprep.subr.mxu0 0.0
        %6507 = vmatpush1.msra.mxu0 0.0
        %6508 = vmatprep.subr.mxu0 0.0
        %6509 = vmatpush1.msra.mxu0 0.0
        %6510 = vmatprep.subr.mxu0 0.0
        %6511 = vmatpush1.msra.mxu0 0.0
        %6512 = vmatprep.subr.mxu0 0.0
        %6513 = vmatpush1.msra.mxu0 0.0
        %6514 = vmatprep.subr.mxu0 0.0
        %6515 = vmatpush1.msra.mxu0 0.0
        %6516 = vmatprep.subr.mxu0 0.0
        %6517 = vmatpush1.msra.mxu0 0.0
        %6518 = vmatprep.subr.mxu0 0.0
        %6519 = vmatpush1.msra.mxu0 0.0
        %6520 = vmatprep.subr.mxu0 0.0
        %6521 = vmatpush1.msra.mxu0 0.0
        %6522 = vmatprep.subr.mxu0 0.0
        %6523 = vmatpush1.msra.mxu0 0.0
        %6524 = vmatprep.subr.mxu0 0.0
        %6525 = vmatpush1.msra.mxu0 0.0
        %6526 = vmatprep.subr.mxu0 0.0
        %6527 = vmatpush1.msra.mxu0 0.0
        %6528 = vmatprep.subr.mxu0 0.0
        %6529 = vmatpush1.msra.mxu0 0.0
        %6530 = vmatprep.subr.mxu0 0.0
        %6531 = vmatpush1.msra.mxu0 0.0
        %6532 = vmatprep.subr.mxu0 0.0
        %6533 = vmatpush1.msra.mxu0 0.0
        %6534 = vmatprep.subr.mxu0 0.0
        %6535 = vmatpush1.msra.mxu0 0.0
        %6536 = vmatprep.subr.mxu0 0.0
        %6537 = vmatpush1.msra.mxu0 0.0
        %6538 = vmatprep.subr.mxu0 0.0
        %6539 = vmatpush1.msra.mxu0 0.0
        %6540 = vmatprep.subr.mxu0 0.0
        %6541 = vmatpush1.msra.mxu0 0.0
        %6542 = vmatprep.subr.mxu0 0.0
        %6543 = vmatpush1.msra.mxu0 0.0
        %6544 = vmatprep.subr.mxu0 0.0
        %6545 = vmatpush1.msra.mxu0 0.0
        %6546 = vmatprep.subr.mxu0 0.0
        %6547 = vmatpush1.msra.mxu0 0.0
        %6548 = vmatprep.subr.mxu0 0.0
        %6549 = vmatpush1.msra.mxu0 0.0
        %6550 = vmatprep.subr.mxu0 0.0
        %6551 = vmatpush1.msra.mxu0 0.0
        %6552 = vmatprep.subr.mxu0 0.0
        %6553 = vmatpush1.msra.mxu0 0.0
        %6554 = vmatprep.mubr.f32.mxu0 0.0
        %v6555 = vand.u32 %v5935, 4294901760
        %6556 = vmatmul.mubr.f32.gmra.mrb[0].mxu0 %v6555
        %v6557 = vpop.f32.mrb[0].mxu0
        %v6558 = vadd.f32 %v6425, %v6557
        %v6559 = vpop.f32.mrb[0].mxu0
        %6560 = vmatprep.mubr.f32.mxu0 0.0
        %v6561 = vand.u32 %v5938, 4294901760
        %6562 = vmatmul.mubr.f32.gmra.mrb[0].mxu0 %v6561
        %v6563 = vpop.f32.mrb[0].mxu0
        %v6564 = vadd.f32 %v6433, %v6563
        %v6565 = vpop.f32.mrb[0].mxu0
        %6566 = vmatprep.mubr.f32.mxu0 0.0
        %v6567 = vand.u32 %v5941, 4294901760
        %6568 = vmatmul.mubr.f32.gmra.mrb[0].mxu0 %v6567
        %v6569 = vpop.f32.mrb[0].mxu0
        %v6570 = vadd.f32 %v6441, %v6569
        %v6571 = vpop.f32.mrb[0].mxu0
        %6572 = vmatprep.mubr.f32.mxu0 0.0
        %v6573 = vand.u32 %v5944, 4294901760
        %6574 = vmatmul.mubr.f32.gmra.mrb[0].mxu0 %v6573
        %v6575 = vpop.f32.mrb[0].mxu0
        %v6576 = vadd.f32 %v6449, %v6575
        %v6577 = vpop.f32.mrb[0].mxu0
        %6578 = vmatprep.mubr.f32.mxu0 0.0
        %v6579 = vand.u32 %v5947, 4294901760
        %6580 = vmatmul.mubr.f32.gmra.mrb[0].mxu0 %v6579
        %v6581 = vpop.f32.mrb[0].mxu0
        %v6582 = vadd.f32 %v6457, %v6581
        %v6583 = vpop.f32.mrb[0].mxu0
        %6584 = vmatprep.mubr.f32.mxu0 0.0
        %v6585 = vand.u32 %v5950, 4294901760
        %6586 = vmatmul.mubr.f32.gmra.mrb[0].mxu0 %v6585
        %v6587 = vpop.f32.mrb[0].mxu0
        %v6588 = vadd.f32 %v6465, %v6587
        %v6589 = vpop.f32.mrb[0].mxu0
        %6590 = vmatprep.mubr.f32.mxu0 0.0
        %v6591 = vand.u32 %v5953, 4294901760
        %6592 = vmatmul.mubr.f32.gmra.mrb[0].mxu0 %v6591
        %v6593 = vpop.f32.mrb[0].mxu0
        %v6594 = vadd.f32 %v6473, %v6593
        %v6595 = vpop.f32.mrb[0].mxu0
        %6596 = vmatprep.mubr.f32.mxu0 0.0
        %v6597 = vand.u32 %v5956, 4294901760
        %6598 = vmatmul.mubr.f32.gmra.mrb[0].mxu0 %v6597
        %v6599 = vpop.f32.mrb[0].mxu0
        %v6600 = vadd.f32 %v6481, %v6599
        %v6601 = vpop.f32.mrb[0].mxu0
        %6602 = vdwg.mxu0
        %6603 = vmatprep.subr.mxu0 0.0
        %v6604 = vand.u32 %v5928, 4294901760
        %6605 = vmatpush1.msra.mxu0 %v6604
        %6606 = vmatprep.subr.mxu0 0.0
        %v6607 = vand.u32 %v5929, 4294901760
        %6608 = vmatpush1.msra.mxu0 %v6607
        %6609 = vmatprep.subr.mxu0 0.0
        %6610 = vmatpush1.msra.mxu0 0.0
        %6611 = vmatprep.subr.mxu0 0.0
        %6612 = vmatpush1.msra.mxu0 0.0
        %6613 = vmatprep.subr.mxu0 0.0
        %6614 = vmatpush1.msra.mxu0 0.0
        %6615 = vmatprep.subr.mxu0 0.0
        %6616 = vmatpush1.msra.mxu0 0.0
        %6617 = vmatprep.subr.mxu0 0.0
        %6618 = vmatpush1.msra.mxu0 0.0
        %6619 = vmatprep.subr.mxu0 0.0
        %6620 = vmatpush1.msra.mxu0 0.0
        %6621 = vmatprep.subr.mxu0 0.0
        %6622 = vmatpush1.msra.mxu0 0.0
        %6623 = vmatprep.subr.mxu0 0.0
        %6624 = vmatpush1.msra.mxu0 0.0
        %6625 = vmatprep.subr.mxu0 0.0
        %6626 = vmatpush1.msra.mxu0 0.0
        %6627 = vmatprep.subr.mxu0 0.0
        %6628 = vmatpush1.msra.mxu0 0.0
        %6629 = vmatprep.subr.mxu0 0.0
        %6630 = vmatpush1.msra.mxu0 0.0
        %6631 = vmatprep.subr.mxu0 0.0
        %6632 = vmatpush1.msra.mxu0 0.0
        %6633 = vmatprep.subr.mxu0 0.0
        %6634 = vmatpush1.msra.mxu0 0.0
        %6635 = vmatprep.subr.mxu0 0.0
        %6636 = vmatpush1.msra.mxu0 0.0
        %6637 = vmatprep.subr.mxu0 0.0
        %6638 = vmatpush1.msra.mxu0 0.0
        %6639 = vmatprep.subr.mxu0 0.0
        %6640 = vmatpush1.msra.mxu0 0.0
        %6641 = vmatprep.subr.mxu0 0.0
        %6642 = vmatpush1.msra.mxu0 0.0
        %6643 = vmatprep.subr.mxu0 0.0
        %6644 = vmatpush1.msra.mxu0 0.0
        %6645 = vmatprep.subr.mxu0 0.0
        %6646 = vmatpush1.msra.mxu0 0.0
        %6647 = vmatprep.subr.mxu0 0.0
        %6648 = vmatpush1.msra.mxu0 0.0
        %6649 = vmatprep.subr.mxu0 0.0
        %6650 = vmatpush1.msra.mxu0 0.0
        %6651 = vmatprep.subr.mxu0 0.0
        %6652 = vmatpush1.msra.mxu0 0.0
        %6653 = vmatprep.subr.mxu0 0.0
        %6654 = vmatpush1.msra.mxu0 0.0
        %6655 = vmatprep.subr.mxu0 0.0
        %6656 = vmatpush1.msra.mxu0 0.0
        %6657 = vmatprep.subr.mxu0 0.0
        %6658 = vmatpush1.msra.mxu0 0.0
        %6659 = vmatprep.subr.mxu0 0.0
        %6660 = vmatpush1.msra.mxu0 0.0
        %6661 = vmatprep.subr.mxu0 0.0
        %6662 = vmatpush1.msra.mxu0 0.0
        %6663 = vmatprep.subr.mxu0 0.0
        %6664 = vmatpush1.msra.mxu0 0.0
        %6665 = vmatprep.subr.mxu0 0.0
        %6666 = vmatpush1.msra.mxu0 0.0
        %6667 = vmatprep.subr.mxu0 0.0
        %6668 = vmatpush1.msra.mxu0 0.0
        %6669 = vmatprep.mubr.f32.mxu0 0.0
        %v6670 = vand.u32 %v5935, 4294901760
        %6671 = vmatmul.mubr.f32.gmra.mrb[0].mxu0 %v6670
        %v6672 = vpop.f32.mrb[0].mxu0
        %v6673 = vadd.f32 %v6558, %v6672
        %v6674 = vpop.f32.mrb[0].mxu0
        %6675 = vmatprep.mubr.f32.mxu0 0.0
        %v6676 = vand.u32 %v5938, 4294901760
        %6677 = vmatmul.mubr.f32.gmra.mrb[0].mxu0 %v6676
        %v6678 = vpop.f32.mrb[0].mxu0
        %v6679 = vadd.f32 %v6564, %v6678
        %v6680 = vpop.f32.mrb[0].mxu0
        %6681 = vmatprep.mubr.f32.mxu0 0.0
        %v6682 = vand.u32 %v5941, 4294901760
        %6683 = vmatmul.mubr.f32.gmra.mrb[0].mxu0 %v6682
        %v6684 = vpop.f32.mrb[0].mxu0
        %v6685 = vadd.f32 %v6570, %v6684
        %v6686 = vpop.f32.mrb[0].mxu0
        %6687 = vmatprep.mubr.f32.mxu0 0.0
        %v6688 = vand.u32 %v5944, 4294901760
        %6689 = vmatmul.mubr.f32.gmra.mrb[0].mxu0 %v6688
        %v6690 = vpop.f32.mrb[0].mxu0
        %v6691 = vadd.f32 %v6576, %v6690
        %v6692 = vpop.f32.mrb[0].mxu0
        %6693 = vmatprep.mubr.f32.mxu0 0.0
        %v6694 = vand.u32 %v5947, 4294901760
        %6695 = vmatmul.mubr.f32.gmra.mrb[0].mxu0 %v6694
        %v6696 = vpop.f32.mrb[0].mxu0
        %v6697 = vadd.f32 %v6582, %v6696
        %v6698 = vpop.f32.mrb[0].mxu0
        %6699 = vmatprep.mubr.f32.mxu0 0.0
        %v6700 = vand.u32 %v5950, 4294901760
        %6701 = vmatmul.mubr.f32.gmra.mrb[0].mxu0 %v6700
        %v6702 = vpop.f32.mrb[0].mxu0
        %v6703 = vadd.f32 %v6588, %v6702
        %v6704 = vpop.f32.mrb[0].mxu0
        %6705 = vmatprep.mubr.f32.mxu0 0.0
        %v6706 = vand.u32 %v5953, 4294901760
        %6707 = vmatmul.mubr.f32.gmra.mrb[0].mxu0 %v6706
        %v6708 = vpop.f32.mrb[0].mxu0
        %v6709 = vadd.f32 %v6594, %v6708
        %v6710 = vpop.f32.mrb[0].mxu0
        %6711 = vmatprep.mubr.f32.mxu0 0.0
        %v6712 = vand.u32 %v5956, 4294901760
        %6713 = vmatmul.mubr.f32.gmra.mrb[0].mxu0 %v6712
        %v6714 = vpop.f32.mrb[0].mxu0
        %v6715 = vadd.f32 %v6600, %v6714
        %v6716 = vpop.f32.mrb[0].mxu0
        %6717 = vdwg.mxu0
        %v6718 = vtanh.pop %v6673
        %v6719 = vtanh.pop %v6679
        %v6720 = vtanh.pop %v6685
        %v6721 = vtanh.pop %v6691
        %v6722 = vtanh.pop %v6697
        %v6723 = vtanh.pop %v6703
        %v6724 = vtanh.pop %v6709
        %v6725 = vtanh.pop %v6715
        %v6726 = vld [vmem:[#allocation4 + $0xd0] sm:$0xff]
        %v6727 = vld [vmem:[#allocation4 + $0xd8] sm:$0xff]
        %v6728 = vlaneseq
        %v6729 = vshrl.u32 %v6728, 7
        %v6730 = vsub.s32 0, %v6729
        %v6731 = vrot.slane %v199, %v6730
        %v6733 = vsel %vm4337, %v6718, 0
        %v6736 = vsel %vm4337, %v6719, 0
        %v6739 = vsel %vm4337, %v6720, 0
        %v6742 = vsel %vm4337, %v6721, 0
        %v6745 = vsel %vm4337, %v6722, 0
        %v6748 = vsel %vm4337, %v6723, 0
        %v6751 = vsel %vm4337, %v6724, 0
        %v6754 = vsel %vm4337, %v6725, 0
        %6756 = vmatprep.subr.mxu0 0.0
        %v6757 = vand.u32 %v6726, 4294901760
        %6758 = vmatpush1.msra.mxu0 %v6757
        %6759 = vmatprep.subr.mxu0 0.0
        %v6760 = vand.u32 %v6727, 4294901760
        %6761 = vmatpush1.msra.mxu0 %v6760
        %6762 = vmatprep.subr.mxu0 0.0
        %6763 = vmatpush1.msra.mxu0 0.0
        %6764 = vmatprep.subr.mxu0 0.0
        %6765 = vmatpush1.msra.mxu0 0.0
        %6766 = vmatprep.subr.mxu0 0.0
        %6767 = vmatpush1.msra.mxu0 0.0
        %6768 = vmatprep.subr.mxu0 0.0
        %6769 = vmatpush1.msra.mxu0 0.0
        %6770 = vmatprep.subr.mxu0 0.0
        %6771 = vmatpush1.msra.mxu0 0.0
        %6772 = vmatprep.subr.mxu0 0.0
        %6773 = vmatpush1.msra.mxu0 0.0
        %6774 = vmatprep.subr.mxu0 0.0
        %6775 = vmatpush1.msra.mxu0 0.0
        %6776 = vmatprep.subr.mxu0 0.0
        %6777 = vmatpush1.msra.mxu0 0.0
        %6778 = vmatprep.subr.mxu0 0.0
        %6779 = vmatpush1.msra.mxu0 0.0
        %6780 = vmatprep.subr.mxu0 0.0
        %6781 = vmatpush1.msra.mxu0 0.0
        %6782 = vmatprep.subr.mxu0 0.0
        %6783 = vmatpush1.msra.mxu0 0.0
        %6784 = vmatprep.subr.mxu0 0.0
        %6785 = vmatpush1.msra.mxu0 0.0
        %6786 = vmatprep.subr.mxu0 0.0
        %6787 = vmatpush1.msra.mxu0 0.0
        %6788 = vmatprep.subr.mxu0 0.0
        %6789 = vmatpush1.msra.mxu0 0.0
        %6790 = vmatprep.subr.mxu0 0.0
        %6791 = vmatpush1.msra.mxu0 0.0
        %6792 = vmatprep.subr.mxu0 0.0
        %6793 = vmatpush1.msra.mxu0 0.0
        %6794 = vmatprep.subr.mxu0 0.0
        %6795 = vmatpush1.msra.mxu0 0.0
        %6796 = vmatprep.subr.mxu0 0.0
        %6797 = vmatpush1.msra.mxu0 0.0
        %6798 = vmatprep.subr.mxu0 0.0
        %6799 = vmatpush1.msra.mxu0 0.0
        %6800 = vmatprep.subr.mxu0 0.0
        %6801 = vmatpush1.msra.mxu0 0.0
        %6802 = vmatprep.subr.mxu0 0.0
        %6803 = vmatpush1.msra.mxu0 0.0
        %6804 = vmatprep.subr.mxu0 0.0
        %6805 = vmatpush1.msra.mxu0 0.0
        %6806 = vmatprep.subr.mxu0 0.0
        %6807 = vmatpush1.msra.mxu0 0.0
        %6808 = vmatprep.subr.mxu0 0.0
        %6809 = vmatpush1.msra.mxu0 0.0
        %6810 = vmatprep.subr.mxu0 0.0
        %6811 = vmatpush1.msra.mxu0 0.0
        %6812 = vmatprep.subr.mxu0 0.0
        %6813 = vmatpush1.msra.mxu0 0.0
        %6814 = vmatprep.subr.mxu0 0.0
        %6815 = vmatpush1.msra.mxu0 0.0
        %6816 = vmatprep.subr.mxu0 0.0
        %6817 = vmatpush1.msra.mxu0 0.0
        %6818 = vmatprep.subr.mxu0 0.0
        %6819 = vmatpush1.msra.mxu0 0.0
        %6820 = vmatprep.subr.mxu0 0.0
        %6821 = vmatpush1.msra.mxu0 0.0
        %6822 = vmatprep.mubr.f32.mxu0 0.0
        %v6823 = vand.u32 %v6733, 4294901760
        %v6824 = vsub.f32 %v6733, %v6823
        %v6825 = vand.u32 %v6824, 4294901760
        %v6826 = vsub.f32 %v6824, %v6825
        %v6827 = vand.u32 %v6826, 4294901760
        %6828 = vmatmul.mubr.f32.gmra.mrb[0].mxu0 %v6827
        %v6829 = vpop.f32.mrb[0].mxu0
        %v6830 = vadd.f32 %v6731, %v6829
        %v6831 = vpop.f32.mrb[0].mxu0
        %6832 = vmatprep.mubr.f32.mxu0 0.0
        %v6833 = vand.u32 %v6736, 4294901760
        %v6834 = vsub.f32 %v6736, %v6833
        %v6835 = vand.u32 %v6834, 4294901760
        %v6836 = vsub.f32 %v6834, %v6835
        %v6837 = vand.u32 %v6836, 4294901760
        %6838 = vmatmul.mubr.f32.gmra.mrb[0].mxu0 %v6837
        %v6839 = vpop.f32.mrb[0].mxu0
        %v6840 = vadd.f32 %v6731, %v6839
        %v6841 = vpop.f32.mrb[0].mxu0
        %6842 = vmatprep.mubr.f32.mxu0 0.0
        %v6843 = vand.u32 %v6739, 4294901760
        %v6844 = vsub.f32 %v6739, %v6843
        %v6845 = vand.u32 %v6844, 4294901760
        %v6846 = vsub.f32 %v6844, %v6845
        %v6847 = vand.u32 %v6846, 4294901760
        %6848 = vmatmul.mubr.f32.gmra.mrb[0].mxu0 %v6847
        %v6849 = vpop.f32.mrb[0].mxu0
        %v6850 = vadd.f32 %v6731, %v6849
        %v6851 = vpop.f32.mrb[0].mxu0
        %6852 = vmatprep.mubr.f32.mxu0 0.0
        %v6853 = vand.u32 %v6742, 4294901760
        %v6854 = vsub.f32 %v6742, %v6853
        %v6855 = vand.u32 %v6854, 4294901760
        %v6856 = vsub.f32 %v6854, %v6855
        %v6857 = vand.u32 %v6856, 4294901760
        %6858 = vmatmul.mubr.f32.gmra.mrb[0].mxu0 %v6857
        %v6859 = vpop.f32.mrb[0].mxu0
        %v6860 = vadd.f32 %v6731, %v6859
        %v6861 = vpop.f32.mrb[0].mxu0
        %6862 = vmatprep.mubr.f32.mxu0 0.0
        %v6863 = vand.u32 %v6745, 4294901760
        %v6864 = vsub.f32 %v6745, %v6863
        %v6865 = vand.u32 %v6864, 4294901760
        %v6866 = vsub.f32 %v6864, %v6865
        %v6867 = vand.u32 %v6866, 4294901760
        %6868 = vmatmul.mubr.f32.gmra.mrb[0].mxu0 %v6867
        %v6869 = vpop.f32.mrb[0].mxu0
        %v6870 = vadd.f32 %v6731, %v6869
        %v6871 = vpop.f32.mrb[0].mxu0
        %6872 = vmatprep.mubr.f32.mxu0 0.0
        %v6873 = vand.u32 %v6748, 4294901760
        %v6874 = vsub.f32 %v6748, %v6873
        %v6875 = vand.u32 %v6874, 4294901760
        %v6876 = vsub.f32 %v6874, %v6875
        %v6877 = vand.u32 %v6876, 4294901760
        %6878 = vmatmul.mubr.f32.gmra.mrb[0].mxu0 %v6877
        %v6879 = vpop.f32.mrb[0].mxu0
        %v6880 = vadd.f32 %v6731, %v6879
        %v6881 = vpop.f32.mrb[0].mxu0
        %6882 = vmatprep.mubr.f32.mxu0 0.0
        %v6883 = vand.u32 %v6751, 4294901760
        %v6884 = vsub.f32 %v6751, %v6883
        %v6885 = vand.u32 %v6884, 4294901760
        %v6886 = vsub.f32 %v6884, %v6885
        %v6887 = vand.u32 %v6886, 4294901760
        %6888 = vmatmul.mubr.f32.gmra.mrb[0].mxu0 %v6887
        %v6889 = vpop.f32.mrb[0].mxu0
        %v6890 = vadd.f32 %v6731, %v6889
        %v6891 = vpop.f32.mrb[0].mxu0
        %6892 = vmatprep.mubr.f32.mxu0 0.0
        %v6893 = vand.u32 %v6754, 4294901760
        %v6894 = vsub.f32 %v6754, %v6893
        %v6895 = vand.u32 %v6894, 4294901760
        %v6896 = vsub.f32 %v6894, %v6895
        %v6897 = vand.u32 %v6896, 4294901760
        %6898 = vmatmul.mubr.f32.gmra.mrb[0].mxu0 %v6897
        %v6899 = vpop.f32.mrb[0].mxu0
        %v6900 = vadd.f32 %v6731, %v6899
        %v6901 = vpop.f32.mrb[0].mxu0
        %6902 = vdwg.mxu0
        %6903 = vmatprep.subr.mxu0 0.0
        %v6904 = vand.u32 %v6726, 4294901760
        %v6905 = vsub.f32 %v6726, %v6904
        %v6906 = vand.u32 %v6905, 4294901760
        %v6907 = vsub.f32 %v6905, %v6906
        %v6908 = vand.u32 %v6907, 4294901760
        %6909 = vmatpush1.msra.mxu0 %v6908
        %6910 = vmatprep.subr.mxu0 0.0
        %v6911 = vand.u32 %v6727, 4294901760
        %v6912 = vsub.f32 %v6727, %v6911
        %v6913 = vand.u32 %v6912, 4294901760
        %v6914 = vsub.f32 %v6912, %v6913
        %v6915 = vand.u32 %v6914, 4294901760
        %6916 = vmatpush1.msra.mxu0 %v6915
        %6917 = vmatprep.subr.mxu0 0.0
        %6918 = vmatpush1.msra.mxu0 0.0
        %6919 = vmatprep.subr.mxu0 0.0
        %6920 = vmatpush1.msra.mxu0 0.0
        %6921 = vmatprep.subr.mxu0 0.0
        %6922 = vmatpush1.msra.mxu0 0.0
        %6923 = vmatprep.subr.mxu0 0.0
        %6924 = vmatpush1.msra.mxu0 0.0
        %6925 = vmatprep.subr.mxu0 0.0
        %6926 = vmatpush1.msra.mxu0 0.0
        %6927 = vmatprep.subr.mxu0 0.0
        %6928 = vmatpush1.msra.mxu0 0.0
        %6929 = vmatprep.subr.mxu0 0.0
        %6930 = vmatpush1.msra.mxu0 0.0
        %6931 = vmatprep.subr.mxu0 0.0
        %6932 = vmatpush1.msra.mxu0 0.0
        %6933 = vmatprep.subr.mxu0 0.0
        %6934 = vmatpush1.msra.mxu0 0.0
        %6935 = vmatprep.subr.mxu0 0.0
        %6936 = vmatpush1.msra.mxu0 0.0
        %6937 = vmatprep.subr.mxu0 0.0
        %6938 = vmatpush1.msra.mxu0 0.0
        %6939 = vmatprep.subr.mxu0 0.0
        %6940 = vmatpush1.msra.mxu0 0.0
        %6941 = vmatprep.subr.mxu0 0.0
        %6942 = vmatpush1.msra.mxu0 0.0
        %6943 = vmatprep.subr.mxu0 0.0
        %6944 = vmatpush1.msra.mxu0 0.0
        %6945 = vmatprep.subr.mxu0 0.0
        %6946 = vmatpush1.msra.mxu0 0.0
        %6947 = vmatprep.subr.mxu0 0.0
        %6948 = vmatpush1.msra.mxu0 0.0
        %6949 = vmatprep.subr.mxu0 0.0
        %6950 = vmatpush1.msra.mxu0 0.0
        %6951 = vmatprep.subr.mxu0 0.0
        %6952 = vmatpush1.msra.mxu0 0.0
        %6953 = vmatprep.subr.mxu0 0.0
        %6954 = vmatpush1.msra.mxu0 0.0
        %6955 = vmatprep.subr.mxu0 0.0
        %6956 = vmatpush1.msra.mxu0 0.0
        %6957 = vmatprep.subr.mxu0 0.0
        %6958 = vmatpush1.msra.mxu0 0.0
        %6959 = vmatprep.subr.mxu0 0.0
        %6960 = vmatpush1.msra.mxu0 0.0
        %6961 = vmatprep.subr.mxu0 0.0
        %6962 = vmatpush1.msra.mxu0 0.0
        %6963 = vmatprep.subr.mxu0 0.0
        %6964 = vmatpush1.msra.mxu0 0.0
        %6965 = vmatprep.subr.mxu0 0.0
        %6966 = vmatpush1.msra.mxu0 0.0
        %6967 = vmatprep.subr.mxu0 0.0
        %6968 = vmatpush1.msra.mxu0 0.0
        %6969 = vmatprep.subr.mxu0 0.0
        %6970 = vmatpush1.msra.mxu0 0.0
        %6971 = vmatprep.subr.mxu0 0.0
        %6972 = vmatpush1.msra.mxu0 0.0
        %6973 = vmatprep.subr.mxu0 0.0
        %6974 = vmatpush1.msra.mxu0 0.0
        %6975 = vmatprep.subr.mxu0 0.0
        %6976 = vmatpush1.msra.mxu0 0.0
        %6977 = vmatprep.mubr.f32.mxu0 0.0
        %v6978 = vand.u32 %v6733, 4294901760
        %6979 = vmatmul.mubr.f32.gmra.mrb[0].mxu0 %v6978
        %v6980 = vpop.f32.mrb[0].mxu0
        %v6981 = vadd.f32 %v6830, %v6980
        %v6982 = vpop.f32.mrb[0].mxu0
        %6983 = vmatprep.mubr.f32.mxu0 0.0
        %v6984 = vand.u32 %v6736, 4294901760
        %6985 = vmatmul.mubr.f32.gmra.mrb[0].mxu0 %v6984
        %v6986 = vpop.f32.mrb[0].mxu0
        %v6987 = vadd.f32 %v6840, %v6986
        %v6988 = vpop.f32.mrb[0].mxu0
        %6989 = vmatprep.mubr.f32.mxu0 0.0
        %v6990 = vand.u32 %v6739, 4294901760
        %6991 = vmatmul.mubr.f32.gmra.mrb[0].mxu0 %v6990
        %v6992 = vpop.f32.mrb[0].mxu0
        %v6993 = vadd.f32 %v6850, %v6992
        %v6994 = vpop.f32.mrb[0].mxu0
        %6995 = vmatprep.mubr.f32.mxu0 0.0
        %v6996 = vand.u32 %v6742, 4294901760
        %6997 = vmatmul.mubr.f32.gmra.mrb[0].mxu0 %v6996
        %v6998 = vpop.f32.mrb[0].mxu0
        %v6999 = vadd.f32 %v6860, %v6998
        %v7000 = vpop.f32.mrb[0].mxu0
        %7001 = vmatprep.mubr.f32.mxu0 0.0
        %v7002 = vand.u32 %v6745, 4294901760
        %7003 = vmatmul.mubr.f32.gmra.mrb[0].mxu0 %v7002
        %v7004 = vpop.f32.mrb[0].mxu0
        %v7005 = vadd.f32 %v6870, %v7004
        %v7006 = vpop.f32.mrb[0].mxu0
        %7007 = vmatprep.mubr.f32.mxu0 0.0
        %v7008 = vand.u32 %v6748, 4294901760
        %7009 = vmatmul.mubr.f32.gmra.mrb[0].mxu0 %v7008
        %v7010 = vpop.f32.mrb[0].mxu0
        %v7011 = vadd.f32 %v6880, %v7010
        %v7012 = vpop.f32.mrb[0].mxu0
        %7013 = vmatprep.mubr.f32.mxu0 0.0
        %v7014 = vand.u32 %v6751, 4294901760
        %7015 = vmatmul.mubr.f32.gmra.mrb[0].mxu0 %v7014
        %v7016 = vpop.f32.mrb[0].mxu0
        %v7017 = vadd.f32 %v6890, %v7016
        %v7018 = vpop.f32.mrb[0].mxu0
        %7019 = vmatprep.mubr.f32.mxu0 0.0
        %v7020 = vand.u32 %v6754, 4294901760
        %7021 = vmatmul.mubr.f32.gmra.mrb[0].mxu0 %v7020
        %v7022 = vpop.f32.mrb[0].mxu0
        %v7023 = vadd.f32 %v6900, %v7022
        %v7024 = vpop.f32.mrb[0].mxu0
        %7025 = vdwg.mxu0
        %7026 = vmatprep.subr.mxu0 0.0
        %v7027 = vand.u32 %v6726, 4294901760
        %v7028 = vsub.f32 %v6726, %v7027
        %7029 = vmatpush1.msra.mxu0 %v7028
        %7030 = vmatprep.subr.mxu0 0.0
        %v7031 = vand.u32 %v6727, 4294901760
        %v7032 = vsub.f32 %v6727, %v7031
        %7033 = vmatpush1.msra.mxu0 %v7032
        %7034 = vmatprep.subr.mxu0 0.0
        %7035 = vmatpush1.msra.mxu0 0.0
        %7036 = vmatprep.subr.mxu0 0.0
        %7037 = vmatpush1.msra.mxu0 0.0
        %7038 = vmatprep.subr.mxu0 0.0
        %7039 = vmatpush1.msra.mxu0 0.0
        %7040 = vmatprep.subr.mxu0 0.0
        %7041 = vmatpush1.msra.mxu0 0.0
        %7042 = vmatprep.subr.mxu0 0.0
        %7043 = vmatpush1.msra.mxu0 0.0
        %7044 = vmatprep.subr.mxu0 0.0
        %7045 = vmatpush1.msra.mxu0 0.0
        %7046 = vmatprep.subr.mxu0 0.0
        %7047 = vmatpush1.msra.mxu0 0.0
        %7048 = vmatprep.subr.mxu0 0.0
        %7049 = vmatpush1.msra.mxu0 0.0
        %7050 = vmatprep.subr.mxu0 0.0
        %7051 = vmatpush1.msra.mxu0 0.0
        %7052 = vmatprep.subr.mxu0 0.0
        %7053 = vmatpush1.msra.mxu0 0.0
        %7054 = vmatprep.subr.mxu0 0.0
        %7055 = vmatpush1.msra.mxu0 0.0
        %7056 = vmatprep.subr.mxu0 0.0
        %7057 = vmatpush1.msra.mxu0 0.0
        %7058 = vmatprep.subr.mxu0 0.0
        %7059 = vmatpush1.msra.mxu0 0.0
        %7060 = vmatprep.subr.mxu0 0.0
        %7061 = vmatpush1.msra.mxu0 0.0
        %7062 = vmatprep.subr.mxu0 0.0
        %7063 = vmatpush1.msra.mxu0 0.0
        %7064 = vmatprep.subr.mxu0 0.0
        %7065 = vmatpush1.msra.mxu0 0.0
        %7066 = vmatprep.subr.mxu0 0.0
        %7067 = vmatpush1.msra.mxu0 0.0
        %7068 = vmatprep.subr.mxu0 0.0
        %7069 = vmatpush1.msra.mxu0 0.0
        %7070 = vmatprep.subr.mxu0 0.0
        %7071 = vmatpush1.msra.mxu0 0.0
        %7072 = vmatprep.subr.mxu0 0.0
        %7073 = vmatpush1.msra.mxu0 0.0
        %7074 = vmatprep.subr.mxu0 0.0
        %7075 = vmatpush1.msra.mxu0 0.0
        %7076 = vmatprep.subr.mxu0 0.0
        %7077 = vmatpush1.msra.mxu0 0.0
        %7078 = vmatprep.subr.mxu0 0.0
        %7079 = vmatpush1.msra.mxu0 0.0
        %7080 = vmatprep.subr.mxu0 0.0
        %7081 = vmatpush1.msra.mxu0 0.0
        %7082 = vmatprep.subr.mxu0 0.0
        %7083 = vmatpush1.msra.mxu0 0.0
        %7084 = vmatprep.subr.mxu0 0.0
        %7085 = vmatpush1.msra.mxu0 0.0
        %7086 = vmatprep.subr.mxu0 0.0
        %7087 = vmatpush1.msra.mxu0 0.0
        %7088 = vmatprep.subr.mxu0 0.0
        %7089 = vmatpush1.msra.mxu0 0.0
        %7090 = vmatprep.subr.mxu0 0.0
        %7091 = vmatpush1.msra.mxu0 0.0
        %7092 = vmatprep.subr.mxu0 0.0
        %7093 = vmatpush1.msra.mxu0 0.0
        %7094 = vmatprep.mubr.f32.mxu0 0.0
        %v7095 = vand.u32 %v6733, 4294901760
        %v7096 = vsub.f32 %v6733, %v7095
        %7097 = vmatmul.mubr.f32.gmra.mrb[0].mxu0 %v7096
        %v7098 = vpop.f32.mrb[0].mxu0
        %v7099 = vadd.f32 %v6981, %v7098
        %v7100 = vpop.f32.mrb[0].mxu0
        %7101 = vmatprep.mubr.f32.mxu0 0.0
        %v7102 = vand.u32 %v6736, 4294901760
        %v7103 = vsub.f32 %v6736, %v7102
        %7104 = vmatmul.mubr.f32.gmra.mrb[0].mxu0 %v7103
        %v7105 = vpop.f32.mrb[0].mxu0
        %v7106 = vadd.f32 %v6987, %v7105
        %v7107 = vpop.f32.mrb[0].mxu0
        %7108 = vmatprep.mubr.f32.mxu0 0.0
        %v7109 = vand.u32 %v6739, 4294901760
        %v7110 = vsub.f32 %v6739, %v7109
        %7111 = vmatmul.mubr.f32.gmra.mrb[0].mxu0 %v7110
        %v7112 = vpop.f32.mrb[0].mxu0
        %v7113 = vadd.f32 %v6993, %v7112
        %v7114 = vpop.f32.mrb[0].mxu0
        %7115 = vmatprep.mubr.f32.mxu0 0.0
        %v7116 = vand.u32 %v6742, 4294901760
        %v7117 = vsub.f32 %v6742, %v7116
        %7118 = vmatmul.mubr.f32.gmra.mrb[0].mxu0 %v7117
        %v7119 = vpop.f32.mrb[0].mxu0
        %v7120 = vadd.f32 %v6999, %v7119
        %v7121 = vpop.f32.mrb[0].mxu0
        %7122 = vmatprep.mubr.f32.mxu0 0.0
        %v7123 = vand.u32 %v6745, 4294901760
        %v7124 = vsub.f32 %v6745, %v7123
        %7125 = vmatmul.mubr.f32.gmra.mrb[0].mxu0 %v7124
        %v7126 = vpop.f32.mrb[0].mxu0
        %v7127 = vadd.f32 %v7005, %v7126
        %v7128 = vpop.f32.mrb[0].mxu0
        %7129 = vmatprep.mubr.f32.mxu0 0.0
        %v7130 = vand.u32 %v6748, 4294901760
        %v7131 = vsub.f32 %v6748, %v7130
        %7132 = vmatmul.mubr.f32.gmra.mrb[0].mxu0 %v7131
        %v7133 = vpop.f32.mrb[0].mxu0
        %v7134 = vadd.f32 %v7011, %v7133
        %v7135 = vpop.f32.mrb[0].mxu0
        %7136 = vmatprep.mubr.f32.mxu0 0.0
        %v7137 = vand.u32 %v6751, 4294901760
        %v7138 = vsub.f32 %v6751, %v7137
        %7139 = vmatmul.mubr.f32.gmra.mrb[0].mxu0 %v7138
        %v7140 = vpop.f32.mrb[0].mxu0
        %v7141 = vadd.f32 %v7017, %v7140
        %v7142 = vpop.f32.mrb[0].mxu0
        %7143 = vmatprep.mubr.f32.mxu0 0.0
        %v7144 = vand.u32 %v6754, 4294901760
        %v7145 = vsub.f32 %v6754, %v7144
        %7146 = vmatmul.mubr.f32.gmra.mrb[0].mxu0 %v7145
        %v7147 = vpop.f32.mrb[0].mxu0
        %v7148 = vadd.f32 %v7023, %v7147
        %v7149 = vpop.f32.mrb[0].mxu0
        %7150 = vdwg.mxu0
        %7151 = vmatprep.subr.mxu0 0.0
        %v7152 = vand.u32 %v6726, 4294901760
        %7153 = vmatpush1.msra.mxu0 %v7152
        %7154 = vmatprep.subr.mxu0 0.0
        %v7155 = vand.u32 %v6727, 4294901760
        %7156 = vmatpush1.msra.mxu0 %v7155
        %7157 = vmatprep.subr.mxu0 0.0
        %7158 = vmatpush1.msra.mxu0 0.0
        %7159 = vmatprep.subr.mxu0 0.0
        %7160 = vmatpush1.msra.mxu0 0.0
        %7161 = vmatprep.subr.mxu0 0.0
        %7162 = vmatpush1.msra.mxu0 0.0
        %7163 = vmatprep.subr.mxu0 0.0
        %7164 = vmatpush1.msra.mxu0 0.0
        %7165 = vmatprep.subr.mxu0 0.0
        %7166 = vmatpush1.msra.mxu0 0.0
        %7167 = vmatprep.subr.mxu0 0.0
        %7168 = vmatpush1.msra.mxu0 0.0
        %7169 = vmatprep.subr.mxu0 0.0
        %7170 = vmatpush1.msra.mxu0 0.0
        %7171 = vmatprep.subr.mxu0 0.0
        %7172 = vmatpush1.msra.mxu0 0.0
        %7173 = vmatprep.subr.mxu0 0.0
        %7174 = vmatpush1.msra.mxu0 0.0
        %7175 = vmatprep.subr.mxu0 0.0
        %7176 = vmatpush1.msra.mxu0 0.0
        %7177 = vmatprep.subr.mxu0 0.0
        %7178 = vmatpush1.msra.mxu0 0.0
        %7179 = vmatprep.subr.mxu0 0.0
        %7180 = vmatpush1.msra.mxu0 0.0
        %7181 = vmatprep.subr.mxu0 0.0
        %7182 = vmatpush1.msra.mxu0 0.0
        %7183 = vmatprep.subr.mxu0 0.0
        %7184 = vmatpush1.msra.mxu0 0.0
        %7185 = vmatprep.subr.mxu0 0.0
        %7186 = vmatpush1.msra.mxu0 0.0
        %7187 = vmatprep.subr.mxu0 0.0
        %7188 = vmatpush1.msra.mxu0 0.0
        %7189 = vmatprep.subr.mxu0 0.0
        %7190 = vmatpush1.msra.mxu0 0.0
        %7191 = vmatprep.subr.mxu0 0.0
        %7192 = vmatpush1.msra.mxu0 0.0
        %7193 = vmatprep.subr.mxu0 0.0
        %7194 = vmatpush1.msra.mxu0 0.0
        %7195 = vmatprep.subr.mxu0 0.0
        %7196 = vmatpush1.msra.mxu0 0.0
        %7197 = vmatprep.subr.mxu0 0.0
        %7198 = vmatpush1.msra.mxu0 0.0
        %7199 = vmatprep.subr.mxu0 0.0
        %7200 = vmatpush1.msra.mxu0 0.0
        %7201 = vmatprep.subr.mxu0 0.0
        %7202 = vmatpush1.msra.mxu0 0.0
        %7203 = vmatprep.subr.mxu0 0.0
        %7204 = vmatpush1.msra.mxu0 0.0
        %7205 = vmatprep.subr.mxu0 0.0
        %7206 = vmatpush1.msra.mxu0 0.0
        %7207 = vmatprep.subr.mxu0 0.0
        %7208 = vmatpush1.msra.mxu0 0.0
        %7209 = vmatprep.subr.mxu0 0.0
        %7210 = vmatpush1.msra.mxu0 0.0
        %7211 = vmatprep.subr.mxu0 0.0
        %7212 = vmatpush1.msra.mxu0 0.0
        %7213 = vmatprep.subr.mxu0 0.0
        %7214 = vmatpush1.msra.mxu0 0.0
        %7215 = vmatprep.subr.mxu0 0.0
        %7216 = vmatpush1.msra.mxu0 0.0
        %7217 = vmatprep.mubr.f32.mxu0 0.0
        %v7218 = vand.u32 %v6733, 4294901760
        %v7219 = vsub.f32 %v6733, %v7218
        %v7220 = vand.u32 %v7219, 4294901760
        %7221 = vmatmul.mubr.f32.gmra.mrb[0].mxu0 %v7220
        %v7222 = vpop.f32.mrb[0].mxu0
        %v7223 = vadd.f32 %v7099, %v7222
        %v7224 = vpop.f32.mrb[0].mxu0
        %7225 = vmatprep.mubr.f32.mxu0 0.0
        %v7226 = vand.u32 %v6736, 4294901760
        %v7227 = vsub.f32 %v6736, %v7226
        %v7228 = vand.u32 %v7227, 4294901760
        %7229 = vmatmul.mubr.f32.gmra.mrb[0].mxu0 %v7228
        %v7230 = vpop.f32.mrb[0].mxu0
        %v7231 = vadd.f32 %v7106, %v7230
        %v7232 = vpop.f32.mrb[0].mxu0
        %7233 = vmatprep.mubr.f32.mxu0 0.0
        %v7234 = vand.u32 %v6739, 4294901760
        %v7235 = vsub.f32 %v6739, %v7234
        %v7236 = vand.u32 %v7235, 4294901760
        %7237 = vmatmul.mubr.f32.gmra.mrb[0].mxu0 %v7236
        %v7238 = vpop.f32.mrb[0].mxu0
        %v7239 = vadd.f32 %v7113, %v7238
        %v7240 = vpop.f32.mrb[0].mxu0
        %7241 = vmatprep.mubr.f32.mxu0 0.0
        %v7242 = vand.u32 %v6742, 4294901760
        %v7243 = vsub.f32 %v6742, %v7242
        %v7244 = vand.u32 %v7243, 4294901760
        %7245 = vmatmul.mubr.f32.gmra.mrb[0].mxu0 %v7244
        %v7246 = vpop.f32.mrb[0].mxu0
        %v7247 = vadd.f32 %v7120, %v7246
        %v7248 = vpop.f32.mrb[0].mxu0
        %7249 = vmatprep.mubr.f32.mxu0 0.0
        %v7250 = vand.u32 %v6745, 4294901760
        %v7251 = vsub.f32 %v6745, %v7250
        %v7252 = vand.u32 %v7251, 4294901760
        %7253 = vmatmul.mubr.f32.gmra.mrb[0].mxu0 %v7252
        %v7254 = vpop.f32.mrb[0].mxu0
        %v7255 = vadd.f32 %v7127, %v7254
        %v7256 = vpop.f32.mrb[0].mxu0
        %7257 = vmatprep.mubr.f32.mxu0 0.0
        %v7258 = vand.u32 %v6748, 4294901760
        %v7259 = vsub.f32 %v6748, %v7258
        %v7260 = vand.u32 %v7259, 4294901760
        %7261 = vmatmul.mubr.f32.gmra.mrb[0].mxu0 %v7260
        %v7262 = vpop.f32.mrb[0].mxu0
        %v7263 = vadd.f32 %v7134, %v7262
        %v7264 = vpop.f32.mrb[0].mxu0
        %7265 = vmatprep.mubr.f32.mxu0 0.0
        %v7266 = vand.u32 %v6751, 4294901760
        %v7267 = vsub.f32 %v6751, %v7266
        %v7268 = vand.u32 %v7267, 4294901760
        %7269 = vmatmul.mubr.f32.gmra.mrb[0].mxu0 %v7268
        %v7270 = vpop.f32.mrb[0].mxu0
        %v7271 = vadd.f32 %v7141, %v7270
        %v7272 = vpop.f32.mrb[0].mxu0
        %7273 = vmatprep.mubr.f32.mxu0 0.0
        %v7274 = vand.u32 %v6754, 4294901760
        %v7275 = vsub.f32 %v6754, %v7274
        %v7276 = vand.u32 %v7275, 4294901760
        %7277 = vmatmul.mubr.f32.gmra.mrb[0].mxu0 %v7276
        %v7278 = vpop.f32.mrb[0].mxu0
        %v7279 = vadd.f32 %v7148, %v7278
        %v7280 = vpop.f32.mrb[0].mxu0
        %7281 = vdwg.mxu0
        %7282 = vmatprep.subr.mxu0 0.0
        %v7283 = vand.u32 %v6726, 4294901760
        %v7284 = vsub.f32 %v6726, %v7283
        %v7285 = vand.u32 %v7284, 4294901760
        %7286 = vmatpush1.msra.mxu0 %v7285
        %7287 = vmatprep.subr.mxu0 0.0
        %v7288 = vand.u32 %v6727, 4294901760
        %v7289 = vsub.f32 %v6727, %v7288
        %v7290 = vand.u32 %v7289, 4294901760
        %7291 = vmatpush1.msra.mxu0 %v7290
        %7292 = vmatprep.subr.mxu0 0.0
        %7293 = vmatpush1.msra.mxu0 0.0
        %7294 = vmatprep.subr.mxu0 0.0
        %7295 = vmatpush1.msra.mxu0 0.0
        %7296 = vmatprep.subr.mxu0 0.0
        %7297 = vmatpush1.msra.mxu0 0.0
        %7298 = vmatprep.subr.mxu0 0.0
        %7299 = vmatpush1.msra.mxu0 0.0
        %7300 = vmatprep.subr.mxu0 0.0
        %7301 = vmatpush1.msra.mxu0 0.0
        %7302 = vmatprep.subr.mxu0 0.0
        %7303 = vmatpush1.msra.mxu0 0.0
        %7304 = vmatprep.subr.mxu0 0.0
        %7305 = vmatpush1.msra.mxu0 0.0
        %7306 = vmatprep.subr.mxu0 0.0
        %7307 = vmatpush1.msra.mxu0 0.0
        %7308 = vmatprep.subr.mxu0 0.0
        %7309 = vmatpush1.msra.mxu0 0.0
        %7310 = vmatprep.subr.mxu0 0.0
        %7311 = vmatpush1.msra.mxu0 0.0
        %7312 = vmatprep.subr.mxu0 0.0
        %7313 = vmatpush1.msra.mxu0 0.0
        %7314 = vmatprep.subr.mxu0 0.0
        %7315 = vmatpush1.msra.mxu0 0.0
        %7316 = vmatprep.subr.mxu0 0.0
        %7317 = vmatpush1.msra.mxu0 0.0
        %7318 = vmatprep.subr.mxu0 0.0
        %7319 = vmatpush1.msra.mxu0 0.0
        %7320 = vmatprep.subr.mxu0 0.0
        %7321 = vmatpush1.msra.mxu0 0.0
        %7322 = vmatprep.subr.mxu0 0.0
        %7323 = vmatpush1.msra.mxu0 0.0
        %7324 = vmatprep.subr.mxu0 0.0
        %7325 = vmatpush1.msra.mxu0 0.0
        %7326 = vmatprep.subr.mxu0 0.0
        %7327 = vmatpush1.msra.mxu0 0.0
        %7328 = vmatprep.subr.mxu0 0.0
        %7329 = vmatpush1.msra.mxu0 0.0
        %7330 = vmatprep.subr.mxu0 0.0
        %7331 = vmatpush1.msra.mxu0 0.0
        %7332 = vmatprep.subr.mxu0 0.0
        %7333 = vmatpush1.msra.mxu0 0.0
        %7334 = vmatprep.subr.mxu0 0.0
        %7335 = vmatpush1.msra.mxu0 0.0
        %7336 = vmatprep.subr.mxu0 0.0
        %7337 = vmatpush1.msra.mxu0 0.0
        %7338 = vmatprep.subr.mxu0 0.0
        %7339 = vmatpush1.msra.mxu0 0.0
        %7340 = vmatprep.subr.mxu0 0.0
        %7341 = vmatpush1.msra.mxu0 0.0
        %7342 = vmatprep.subr.mxu0 0.0
        %7343 = vmatpush1.msra.mxu0 0.0
        %7344 = vmatprep.subr.mxu0 0.0
        %7345 = vmatpush1.msra.mxu0 0.0
        %7346 = vmatprep.subr.mxu0 0.0
        %7347 = vmatpush1.msra.mxu0 0.0
        %7348 = vmatprep.subr.mxu0 0.0
        %7349 = vmatpush1.msra.mxu0 0.0
        %7350 = vmatprep.subr.mxu0 0.0
        %7351 = vmatpush1.msra.mxu0 0.0
        %7352 = vmatprep.mubr.f32.mxu0 0.0
        %v7353 = vand.u32 %v6733, 4294901760
        %7354 = vmatmul.mubr.f32.gmra.mrb[0].mxu0 %v7353
        %v7355 = vpop.f32.mrb[0].mxu0
        %v7356 = vadd.f32 %v7223, %v7355
        %v7357 = vpop.f32.mrb[0].mxu0
        %7358 = vmatprep.mubr.f32.mxu0 0.0
        %v7359 = vand.u32 %v6736, 4294901760
        %7360 = vmatmul.mubr.f32.gmra.mrb[0].mxu0 %v7359
        %v7361 = vpop.f32.mrb[0].mxu0
        %v7362 = vadd.f32 %v7231, %v7361
        %v7363 = vpop.f32.mrb[0].mxu0
        %7364 = vmatprep.mubr.f32.mxu0 0.0
        %v7365 = vand.u32 %v6739, 4294901760
        %7366 = vmatmul.mubr.f32.gmra.mrb[0].mxu0 %v7365
        %v7367 = vpop.f32.mrb[0].mxu0
        %v7368 = vadd.f32 %v7239, %v7367
        %v7369 = vpop.f32.mrb[0].mxu0
        %7370 = vmatprep.mubr.f32.mxu0 0.0
        %v7371 = vand.u32 %v6742, 4294901760
        %7372 = vmatmul.mubr.f32.gmra.mrb[0].mxu0 %v7371
        %v7373 = vpop.f32.mrb[0].mxu0
        %v7374 = vadd.f32 %v7247, %v7373
        %v7375 = vpop.f32.mrb[0].mxu0
        %7376 = vmatprep.mubr.f32.mxu0 0.0
        %v7377 = vand.u32 %v6745, 4294901760
        %7378 = vmatmul.mubr.f32.gmra.mrb[0].mxu0 %v7377
        %v7379 = vpop.f32.mrb[0].mxu0
        %v7380 = vadd.f32 %v7255, %v7379
        %v7381 = vpop.f32.mrb[0].mxu0
        %7382 = vmatprep.mubr.f32.mxu0 0.0
        %v7383 = vand.u32 %v6748, 4294901760
        %7384 = vmatmul.mubr.f32.gmra.mrb[0].mxu0 %v7383
        %v7385 = vpop.f32.mrb[0].mxu0
        %v7386 = vadd.f32 %v7263, %v7385
        %v7387 = vpop.f32.mrb[0].mxu0
        %7388 = vmatprep.mubr.f32.mxu0 0.0
        %v7389 = vand.u32 %v6751, 4294901760
        %7390 = vmatmul.mubr.f32.gmra.mrb[0].mxu0 %v7389
        %v7391 = vpop.f32.mrb[0].mxu0
        %v7392 = vadd.f32 %v7271, %v7391
        %v7393 = vpop.f32.mrb[0].mxu0
        %7394 = vmatprep.mubr.f32.mxu0 0.0
        %v7395 = vand.u32 %v6754, 4294901760
        %7396 = vmatmul.mubr.f32.gmra.mrb[0].mxu0 %v7395
        %v7397 = vpop.f32.mrb[0].mxu0
        %v7398 = vadd.f32 %v7279, %v7397
        %v7399 = vpop.f32.mrb[0].mxu0
        %7400 = vdwg.mxu0
        %7401 = vmatprep.subr.mxu0 0.0
        %v7402 = vand.u32 %v6726, 4294901760
        %7403 = vmatpush1.msra.mxu0 %v7402
        %7404 = vmatprep.subr.mxu0 0.0
        %v7405 = vand.u32 %v6727, 4294901760
        %7406 = vmatpush1.msra.mxu0 %v7405
        %7407 = vmatprep.subr.mxu0 0.0
        %7408 = vmatpush1.msra.mxu0 0.0
        %7409 = vmatprep.subr.mxu0 0.0
        %7410 = vmatpush1.msra.mxu0 0.0
        %7411 = vmatprep.subr.mxu0 0.0
        %7412 = vmatpush1.msra.mxu0 0.0
        %7413 = vmatprep.subr.mxu0 0.0
        %7414 = vmatpush1.msra.mxu0 0.0
        %7415 = vmatprep.subr.mxu0 0.0
        %7416 = vmatpush1.msra.mxu0 0.0
        %7417 = vmatprep.subr.mxu0 0.0
        %7418 = vmatpush1.msra.mxu0 0.0
        %7419 = vmatprep.subr.mxu0 0.0
        %7420 = vmatpush1.msra.mxu0 0.0
        %7421 = vmatprep.subr.mxu0 0.0
        %7422 = vmatpush1.msra.mxu0 0.0
        %7423 = vmatprep.subr.mxu0 0.0
        %7424 = vmatpush1.msra.mxu0 0.0
        %7425 = vmatprep.subr.mxu0 0.0
        %7426 = vmatpush1.msra.mxu0 0.0
        %7427 = vmatprep.subr.mxu0 0.0
        %7428 = vmatpush1.msra.mxu0 0.0
        %7429 = vmatprep.subr.mxu0 0.0
        %7430 = vmatpush1.msra.mxu0 0.0
        %7431 = vmatprep.subr.mxu0 0.0
        %7432 = vmatpush1.msra.mxu0 0.0
        %7433 = vmatprep.subr.mxu0 0.0
        %7434 = vmatpush1.msra.mxu0 0.0
        %7435 = vmatprep.subr.mxu0 0.0
        %7436 = vmatpush1.msra.mxu0 0.0
        %7437 = vmatprep.subr.mxu0 0.0
        %7438 = vmatpush1.msra.mxu0 0.0
        %7439 = vmatprep.subr.mxu0 0.0
        %7440 = vmatpush1.msra.mxu0 0.0
        %7441 = vmatprep.subr.mxu0 0.0
        %7442 = vmatpush1.msra.mxu0 0.0
        %7443 = vmatprep.subr.mxu0 0.0
        %7444 = vmatpush1.msra.mxu0 0.0
        %7445 = vmatprep.subr.mxu0 0.0
        %7446 = vmatpush1.msra.mxu0 0.0
        %7447 = vmatprep.subr.mxu0 0.0
        %7448 = vmatpush1.msra.mxu0 0.0
        %7449 = vmatprep.subr.mxu0 0.0
        %7450 = vmatpush1.msra.mxu0 0.0
        %7451 = vmatprep.subr.mxu0 0.0
        %7452 = vmatpush1.msra.mxu0 0.0
        %7453 = vmatprep.subr.mxu0 0.0
        %7454 = vmatpush1.msra.mxu0 0.0
        %7455 = vmatprep.subr.mxu0 0.0
        %7456 = vmatpush1.msra.mxu0 0.0
        %7457 = vmatprep.subr.mxu0 0.0
        %7458 = vmatpush1.msra.mxu0 0.0
        %7459 = vmatprep.subr.mxu0 0.0
        %7460 = vmatpush1.msra.mxu0 0.0
        %7461 = vmatprep.subr.mxu0 0.0
        %7462 = vmatpush1.msra.mxu0 0.0
        %7463 = vmatprep.subr.mxu0 0.0
        %7464 = vmatpush1.msra.mxu0 0.0
        %7465 = vmatprep.subr.mxu0 0.0
        %7466 = vmatpush1.msra.mxu0 0.0
        %7467 = vmatprep.mubr.f32.mxu0 0.0
        %v7468 = vand.u32 %v6733, 4294901760
        %7469 = vmatmul.mubr.f32.gmra.mrb[0].mxu0 %v7468
        %v7470 = vpop.f32.mrb[0].mxu0
        %v7471 = vadd.f32 %v7356, %v7470
        %v7472 = vpop.f32.mrb[0].mxu0
        %7473 = vmatprep.mubr.f32.mxu0 0.0
        %v7474 = vand.u32 %v6736, 4294901760
        %7475 = vmatmul.mubr.f32.gmra.mrb[0].mxu0 %v7474
        %v7476 = vpop.f32.mrb[0].mxu0
        %v7477 = vadd.f32 %v7362, %v7476
        %v7478 = vpop.f32.mrb[0].mxu0
        %7479 = vmatprep.mubr.f32.mxu0 0.0
        %v7480 = vand.u32 %v6739, 4294901760
        %7481 = vmatmul.mubr.f32.gmra.mrb[0].mxu0 %v7480
        %v7482 = vpop.f32.mrb[0].mxu0
        %v7483 = vadd.f32 %v7368, %v7482
        %v7484 = vpop.f32.mrb[0].mxu0
        %7485 = vmatprep.mubr.f32.mxu0 0.0
        %v7486 = vand.u32 %v6742, 4294901760
        %7487 = vmatmul.mubr.f32.gmra.mrb[0].mxu0 %v7486
        %v7488 = vpop.f32.mrb[0].mxu0
        %v7489 = vadd.f32 %v7374, %v7488
        %v7490 = vpop.f32.mrb[0].mxu0
        %7491 = vmatprep.mubr.f32.mxu0 0.0
        %v7492 = vand.u32 %v6745, 4294901760
        %7493 = vmatmul.mubr.f32.gmra.mrb[0].mxu0 %v7492
        %v7494 = vpop.f32.mrb[0].mxu0
        %v7495 = vadd.f32 %v7380, %v7494
        %v7496 = vpop.f32.mrb[0].mxu0
        %7497 = vmatprep.mubr.f32.mxu0 0.0
        %v7498 = vand.u32 %v6748, 4294901760
        %7499 = vmatmul.mubr.f32.gmra.mrb[0].mxu0 %v7498
        %v7500 = vpop.f32.mrb[0].mxu0
        %v7501 = vadd.f32 %v7386, %v7500
        %v7502 = vpop.f32.mrb[0].mxu0
        %7503 = vmatprep.mubr.f32.mxu0 0.0
        %v7504 = vand.u32 %v6751, 4294901760
        %7505 = vmatmul.mubr.f32.gmra.mrb[0].mxu0 %v7504
        %v7506 = vpop.f32.mrb[0].mxu0
        %v7507 = vadd.f32 %v7392, %v7506
        %v7508 = vpop.f32.mrb[0].mxu0
        %7509 = vmatprep.mubr.f32.mxu0 0.0
        %v7510 = vand.u32 %v6754, 4294901760
        %7511 = vmatmul.mubr.f32.gmra.mrb[0].mxu0 %v7510
        %v7512 = vpop.f32.mrb[0].mxu0
        %v7513 = vadd.f32 %v7398, %v7512
        %v7514 = vpop.f32.mrb[0].mxu0
        %7515 = vdwg.mxu0
        %v7516 = vtanh.pop %v7471
        %v7517 = vtanh.pop %v7477
        %v7518 = vtanh.pop %v7483
        %v7519 = vtanh.pop %v7489
        %v7520 = vtanh.pop %v7495
        %v7521 = vtanh.pop %v7501
        %v7522 = vtanh.pop %v7507
        %v7523 = vtanh.pop %v7513
        %v7524 = vadd.f32 %v7516, %v190
        %v7525 = vadd.f32 %v7517, %v191
        %v7526 = vadd.f32 %v7518, %v192
        %v7527 = vadd.f32 %v7519, %v193
        %v7528 = vadd.f32 %v7520, %v194
        %v7529 = vadd.f32 %v7521, %v195
        %v7530 = vadd.f32 %v7522, %v196
        %v7531 = vadd.f32 %v7523, %v197
        %v7532 = vlaneseq
        %v7533 = vshrl.u32 %v7532, 7
        %v7534 = vsub.s32 1, %v7533
        %v7535 = vrot.slane %v199, %v7534
        %v7536 = vmul.f32 %v7524, %v7535
        %v7537 = vmul.f32 %v7525, %v7535
        %v7538 = vmul.f32 %v7526, %v7535
        %v7539 = vmul.f32 %v7527, %v7535
        %v7540 = vmul.f32 %v7528, %v7535
        %v7541 = vmul.f32 %v7529, %v7535
        %v7542 = vmul.f32 %v7530, %v7535
        %v7543 = vmul.f32 %v7531, %v7535
        %7544 = vadd.xlane.f32.xlu0 %v7536
        %v7545 = vpop.xlane.xlu0 %7544
        %7546 = vadd.xlane.f32.xlu0 %v7537
        %v7547 = vpop.xlane.xlu0 %7546
        %7548 = vadd.xlane.f32.xlu0 %v7538
        %v7549 = vpop.xlane.xlu0 %7548
        %7550 = vadd.xlane.f32.xlu0 %v7539
        %v7551 = vpop.xlane.xlu0 %7550
        %7552 = vadd.xlane.f32.xlu0 %v7540
        %v7553 = vpop.xlane.xlu0 %7552
        %7554 = vadd.xlane.f32.xlu0 %v7541
        %v7555 = vpop.xlane.xlu0 %7554
        %7556 = vadd.xlane.f32.xlu0 %v7542
        %v7557 = vpop.xlane.xlu0 %7556
        %7558 = vadd.xlane.f32.xlu0 %v7543
        %v7559 = vpop.xlane.xlu0 %7558
        %vm7560 = vcmask 7168
        %7561 = vst.msk [vmem:[%s180] sm:$0xff] %vm7560, %v7545
        %7562 = vst.msk [vmem:[%s180 + $0x8] sm:$0xff] %vm7560, %v7547
        %7563 = vst.msk [vmem:[%s180 + $0x10] sm:$0xff] %vm7560, %v7549
        %7564 = vst.msk [vmem:[%s180 + $0x18] sm:$0xff] %vm7560, %v7551
        %7565 = vst.msk [vmem:[%s180 + $0x20] sm:$0xff] %vm7560, %v7553
        %7566 = vst.msk [vmem:[%s180 + $0x28] sm:$0xff] %vm7560, %v7555
        %7567 = vst.msk [vmem:[%s180 + $0x30] sm:$0xff] %vm7560, %v7557
        %7568 = vst.msk [vmem:[%s180 + $0x38] sm:$0xff] %vm7560, %v7559
        %s7569 = smul.u32 8, %s17
        %p7570 = scmp.lt.s32.totalorder %s7569, 15
        %s7571 = scalar_select %p7570, %s7569, 15
        %s7572 = smul.addr %s7571, 8
        %s7573 = scalar_lea.vmem %s2, %s7572
        // Predicated region
        $region37: #{tpu_custom_call.1} parent=27 // pred_check
          %p7574 = pneg %p82
        $region38: #{tpu_custom_call.1} parent=27 // pred_check_branch
          %7576 = sbr.rel (%p7574) target = $region40
        $region39: #{tpu_custom_call.1} parent=27 // pred_region
          %s7577 = smul.u32 8, %s17
        $region40: #{tpu_custom_call.1} parent=27 // pred_fallthru
          _
      $region28: #{tpu_custom_call.1} parent=5 // pred_fallthru
        _
      %p7578 = scmp.le.s32.totalorder 2, %s12
      // Predicated region
      $region41: #{tpu_custom_call.1} parent=5 // pred_check
        %p7579 = pneg %p7578
      $region42: #{tpu_custom_call.1} parent=5 // pred_check_branch
        %7581 = sbr.rel (%p7579) target = $region44
      $region43: #{tpu_custom_call.1} parent=5 // pred_region
        %s7582 = ssub.s32 %s12, 2
        // Predicated region
        $region45: #{tpu_custom_call.1} parent=43 // pred_check
          %p7583 = pneg %p88
        $region46: #{tpu_custom_call.1} parent=43 // pred_check_branch
          %7585 = sbr.rel (%p7583) target = $region48
        $region47: #{tpu_custom_call.1} parent=43 // pred_region
          %s7586 = smul.u32 8, %s18
          %p7587 = scmp.lt.s32.totalorder %s7586, 15
          %s7588 = scalar_select %p7587, %s7586, 15
          %s7589 = smul.addr %s7588, 8
          %s7590 = scalar_lea.vmem %s2, %s7589
        $region48: #{tpu_custom_call.1} parent=43 // pred_fallthru
          _
      $region44: #{tpu_custom_call.1} parent=5 // pred_fallthru
        _
    $region6: #{tpu_custom_call.1} parent=1 // loop_footer
      %s16 = sadd.s32 1, %s12
    $region7: #{tpu_custom_call.1} parent=1 // loop_footer_branch
      %11 = sbr.rel target = $region3
    $region8: #{tpu_custom_call.1} parent=1 // loop_exit
      _
    %7591 = vsyncpa [#allocation3], 1
    %s7592 = scalar_lea.sflag [#allocation3], 1
    %7593 = vsyncpa %s7592, 1
    %7594 = vsyncpa [#allocation5], 1

</llo_original>
